<compile_context>
chip_gen: v7x
topology: tpu7x:2x2x1
jax: 0.10.0
libtpu: 0.0.40
codegen_flags: <defaults>
</compile_context>

<pallas_src>
import numpy as np

import jax
import jax.numpy as jnp
from jax.experimental import pallas as pl
from jax.experimental.pallas import tpu as pltpu


# --------------------------------------------------------------------------- #
# Fused kernel: one grid step == TB images; everything stays resident in VMEM.
# --------------------------------------------------------------------------- #
def _lenet_fused_kernel(
    xe_ref, xo_ref,                         # [12*TB, 140] bf16 row-im2col (even/odd conv1 rows)
    tw1e_ref, tw1o_ref, b1_ref,             # conv1 Toeplitz (even/odd output cols) + bias
    tw2e_ref, tw2o_ref, b2_ref,             # conv2 banded Toeplitz (even/odd output cols) + bias
    wfc1_ref, bfc1_ref, wfc2_ref, bfc2_ref,  # fc1 / fc2
    out_ref,                                # [TB, 128] f32 (lanes 10..127 are zero padding)
    z1_scr,                                 # VMEM [12*TB, 240] f32
    p1_scr,                                 # VMEM [12*TB, 240] bf16
    z2e_scr, z2o_scr,                       # VMEM [8*TB, 200] f32
    p2_scr,                                 # VMEM [4*TB, 200] bf16
):
    f32 = jnp.float32
    tb = out_ref.shape[0]

    # ---- conv1 (5x5, 1->20) + ReLU + 2x2 max-pool, fully folded ------------ #
    # Rows evaluated only at even / odd conv-output rows (xe / xo), columns
    # only at even / odd conv-output columns (tw1e / tw1o): the 2x2 pool is the
    # elementwise max of the four [12*TB, 240] matmul results (MXU, bf16xbf16->f32).
    xe = xe_ref[...]
    xo = xo_ref[...]
    z1_scr[...] = jnp.dot(xe, tw1e_ref[...], preferred_element_type=f32)
    z1_scr[...] = jnp.maximum(
        z1_scr[...], jnp.dot(xe, tw1o_ref[...], preferred_element_type=f32))
    z1_scr[...] = jnp.maximum(
        z1_scr[...], jnp.dot(xo, tw1e_ref[...], preferred_element_type=f32))
    z1_scr[...] = jnp.maximum(
        z1_scr[...], jnp.dot(xo, tw1o_ref[...], preferred_element_type=f32))
    p1_scr[...] = jnp.maximum(z1_scr[...] + b1_ref[...], 0.0).astype(p1_scr.dtype)

    # ---- conv2 (5x5, 20->50) + ReLU + 2x2 max-pool -------------------------- #
    # Banded Toeplitz over the 5 kernel rows; band i's LHS is a contiguous,
    # sublane-aligned slice because p1 rows are pooled-row-major.  Column
    # pooling is folded into tw2e/tw2o; row pooling acts on aligned TB blocks.
    for i in range(5):
        band = p1_scr[i * tb:(i + 8) * tb, :]                      # [8*TB, 240]
        ze = jnp.dot(band, tw2e_ref[i], preferred_element_type=f32)
        zo = jnp.dot(band, tw2o_ref[i], preferred_element_type=f32)
        if i == 0:
            z2e_scr[...] = ze
            z2o_scr[...] = zo
        else:
            z2e_scr[...] = z2e_scr[...] + ze
            z2o_scr[...] = z2o_scr[...] + zo
    # bias + ReLU + column (width) pooling; reuse z2e_scr for the result.
    z2e_scr[...] = jnp.maximum(
        jnp.maximum(z2e_scr[...], z2o_scr[...]) + b2_ref[...], 0.0)
    # row (height) pooling: conv2 output rows 2q / 2q+1 are TB-row blocks.
    for q in range(4):
        p2_scr[q * tb:(q + 1) * tb, :] = jnp.maximum(
            z2e_scr[(2 * q) * tb:(2 * q + 1) * tb, :],
            z2e_scr[(2 * q + 1) * tb:(2 * q + 2) * tb, :]).astype(p2_scr.dtype)

    # ---- fc1 (800 -> 500) + ReLU ------------------------------------------- #
    # K=800 as 4 aligned 200-wide chunks (one per pooled conv2 row); equivalent
    # to one [TB, 800] @ [800, 500] matmul without any lane relayout.  wfc1 is
    # host-permuted from torch's (c,h,w) flatten order to the kernel's order.
    h = jnp.dot(p2_scr[0:tb, :], wfc1_ref[0], preferred_element_type=f32)
    for q in range(1, 4):
        h = h + jnp.dot(p2_scr[q * tb:(q + 1) * tb, :], wfc1_ref[q],
                        preferred_element_type=f32)
    h = jnp.maximum(h + bfc1_ref[...], 0.0)                          # [TB, 500]
    # TODO(synk): nn.Dropout(0.5) is treated as identity (eval-mode semantics).

    # ---- fc2 (500 -> 10, lane-padded to 128) -------------------------------- #
    out_ref[...] = (jnp.dot(h.astype(jnp.bfloat16), wfc2_ref[...],
                            preferred_element_type=f32) + bfc2_ref[...])


# --------------------------------------------------------------------------- #
# One-time host-side parameter re-layout (torch shapes -> kernel operands).
# --------------------------------------------------------------------------- #
def prepare_operands(params):
    """Re-layout torch-shaped parameters into MXU-friendly bf16 operands."""
    w1 = np.asarray(params["w1"], np.float32)      # (20, 1, 5, 5)
    b1 = np.asarray(params["b1"], np.float32)      # (20,)
    w2 = np.asarray(params["w2"], np.float32)      # (50, 20, 5, 5)
    b2 = np.asarray(params["b2"], np.float32)      # (50,)
    wfc1 = np.asarray(params["wfc1"], np.float32)  # (500, 800)
    bfc1 = np.asarray(params["bfc1"], np.float32)  # (500,)
    wfc2 = np.asarray(params["wfc2"], np.float32)  # (10, 500)
    bfc2 = np.asarray(params["bfc2"], np.float32)  # (10,)

    # conv1: K-concatenated Toeplitz, one variant per output-column parity
    # (2x2-pool width pairs folded into the weights).
    #   tw1e[i*28 + (2*q1 + j), q1*20 + co] = w1[co, 0, i, j]    (ow = 2*q1)
    #   tw1o[i*28 + (2*q1+1+j), q1*20 + co] = w1[co, 0, i, j]    (ow = 2*q1+1)
    tw1e = np.zeros((140, 240), np.float32)
    tw1o = np.zeros((140, 240), np.float32)
    for i in range(5):
        for q1 in range(12):
            for j in range(5):
                tw1e[i * 28 + 2 * q1 + j, q1 * 20:(q1 + 1) * 20] = w1[:, 0, i, j]
                tw1o[i * 28 + 2 * q1 + 1 + j, q1 * 20:(q1 + 1) * 20] = w1[:, 0, i, j]
    b1_row = np.tile(b1, 12)[None, :]                          # [1, 240]

    # conv2: banded Toeplitz per kernel row, split by output-column parity.
    #   tw2e[i, (2*q2   + j)*20 + ci, q2*50 + co] = w2[co, ci, i, j]
    #   tw2o[i, (2*q2+1 + j)*20 + ci, q2*50 + co] = w2[co, ci, i, j]
    tw2e = np.zeros((5, 240, 200), np.float32)
    tw2o = np.zeros((5, 240, 200), np.float32)
    for i in range(5):
        for q2 in range(4):
            for j in range(5):
                blk = w2[:, :, i, j].T                         # [ci, co]
                pw_e = 2 * q2 + j
                pw_o = 2 * q2 + 1 + j
                tw2e[i, pw_e * 20:(pw_e + 1) * 20, q2 * 50:(q2 + 1) * 50] = blk
                tw2o[i, pw_o * 20:(pw_o + 1) * 20, q2 * 50:(q2 + 1) * 50] = blk
    b2_row = np.tile(b2, 4)[None, :]                           # [1, 200]

    # fc1: split per pooled conv2 row q and permuted from torch's (c, h, w)
    # flatten order into the kernel's (w, c) column order:
    #   wfc1p[q, q2*50 + co, f] = wfc1[f, co*16 + 4*q + q2]
    wfc1p = np.ascontiguousarray(
        np.transpose(wfc1.reshape(500, 50, 4, 4), (2, 3, 1, 0))
    ).reshape(4, 200, 500)
    bfc1_row = bfc1[None, :]                                   # [1, 500]

    # fc2: (in, out) layout, output lanes zero-padded to 128.  Keep the padding
    # exactly zero so out[:, :10] slicing stays valid after the bf16 cast.
    wfc2p = np.zeros((500, 128), np.float32)
    wfc2p[:, :10] = wfc2.T
    bfc2_row = np.zeros((1, 128), np.float32)
    bfc2_row[0, :10] = bfc2

    bf16, f32 = jnp.bfloat16, jnp.float32
    return (jnp.asarray(tw1e, bf16), jnp.asarray(tw1o, bf16),
            jnp.asarray(b1_row, f32),
            jnp.asarray(tw2e, bf16), jnp.asarray(tw2o, bf16),
            jnp.asarray(b2_row, f32),
            jnp.asarray(wfc1p, bf16), jnp.asarray(bfc1_row, f32),
            jnp.asarray(wfc2p, bf16), jnp.asarray(bfc2_row, f32))


# --------------------------------------------------------------------------- #
# Wrapper
# --------------------------------------------------------------------------- #
def _pinned_spec(shape):
    nd = len(shape)
    return pl.BlockSpec(tuple(shape), lambda i: (0,) * nd)    # resident weights


def lenet_forward(operands, x_nchw, *, tb=16):
    """Fused LeNet forward. x_nchw: [N, 1, 28, 28] float32 -> [N, 10] logits."""
    n, c, hh, ww = x_nchw.shape
    assert (c, hh, ww) == (1, 28, 28), "LeNet expects [N, 1, 28, 28] inputs"
    assert tb % 16 == 0, "tb must be a multiple of 16 (bf16 sublane tile)"
    g = pl.cdiv(n, tb)
    n_pad = g * tb

    # NCHW with C == 1: dropping the channel axis is a pure reshape.
    x = x_nchw.reshape(n, 28, 28).astype(jnp.float32)
    if n_pad != n:
        x = jnp.pad(x, ((0, n_pad - n), (0, 0), (0, 0)))

    # Row-im2col, K-concatenated over the 5 kernel rows, evaluated only at even
    # (xe) / odd (xo) conv1 output rows.  Rows ordered (step, pooled_row p,
    # image-in-step b) so the kernel's activations come out pooled-row-major.
    rows = 2 * np.arange(12)[:, None] + np.arange(5)[None, :]       # [12, 5]

    def pack(row_idx):
        t = x[:, row_idx, :]                                        # [n_pad,12,5,28]
        t = t.reshape(g, tb, 12, 140)
        t = jnp.transpose(t, (0, 2, 1, 3))                          # (g, p, b, k)
        return t.reshape(g * 12 * tb, 140).astype(jnp.bfloat16)

    xe = pack(rows)
    xo = pack(rows + 1)

    in_specs = [pl.BlockSpec((12 * tb, 140), lambda i: (i, 0)),
                pl.BlockSpec((12 * tb, 140), lambda i: (i, 0))]
    in_specs += [_pinned_spec(op.shape) for op in operands]

    flops = 2 * n_pad * (4 * 12 * 140 * 240 + 10 * 8 * 240 * 200
                         + 4 * 200 * 500 + 500 * 128)
    bytes_accessed = (sum(int(op.size) * op.dtype.itemsize for op in operands)
                      + 2 * int(xe.size) * xe.dtype.itemsize + n_pad * 128 * 4)

    out = pl.pallas_call(
        _lenet_fused_kernel,
        out_shape=jax.ShapeDtypeStruct((n_pad, 128), jnp.float32),
        grid=(g,),
        in_specs=in_specs,
        out_specs=pl.BlockSpec((tb, 128), lambda i: (i, 0)),
        scratch_shapes=[
            pltpu.VMEM((12 * tb, 240), jnp.float32),   # conv1 4-way max accumulator
            pltpu.VMEM((12 * tb, 240), jnp.bfloat16),  # pooled conv1 / conv2 LHS
            pltpu.VMEM((8 * tb, 200), jnp.float32),    # conv2 even-col accumulator
            pltpu.VMEM((8 * tb, 200), jnp.float32),    # conv2 odd-col accumulator
            pltpu.VMEM((4 * tb, 200), jnp.bfloat16),   # pooled conv2 / fc1 LHS
        ],
        compiler_params=pltpu.CompilerParams(
            dimension_semantics=("parallel",),
            vmem_limit_bytes=32 * 1024 * 1024,
        ),
        cost_estimate=pl.CostEstimate(flops=flops, transcendentals=0,
                                      bytes_accessed=bytes_accessed),
    )(xe, xo, *operands)

    # Lane-padded kernel output -> logical [N, 10] logits.
    return out[:n, :10]


# --------------------------------------------------------------------------- #
# Synthetic torch-layout parameters + pure-JAX reference (for validation).
# --------------------------------------------------------------------------- #
def init_params(key):
    ks = jax.random.split(key, 8)
    s = 0.1
    return {
        "w1": jax.random.normal(ks[0], (20, 1, 5, 5), jnp.float32) * s,   # conv1.weight
        "b1": jax.random.normal(ks[1], (20,), jnp.float32) * s,           # conv1.bias
        "w2": jax.random.normal(ks[2], (50, 20, 5, 5), jnp.float32) * s,  # conv2.weight
        "b2": jax.random.normal(ks[3], (50,), jnp.float32) * s,           # conv2.bias
        "wfc1": jax.random.normal(ks[4], (500, 800), jnp.float32) * s,    # fc1.weight
        "bfc1": jax.random.normal(ks[5], (500,), jnp.float32) * s,        # fc1.bias
        "wfc2": jax.random.normal(ks[6], (10, 500), jnp.float32) * s,     # fc2.weight
        "bfc2": jax.random.normal(ks[7], (10,), jnp.float32) * s,         # fc2.bias
    }


def _ref_maxpool2x2(y_nchw):
    return jnp.maximum(
        jnp.maximum(y_nchw[:, :, 0::2, 0::2], y_nchw[:, :, 0::2, 1::2]),
        jnp.maximum(y_nchw[:, :, 1::2, 0::2], y_nchw[:, :, 1::2, 1::2]))


def reference_forward(params, x_nchw):
    """Pure-JAX replica of the PyTorch module (validation only)."""
    dn = ("NCHW", "OIHW", "NCHW")
    y = jax.lax.conv_general_dilated(x_nchw, params["w1"], (1, 1), "VALID",
                                     dimension_numbers=dn)
    y = jax.nn.relu(y + params["b1"][None, :, None, None])
    y = _ref_maxpool2x2(y)
    y = jax.lax.conv_general_dilated(y, params["w2"], (1, 1), "VALID",
                                     dimension_numbers=dn)
    y = jax.nn.relu(y + params["b2"][None, :, None, None])
    y = _ref_maxpool2x2(y)
    y = y.reshape(y.shape[0], 4 * 4 * 50)                 # torch .view(-1, 800)
    y = jax.nn.relu(y @ params["wfc1"].T + params["bfc1"])
    y = y @ params["wfc2"].T + params["bfc2"]             # dropout == identity (eval)
    return y


if __name__ == "__main__":
    key = jax.random.PRNGKey(0)
    pkey, xkey = jax.random.split(key)
    params = init_params(pkey)
    # 28x28 single-channel input is forced by the 4*4*50 flatten.  Batch 32 =
    # two parallel grid steps of TB=16 (exercises batching + both v7x cores).
    x = jax.random.normal(xkey, (32, 1, 28, 28), jnp.float32)

    operands = prepare_operands(params)                   # one-time host prep
    out = jax.jit(lenet_forward)(operands, x)
    out = jax.block_until_ready(out)
    assert out.shape == (32, 10) and out.dtype == jnp.float32

    # Reference fed the same bf16-rounded weights / input the kernel consumes
    # (biases and accumulation stay f32 in both) -> validates layout/indexing.
    def _q(a):
        return jnp.asarray(a, jnp.bfloat16).astype(jnp.float32)

    params_q = dict(params)
    for k in ("w1", "w2", "wfc1", "wfc2"):
        params_q[k] = _q(params[k])
    ref = jax.block_until_ready(jax.jit(reference_forward)(params_q, _q(x)))
    np.testing.assert_allclose(np.asarray(out), np.asarray(ref),
                               rtol=5e-2, atol=7e-2)
    print("KERNEL_OK")
</pallas_src>

<mosaic_0001>
module attributes {stable_mosaic.version = 11 : i64} {
  func.func @_lenet_fused_kernel(%arg0: i32, %arg1: memref<192x140xbf16, #tpu.memory_space<vmem>>, %arg2: memref<192x140xbf16, #tpu.memory_space<vmem>>, %arg3: memref<140x240xbf16, #tpu.memory_space<vmem>>, %arg4: memref<140x240xbf16, #tpu.memory_space<vmem>>, %arg5: memref<1x240xf32, #tpu.memory_space<vmem>>, %arg6: memref<5x240x200xbf16, #tpu.memory_space<vmem>>, %arg7: memref<5x240x200xbf16, #tpu.memory_space<vmem>>, %arg8: memref<1x200xf32, #tpu.memory_space<vmem>>, %arg9: memref<4x200x500xbf16, #tpu.memory_space<vmem>>, %arg10: memref<1x500xf32, #tpu.memory_space<vmem>>, %arg11: memref<500x128xbf16, #tpu.memory_space<vmem>>, %arg12: memref<1x128xf32, #tpu.memory_space<vmem>>, %arg13: memref<16x128xf32, #tpu.memory_space<vmem>>, %arg14: memref<192x240xf32, #tpu.memory_space<vmem>>, %arg15: memref<192x240xbf16, #tpu.memory_space<vmem>>, %arg16: memref<128x200xf32, #tpu.memory_space<vmem>>, %arg17: memref<128x200xf32, #tpu.memory_space<vmem>>, %arg18: memref<64x200xbf16, #tpu.memory_space<vmem>>) attributes {dimension_semantics = [#tpu.dimension_semantics<parallel>], iteration_bounds = array<i64: 2>, scalar_prefetch = 0 : i64, scratch_operands = 5 : i64, tpu.core_type = #tpu.core_type<tc>, window_params = [{transform_indices = @transform_0, window_bounds = array<i64: 192, 140>}, {transform_indices = @transform_1, window_bounds = array<i64: 192, 140>}, {pipeline_mode = #tpu.pipeline_mode<synchronous>, transform_indices = @transform_2, window_bounds = array<i64: 140, 240>}, {pipeline_mode = #tpu.pipeline_mode<synchronous>, transform_indices = @transform_3, window_bounds = array<i64: 140, 240>}, {pipeline_mode = #tpu.pipeline_mode<synchronous>, transform_indices = @transform_4, window_bounds = array<i64: 1, 240>}, {pipeline_mode = #tpu.pipeline_mode<synchronous>, transform_indices = @transform_5, window_bounds = array<i64: 5, 240, 200>}, {pipeline_mode = #tpu.pipeline_mode<synchronous>, transform_indices = @transform_6, window_bounds = array<i64: 5, 240, 200>}, {pipeline_mode = #tpu.pipeline_mode<synchronous>, transform_indices = @transform_7, window_bounds = array<i64: 1, 200>}, {pipeline_mode = #tpu.pipeline_mode<synchronous>, transform_indices = @transform_8, window_bounds = array<i64: 4, 200, 500>}, {pipeline_mode = #tpu.pipeline_mode<synchronous>, transform_indices = @transform_9, window_bounds = array<i64: 1, 500>}, {pipeline_mode = #tpu.pipeline_mode<synchronous>, transform_indices = @transform_10, window_bounds = array<i64: 500, 128>}, {pipeline_mode = #tpu.pipeline_mode<synchronous>, transform_indices = @transform_11, window_bounds = array<i64: 1, 128>}, {transform_indices = @transform_12, window_bounds = array<i64: 16, 128>}]} {
    %c0 = arith.constant 0 : index
    %c0_0 = arith.constant 0 : index
    %0 = vector.load %arg1[%c0, %c0_0] : memref<192x140xbf16, #tpu.memory_space<vmem>>, vector<192x140xbf16>
    %c0_1 = arith.constant 0 : index
    %c0_2 = arith.constant 0 : index
    %1 = vector.load %arg2[%c0_1, %c0_2] : memref<192x140xbf16, #tpu.memory_space<vmem>>, vector<192x140xbf16>
    %c0_3 = arith.constant 0 : index
    %c0_4 = arith.constant 0 : index
    %2 = vector.load %arg3[%c0_3, %c0_4] : memref<140x240xbf16, #tpu.memory_space<vmem>>, vector<140x240xbf16>
    %cst = arith.constant dense<0.000000e+00> : vector<192x240xf32>
    %3 = tpu.matmul %0, %2, %cst {dimension_numbers = #tpu.dot_dimension_numbers<[1], [0], [0], [1], [0, 0, 1, 1], [], []>} : vector<192x140xbf16>, vector<140x240xbf16>, vector<192x240xf32> -> vector<192x240xf32>
    %c0_5 = arith.constant 0 : index
    %c0_6 = arith.constant 0 : index
    %4 = vector.load %arg14[%c0_5, %c0_6] : memref<192x240xf32, #tpu.memory_space<vmem>>, vector<192x240xf32>
    tpu.vector_store %arg14[%c0_5, %c0_6], %3 {strides = array<i32>} : memref<192x240xf32, #tpu.memory_space<vmem>>, vector<192x240xf32>,
    %c0_7 = arith.constant 0 : index
    %c0_8 = arith.constant 0 : index
    %5 = vector.load %arg14[%c0_7, %c0_8] : memref<192x240xf32, #tpu.memory_space<vmem>>, vector<192x240xf32>
    %c0_9 = arith.constant 0 : index
    %c0_10 = arith.constant 0 : index
    %6 = vector.load %arg4[%c0_9, %c0_10] : memref<140x240xbf16, #tpu.memory_space<vmem>>, vector<140x240xbf16>
    %cst_11 = arith.constant dense<0.000000e+00> : vector<192x240xf32>
    %7 = tpu.matmul %0, %6, %cst_11 {dimension_numbers = #tpu.dot_dimension_numbers<[1], [0], [0], [1], [0, 0, 1, 1], [], []>} : vector<192x140xbf16>, vector<140x240xbf16>, vector<192x240xf32> -> vector<192x240xf32>
    %8 = arith.maximumf %5, %7 : vector<192x240xf32>
    %c0_12 = arith.constant 0 : index
    %c0_13 = arith.constant 0 : index
    %9 = vector.load %arg14[%c0_12, %c0_13] : memref<192x240xf32, #tpu.memory_space<vmem>>, vector<192x240xf32>
    tpu.vector_store %arg14[%c0_12, %c0_13], %8 {strides = array<i32>} : memref<192x240xf32, #tpu.memory_space<vmem>>, vector<192x240xf32>,
    %c0_14 = arith.constant 0 : index
    %c0_15 = arith.constant 0 : index
    %10 = vector.load %arg14[%c0_14, %c0_15] : memref<192x240xf32, #tpu.memory_space<vmem>>, vector<192x240xf32>
    %c0_16 = arith.constant 0 : index
    %c0_17 = arith.constant 0 : index
    %11 = vector.load %arg3[%c0_16, %c0_17] : memref<140x240xbf16, #tpu.memory_space<vmem>>, vector<140x240xbf16>
    %cst_18 = arith.constant dense<0.000000e+00> : vector<192x240xf32>
    %12 = tpu.matmul %1, %11, %cst_18 {dimension_numbers = #tpu.dot_dimension_numbers<[1], [0], [0], [1], [0, 0, 1, 1], [], []>} : vector<192x140xbf16>, vector<140x240xbf16>, vector<192x240xf32> -> vector<192x240xf32>
    %13 = arith.maximumf %10, %12 : vector<192x240xf32>
    %c0_19 = arith.constant 0 : index
    %c0_20 = arith.constant 0 : index
    %14 = vector.load %arg14[%c0_19, %c0_20] : memref<192x240xf32, #tpu.memory_space<vmem>>, vector<192x240xf32>
    tpu.vector_store %arg14[%c0_19, %c0_20], %13 {strides = array<i32>} : memref<192x240xf32, #tpu.memory_space<vmem>>, vector<192x240xf32>,
    %c0_21 = arith.constant 0 : index
    %c0_22 = arith.constant 0 : index
    %15 = vector.load %arg14[%c0_21, %c0_22] : memref<192x240xf32, #tpu.memory_space<vmem>>, vector<192x240xf32>
    %c0_23 = arith.constant 0 : index
    %c0_24 = arith.constant 0 : index
    %16 = vector.load %arg4[%c0_23, %c0_24] : memref<140x240xbf16, #tpu.memory_space<vmem>>, vector<140x240xbf16>
    %cst_25 = arith.constant dense<0.000000e+00> : vector<192x240xf32>
    %17 = tpu.matmul %1, %16, %cst_25 {dimension_numbers = #tpu.dot_dimension_numbers<[1], [0], [0], [1], [0, 0, 1, 1], [], []>} : vector<192x140xbf16>, vector<140x240xbf16>, vector<192x240xf32> -> vector<192x240xf32>
    %18 = arith.maximumf %15, %17 : vector<192x240xf32>
    %c0_26 = arith.constant 0 : index
    %c0_27 = arith.constant 0 : index
    %19 = vector.load %arg14[%c0_26, %c0_27] : memref<192x240xf32, #tpu.memory_space<vmem>>, vector<192x240xf32>
    tpu.vector_store %arg14[%c0_26, %c0_27], %18 {strides = array<i32>} : memref<192x240xf32, #tpu.memory_space<vmem>>, vector<192x240xf32>,
    %c0_28 = arith.constant 0 : index
    %c0_29 = arith.constant 0 : index
    %20 = vector.load %arg14[%c0_28, %c0_29] : memref<192x240xf32, #tpu.memory_space<vmem>>, vector<192x240xf32>
    %c0_30 = arith.constant 0 : index
    %c0_31 = arith.constant 0 : index
    %21 = vector.load %arg5[%c0_30, %c0_31] : memref<1x240xf32, #tpu.memory_space<vmem>>, vector<1x240xf32>
    %22 = vector.broadcast %21 : vector<1x240xf32> to vector<192x240xf32>
    %23 = arith.addf %20, %22 : vector<192x240xf32>
    %cst_32 = arith.constant 0.000000e+00 : f32
    %24 = vector.broadcast %cst_32 : f32 to vector<192x240xf32>
    %25 = arith.maximumf %23, %24 : vector<192x240xf32>
    %26 = arith.truncf %25 : vector<192x240xf32> to vector<192x240xbf16>
    %c0_33 = arith.constant 0 : index
    %c0_34 = arith.constant 0 : index
    %27 = vector.load %arg15[%c0_33, %c0_34] : memref<192x240xbf16, #tpu.memory_space<vmem>>, vector<192x240xbf16>
    tpu.vector_store %arg15[%c0_33, %c0_34], %26 {strides = array<i32>} : memref<192x240xbf16, #tpu.memory_space<vmem>>, vector<192x240xbf16>,
    %c0_35 = arith.constant 0 : index
    %c0_36 = arith.constant 0 : index
    %28 = vector.load %arg15[%c0_35, %c0_36] : memref<192x240xbf16, #tpu.memory_space<vmem>>, vector<128x240xbf16>
    %c0_37 = arith.constant 0 : index
    %c0_38 = arith.constant 0 : index
    %c0_39 = arith.constant 0 : index
    %29 = vector.load %arg6[%c0_37, %c0_38, %c0_39] : memref<5x240x200xbf16, #tpu.memory_space<vmem>>, vector<1x240x200xbf16>
    %30 = vector.shape_cast %29 : vector<1x240x200xbf16> to vector<240x200xbf16>
    %cst_40 = arith.constant dense<0.000000e+00> : vector<128x200xf32>
    %31 = tpu.matmul %28, %30, %cst_40 {dimension_numbers = #tpu.dot_dimension_numbers<[1], [0], [0], [1], [0, 0, 1, 1], [], []>} : vector<128x240xbf16>, vector<240x200xbf16>, vector<128x200xf32> -> vector<128x200xf32>
    %c0_41 = arith.constant 0 : index
    %c0_42 = arith.constant 0 : index
    %c0_43 = arith.constant 0 : index
    %32 = vector.load %arg7[%c0_41, %c0_42, %c0_43] : memref<5x240x200xbf16, #tpu.memory_space<vmem>>, vector<1x240x200xbf16>
    %33 = vector.shape_cast %32 : vector<1x240x200xbf16> to vector<240x200xbf16>
    %cst_44 = arith.constant dense<0.000000e+00> : vector<128x200xf32>
    %34 = tpu.matmul %28, %33, %cst_44 {dimension_numbers = #tpu.dot_dimension_numbers<[1], [0], [0], [1], [0, 0, 1, 1], [], []>} : vector<128x240xbf16>, vector<240x200xbf16>, vector<128x200xf32> -> vector<128x200xf32>
    %c0_45 = arith.constant 0 : index
    %c0_46 = arith.constant 0 : index
    %35 = vector.load %arg16[%c0_45, %c0_46] : memref<128x200xf32, #tpu.memory_space<vmem>>, vector<128x200xf32>
    tpu.vector_store %arg16[%c0_45, %c0_46], %31 {strides = array<i32>} : memref<128x200xf32, #tpu.memory_space<vmem>>, vector<128x200xf32>,
    %c0_47 = arith.constant 0 : index
    %c0_48 = arith.constant 0 : index
    %36 = vector.load %arg17[%c0_47, %c0_48] : memref<128x200xf32, #tpu.memory_space<vmem>>, vector<128x200xf32>
    tpu.vector_store %arg17[%c0_47, %c0_48], %34 {strides = array<i32>} : memref<128x200xf32, #tpu.memory_space<vmem>>, vector<128x200xf32>,
    %c16 = arith.constant 16 : index
    %c0_49 = arith.constant 0 : index
    %37 = vector.load %arg15[%c16, %c0_49] : memref<192x240xbf16, #tpu.memory_space<vmem>>, vector<128x240xbf16>
    %c1 = arith.constant 1 : index
    %c0_50 = arith.constant 0 : index
    %c0_51 = arith.constant 0 : index
    %38 = vector.load %arg6[%c1, %c0_50, %c0_51] : memref<5x240x200xbf16, #tpu.memory_space<vmem>>, vector<1x240x200xbf16>
    %39 = vector.shape_cast %38 : vector<1x240x200xbf16> to vector<240x200xbf16>
    %cst_52 = arith.constant dense<0.000000e+00> : vector<128x200xf32>
    %40 = tpu.matmul %37, %39, %cst_52 {dimension_numbers = #tpu.dot_dimension_numbers<[1], [0], [0], [1], [0, 0, 1, 1], [], []>} : vector<128x240xbf16>, vector<240x200xbf16>, vector<128x200xf32> -> vector<128x200xf32>
    %c1_53 = arith.constant 1 : index
    %c0_54 = arith.constant 0 : index
    %c0_55 = arith.constant 0 : index
    %41 = vector.load %arg7[%c1_53, %c0_54, %c0_55] : memref<5x240x200xbf16, #tpu.memory_space<vmem>>, vector<1x240x200xbf16>
    %42 = vector.shape_cast %41 : vector<1x240x200xbf16> to vector<240x200xbf16>
    %cst_56 = arith.constant dense<0.000000e+00> : vector<128x200xf32>
    %43 = tpu.matmul %37, %42, %cst_56 {dimension_numbers = #tpu.dot_dimension_numbers<[1], [0], [0], [1], [0, 0, 1, 1], [], []>} : vector<128x240xbf16>, vector<240x200xbf16>, vector<128x200xf32> -> vector<128x200xf32>
    %c0_57 = arith.constant 0 : index
    %c0_58 = arith.constant 0 : index
    %44 = vector.load %arg16[%c0_57, %c0_58] : memref<128x200xf32, #tpu.memory_space<vmem>>, vector<128x200xf32>
    %45 = arith.addf %44, %40 : vector<128x200xf32>
    %c0_59 = arith.constant 0 : index
    %c0_60 = arith.constant 0 : index
    %46 = vector.load %arg16[%c0_59, %c0_60] : memref<128x200xf32, #tpu.memory_space<vmem>>, vector<128x200xf32>
    tpu.vector_store %arg16[%c0_59, %c0_60], %45 {strides = array<i32>} : memref<128x200xf32, #tpu.memory_space<vmem>>, vector<128x200xf32>,
    %c0_61 = arith.constant 0 : index
    %c0_62 = arith.constant 0 : index
    %47 = vector.load %arg17[%c0_61, %c0_62] : memref<128x200xf32, #tpu.memory_space<vmem>>, vector<128x200xf32>
    %48 = arith.addf %47, %43 : vector<128x200xf32>
    %c0_63 = arith.constant 0 : index
    %c0_64 = arith.constant 0 : index
    %49 = vector.load %arg17[%c0_63, %c0_64] : memref<128x200xf32, #tpu.memory_space<vmem>>, vector<128x200xf32>
    tpu.vector_store %arg17[%c0_63, %c0_64], %48 {strides = array<i32>} : memref<128x200xf32, #tpu.memory_space<vmem>>, vector<128x200xf32>,
    %c32 = arith.constant 32 : index
    %c0_65 = arith.constant 0 : index
    %50 = vector.load %arg15[%c32, %c0_65] : memref<192x240xbf16, #tpu.memory_space<vmem>>, vector<128x240xbf16>
    %c2 = arith.constant 2 : index
    %c0_66 = arith.constant 0 : index
    %c0_67 = arith.constant 0 : index
    %51 = vector.load %arg6[%c2, %c0_66, %c0_67] : memref<5x240x200xbf16, #tpu.memory_space<vmem>>, vector<1x240x200xbf16>
    %52 = vector.shape_cast %51 : vector<1x240x200xbf16> to vector<240x200xbf16>
    %cst_68 = arith.constant dense<0.000000e+00> : vector<128x200xf32>
    %53 = tpu.matmul %50, %52, %cst_68 {dimension_numbers = #tpu.dot_dimension_numbers<[1], [0], [0], [1], [0, 0, 1, 1], [], []>} : vector<128x240xbf16>, vector<240x200xbf16>, vector<128x200xf32> -> vector<128x200xf32>
    %c2_69 = arith.constant 2 : index
    %c0_70 = arith.constant 0 : index
    %c0_71 = arith.constant 0 : index
    %54 = vector.load %arg7[%c2_69, %c0_70, %c0_71] : memref<5x240x200xbf16, #tpu.memory_space<vmem>>, vector<1x240x200xbf16>
    %55 = vector.shape_cast %54 : vector<1x240x200xbf16> to vector<240x200xbf16>
    %cst_72 = arith.constant dense<0.000000e+00> : vector<128x200xf32>
    %56 = tpu.matmul %50, %55, %cst_72 {dimension_numbers = #tpu.dot_dimension_numbers<[1], [0], [0], [1], [0, 0, 1, 1], [], []>} : vector<128x240xbf16>, vector<240x200xbf16>, vector<128x200xf32> -> vector<128x200xf32>
    %c0_73 = arith.constant 0 : index
    %c0_74 = arith.constant 0 : index
    %57 = vector.load %arg16[%c0_73, %c0_74] : memref<128x200xf32, #tpu.memory_space<vmem>>, vector<128x200xf32>
    %58 = arith.addf %57, %53 : vector<128x200xf32>
    %c0_75 = arith.constant 0 : index
    %c0_76 = arith.constant 0 : index
    %59 = vector.load %arg16[%c0_75, %c0_76] : memref<128x200xf32, #tpu.memory_space<vmem>>, vector<128x200xf32>
    tpu.vector_store %arg16[%c0_75, %c0_76], %58 {strides = array<i32>} : memref<128x200xf32, #tpu.memory_space<vmem>>, vector<128x200xf32>,
    %c0_77 = arith.constant 0 : index
    %c0_78 = arith.constant 0 : index
    %60 = vector.load %arg17[%c0_77, %c0_78] : memref<128x200xf32, #tpu.memory_space<vmem>>, vector<128x200xf32>
    %61 = arith.addf %60, %56 : vector<128x200xf32>
    %c0_79 = arith.constant 0 : index
    %c0_80 = arith.constant 0 : index
    %62 = vector.load %arg17[%c0_79, %c0_80] : memref<128x200xf32, #tpu.memory_space<vmem>>, vector<128x200xf32>
    tpu.vector_store %arg17[%c0_79, %c0_80], %61 {strides = array<i32>} : memref<128x200xf32, #tpu.memory_space<vmem>>, vector<128x200xf32>,
    %c48 = arith.constant 48 : index
    %c0_81 = arith.constant 0 : index
    %63 = vector.load %arg15[%c48, %c0_81] : memref<192x240xbf16, #tpu.memory_space<vmem>>, vector<128x240xbf16>
    %c3 = arith.constant 3 : index
    %c0_82 = arith.constant 0 : index
    %c0_83 = arith.constant 0 : index
    %64 = vector.load %arg6[%c3, %c0_82, %c0_83] : memref<5x240x200xbf16, #tpu.memory_space<vmem>>, vector<1x240x200xbf16>
    %65 = vector.shape_cast %64 : vector<1x240x200xbf16> to vector<240x200xbf16>
    %cst_84 = arith.constant dense<0.000000e+00> : vector<128x200xf32>
    %66 = tpu.matmul %63, %65, %cst_84 {dimension_numbers = #tpu.dot_dimension_numbers<[1], [0], [0], [1], [0, 0, 1, 1], [], []>} : vector<128x240xbf16>, vector<240x200xbf16>, vector<128x200xf32> -> vector<128x200xf32>
    %c3_85 = arith.constant 3 : index
    %c0_86 = arith.constant 0 : index
    %c0_87 = arith.constant 0 : index
    %67 = vector.load %arg7[%c3_85, %c0_86, %c0_87] : memref<5x240x200xbf16, #tpu.memory_space<vmem>>, vector<1x240x200xbf16>
    %68 = vector.shape_cast %67 : vector<1x240x200xbf16> to vector<240x200xbf16>
    %cst_88 = arith.constant dense<0.000000e+00> : vector<128x200xf32>
    %69 = tpu.matmul %63, %68, %cst_88 {dimension_numbers = #tpu.dot_dimension_numbers<[1], [0], [0], [1], [0, 0, 1, 1], [], []>} : vector<128x240xbf16>, vector<240x200xbf16>, vector<128x200xf32> -> vector<128x200xf32>
    %c0_89 = arith.constant 0 : index
    %c0_90 = arith.constant 0 : index
    %70 = vector.load %arg16[%c0_89, %c0_90] : memref<128x200xf32, #tpu.memory_space<vmem>>, vector<128x200xf32>
    %71 = arith.addf %70, %66 : vector<128x200xf32>
    %c0_91 = arith.constant 0 : index
    %c0_92 = arith.constant 0 : index
    %72 = vector.load %arg16[%c0_91, %c0_92] : memref<128x200xf32, #tpu.memory_space<vmem>>, vector<128x200xf32>
    tpu.vector_store %arg16[%c0_91, %c0_92], %71 {strides = array<i32>} : memref<128x200xf32, #tpu.memory_space<vmem>>, vector<128x200xf32>,
    %c0_93 = arith.constant 0 : index
    %c0_94 = arith.constant 0 : index
    %73 = vector.load %arg17[%c0_93, %c0_94] : memref<128x200xf32, #tpu.memory_space<vmem>>, vector<128x200xf32>
    %74 = arith.addf %73, %69 : vector<128x200xf32>
    %c0_95 = arith.constant 0 : index
    %c0_96 = arith.constant 0 : index
    %75 = vector.load %arg17[%c0_95, %c0_96] : memref<128x200xf32, #tpu.memory_space<vmem>>, vector<128x200xf32>
    tpu.vector_store %arg17[%c0_95, %c0_96], %74 {strides = array<i32>} : memref<128x200xf32, #tpu.memory_space<vmem>>, vector<128x200xf32>,
    %c64 = arith.constant 64 : index
    %c0_97 = arith.constant 0 : index
    %76 = vector.load %arg15[%c64, %c0_97] : memref<192x240xbf16, #tpu.memory_space<vmem>>, vector<128x240xbf16>
    %c4 = arith.constant 4 : index
    %c0_98 = arith.constant 0 : index
    %c0_99 = arith.constant 0 : index
    %77 = vector.load %arg6[%c4, %c0_98, %c0_99] : memref<5x240x200xbf16, #tpu.memory_space<vmem>>, vector<1x240x200xbf16>
    %78 = vector.shape_cast %77 : vector<1x240x200xbf16> to vector<240x200xbf16>
    %cst_100 = arith.constant dense<0.000000e+00> : vector<128x200xf32>
    %79 = tpu.matmul %76, %78, %cst_100 {dimension_numbers = #tpu.dot_dimension_numbers<[1], [0], [0], [1], [0, 0, 1, 1], [], []>} : vector<128x240xbf16>, vector<240x200xbf16>, vector<128x200xf32> -> vector<128x200xf32>
    %c4_101 = arith.constant 4 : index
    %c0_102 = arith.constant 0 : index
    %c0_103 = arith.constant 0 : index
    %80 = vector.load %arg7[%c4_101, %c0_102, %c0_103] : memref<5x240x200xbf16, #tpu.memory_space<vmem>>, vector<1x240x200xbf16>
    %81 = vector.shape_cast %80 : vector<1x240x200xbf16> to vector<240x200xbf16>
    %cst_104 = arith.constant dense<0.000000e+00> : vector<128x200xf32>
    %82 = tpu.matmul %76, %81, %cst_104 {dimension_numbers = #tpu.dot_dimension_numbers<[1], [0], [0], [1], [0, 0, 1, 1], [], []>} : vector<128x240xbf16>, vector<240x200xbf16>, vector<128x200xf32> -> vector<128x200xf32>
    %c0_105 = arith.constant 0 : index
    %c0_106 = arith.constant 0 : index
    %83 = vector.load %arg16[%c0_105, %c0_106] : memref<128x200xf32, #tpu.memory_space<vmem>>, vector<128x200xf32>
    %84 = arith.addf %83, %79 : vector<128x200xf32>
    %c0_107 = arith.constant 0 : index
    %c0_108 = arith.constant 0 : index
    %85 = vector.load %arg16[%c0_107, %c0_108] : memref<128x200xf32, #tpu.memory_space<vmem>>, vector<128x200xf32>
    tpu.vector_store %arg16[%c0_107, %c0_108], %84 {strides = array<i32>} : memref<128x200xf32, #tpu.memory_space<vmem>>, vector<128x200xf32>,
    %c0_109 = arith.constant 0 : index
    %c0_110 = arith.constant 0 : index
    %86 = vector.load %arg17[%c0_109, %c0_110] : memref<128x200xf32, #tpu.memory_space<vmem>>, vector<128x200xf32>
    %87 = arith.addf %86, %82 : vector<128x200xf32>
    %c0_111 = arith.constant 0 : index
    %c0_112 = arith.constant 0 : index
    %88 = vector.load %arg17[%c0_111, %c0_112] : memref<128x200xf32, #tpu.memory_space<vmem>>, vector<128x200xf32>
    tpu.vector_store %arg17[%c0_111, %c0_112], %87 {strides = array<i32>} : memref<128x200xf32, #tpu.memory_space<vmem>>, vector<128x200xf32>,
    %c0_113 = arith.constant 0 : index
    %c0_114 = arith.constant 0 : index
    %89 = vector.load %arg16[%c0_113, %c0_114] : memref<128x200xf32, #tpu.memory_space<vmem>>, vector<128x200xf32>
    %c0_115 = arith.constant 0 : index
    %c0_116 = arith.constant 0 : index
    %90 = vector.load %arg17[%c0_115, %c0_116] : memref<128x200xf32, #tpu.memory_space<vmem>>, vector<128x200xf32>
    %91 = arith.maximumf %89, %90 : vector<128x200xf32>
    %c0_117 = arith.constant 0 : index
    %c0_118 = arith.constant 0 : index
    %92 = vector.load %arg8[%c0_117, %c0_118] : memref<1x200xf32, #tpu.memory_space<vmem>>, vector<1x200xf32>
    %93 = vector.broadcast %92 : vector<1x200xf32> to vector<128x200xf32>
    %94 = arith.addf %91, %93 : vector<128x200xf32>
    %cst_119 = arith.constant 0.000000e+00 : f32
    %95 = vector.broadcast %cst_119 : f32 to vector<128x200xf32>
    %96 = arith.maximumf %94, %95 : vector<128x200xf32>
    %c0_120 = arith.constant 0 : index
    %c0_121 = arith.constant 0 : index
    %97 = vector.load %arg16[%c0_120, %c0_121] : memref<128x200xf32, #tpu.memory_space<vmem>>, vector<128x200xf32>
    tpu.vector_store %arg16[%c0_120, %c0_121], %96 {strides = array<i32>} : memref<128x200xf32, #tpu.memory_space<vmem>>, vector<128x200xf32>,
    %c0_122 = arith.constant 0 : index
    %c0_123 = arith.constant 0 : index
    %98 = vector.load %arg16[%c0_122, %c0_123] : memref<128x200xf32, #tpu.memory_space<vmem>>, vector<16x200xf32>
    %c16_124 = arith.constant 16 : index
    %c0_125 = arith.constant 0 : index
    %99 = vector.load %arg16[%c16_124, %c0_125] : memref<128x200xf32, #tpu.memory_space<vmem>>, vector<16x200xf32>
    %100 = arith.maximumf %98, %99 : vector<16x200xf32>
    %101 = arith.truncf %100 : vector<16x200xf32> to vector<16x200xbf16>
    %c0_126 = arith.constant 0 : index
    %c0_127 = arith.constant 0 : index
    %102 = vector.load %arg18[%c0_126, %c0_127] : memref<64x200xbf16, #tpu.memory_space<vmem>>, vector<16x200xbf16>
    tpu.vector_store %arg18[%c0_126, %c0_127], %101 {strides = array<i32>} : memref<64x200xbf16, #tpu.memory_space<vmem>>, vector<16x200xbf16>,
    %c32_128 = arith.constant 32 : index
    %c0_129 = arith.constant 0 : index
    %103 = vector.load %arg16[%c32_128, %c0_129] : memref<128x200xf32, #tpu.memory_space<vmem>>, vector<16x200xf32>
    %c48_130 = arith.constant 48 : index
    %c0_131 = arith.constant 0 : index
    %104 = vector.load %arg16[%c48_130, %c0_131] : memref<128x200xf32, #tpu.memory_space<vmem>>, vector<16x200xf32>
    %105 = arith.maximumf %103, %104 : vector<16x200xf32>
    %106 = arith.truncf %105 : vector<16x200xf32> to vector<16x200xbf16>
    %c16_132 = arith.constant 16 : index
    %c0_133 = arith.constant 0 : index
    %107 = vector.load %arg18[%c16_132, %c0_133] : memref<64x200xbf16, #tpu.memory_space<vmem>>, vector<16x200xbf16>
    tpu.vector_store %arg18[%c16_132, %c0_133], %106 {strides = array<i32>} : memref<64x200xbf16, #tpu.memory_space<vmem>>, vector<16x200xbf16>,
    %c64_134 = arith.constant 64 : index
    %c0_135 = arith.constant 0 : index
    %108 = vector.load %arg16[%c64_134, %c0_135] : memref<128x200xf32, #tpu.memory_space<vmem>>, vector<16x200xf32>
    %c80 = arith.constant 80 : index
    %c0_136 = arith.constant 0 : index
    %109 = vector.load %arg16[%c80, %c0_136] : memref<128x200xf32, #tpu.memory_space<vmem>>, vector<16x200xf32>
    %110 = arith.maximumf %108, %109 : vector<16x200xf32>
    %111 = arith.truncf %110 : vector<16x200xf32> to vector<16x200xbf16>
    %c32_137 = arith.constant 32 : index
    %c0_138 = arith.constant 0 : index
    %112 = vector.load %arg18[%c32_137, %c0_138] : memref<64x200xbf16, #tpu.memory_space<vmem>>, vector<16x200xbf16>
    tpu.vector_store %arg18[%c32_137, %c0_138], %111 {strides = array<i32>} : memref<64x200xbf16, #tpu.memory_space<vmem>>, vector<16x200xbf16>,
    %c96 = arith.constant 96 : index
    %c0_139 = arith.constant 0 : index
    %113 = vector.load %arg16[%c96, %c0_139] : memref<128x200xf32, #tpu.memory_space<vmem>>, vector<16x200xf32>
    %c112 = arith.constant 112 : index
    %c0_140 = arith.constant 0 : index
    %114 = vector.load %arg16[%c112, %c0_140] : memref<128x200xf32, #tpu.memory_space<vmem>>, vector<16x200xf32>
    %115 = arith.maximumf %113, %114 : vector<16x200xf32>
    %116 = arith.truncf %115 : vector<16x200xf32> to vector<16x200xbf16>
    %c48_141 = arith.constant 48 : index
    %c0_142 = arith.constant 0 : index
    %117 = vector.load %arg18[%c48_141, %c0_142] : memref<64x200xbf16, #tpu.memory_space<vmem>>, vector<16x200xbf16>
    tpu.vector_store %arg18[%c48_141, %c0_142], %116 {strides = array<i32>} : memref<64x200xbf16, #tpu.memory_space<vmem>>, vector<16x200xbf16>,
    %c0_143 = arith.constant 0 : index
    %c0_144 = arith.constant 0 : index
    %118 = vector.load %arg18[%c0_143, %c0_144] : memref<64x200xbf16, #tpu.memory_space<vmem>>, vector<16x200xbf16>
    %c0_145 = arith.constant 0 : index
    %c0_146 = arith.constant 0 : index
    %c0_147 = arith.constant 0 : index
    %119 = vector.load %arg9[%c0_145, %c0_146, %c0_147] : memref<4x200x500xbf16, #tpu.memory_space<vmem>>, vector<1x200x500xbf16>
    %120 = vector.shape_cast %119 : vector<1x200x500xbf16> to vector<200x500xbf16>
    %cst_148 = arith.constant dense<0.000000e+00> : vector<16x500xf32>
    %121 = tpu.matmul %118, %120, %cst_148 {dimension_numbers = #tpu.dot_dimension_numbers<[1], [0], [0], [1], [0, 0, 1, 1], [], []>} : vector<16x200xbf16>, vector<200x500xbf16>, vector<16x500xf32> -> vector<16x500xf32>
    %c16_149 = arith.constant 16 : index
    %c0_150 = arith.constant 0 : index
    %122 = vector.load %arg18[%c16_149, %c0_150] : memref<64x200xbf16, #tpu.memory_space<vmem>>, vector<16x200xbf16>
    %c1_151 = arith.constant 1 : index
    %c0_152 = arith.constant 0 : index
    %c0_153 = arith.constant 0 : index
    %123 = vector.load %arg9[%c1_151, %c0_152, %c0_153] : memref<4x200x500xbf16, #tpu.memory_space<vmem>>, vector<1x200x500xbf16>
    %124 = vector.shape_cast %123 : vector<1x200x500xbf16> to vector<200x500xbf16>
    %cst_154 = arith.constant dense<0.000000e+00> : vector<16x500xf32>
    %125 = tpu.matmul %122, %124, %cst_154 {dimension_numbers = #tpu.dot_dimension_numbers<[1], [0], [0], [1], [0, 0, 1, 1], [], []>} : vector<16x200xbf16>, vector<200x500xbf16>, vector<16x500xf32> -> vector<16x500xf32>
    %126 = arith.addf %121, %125 : vector<16x500xf32>
    %c32_155 = arith.constant 32 : index
    %c0_156 = arith.constant 0 : index
    %127 = vector.load %arg18[%c32_155, %c0_156] : memref<64x200xbf16, #tpu.memory_space<vmem>>, vector<16x200xbf16>
    %c2_157 = arith.constant 2 : index
    %c0_158 = arith.constant 0 : index
    %c0_159 = arith.constant 0 : index
    %128 = vector.load %arg9[%c2_157, %c0_158, %c0_159] : memref<4x200x500xbf16, #tpu.memory_space<vmem>>, vector<1x200x500xbf16>
    %129 = vector.shape_cast %128 : vector<1x200x500xbf16> to vector<200x500xbf16>
    %cst_160 = arith.constant dense<0.000000e+00> : vector<16x500xf32>
    %130 = tpu.matmul %127, %129, %cst_160 {dimension_numbers = #tpu.dot_dimension_numbers<[1], [0], [0], [1], [0, 0, 1, 1], [], []>} : vector<16x200xbf16>, vector<200x500xbf16>, vector<16x500xf32> -> vector<16x500xf32>
    %131 = arith.addf %126, %130 : vector<16x500xf32>
    %c48_161 = arith.constant 48 : index
    %c0_162 = arith.constant 0 : index
    %132 = vector.load %arg18[%c48_161, %c0_162] : memref<64x200xbf16, #tpu.memory_space<vmem>>, vector<16x200xbf16>
    %c3_163 = arith.constant 3 : index
    %c0_164 = arith.constant 0 : index
    %c0_165 = arith.constant 0 : index
    %133 = vector.load %arg9[%c3_163, %c0_164, %c0_165] : memref<4x200x500xbf16, #tpu.memory_space<vmem>>, vector<1x200x500xbf16>
    %134 = vector.shape_cast %133 : vector<1x200x500xbf16> to vector<200x500xbf16>
    %cst_166 = arith.constant dense<0.000000e+00> : vector<16x500xf32>
    %135 = tpu.matmul %132, %134, %cst_166 {dimension_numbers = #tpu.dot_dimension_numbers<[1], [0], [0], [1], [0, 0, 1, 1], [], []>} : vector<16x200xbf16>, vector<200x500xbf16>, vector<16x500xf32> -> vector<16x500xf32>
    %136 = arith.addf %131, %135 : vector<16x500xf32>
    %c0_167 = arith.constant 0 : index
    %c0_168 = arith.constant 0 : index
    %137 = vector.load %arg10[%c0_167, %c0_168] : memref<1x500xf32, #tpu.memory_space<vmem>>, vector<1x500xf32>
    %138 = vector.broadcast %137 : vector<1x500xf32> to vector<16x500xf32>
    %139 = arith.addf %136, %138 : vector<16x500xf32>
    %cst_169 = arith.constant 0.000000e+00 : f32
    %140 = vector.broadcast %cst_169 : f32 to vector<16x500xf32>
    %141 = arith.maximumf %139, %140 : vector<16x500xf32>
    %142 = arith.truncf %141 : vector<16x500xf32> to vector<16x500xbf16>
    %c0_170 = arith.constant 0 : index
    %c0_171 = arith.constant 0 : index
    %143 = vector.load %arg11[%c0_170, %c0_171] : memref<500x128xbf16, #tpu.memory_space<vmem>>, vector<500x128xbf16>
    %cst_172 = arith.constant dense<0.000000e+00> : vector<16x128xf32>
    %144 = tpu.matmul %142, %143, %cst_172 {dimension_numbers = #tpu.dot_dimension_numbers<[1], [0], [0], [1], [0, 0, 1, 1], [], []>} : vector<16x500xbf16>, vector<500x128xbf16>, vector<16x128xf32> -> vector<16x128xf32>
    %c0_173 = arith.constant 0 : index
    %c0_174 = arith.constant 0 : index
    %145 = vector.load %arg12[%c0_173, %c0_174] : memref<1x128xf32, #tpu.memory_space<vmem>>, vector<1x128xf32>
    %146 = vector.broadcast %145 : vector<1x128xf32> to vector<16x128xf32>
    %147 = arith.addf %144, %146 : vector<16x128xf32>
    %c0_175 = arith.constant 0 : index
    %c0_176 = arith.constant 0 : index
    %148 = vector.load %arg13[%c0_175, %c0_176] : memref<16x128xf32, #tpu.memory_space<vmem>>, vector<16x128xf32>
    tpu.vector_store %arg13[%c0_175, %c0_176], %147 {strides = array<i32>} : memref<16x128xf32, #tpu.memory_space<vmem>>, vector<16x128xf32>,
    return
  }
  func.func @transform_0(%arg0: i32) -> (i32, i32) {
    %c0_i32 = arith.constant 0 : i32
    %c0_i32_0 = arith.constant 0 : i32
    return %arg0, %c0_i32 : i32, i32
  }
  func.func @transform_1(%arg0: i32) -> (i32, i32) {
    %c0_i32 = arith.constant 0 : i32
    %c0_i32_0 = arith.constant 0 : i32
    return %arg0, %c0_i32 : i32, i32
  }
  func.func @transform_2(%arg0: i32) -> (i32, i32) {
    %c0_i32 = arith.constant 0 : i32
    %c0_i32_0 = arith.constant 0 : i32
    %c0_i32_1 = arith.constant 0 : i32
    return %c0_i32, %c0_i32_0 : i32, i32
  }
  func.func @transform_3(%arg0: i32) -> (i32, i32) {
    %c0_i32 = arith.constant 0 : i32
    %c0_i32_0 = arith.constant 0 : i32
    %c0_i32_1 = arith.constant 0 : i32
    return %c0_i32, %c0_i32_0 : i32, i32
  }
  func.func @transform_4(%arg0: i32) -> (i32, i32) {
    %c0_i32 = arith.constant 0 : i32
    %c0_i32_0 = arith.constant 0 : i32
    %c0_i32_1 = arith.constant 0 : i32
    return %c0_i32, %c0_i32_0 : i32, i32
  }
  func.func @transform_5(%arg0: i32) -> (i32, i32, i32) {
    %c0_i32 = arith.constant 0 : i32
    %c0_i32_0 = arith.constant 0 : i32
    %c0_i32_1 = arith.constant 0 : i32
    %c0_i32_2 = arith.constant 0 : i32
    return %c0_i32, %c0_i32_0, %c0_i32_1 : i32, i32, i32
  }
  func.func @transform_6(%arg0: i32) -> (i32, i32, i32) {
    %c0_i32 = arith.constant 0 : i32
    %c0_i32_0 = arith.constant 0 : i32
    %c0_i32_1 = arith.constant 0 : i32
    %c0_i32_2 = arith.constant 0 : i32
    return %c0_i32, %c0_i32_0, %c0_i32_1 : i32, i32, i32
  }
  func.func @transform_7(%arg0: i32) -> (i32, i32) {
    %c0_i32 = arith.constant 0 : i32
    %c0_i32_0 = arith.constant 0 : i32
    %c0_i32_1 = arith.constant 0 : i32
    return %c0_i32, %c0_i32_0 : i32, i32
  }
  func.func @transform_8(%arg0: i32) -> (i32, i32, i32) {
    %c0_i32 = arith.constant 0 : i32
    %c0_i32_0 = arith.constant 0 : i32
    %c0_i32_1 = arith.constant 0 : i32
    %c0_i32_2 = arith.constant 0 : i32
    return %c0_i32, %c0_i32_0, %c0_i32_1 : i32, i32, i32
  }
  func.func @transform_9(%arg0: i32) -> (i32, i32) {
    %c0_i32 = arith.constant 0 : i32
    %c0_i32_0 = arith.constant 0 : i32
    %c0_i32_1 = arith.constant 0 : i32
    return %c0_i32, %c0_i32_0 : i32, i32
  }
  func.func @transform_10(%arg0: i32) -> (i32, i32) {
    %c0_i32 = arith.constant 0 : i32
    %c0_i32_0 = arith.constant 0 : i32
    %c0_i32_1 = arith.constant 0 : i32
    return %c0_i32, %c0_i32_0 : i32, i32
  }
  func.func @transform_11(%arg0: i32) -> (i32, i32) {
    %c0_i32 = arith.constant 0 : i32
    %c0_i32_0 = arith.constant 0 : i32
    %c0_i32_1 = arith.constant 0 : i32
    return %c0_i32, %c0_i32_0 : i32, i32
  }
  func.func @transform_12(%arg0: i32) -> (i32, i32) {
    %c0_i32 = arith.constant 0 : i32
    %c0_i32_0 = arith.constant 0 : i32
    return %arg0, %c0_i32 : i32, i32
  }
}

</mosaic_0001>

<llo_original>
// kernel: lenet_forward.1
$region0: #{lenet_forward.1}
  #allocation0 [shape = 'u32[]', space=smem, size = 0x4, offset = 0x4, fixed_abs, tag = 'smem constant byte address 0x4 - core index']
  #allocation1 [shape = 'u32[144,128]{1,0:T(1,128)}', space=vmem, size = 0x12000, scoped, tag = 'internal scratch']
  #allocation2 [shape = 'f32[192,240]{1,0:T(8,128)}', space=vmem, size = 0x30000, scoped, tag = 'scratch operand']
  #allocation3 [shape = 'bf16[192,240]{1,0:T(16,128)(2,1)}', space=vmem, size = 0x18000, scoped, tag = 'scratch operand']
  #allocation4 [shape = 'f32[128,200]{1,0:T(8,128)}', space=vmem, size = 0x20000, scoped, tag = 'scratch operand']
  #allocation5 [shape = 'f32[128,200]{1,0:T(8,128)}', space=vmem, size = 0x20000, scoped, tag = 'scratch operand']
  #allocation6 [shape = 'bf16[64,200]{1,0:T(16,128)(2,1)}', space=vmem, size = 0x8000, scoped, tag = 'scratch operand']
  %s0 = inlined_call_operand.vmem [shape: bf16[384,140], index: 0, kind: input, shape index: {}]
  %s1 = inlined_call_operand.vmem [shape: bf16[384,140], index: 1, kind: input, shape index: {}]
  %s2 = inlined_call_operand.vmem [shape: bf16[140,240], index: 2, kind: input, shape index: {}]
  %s3 = inlined_call_operand.vmem [shape: bf16[140,240], index: 3, kind: input, shape index: {}]
  %s4 = inlined_call_operand.vmem [shape: f32[1,240], index: 4, kind: input, shape index: {}]
  %s5 = inlined_call_operand.vmem [shape: bf16[5,240,200], index: 5, kind: input, shape index: {}]
  %s6 = inlined_call_operand.vmem [shape: bf16[5,240,200], index: 6, kind: input, shape index: {}]
  %s7 = inlined_call_operand.vmem [shape: f32[1,200], index: 7, kind: input, shape index: {}]
  %s8 = inlined_call_operand.vmem [shape: bf16[4,200,500], index: 8, kind: input, shape index: {}]
  %s9 = inlined_call_operand.vmem [shape: f32[1,500], index: 9, kind: input, shape index: {}]
  %s10 = inlined_call_operand.vmem [shape: bf16[500,128], index: 10, kind: input, shape index: {}]
  %s11 = inlined_call_operand.vmem [shape: f32[1,128], index: 11, kind: input, shape index: {}]
  %s12 = inlined_call_operand.vmem [shape: f32[32,128], index: 12, kind: output, shape index: {}]
  %s13 = sld [smem:[#allocation0]]
  $region81: #{lenet_forward.1} parent=0
    _
  %s15 = ssub.s32 1, %s13
  %s16 = scalar_select 0, %s15, %s13
  loop: start=0, step=1, limit=4
  $region2: #{lenet_forward.1} parent=0 // loop_pre_header
    _
  $region3: #{lenet_forward.1} parent=0 // loop_header
    %s18 = sphi 0, %s22
    %p19 = scmp.ge.s32.totalorder %s18, 4
    %s28 = sphi 0, %s30
    %s31 = sphi 0, %s28
    %s32 = sphi 0, %s31
    %s48 = sphi 0, %s32
    %s54 = sphi 0, %s56
    %s57 = sphi 0, %s54
    %s58 = sphi 0, %s57
    %s74 = sphi 0, %s58
    %s78 = sphi 0, %s78
    %s80 = sphi 0, %s78
    %s81 = sphi 0, %s80
    %s95 = sphi 0, %s81
    %s99 = sphi 0, %s99
    %s101 = sphi 0, %s99
    %s102 = sphi 0, %s101
    %s116 = sphi 0, %s102
    %s120 = sphi 0, %s120
    %s122 = sphi 0, %s120
    %s123 = sphi 0, %s122
    %s137 = sphi 0, %s123
    %s141 = sphi 0, %s141
    %s143 = sphi 0, %s141
    %s144 = sphi 0, %s143
    %s158 = sphi 0, %s144
    %s162 = sphi 0, %s162
    %s164 = sphi 0, %s162
    %s165 = sphi 0, %s164
    %s179 = sphi 0, %s165
    %s183 = sphi 0, %s183
    %s185 = sphi 0, %s183
    %s186 = sphi 0, %s185
    %s200 = sphi 0, %s186
    %s204 = sphi 0, %s204
    %s206 = sphi 0, %s204
    %s207 = sphi 0, %s206
    %s221 = sphi 0, %s207
    %s225 = sphi 0, %s225
    %s227 = sphi 0, %s225
    %s228 = sphi 0, %s227
    %s242 = sphi 0, %s228
    %s246 = sphi 0, %s246
    %s248 = sphi 0, %s246
    %s249 = sphi 0, %s248
    %s263 = sphi 0, %s249
    %s267 = sphi 0, %s267
    %s269 = sphi 0, %s267
    %s270 = sphi 0, %s269
    %s284 = sphi 0, %s270
    %s290 = sphi 0, %s292
    %s293 = sphi 0, %s290
    %s294 = sphi 0, %s293
    %s310 = sphi 0, %s294
  $region4: #{lenet_forward.1} parent=0 // loop_header_branch
    %21 = sbr.rel (%p19) target = $region8
  $region5: #{lenet_forward.1} parent=0 // loop_body
    %s23 = ssub.s32 %s18, 1
    %s24 = ssub.s32 %s18, 2
    %s25 = sadd.s32 %s18, 1
    %s26 = ssub.s32 %s18, %s25
    %p27 = scmp.eq.s32.totalorder %s26, 0
    %s29 = sadd.s32 %s28, 1
    %s30 = scalar_select %p27, %s28, %s29
    %p33 = pneg %p27
    %p34 = scmp.eq.s32.totalorder %s18, 1
    %p35 = por %p33, %p34
    %p36 = scmp.ne.s32.totalorder %s28, %s31
    %p37 = scmp.eq.s32.totalorder %s18, 0
    %p38 = por %p36, %p37
    %p39 = scmp.ne.s32.totalorder %s28, %s31
    %p40 = scmp.eq.s32.totalorder %s23, 1
    %p41 = por %p39, %p40
    %p42 = scmp.ne.s32.totalorder %s31, %s32
    %p43 = scmp.eq.s32.totalorder %s23, 0
    %p44 = por %p42, %p43
    %p45 = scmp.ne.s32.totalorder %s31, %s32
    %p46 = scmp.eq.s32.totalorder %s24, 1
    %p47 = por %p45, %p46
    %p49 = scmp.ne.s32.totalorder %s32, %s48
    %p50 = scmp.eq.s32.totalorder %s24, 0
    %p51 = por %p49, %p50
    %s52 = ssub.s32 %s18, %s25
    %p53 = scmp.eq.s32.totalorder %s52, 0
    %s55 = sadd.s32 %s54, 1
    %s56 = scalar_select %p53, %s54, %s55
    %p59 = pneg %p53
    %p60 = scmp.eq.s32.totalorder %s18, 1
    %p61 = por %p59, %p60
    %p62 = scmp.ne.s32.totalorder %s54, %s57
    %p63 = scmp.eq.s32.totalorder %s18, 0
    %p64 = por %p62, %p63
    %p65 = scmp.ne.s32.totalorder %s54, %s57
    %p66 = scmp.eq.s32.totalorder %s23, 1
    %p67 = por %p65, %p66
    %p68 = scmp.ne.s32.totalorder %s57, %s58
    %p69 = scmp.eq.s32.totalorder %s23, 0
    %p70 = por %p68, %p69
    %p71 = scmp.ne.s32.totalorder %s57, %s58
    %p72 = scmp.eq.s32.totalorder %s24, 1
    %p73 = por %p71, %p72
    %p75 = scmp.ne.s32.totalorder %s58, %s74
    %p76 = scmp.eq.s32.totalorder %s24, 0
    %p77 = por %p75, %p76
    %s79 = sadd.s32 %s78, 1
    %p82 = scmp.eq.s32.totalorder %s18, 1
    %p83 = scmp.ne.s32.totalorder %s78, %s80
    %p84 = scmp.eq.s32.totalorder %s18, 0
    %p85 = por %p83, %p84
    %p86 = scmp.ne.s32.totalorder %s78, %s80
    %p87 = scmp.eq.s32.totalorder %s23, 1
    %p88 = por %p86, %p87
    %p89 = scmp.ne.s32.totalorder %s80, %s81
    %p90 = scmp.eq.s32.totalorder %s23, 0
    %p91 = por %p89, %p90
    %p92 = scmp.ne.s32.totalorder %s80, %s81
    %p93 = scmp.eq.s32.totalorder %s24, 1
    %p94 = por %p92, %p93
    %p96 = scmp.ne.s32.totalorder %s81, %s95
    %p97 = scmp.eq.s32.totalorder %s24, 0
    %p98 = por %p96, %p97
    %s100 = sadd.s32 %s99, 1
    %p103 = scmp.eq.s32.totalorder %s18, 1
    %p104 = scmp.ne.s32.totalorder %s99, %s101
    %p105 = scmp.eq.s32.totalorder %s18, 0
    %p106 = por %p104, %p105
    %p107 = scmp.ne.s32.totalorder %s99, %s101
    %p108 = scmp.eq.s32.totalorder %s23, 1
    %p109 = por %p107, %p108
    %p110 = scmp.ne.s32.totalorder %s101, %s102
    %p111 = scmp.eq.s32.totalorder %s23, 0
    %p112 = por %p110, %p111
    %p113 = scmp.ne.s32.totalorder %s101, %s102
    %p114 = scmp.eq.s32.totalorder %s24, 1
    %p115 = por %p113, %p114
    %p117 = scmp.ne.s32.totalorder %s102, %s116
    %p118 = scmp.eq.s32.totalorder %s24, 0
    %p119 = por %p117, %p118
    %s121 = sadd.s32 %s120, 1
    %p124 = scmp.eq.s32.totalorder %s18, 1
    %p125 = scmp.ne.s32.totalorder %s120, %s122
    %p126 = scmp.eq.s32.totalorder %s18, 0
    %p127 = por %p125, %p126
    %p128 = scmp.ne.s32.totalorder %s120, %s122
    %p129 = scmp.eq.s32.totalorder %s23, 1
    %p130 = por %p128, %p129
    %p131 = scmp.ne.s32.totalorder %s122, %s123
    %p132 = scmp.eq.s32.totalorder %s23, 0
    %p133 = por %p131, %p132
    %p134 = scmp.ne.s32.totalorder %s122, %s123
    %p135 = scmp.eq.s32.totalorder %s24, 1
    %p136 = por %p134, %p135
    %p138 = scmp.ne.s32.totalorder %s123, %s137
    %p139 = scmp.eq.s32.totalorder %s24, 0
    %p140 = por %p138, %p139
    %s142 = sadd.s32 %s141, 1
    %p145 = scmp.eq.s32.totalorder %s18, 1
    %p146 = scmp.ne.s32.totalorder %s141, %s143
    %p147 = scmp.eq.s32.totalorder %s18, 0
    %p148 = por %p146, %p147
    %p149 = scmp.ne.s32.totalorder %s141, %s143
    %p150 = scmp.eq.s32.totalorder %s23, 1
    %p151 = por %p149, %p150
    %p152 = scmp.ne.s32.totalorder %s143, %s144
    %p153 = scmp.eq.s32.totalorder %s23, 0
    %p154 = por %p152, %p153
    %p155 = scmp.ne.s32.totalorder %s143, %s144
    %p156 = scmp.eq.s32.totalorder %s24, 1
    %p157 = por %p155, %p156
    %p159 = scmp.ne.s32.totalorder %s144, %s158
    %p160 = scmp.eq.s32.totalorder %s24, 0
    %p161 = por %p159, %p160
    %s163 = sadd.s32 %s162, 1
    %p166 = scmp.eq.s32.totalorder %s18, 1
    %p167 = scmp.ne.s32.totalorder %s162, %s164
    %p168 = scmp.eq.s32.totalorder %s18, 0
    %p169 = por %p167, %p168
    %p170 = scmp.ne.s32.totalorder %s162, %s164
    %p171 = scmp.eq.s32.totalorder %s23, 1
    %p172 = por %p170, %p171
    %p173 = scmp.ne.s32.totalorder %s164, %s165
    %p174 = scmp.eq.s32.totalorder %s23, 0
    %p175 = por %p173, %p174
    %p176 = scmp.ne.s32.totalorder %s164, %s165
    %p177 = scmp.eq.s32.totalorder %s24, 1
    %p178 = por %p176, %p177
    %p180 = scmp.ne.s32.totalorder %s165, %s179
    %p181 = scmp.eq.s32.totalorder %s24, 0
    %p182 = por %p180, %p181
    %s184 = sadd.s32 %s183, 1
    %p187 = scmp.eq.s32.totalorder %s18, 1
    %p188 = scmp.ne.s32.totalorder %s183, %s185
    %p189 = scmp.eq.s32.totalorder %s18, 0
    %p190 = por %p188, %p189
    %p191 = scmp.ne.s32.totalorder %s183, %s185
    %p192 = scmp.eq.s32.totalorder %s23, 1
    %p193 = por %p191, %p192
    %p194 = scmp.ne.s32.totalorder %s185, %s186
    %p195 = scmp.eq.s32.totalorder %s23, 0
    %p196 = por %p194, %p195
    %p197 = scmp.ne.s32.totalorder %s185, %s186
    %p198 = scmp.eq.s32.totalorder %s24, 1
    %p199 = por %p197, %p198
    %p201 = scmp.ne.s32.totalorder %s186, %s200
    %p202 = scmp.eq.s32.totalorder %s24, 0
    %p203 = por %p201, %p202
    %s205 = sadd.s32 %s204, 1
    %p208 = scmp.eq.s32.totalorder %s18, 1
    %p209 = scmp.ne.s32.totalorder %s204, %s206
    %p210 = scmp.eq.s32.totalorder %s18, 0
    %p211 = por %p209, %p210
    %p212 = scmp.ne.s32.totalorder %s204, %s206
    %p213 = scmp.eq.s32.totalorder %s23, 1
    %p214 = por %p212, %p213
    %p215 = scmp.ne.s32.totalorder %s206, %s207
    %p216 = scmp.eq.s32.totalorder %s23, 0
    %p217 = por %p215, %p216
    %p218 = scmp.ne.s32.totalorder %s206, %s207
    %p219 = scmp.eq.s32.totalorder %s24, 1
    %p220 = por %p218, %p219
    %p222 = scmp.ne.s32.totalorder %s207, %s221
    %p223 = scmp.eq.s32.totalorder %s24, 0
    %p224 = por %p222, %p223
    %s226 = sadd.s32 %s225, 1
    %p229 = scmp.eq.s32.totalorder %s18, 1
    %p230 = scmp.ne.s32.totalorder %s225, %s227
    %p231 = scmp.eq.s32.totalorder %s18, 0
    %p232 = por %p230, %p231
    %p233 = scmp.ne.s32.totalorder %s225, %s227
    %p234 = scmp.eq.s32.totalorder %s23, 1
    %p235 = por %p233, %p234
    %p236 = scmp.ne.s32.totalorder %s227, %s228
    %p237 = scmp.eq.s32.totalorder %s23, 0
    %p238 = por %p236, %p237
    %p239 = scmp.ne.s32.totalorder %s227, %s228
    %p240 = scmp.eq.s32.totalorder %s24, 1
    %p241 = por %p239, %p240
    %p243 = scmp.ne.s32.totalorder %s228, %s242
    %p244 = scmp.eq.s32.totalorder %s24, 0
    %p245 = por %p243, %p244
    %s247 = sadd.s32 %s246, 1
    %p250 = scmp.eq.s32.totalorder %s18, 1
    %p251 = scmp.ne.s32.totalorder %s246, %s248
    %p252 = scmp.eq.s32.totalorder %s18, 0
    %p253 = por %p251, %p252
    %p254 = scmp.ne.s32.totalorder %s246, %s248
    %p255 = scmp.eq.s32.totalorder %s23, 1
    %p256 = por %p254, %p255
    %p257 = scmp.ne.s32.totalorder %s248, %s249
    %p258 = scmp.eq.s32.totalorder %s23, 0
    %p259 = por %p257, %p258
    %p260 = scmp.ne.s32.totalorder %s248, %s249
    %p261 = scmp.eq.s32.totalorder %s24, 1
    %p262 = por %p260, %p261
    %p264 = scmp.ne.s32.totalorder %s249, %s263
    %p265 = scmp.eq.s32.totalorder %s24, 0
    %p266 = por %p264, %p265
    %s268 = sadd.s32 %s267, 1
    %p271 = scmp.eq.s32.totalorder %s18, 1
    %p272 = scmp.ne.s32.totalorder %s267, %s269
    %p273 = scmp.eq.s32.totalorder %s18, 0
    %p274 = por %p272, %p273
    %p275 = scmp.ne.s32.totalorder %s267, %s269
    %p276 = scmp.eq.s32.totalorder %s23, 1
    %p277 = por %p275, %p276
    %p278 = scmp.ne.s32.totalorder %s269, %s270
    %p279 = scmp.eq.s32.totalorder %s23, 0
    %p280 = por %p278, %p279
    %p281 = scmp.ne.s32.totalorder %s269, %s270
    %p282 = scmp.eq.s32.totalorder %s24, 1
    %p283 = por %p281, %p282
    %p285 = scmp.ne.s32.totalorder %s270, %s284
    %p286 = scmp.eq.s32.totalorder %s24, 0
    %p287 = por %p285, %p286
    %s288 = ssub.s32 %s18, %s25
    %p289 = scmp.eq.s32.totalorder %s288, 0
    %s291 = sadd.s32 %s290, 1
    %s292 = scalar_select %p289, %s290, %s291
    %p295 = pneg %p289
    %p296 = scmp.eq.s32.totalorder %s18, 1
    %p297 = por %p295, %p296
    %p298 = scmp.ne.s32.totalorder %s290, %s293
    %p299 = scmp.eq.s32.totalorder %s18, 0
    %p300 = por %p298, %p299
    %p301 = scmp.ne.s32.totalorder %s290, %s293
    %p302 = scmp.eq.s32.totalorder %s23, 1
    %p303 = por %p301, %p302
    %p304 = scmp.ne.s32.totalorder %s293, %s294
    %p305 = scmp.eq.s32.totalorder %s23, 0
    %p306 = por %p304, %p305
    %p307 = scmp.ne.s32.totalorder %s293, %s294
    %p308 = scmp.eq.s32.totalorder %s24, 1
    %p309 = por %p307, %p308
    %p311 = scmp.ne.s32.totalorder %s294, %s310
    %p312 = scmp.eq.s32.totalorder %s24, 0
    %p313 = por %p311, %p312
    %p314 = scmp.le.s32.totalorder 1, %s18
    %p315 = scmp.lt.s32.totalorder %s18, 3
    %p316 = pnand %p314, %p315
    %p317 = pneg %p316
    // Predicated region
    $region9: #{lenet_forward.1} parent=5 // pred_check
      _
    $region10: #{lenet_forward.1} parent=5 // pred_check_branch
      %319 = sbr.rel (%p316) target = $region12
    $region11: #{lenet_forward.1} parent=5 // pred_region
      %s320 = ssub.s32 %s18, 1
      // Predicated region
      $region13: #{lenet_forward.1} parent=11 // pred_check
        %p321 = pneg %p91
      $region14: #{lenet_forward.1} parent=11 // pred_check_branch
        %323 = sbr.rel (%p321) target = $region16
      $region15: #{lenet_forward.1} parent=11 // pred_region
        _
      $region16: #{lenet_forward.1} parent=11 // pred_fallthru
        _
      // Predicated region
      $region17: #{lenet_forward.1} parent=11 // pred_check
        %p324 = pneg %p112
      $region18: #{lenet_forward.1} parent=11 // pred_check_branch
        %326 = sbr.rel (%p324) target = $region20
      $region19: #{lenet_forward.1} parent=11 // pred_region
        _
      $region20: #{lenet_forward.1} parent=11 // pred_fallthru
        _
      // Predicated region
      $region21: #{lenet_forward.1} parent=11 // pred_check
        %p327 = pneg %p133
      $region22: #{lenet_forward.1} parent=11 // pred_check_branch
        %329 = sbr.rel (%p327) target = $region24
      $region23: #{lenet_forward.1} parent=11 // pred_region
        _
      $region24: #{lenet_forward.1} parent=11 // pred_fallthru
        _
      // Predicated region
      $region25: #{lenet_forward.1} parent=11 // pred_check
        %p330 = pneg %p154
      $region26: #{lenet_forward.1} parent=11 // pred_check_branch
        %332 = sbr.rel (%p330) target = $region28
      $region27: #{lenet_forward.1} parent=11 // pred_region
        _
      $region28: #{lenet_forward.1} parent=11 // pred_fallthru
        _
      // Predicated region
      $region29: #{lenet_forward.1} parent=11 // pred_check
        %p333 = pneg %p175
      $region30: #{lenet_forward.1} parent=11 // pred_check_branch
        %335 = sbr.rel (%p333) target = $region32
      $region31: #{lenet_forward.1} parent=11 // pred_region
        _
      $region32: #{lenet_forward.1} parent=11 // pred_fallthru
        _
      // Predicated region
      $region33: #{lenet_forward.1} parent=11 // pred_check
        %p336 = pneg %p196
      $region34: #{lenet_forward.1} parent=11 // pred_check_branch
        %338 = sbr.rel (%p336) target = $region36
      $region35: #{lenet_forward.1} parent=11 // pred_region
        _
      $region36: #{lenet_forward.1} parent=11 // pred_fallthru
        _
      // Predicated region
      $region37: #{lenet_forward.1} parent=11 // pred_check
        %p339 = pneg %p217
      $region38: #{lenet_forward.1} parent=11 // pred_check_branch
        %341 = sbr.rel (%p339) target = $region40
      $region39: #{lenet_forward.1} parent=11 // pred_region
        _
      $region40: #{lenet_forward.1} parent=11 // pred_fallthru
        _
      // Predicated region
      $region41: #{lenet_forward.1} parent=11 // pred_check
        %p342 = pneg %p238
      $region42: #{lenet_forward.1} parent=11 // pred_check_branch
        %344 = sbr.rel (%p342) target = $region44
      $region43: #{lenet_forward.1} parent=11 // pred_region
        _
      $region44: #{lenet_forward.1} parent=11 // pred_fallthru
        _
      // Predicated region
      $region45: #{lenet_forward.1} parent=11 // pred_check
        %p345 = pneg %p259
      $region46: #{lenet_forward.1} parent=11 // pred_check_branch
        %347 = sbr.rel (%p345) target = $region48
      $region47: #{lenet_forward.1} parent=11 // pred_region
        _
      $region48: #{lenet_forward.1} parent=11 // pred_fallthru
        _
      // Predicated region
      $region49: #{lenet_forward.1} parent=11 // pred_check
        %p348 = pneg %p280
      $region50: #{lenet_forward.1} parent=11 // pred_check_branch
        %350 = sbr.rel (%p348) target = $region52
      $region51: #{lenet_forward.1} parent=11 // pred_region
        _
      $region52: #{lenet_forward.1} parent=11 // pred_fallthru
        _
    $region12: #{lenet_forward.1} parent=5 // pred_fallthru
      _
    %p351 = scmp.lt.s32.totalorder %s18, 2
    // Predicated region
    $region53: #{lenet_forward.1} parent=5 // pred_check
      %p352 = pneg %p351
    $region54: #{lenet_forward.1} parent=5 // pred_check_branch
      %354 = sbr.rel (%p352) target = $region56
    $region55: #{lenet_forward.1} parent=5 // pred_region
      // Predicated region
      $region57: #{lenet_forward.1} parent=55 // pred_check
        %p355 = pneg %p38
      $region58: #{lenet_forward.1} parent=55 // pred_check_branch
        %357 = sbr.rel (%p355) target = $region60
      $region59: #{lenet_forward.1} parent=55 // pred_region
        %s358 = smul.u32 24, %s18
        %p359 = scmp.lt.s32.totalorder %s358, 47
        %s360 = scalar_select %p359, %s358, 47
        %s361 = smul.addr %s360, 2
        %s362 = smul.addr %s361, 4
        %s363 = scalar_lea.vmem %s0, %s362
        %s364 = smul.u32 24, %s18
      $region60: #{lenet_forward.1} parent=55 // pred_fallthru
        _
      // Predicated region
      $region61: #{lenet_forward.1} parent=55 // pred_check
        %p365 = pneg %p64
      $region62: #{lenet_forward.1} parent=55 // pred_check_branch
        %367 = sbr.rel (%p365) target = $region64
      $region63: #{lenet_forward.1} parent=55 // pred_region
        %s368 = smul.u32 24, %s18
        %p369 = scmp.lt.s32.totalorder %s368, 47
        %s370 = scalar_select %p369, %s368, 47
        %s371 = smul.addr %s370, 2
        %s372 = smul.addr %s371, 4
        %s373 = scalar_lea.vmem %s1, %s372
        %s374 = smul.u32 24, %s18
      $region64: #{lenet_forward.1} parent=55 // pred_fallthru
        _
    $region56: #{lenet_forward.1} parent=5 // pred_fallthru
      _
    %p375 = scmp.le.s32.totalorder 1, %s18
    %p376 = scmp.lt.s32.totalorder %s18, 3
    %p377 = pnand %p375, %p376
    %p378 = pneg %p377
    // Predicated region
    $region65: #{lenet_forward.1} parent=5 // pred_check
      _
    $region66: #{lenet_forward.1} parent=5 // pred_check_branch
      %380 = sbr.rel (%p377) target = $region68
    $region67: #{lenet_forward.1} parent=5 // pred_region
      %s381 = ssub.s32 %s18, 1
      %s382 = smul.u32 24, %s23
      %p383 = scmp.lt.s32.totalorder %s382, 47
      %s384 = scalar_select %p383, %s382, 47
      %s385 = smul.addr %s384, 2
      %s386 = smul.addr %s385, 4
      %s387 = scalar_lea.vmem %s0, %s386
      %p388 = pneg %p44
      %p389 = pneg %p41
      %s390 = smul.u32 24, %s23
      %p391 = scmp.lt.s32.totalorder %s390, 47
      %s392 = scalar_select %p391, %s390, 47
      %s393 = smul.addr %s392, 2
      %s394 = smul.addr %s393, 4
      %s395 = scalar_lea.vmem %s1, %s394
      %p396 = pneg %p70
      %p397 = pneg %p67
      %p398 = pneg %p91
      %p399 = pneg %p88
      %p400 = pneg %p112
      %p401 = pneg %p109
      %p402 = pneg %p133
      %p403 = pneg %p130
      %p404 = pneg %p154
      %p405 = pneg %p151
      %p406 = pneg %p175
      %p407 = pneg %p172
      %p408 = pneg %p196
      %p409 = pneg %p193
      %p410 = pneg %p217
      %p411 = pneg %p214
      %p412 = pneg %p238
      %p413 = pneg %p235
      %p414 = pneg %p259
      %p415 = pneg %p256
      %p416 = pneg %p280
      %p417 = pneg %p277
      %p418 = pneg %p306
      %p419 = pneg %p303
      %s420 = smul.u32 2, %s23
      %p421 = scmp.lt.s32.totalorder %s420, 3
      %s422 = scalar_select %p421, %s420, 3
      %s423 = smul.addr %s422, 8
      %s424 = scalar_lea.vmem %s12, %s423
      %s425 = smul.u32 24, %s23
      %p426 = scmp.lt.s32.totalorder %s425, 47
      %s427 = scalar_select %p426, %s425, 47
      %s428 = smul.addr %s427, 2
      %s429 = smul.addr %s428, 4
      %s430 = scalar_lea.vmem %s0, %s429
      %s431 = smul.u32 24, %s23
      %s432 = smul.u32 24, %s23
      %p433 = scmp.lt.s32.totalorder %s432, 47
      %s434 = scalar_select %p433, %s432, 47
      %s435 = smul.addr %s434, 2
      %s436 = smul.addr %s435, 4
      %s437 = scalar_lea.vmem %s1, %s436
      %s438 = smul.u32 24, %s23
      %s439 = smul.u32 2, %s23
      %p440 = scmp.lt.s32.totalorder %s439, 3
      %s441 = scalar_select %p440, %s439, 3
      %s442 = smul.addr %s441, 8
      %s443 = scalar_lea.vmem %s12, %s442
      %s444 = smul.u32 2, %s23
      %v446 = vld [vmem:[%s430] sm:$0xff]
      %v447 = vld [vmem:[%s430 + $0x8] sm:$0xff]
      %v448 = vld [vmem:[%s430 + $0x10] sm:$0xff]
      %v449 = vld [vmem:[%s430 + $0x18] sm:$0xff]
      %v450 = vld [vmem:[%s430 + $0x20] sm:$0xff]
      %v451 = vld [vmem:[%s430 + $0x28] sm:$0xff]
      %v452 = vld [vmem:[%s430 + $0x30] sm:$0xff]
      %v453 = vld [vmem:[%s430 + $0x38] sm:$0xff]
      %v454 = vld [vmem:[%s430 + $0x40] sm:$0xff]
      %v455 = vld [vmem:[%s430 + $0x48] sm:$0xff]
      %v456 = vld [vmem:[%s430 + $0x50] sm:$0xff]
      %v457 = vld [vmem:[%s430 + $0x58] sm:$0xff]
      %v458 = vld [vmem:[%s430 + $0x60] sm:$0xff]
      %v459 = vld [vmem:[%s430 + $0x68] sm:$0xff]
      %v460 = vld [vmem:[%s430 + $0x70] sm:$0xff]
      %v461 = vld [vmem:[%s430 + $0x78] sm:$0xff]
      %v462 = vld [vmem:[%s430 + $0x80] sm:$0xff]
      %v463 = vld [vmem:[%s430 + $0x88] sm:$0xff]
      %v464 = vld [vmem:[%s430 + $0x90] sm:$0xff]
      %v465 = vld [vmem:[%s430 + $0x98] sm:$0xff]
      %v466 = vld [vmem:[%s430 + $0xa0] sm:$0xff]
      %v467 = vld [vmem:[%s430 + $0xa8] sm:$0xff]
      %v468 = vld [vmem:[%s430 + $0xb0] sm:$0xff]
      %v469 = vld [vmem:[%s430 + $0xb8] sm:$0xff]
      %v470 = vld [vmem:[%s437] sm:$0xff]
      %v471 = vld [vmem:[%s437 + $0x8] sm:$0xff]
      %v472 = vld [vmem:[%s437 + $0x10] sm:$0xff]
      %v473 = vld [vmem:[%s437 + $0x18] sm:$0xff]
      %v474 = vld [vmem:[%s437 + $0x20] sm:$0xff]
      %v475 = vld [vmem:[%s437 + $0x28] sm:$0xff]
      %v476 = vld [vmem:[%s437 + $0x30] sm:$0xff]
      %v477 = vld [vmem:[%s437 + $0x38] sm:$0xff]
      %v478 = vld [vmem:[%s437 + $0x40] sm:$0xff]
      %v479 = vld [vmem:[%s437 + $0x48] sm:$0xff]
      %v480 = vld [vmem:[%s437 + $0x50] sm:$0xff]
      %v481 = vld [vmem:[%s437 + $0x58] sm:$0xff]
      %v482 = vld [vmem:[%s437 + $0x60] sm:$0xff]
      %v483 = vld [vmem:[%s437 + $0x68] sm:$0xff]
      %v484 = vld [vmem:[%s437 + $0x70] sm:$0xff]
      %v485 = vld [vmem:[%s437 + $0x78] sm:$0xff]
      %v486 = vld [vmem:[%s437 + $0x80] sm:$0xff]
      %v487 = vld [vmem:[%s437 + $0x88] sm:$0xff]
      %v488 = vld [vmem:[%s437 + $0x90] sm:$0xff]
      %v489 = vld [vmem:[%s437 + $0x98] sm:$0xff]
      %v490 = vld [vmem:[%s437 + $0xa0] sm:$0xff]
      %v491 = vld [vmem:[%s437 + $0xa8] sm:$0xff]
      %v492 = vld [vmem:[%s437 + $0xb0] sm:$0xff]
      %v493 = vld [vmem:[%s437 + $0xb8] sm:$0xff]
      %v494 = vld [vmem:[%s2] sm:$0xff]
      %v495 = vld [vmem:[%s2 + $0x8] sm:$0xff]
      %v496 = vld [vmem:[%s2 + $0x10] sm:$0xff]
      %v497 = vld [vmem:[%s2 + $0x18] sm:$0xff]
      %v498 = vld [vmem:[%s2 + $0x20] sm:$0xff]
      %v499 = vld [vmem:[%s2 + $0x28] sm:$0xff]
      %v500 = vld [vmem:[%s2 + $0x30] sm:$0xff]
      %v501 = vld [vmem:[%s2 + $0x38] sm:$0xff]
      %v502 = vld [vmem:[%s2 + $0x40] sm:$0xff]
      %v503 = vld [vmem:[%s2 + $0x48] sm:$0xff]
      %v504 = vld [vmem:[%s2 + $0x50] sm:$0xff]
      %v505 = vld [vmem:[%s2 + $0x58] sm:$0xff]
      %v506 = vld [vmem:[%s2 + $0x60] sm:$0xff]
      %v507 = vld [vmem:[%s2 + $0x68] sm:$0xff]
      %v508 = vld [vmem:[%s2 + $0x70] sm:$0xff]
      %v509 = vld [vmem:[%s2 + $0x78] sm:$0xff]
      %v510 = vld [vmem:[%s2 + $0x80] sm:$0xff]
      %v511 = vld [vmem:[%s2 + $0x88] sm:$0x33]
      %v536 = vunpack.c.l.b16 %v446
      %v537 = vunpack.c.h.b16 %v446
      %v538 = vunpack.c.l.b16 %v447
      %v539 = vunpack.c.h.b16 %v447
      %v540 = vunpack.c.l.b16 %v448
      %v541 = vunpack.c.h.b16 %v448
      %v542 = vunpack.c.l.b16 %v449
      %v543 = vunpack.c.h.b16 %v449
      %v544 = vunpack.c.l.b16 %v450
      %v545 = vunpack.c.h.b16 %v450
      %v546 = vunpack.c.l.b16 %v451
      %v547 = vunpack.c.h.b16 %v451
      %v548 = vunpack.c.l.b16 %v452
      %v549 = vunpack.c.h.b16 %v452
      %v550 = vunpack.c.l.b16 %v453
      %v551 = vunpack.c.h.b16 %v453
      %v552 = vunpack.c.l.b16 %v454
      %v553 = vunpack.c.h.b16 %v454
      %v554 = vunpack.c.l.b16 %v455
      %v555 = vunpack.c.h.b16 %v455
      %v556 = vunpack.c.l.b16 %v456
      %v557 = vunpack.c.h.b16 %v456
      %v558 = vunpack.c.l.b16 %v457
      %v559 = vunpack.c.h.b16 %v457
      %v560 = vunpack.c.l.b16 %v458
      %v561 = vunpack.c.h.b16 %v458
      %v562 = vunpack.c.l.b16 %v459
      %v563 = vunpack.c.h.b16 %v459
      %v564 = vunpack.c.l.b16 %v460
      %v565 = vunpack.c.h.b16 %v460
      %v566 = vunpack.c.l.b16 %v461
      %v567 = vunpack.c.h.b16 %v461
      %v568 = vunpack.c.l.b16 %v462
      %v569 = vunpack.c.h.b16 %v462
      %v570 = vunpack.c.l.b16 %v463
      %v571 = vunpack.c.h.b16 %v463
      %v572 = vunpack.c.l.b16 %v464
      %v573 = vunpack.c.h.b16 %v464
      %v574 = vunpack.c.l.b16 %v465
      %v575 = vunpack.c.h.b16 %v465
      %v576 = vunpack.c.l.b16 %v466
      %v577 = vunpack.c.h.b16 %v466
      %v578 = vunpack.c.l.b16 %v467
      %v579 = vunpack.c.h.b16 %v467
      %v580 = vunpack.c.l.b16 %v468
      %v581 = vunpack.c.h.b16 %v468
      %v582 = vunpack.c.l.b16 %v469
      %v583 = vunpack.c.h.b16 %v469
      %v584 = vpack.c.b16 %v538, %v536
      %v585 = vpack.c.b16 %v539, %v537
      %v586 = vpack.c.b16 %v542, %v540
      %v587 = vpack.c.b16 %v543, %v541
      %v588 = vpack.c.b16 %v546, %v544
      %v589 = vpack.c.b16 %v547, %v545
      %v590 = vpack.c.b16 %v550, %v548
      %v591 = vpack.c.b16 %v551, %v549
      %v592 = vpack.c.b16 %v554, %v552
      %v593 = vpack.c.b16 %v555, %v553
      %v594 = vpack.c.b16 %v558, %v556
      %v595 = vpack.c.b16 %v559, %v557
      %v596 = vpack.c.b16 %v562, %v560
      %v597 = vpack.c.b16 %v563, %v561
      %v598 = vpack.c.b16 %v566, %v564
      %v599 = vpack.c.b16 %v567, %v565
      %v600 = vpack.c.b16 %v570, %v568
      %v601 = vpack.c.b16 %v571, %v569
      %v602 = vpack.c.b16 %v574, %v572
      %v603 = vpack.c.b16 %v575, %v573
      %v604 = vpack.c.b16 %v578, %v576
      %v605 = vpack.c.b16 %v579, %v577
      %v606 = vpack.c.b16 %v582, %v580
      %v607 = vpack.c.b16 %v583, %v581
      %v638 = vunpack.c.l.b16 %v494
      %v639 = vunpack.c.h.b16 %v494
      %v640 = vunpack.c.l.b16 %v495
      %v641 = vunpack.c.h.b16 %v495
      %v642 = vunpack.c.l.b16 %v496
      %v643 = vunpack.c.h.b16 %v496
      %v644 = vunpack.c.l.b16 %v497
      %v645 = vunpack.c.h.b16 %v497
      %v646 = vunpack.c.l.b16 %v498
      %v647 = vunpack.c.h.b16 %v498
      %v648 = vunpack.c.l.b16 %v499
      %v649 = vunpack.c.h.b16 %v499
      %v650 = vunpack.c.l.b16 %v500
      %v651 = vunpack.c.h.b16 %v500
      %v652 = vunpack.c.l.b16 %v501
      %v653 = vunpack.c.h.b16 %v501
      %v654 = vunpack.c.l.b16 %v502
      %v655 = vunpack.c.h.b16 %v502
      %v656 = vunpack.c.l.b16 %v503
      %v657 = vunpack.c.h.b16 %v503
      %v658 = vunpack.c.l.b16 %v504
      %v659 = vunpack.c.h.b16 %v504
      %v660 = vunpack.c.l.b16 %v505
      %v661 = vunpack.c.h.b16 %v505
      %v662 = vunpack.c.l.b16 %v506
      %v663 = vunpack.c.h.b16 %v506
      %v664 = vunpack.c.l.b16 %v507
      %v665 = vunpack.c.h.b16 %v507
      %v666 = vunpack.c.l.b16 %v508
      %v667 = vunpack.c.h.b16 %v508
      %v668 = vunpack.c.l.b16 %v509
      %v669 = vunpack.c.h.b16 %v509
      %v670 = vunpack.c.l.b16 %v510
      %v671 = vunpack.c.h.b16 %v510
      %v672 = vunpack.c.l.b16 %v511
      %v673 = vunpack.c.h.b16 %v511
      %v674 = vpack.c.b16 %v640, %v638
      %v675 = vpack.c.b16 %v641, %v639
      %v676 = vpack.c.b16 %v644, %v642
      %v677 = vpack.c.b16 %v645, %v643
      %v678 = vpack.c.b16 %v648, %v646
      %v679 = vpack.c.b16 %v649, %v647
      %v680 = vpack.c.b16 %v652, %v650
      %v681 = vpack.c.b16 %v653, %v651
      %v682 = vpack.c.b16 %v656, %v654
      %v683 = vpack.c.b16 %v657, %v655
      %v684 = vpack.c.b16 %v660, %v658
      %v685 = vpack.c.b16 %v661, %v659
      %v686 = vpack.c.b16 %v664, %v662
      %v687 = vpack.c.b16 %v665, %v663
      %v688 = vpack.c.b16 %v668, %v666
      %v689 = vpack.c.b16 %v669, %v667
      %v690 = vpack.c.b16 %v672, %v670
      %v691 = vpack.c.b16 %v673, %v671
      %vm708 = vcmask 97280
      %v710 = vsel %vm708, %v585, 0
      %v713 = vsel %vm708, %v587, 0
      %v716 = vsel %vm708, %v589, 0
      %v719 = vsel %vm708, %v591, 0
      %v722 = vsel %vm708, %v593, 0
      %v725 = vsel %vm708, %v595, 0
      %v728 = vsel %vm708, %v597, 0
      %v731 = vsel %vm708, %v599, 0
      %v734 = vsel %vm708, %v601, 0
      %v737 = vsel %vm708, %v603, 0
      %v740 = vsel %vm708, %v605, 0
      %v743 = vsel %vm708, %v607, 0
      %vm745 = vcmask 1045504
      %v747 = vsel %vm745, %v690, 0
      %v750 = vsel %vm745, %v691, 0
      %752 = vmatprep.subr.bf16.mxu0 %v675
      %753 = vmatpush1.bf16.msra.mxu0 %v674
      %754 = vmatprep.subr.bf16.mxu0 %v677
      %755 = vmatpush1.bf16.msra.mxu0 %v676
      %756 = vmatprep.subr.bf16.mxu0 %v679
      %757 = vmatpush1.bf16.msra.mxu0 %v678
      %758 = vmatprep.subr.bf16.mxu0 %v681
      %759 = vmatpush1.bf16.msra.mxu0 %v680
      %760 = vmatprep.subr.bf16.mxu0 %v683
      %761 = vmatpush1.bf16.msra.mxu0 %v682
      %762 = vmatprep.subr.bf16.mxu0 %v685
      %763 = vmatpush1.bf16.msra.mxu0 %v684
      %764 = vmatprep.subr.bf16.mxu0 %v687
      %765 = vmatpush1.bf16.msra.mxu0 %v686
      %766 = vmatprep.subr.bf16.mxu0 %v689
      %767 = vmatpush1.bf16.msra.mxu0 %v688
      %768 = vmatprep.subr.bf16.mxu0 %v750
      %769 = vmatpush1.bf16.msra.mxu0 %v747
      %770 = vmatprep.subr.bf16.mxu0 0
      %771 = vmatpush1.bf16.msra.mxu0 0
      %772 = vmatprep.subr.bf16.mxu0 0
      %773 = vmatpush1.bf16.msra.mxu0 0
      %774 = vmatprep.subr.bf16.mxu0 0
      %775 = vmatpush1.bf16.msra.mxu0 0
      %776 = vmatprep.subr.bf16.mxu0 0
      %777 = vmatpush1.bf16.msra.mxu0 0
      %778 = vmatprep.subr.bf16.mxu0 0
      %779 = vmatpush1.bf16.msra.mxu0 0
      %780 = vmatprep.subr.bf16.mxu0 0
      %781 = vmatpush1.bf16.msra.mxu0 0
      %782 = vmatprep.subr.bf16.mxu0 0
      %783 = vmatpush1.bf16.msra.mxu0 0
      %784 = vmatprep.mubr.bf16.mxu0 %v710
      %785 = vmatmul.mubr.bf16.gmra.mrb[0].mxu0 %v584
      %v786 = vpop.f32.mrb[0].mxu0
      %v787 = vadd.f32 0.0, %v786
      %v788 = vpop.f32.mrb[0].mxu0
      %v789 = vadd.f32 0.0, %v788
      %v790 = vpop.f32.mrb[0].mxu0
      %v791 = vadd.f32 0.0, %v790
      %v792 = vpop.f32.mrb[0].mxu0
      %v793 = vadd.f32 0.0, %v792
      %794 = vmatprep.mubr.bf16.mxu0 %v713
      %795 = vmatmul.mubr.bf16.gmra.mrb[0].mxu0 %v586
      %v796 = vpop.f32.mrb[0].mxu0
      %v797 = vadd.f32 0.0, %v796
      %v798 = vpop.f32.mrb[0].mxu0
      %v799 = vadd.f32 0.0, %v798
      %v800 = vpop.f32.mrb[0].mxu0
      %v801 = vadd.f32 0.0, %v800
      %v802 = vpop.f32.mrb[0].mxu0
      %v803 = vadd.f32 0.0, %v802
      %804 = vmatprep.mubr.bf16.mxu0 %v716
      %805 = vmatmul.mubr.bf16.gmra.mrb[0].mxu0 %v588
      %v806 = vpop.f32.mrb[0].mxu0
      %v807 = vadd.f32 0.0, %v806
      %v808 = vpop.f32.mrb[0].mxu0
      %v809 = vadd.f32 0.0, %v808
      %v810 = vpop.f32.mrb[0].mxu0
      %v811 = vadd.f32 0.0, %v810
      %v812 = vpop.f32.mrb[0].mxu0
      %v813 = vadd.f32 0.0, %v812
      %814 = vmatprep.mubr.bf16.mxu0 %v719
      %815 = vmatmul.mubr.bf16.gmra.mrb[0].mxu0 %v590
      %v816 = vpop.f32.mrb[0].mxu0
      %v817 = vadd.f32 0.0, %v816
      %v818 = vpop.f32.mrb[0].mxu0
      %v819 = vadd.f32 0.0, %v818
      %v820 = vpop.f32.mrb[0].mxu0
      %v821 = vadd.f32 0.0, %v820
      %v822 = vpop.f32.mrb[0].mxu0
      %v823 = vadd.f32 0.0, %v822
      %824 = vmatprep.mubr.bf16.mxu0 %v722
      %825 = vmatmul.mubr.bf16.gmra.mrb[0].mxu0 %v592
      %v826 = vpop.f32.mrb[0].mxu0
      %v827 = vadd.f32 0.0, %v826
      %v828 = vpop.f32.mrb[0].mxu0
      %v829 = vadd.f32 0.0, %v828
      %v830 = vpop.f32.mrb[0].mxu0
      %v831 = vadd.f32 0.0, %v830
      %v832 = vpop.f32.mrb[0].mxu0
      %v833 = vadd.f32 0.0, %v832
      %834 = vmatprep.mubr.bf16.mxu0 %v725
      %835 = vmatmul.mubr.bf16.gmra.mrb[0].mxu0 %v594
      %v836 = vpop.f32.mrb[0].mxu0
      %v837 = vadd.f32 0.0, %v836
      %v838 = vpop.f32.mrb[0].mxu0
      %v839 = vadd.f32 0.0, %v838
      %v840 = vpop.f32.mrb[0].mxu0
      %v841 = vadd.f32 0.0, %v840
      %v842 = vpop.f32.mrb[0].mxu0
      %v843 = vadd.f32 0.0, %v842
      %844 = vmatprep.mubr.bf16.mxu0 %v728
      %845 = vmatmul.mubr.bf16.gmra.mrb[0].mxu0 %v596
      %v846 = vpop.f32.mrb[0].mxu0
      %v847 = vadd.f32 0.0, %v846
      %v848 = vpop.f32.mrb[0].mxu0
      %v849 = vadd.f32 0.0, %v848
      %v850 = vpop.f32.mrb[0].mxu0
      %v851 = vadd.f32 0.0, %v850
      %v852 = vpop.f32.mrb[0].mxu0
      %v853 = vadd.f32 0.0, %v852
      %854 = vmatprep.mubr.bf16.mxu0 %v731
      %855 = vmatmul.mubr.bf16.gmra.mrb[0].mxu0 %v598
      %v856 = vpop.f32.mrb[0].mxu0
      %v857 = vadd.f32 0.0, %v856
      %v858 = vpop.f32.mrb[0].mxu0
      %v859 = vadd.f32 0.0, %v858
      %v860 = vpop.f32.mrb[0].mxu0
      %v861 = vadd.f32 0.0, %v860
      %v862 = vpop.f32.mrb[0].mxu0
      %v863 = vadd.f32 0.0, %v862
      %864 = vmatprep.mubr.bf16.mxu0 %v734
      %865 = vmatmul.mubr.bf16.gmra.mrb[0].mxu0 %v600
      %v866 = vpop.f32.mrb[0].mxu0
      %v867 = vadd.f32 0.0, %v866
      %v868 = vpop.f32.mrb[0].mxu0
      %v869 = vadd.f32 0.0, %v868
      %v870 = vpop.f32.mrb[0].mxu0
      %v871 = vadd.f32 0.0, %v870
      %v872 = vpop.f32.mrb[0].mxu0
      %v873 = vadd.f32 0.0, %v872
      %874 = vmatprep.mubr.bf16.mxu0 %v737
      %875 = vmatmul.mubr.bf16.gmra.mrb[0].mxu0 %v602
      %v876 = vpop.f32.mrb[0].mxu0
      %v877 = vadd.f32 0.0, %v876
      %v878 = vpop.f32.mrb[0].mxu0
      %v879 = vadd.f32 0.0, %v878
      %v880 = vpop.f32.mrb[0].mxu0
      %v881 = vadd.f32 0.0, %v880
      %v882 = vpop.f32.mrb[0].mxu0
      %v883 = vadd.f32 0.0, %v882
      %884 = vmatprep.mubr.bf16.mxu0 %v740
      %885 = vmatmul.mubr.bf16.gmra.mrb[0].mxu0 %v604
      %v886 = vpop.f32.mrb[0].mxu0
      %v887 = vadd.f32 0.0, %v886
      %v888 = vpop.f32.mrb[0].mxu0
      %v889 = vadd.f32 0.0, %v888
      %v890 = vpop.f32.mrb[0].mxu0
      %v891 = vadd.f32 0.0, %v890
      %v892 = vpop.f32.mrb[0].mxu0
      %v893 = vadd.f32 0.0, %v892
      %894 = vmatprep.mubr.bf16.mxu0 %v743
      %895 = vmatmul.mubr.bf16.gmra.mrb[0].mxu0 %v606
      %v896 = vpop.f32.mrb[0].mxu0
      %v897 = vadd.f32 0.0, %v896
      %v898 = vpop.f32.mrb[0].mxu0
      %v899 = vadd.f32 0.0, %v898
      %v900 = vpop.f32.mrb[0].mxu0
      %v901 = vadd.f32 0.0, %v900
      %v902 = vpop.f32.mrb[0].mxu0
      %v903 = vadd.f32 0.0, %v902
      %904 = vdwg.mxu0
      %905 = vst [vmem:[#allocation2] sm:$0xff] %v787
      %vm906 = vcmask 916480
      %907 = vst.msk [vmem:[#allocation2 + $0x8] sm:$0xff] %vm906, %v789
      %908 = vst [vmem:[#allocation2 + $0x10] sm:$0xff] %v791
      %909 = vst.msk [vmem:[#allocation2 + $0x18] sm:$0xff] %vm906, %v793
      %910 = vst [vmem:[#allocation2 + $0x20] sm:$0xff] %v797
      %911 = vst.msk [vmem:[#allocation2 + $0x28] sm:$0xff] %vm906, %v799
      %912 = vst [vmem:[#allocation2 + $0x30] sm:$0xff] %v801
      %913 = vst.msk [vmem:[#allocation2 + $0x38] sm:$0xff] %vm906, %v803
      %914 = vst [vmem:[#allocation2 + $0x40] sm:$0xff] %v807
      %915 = vst.msk [vmem:[#allocation2 + $0x48] sm:$0xff] %vm906, %v809
      %916 = vst [vmem:[#allocation2 + $0x50] sm:$0xff] %v811
      %917 = vst.msk [vmem:[#allocation2 + $0x58] sm:$0xff] %vm906, %v813
      %918 = vst [vmem:[#allocation2 + $0x60] sm:$0xff] %v817
      %919 = vst.msk [vmem:[#allocation2 + $0x68] sm:$0xff] %vm906, %v819
      %920 = vst [vmem:[#allocation2 + $0x70] sm:$0xff] %v821
      %921 = vst.msk [vmem:[#allocation2 + $0x78] sm:$0xff] %vm906, %v823
      %922 = vst [vmem:[#allocation2 + $0x80] sm:$0xff] %v827
      %923 = vst.msk [vmem:[#allocation2 + $0x88] sm:$0xff] %vm906, %v829
      %924 = vst [vmem:[#allocation2 + $0x90] sm:$0xff] %v831
      %925 = vst.msk [vmem:[#allocation2 + $0x98] sm:$0xff] %vm906, %v833
      %926 = vst [vmem:[#allocation2 + $0xa0] sm:$0xff] %v837
      %927 = vst.msk [vmem:[#allocation2 + $0xa8] sm:$0xff] %vm906, %v839
      %928 = vst [vmem:[#allocation2 + $0xb0] sm:$0xff] %v841
      %929 = vst.msk [vmem:[#allocation2 + $0xb8] sm:$0xff] %vm906, %v843
      %930 = vst [vmem:[#allocation2 + $0xc0] sm:$0xff] %v847
      %931 = vst.msk [vmem:[#allocation2 + $0xc8] sm:$0xff] %vm906, %v849
      %932 = vst [vmem:[#allocation2 + $0xd0] sm:$0xff] %v851
      %933 = vst.msk [vmem:[#allocation2 + $0xd8] sm:$0xff] %vm906, %v853
      %934 = vst [vmem:[#allocation2 + $0xe0] sm:$0xff] %v857
      %935 = vst.msk [vmem:[#allocation2 + $0xe8] sm:$0xff] %vm906, %v859
      %936 = vst [vmem:[#allocation2 + $0xf0] sm:$0xff] %v861
      %937 = vst.msk [vmem:[#allocation2 + $0xf8] sm:$0xff] %vm906, %v863
      %938 = vst [vmem:[#allocation2 + $0x100] sm:$0xff] %v867
      %939 = vst.msk [vmem:[#allocation2 + $0x108] sm:$0xff] %vm906, %v869
      %940 = vst [vmem:[#allocation2 + $0x110] sm:$0xff] %v871
      %941 = vst.msk [vmem:[#allocation2 + $0x118] sm:$0xff] %vm906, %v873
      %942 = vst [vmem:[#allocation2 + $0x120] sm:$0xff] %v877
      %943 = vst.msk [vmem:[#allocation2 + $0x128] sm:$0xff] %vm906, %v879
      %944 = vst [vmem:[#allocation2 + $0x130] sm:$0xff] %v881
      %945 = vst.msk [vmem:[#allocation2 + $0x138] sm:$0xff] %vm906, %v883
      %946 = vst [vmem:[#allocation2 + $0x140] sm:$0xff] %v887
      %947 = vst.msk [vmem:[#allocation2 + $0x148] sm:$0xff] %vm906, %v889
      %948 = vst [vmem:[#allocation2 + $0x150] sm:$0xff] %v891
      %949 = vst.msk [vmem:[#allocation2 + $0x158] sm:$0xff] %vm906, %v893
      %950 = vst [vmem:[#allocation2 + $0x160] sm:$0xff] %v897
      %951 = vst.msk [vmem:[#allocation2 + $0x168] sm:$0xff] %vm906, %v899
      %952 = vst [vmem:[#allocation2 + $0x170] sm:$0xff] %v901
      %953 = vst.msk [vmem:[#allocation2 + $0x178] sm:$0xff] %vm906, %v903
      %v954 = vld [vmem:[#allocation2] sm:$0xff]
      %v955 = vld [vmem:[#allocation2 + $0x8] sm:$0xff]
      %v956 = vld [vmem:[#allocation2 + $0x10] sm:$0xff]
      %v957 = vld [vmem:[#allocation2 + $0x18] sm:$0xff]
      %v958 = vld [vmem:[#allocation2 + $0x20] sm:$0xff]
      %v959 = vld [vmem:[#allocation2 + $0x28] sm:$0xff]
      %v960 = vld [vmem:[#allocation2 + $0x30] sm:$0xff]
      %v961 = vld [vmem:[#allocation2 + $0x38] sm:$0xff]
      %v962 = vld [vmem:[#allocation2 + $0x40] sm:$0xff]
      %v963 = vld [vmem:[#allocation2 + $0x48] sm:$0xff]
      %v964 = vld [vmem:[#allocation2 + $0x50] sm:$0xff]
      %v965 = vld [vmem:[#allocation2 + $0x58] sm:$0xff]
      %v966 = vld [vmem:[#allocation2 + $0x60] sm:$0xff]
      %v967 = vld [vmem:[#allocation2 + $0x68] sm:$0xff]
      %v968 = vld [vmem:[#allocation2 + $0x70] sm:$0xff]
      %v969 = vld [vmem:[#allocation2 + $0x78] sm:$0xff]
      %v970 = vld [vmem:[#allocation2 + $0x80] sm:$0xff]
      %v971 = vld [vmem:[#allocation2 + $0x88] sm:$0xff]
      %v972 = vld [vmem:[#allocation2 + $0x90] sm:$0xff]
      %v973 = vld [vmem:[#allocation2 + $0x98] sm:$0xff]
      %v974 = vld [vmem:[#allocation2 + $0xa0] sm:$0xff]
      %v975 = vld [vmem:[#allocation2 + $0xa8] sm:$0xff]
      %v976 = vld [vmem:[#allocation2 + $0xb0] sm:$0xff]
      %v977 = vld [vmem:[#allocation2 + $0xb8] sm:$0xff]
      %v978 = vld [vmem:[#allocation2 + $0xc0] sm:$0xff]
      %v979 = vld [vmem:[#allocation2 + $0xc8] sm:$0xff]
      %v980 = vld [vmem:[#allocation2 + $0xd0] sm:$0xff]
      %v981 = vld [vmem:[#allocation2 + $0xd8] sm:$0xff]
      %v982 = vld [vmem:[#allocation2 + $0xe0] sm:$0xff]
      %v983 = vld [vmem:[#allocation2 + $0xe8] sm:$0xff]
      %v984 = vld [vmem:[#allocation2 + $0xf0] sm:$0xff]
      %v985 = vld [vmem:[#allocation2 + $0xf8] sm:$0xff]
      %v986 = vld [vmem:[#allocation2 + $0x100] sm:$0xff]
      %v987 = vld [vmem:[#allocation2 + $0x108] sm:$0xff]
      %v988 = vld [vmem:[#allocation2 + $0x110] sm:$0xff]
      %v989 = vld [vmem:[#allocation2 + $0x118] sm:$0xff]
      %v990 = vld [vmem:[#allocation2 + $0x120] sm:$0xff]
      %v991 = vld [vmem:[#allocation2 + $0x128] sm:$0xff]
      %v992 = vld [vmem:[#allocation2 + $0x130] sm:$0xff]
      %v993 = vld [vmem:[#allocation2 + $0x138] sm:$0xff]
      %v994 = vld [vmem:[#allocation2 + $0x140] sm:$0xff]
      %v995 = vld [vmem:[#allocation2 + $0x148] sm:$0xff]
      %v996 = vld [vmem:[#allocation2 + $0x150] sm:$0xff]
      %v997 = vld [vmem:[#allocation2 + $0x158] sm:$0xff]
      %v998 = vld [vmem:[#allocation2 + $0x160] sm:$0xff]
      %v999 = vld [vmem:[#allocation2 + $0x168] sm:$0xff]
      %v1000 = vld [vmem:[#allocation2 + $0x170] sm:$0xff]
      %v1001 = vld [vmem:[#allocation2 + $0x178] sm:$0xff]
      %v1002 = vld [vmem:[%s3] sm:$0xff]
      %v1003 = vld [vmem:[%s3 + $0x8] sm:$0xff]
      %v1004 = vld [vmem:[%s3 + $0x10] sm:$0xff]
      %v1005 = vld [vmem:[%s3 + $0x18] sm:$0xff]
      %v1006 = vld [vmem:[%s3 + $0x20] sm:$0xff]
      %v1007 = vld [vmem:[%s3 + $0x28] sm:$0xff]
      %v1008 = vld [vmem:[%s3 + $0x30] sm:$0xff]
      %v1009 = vld [vmem:[%s3 + $0x38] sm:$0xff]
      %v1010 = vld [vmem:[%s3 + $0x40] sm:$0xff]
      %v1011 = vld [vmem:[%s3 + $0x48] sm:$0xff]
      %v1012 = vld [vmem:[%s3 + $0x50] sm:$0xff]
      %v1013 = vld [vmem:[%s3 + $0x58] sm:$0xff]
      %v1014 = vld [vmem:[%s3 + $0x60] sm:$0xff]
      %v1015 = vld [vmem:[%s3 + $0x68] sm:$0xff]
      %v1016 = vld [vmem:[%s3 + $0x70] sm:$0xff]
      %v1017 = vld [vmem:[%s3 + $0x78] sm:$0xff]
      %v1018 = vld [vmem:[%s3 + $0x80] sm:$0xff]
      %v1019 = vld [vmem:[%s3 + $0x88] sm:$0x33]
      %v1038 = vunpack.c.l.b16 %v1002
      %v1039 = vunpack.c.h.b16 %v1002
      %v1040 = vunpack.c.l.b16 %v1003
      %v1041 = vunpack.c.h.b16 %v1003
      %v1042 = vunpack.c.l.b16 %v1004
      %v1043 = vunpack.c.h.b16 %v1004
      %v1044 = vunpack.c.l.b16 %v1005
      %v1045 = vunpack.c.h.b16 %v1005
      %v1046 = vunpack.c.l.b16 %v1006
      %v1047 = vunpack.c.h.b16 %v1006
      %v1048 = vunpack.c.l.b16 %v1007
      %v1049 = vunpack.c.h.b16 %v1007
      %v1050 = vunpack.c.l.b16 %v1008
      %v1051 = vunpack.c.h.b16 %v1008
      %v1052 = vunpack.c.l.b16 %v1009
      %v1053 = vunpack.c.h.b16 %v1009
      %v1054 = vunpack.c.l.b16 %v1010
      %v1055 = vunpack.c.h.b16 %v1010
      %v1056 = vunpack.c.l.b16 %v1011
      %v1057 = vunpack.c.h.b16 %v1011
      %v1058 = vunpack.c.l.b16 %v1012
      %v1059 = vunpack.c.h.b16 %v1012
      %v1060 = vunpack.c.l.b16 %v1013
      %v1061 = vunpack.c.h.b16 %v1013
      %v1062 = vunpack.c.l.b16 %v1014
      %v1063 = vunpack.c.h.b16 %v1014
      %v1064 = vunpack.c.l.b16 %v1015
      %v1065 = vunpack.c.h.b16 %v1015
      %v1066 = vunpack.c.l.b16 %v1016
      %v1067 = vunpack.c.h.b16 %v1016
      %v1068 = vunpack.c.l.b16 %v1017
      %v1069 = vunpack.c.h.b16 %v1017
      %v1070 = vunpack.c.l.b16 %v1018
      %v1071 = vunpack.c.h.b16 %v1018
      %v1072 = vunpack.c.l.b16 %v1019
      %v1073 = vunpack.c.h.b16 %v1019
      %v1074 = vpack.c.b16 %v1040, %v1038
      %v1075 = vpack.c.b16 %v1041, %v1039
      %v1076 = vpack.c.b16 %v1044, %v1042
      %v1077 = vpack.c.b16 %v1045, %v1043
      %v1078 = vpack.c.b16 %v1048, %v1046
      %v1079 = vpack.c.b16 %v1049, %v1047
      %v1080 = vpack.c.b16 %v1052, %v1050
      %v1081 = vpack.c.b16 %v1053, %v1051
      %v1082 = vpack.c.b16 %v1056, %v1054
      %v1083 = vpack.c.b16 %v1057, %v1055
      %v1084 = vpack.c.b16 %v1060, %v1058
      %v1085 = vpack.c.b16 %v1061, %v1059
      %v1086 = vpack.c.b16 %v1064, %v1062
      %v1087 = vpack.c.b16 %v1065, %v1063
      %v1088 = vpack.c.b16 %v1068, %v1066
      %v1089 = vpack.c.b16 %v1069, %v1067
      %v1090 = vpack.c.b16 %v1072, %v1070
      %v1091 = vpack.c.b16 %v1073, %v1071
      %v1109 = vsel %vm745, %v1090, 0
      %v1112 = vsel %vm745, %v1091, 0
      %1114 = vmatprep.subr.bf16.mxu0 %v1075
      %1115 = vmatpush1.bf16.msra.mxu0 %v1074
      %1116 = vmatprep.subr.bf16.mxu0 %v1077
      %1117 = vmatpush1.bf16.msra.mxu0 %v1076
      %1118 = vmatprep.subr.bf16.mxu0 %v1079
      %1119 = vmatpush1.bf16.msra.mxu0 %v1078
      %1120 = vmatprep.subr.bf16.mxu0 %v1081
      %1121 = vmatpush1.bf16.msra.mxu0 %v1080
      %1122 = vmatprep.subr.bf16.mxu0 %v1083
      %1123 = vmatpush1.bf16.msra.mxu0 %v1082
      %1124 = vmatprep.subr.bf16.mxu0 %v1085
      %1125 = vmatpush1.bf16.msra.mxu0 %v1084
      %1126 = vmatprep.subr.bf16.mxu0 %v1087
      %1127 = vmatpush1.bf16.msra.mxu0 %v1086
      %1128 = vmatprep.subr.bf16.mxu0 %v1089
      %1129 = vmatpush1.bf16.msra.mxu0 %v1088
      %1130 = vmatprep.subr.bf16.mxu0 %v1112
      %1131 = vmatpush1.bf16.msra.mxu0 %v1109
      %1132 = vmatprep.subr.bf16.mxu0 0
      %1133 = vmatpush1.bf16.msra.mxu0 0
      %1134 = vmatprep.subr.bf16.mxu0 0
      %1135 = vmatpush1.bf16.msra.mxu0 0
      %1136 = vmatprep.subr.bf16.mxu0 0
      %1137 = vmatpush1.bf16.msra.mxu0 0
      %1138 = vmatprep.subr.bf16.mxu0 0
      %1139 = vmatpush1.bf16.msra.mxu0 0
      %1140 = vmatprep.subr.bf16.mxu0 0
      %1141 = vmatpush1.bf16.msra.mxu0 0
      %1142 = vmatprep.subr.bf16.mxu0 0
      %1143 = vmatpush1.bf16.msra.mxu0 0
      %1144 = vmatprep.subr.bf16.mxu0 0
      %1145 = vmatpush1.bf16.msra.mxu0 0
      %1146 = vmatprep.mubr.bf16.mxu0 %v710
      %1147 = vmatmul.mubr.bf16.gmra.mrb[0].mxu0 %v584
      %v1148 = vpop.f32.mrb[0].mxu0
      %v1149 = vadd.f32 0.0, %v1148
      %v1150 = vpop.f32.mrb[0].mxu0
      %v1151 = vadd.f32 0.0, %v1150
      %v1152 = vpop.f32.mrb[0].mxu0
      %v1153 = vadd.f32 0.0, %v1152
      %v1154 = vpop.f32.mrb[0].mxu0
      %v1155 = vadd.f32 0.0, %v1154
      %1156 = vmatprep.mubr.bf16.mxu0 %v713
      %1157 = vmatmul.mubr.bf16.gmra.mrb[0].mxu0 %v586
      %v1158 = vpop.f32.mrb[0].mxu0
      %v1159 = vadd.f32 0.0, %v1158
      %v1160 = vpop.f32.mrb[0].mxu0
      %v1161 = vadd.f32 0.0, %v1160
      %v1162 = vpop.f32.mrb[0].mxu0
      %v1163 = vadd.f32 0.0, %v1162
      %v1164 = vpop.f32.mrb[0].mxu0
      %v1165 = vadd.f32 0.0, %v1164
      %1166 = vmatprep.mubr.bf16.mxu0 %v716
      %1167 = vmatmul.mubr.bf16.gmra.mrb[0].mxu0 %v588
      %v1168 = vpop.f32.mrb[0].mxu0
      %v1169 = vadd.f32 0.0, %v1168
      %v1170 = vpop.f32.mrb[0].mxu0
      %v1171 = vadd.f32 0.0, %v1170
      %v1172 = vpop.f32.mrb[0].mxu0
      %v1173 = vadd.f32 0.0, %v1172
      %v1174 = vpop.f32.mrb[0].mxu0
      %v1175 = vadd.f32 0.0, %v1174
      %1176 = vmatprep.mubr.bf16.mxu0 %v719
      %1177 = vmatmul.mubr.bf16.gmra.mrb[0].mxu0 %v590
      %v1178 = vpop.f32.mrb[0].mxu0
      %v1179 = vadd.f32 0.0, %v1178
      %v1180 = vpop.f32.mrb[0].mxu0
      %v1181 = vadd.f32 0.0, %v1180
      %v1182 = vpop.f32.mrb[0].mxu0
      %v1183 = vadd.f32 0.0, %v1182
      %v1184 = vpop.f32.mrb[0].mxu0
      %v1185 = vadd.f32 0.0, %v1184
      %1186 = vmatprep.mubr.bf16.mxu0 %v722
      %1187 = vmatmul.mubr.bf16.gmra.mrb[0].mxu0 %v592
      %v1188 = vpop.f32.mrb[0].mxu0
      %v1189 = vadd.f32 0.0, %v1188
      %v1190 = vpop.f32.mrb[0].mxu0
      %v1191 = vadd.f32 0.0, %v1190
      %v1192 = vpop.f32.mrb[0].mxu0
      %v1193 = vadd.f32 0.0, %v1192
      %v1194 = vpop.f32.mrb[0].mxu0
      %v1195 = vadd.f32 0.0, %v1194
      %1196 = vmatprep.mubr.bf16.mxu0 %v725
      %1197 = vmatmul.mubr.bf16.gmra.mrb[0].mxu0 %v594
      %v1198 = vpop.f32.mrb[0].mxu0
      %v1199 = vadd.f32 0.0, %v1198
      %v1200 = vpop.f32.mrb[0].mxu0
      %v1201 = vadd.f32 0.0, %v1200
      %v1202 = vpop.f32.mrb[0].mxu0
      %v1203 = vadd.f32 0.0, %v1202
      %v1204 = vpop.f32.mrb[0].mxu0
      %v1205 = vadd.f32 0.0, %v1204
      %1206 = vmatprep.mubr.bf16.mxu0 %v728
      %1207 = vmatmul.mubr.bf16.gmra.mrb[0].mxu0 %v596
      %v1208 = vpop.f32.mrb[0].mxu0
      %v1209 = vadd.f32 0.0, %v1208
      %v1210 = vpop.f32.mrb[0].mxu0
      %v1211 = vadd.f32 0.0, %v1210
      %v1212 = vpop.f32.mrb[0].mxu0
      %v1213 = vadd.f32 0.0, %v1212
      %v1214 = vpop.f32.mrb[0].mxu0
      %v1215 = vadd.f32 0.0, %v1214
      %1216 = vmatprep.mubr.bf16.mxu0 %v731
      %1217 = vmatmul.mubr.bf16.gmra.mrb[0].mxu0 %v598
      %v1218 = vpop.f32.mrb[0].mxu0
      %v1219 = vadd.f32 0.0, %v1218
      %v1220 = vpop.f32.mrb[0].mxu0
      %v1221 = vadd.f32 0.0, %v1220
      %v1222 = vpop.f32.mrb[0].mxu0
      %v1223 = vadd.f32 0.0, %v1222
      %v1224 = vpop.f32.mrb[0].mxu0
      %v1225 = vadd.f32 0.0, %v1224
      %1226 = vmatprep.mubr.bf16.mxu0 %v734
      %1227 = vmatmul.mubr.bf16.gmra.mrb[0].mxu0 %v600
      %v1228 = vpop.f32.mrb[0].mxu0
      %v1229 = vadd.f32 0.0, %v1228
      %v1230 = vpop.f32.mrb[0].mxu0
      %v1231 = vadd.f32 0.0, %v1230
      %v1232 = vpop.f32.mrb[0].mxu0
      %v1233 = vadd.f32 0.0, %v1232
      %v1234 = vpop.f32.mrb[0].mxu0
      %v1235 = vadd.f32 0.0, %v1234
      %1236 = vmatprep.mubr.bf16.mxu0 %v737
      %1237 = vmatmul.mubr.bf16.gmra.mrb[0].mxu0 %v602
      %v1238 = vpop.f32.mrb[0].mxu0
      %v1239 = vadd.f32 0.0, %v1238
      %v1240 = vpop.f32.mrb[0].mxu0
      %v1241 = vadd.f32 0.0, %v1240
      %v1242 = vpop.f32.mrb[0].mxu0
      %v1243 = vadd.f32 0.0, %v1242
      %v1244 = vpop.f32.mrb[0].mxu0
      %v1245 = vadd.f32 0.0, %v1244
      %1246 = vmatprep.mubr.bf16.mxu0 %v740
      %1247 = vmatmul.mubr.bf16.gmra.mrb[0].mxu0 %v604
      %v1248 = vpop.f32.mrb[0].mxu0
      %v1249 = vadd.f32 0.0, %v1248
      %v1250 = vpop.f32.mrb[0].mxu0
      %v1251 = vadd.f32 0.0, %v1250
      %v1252 = vpop.f32.mrb[0].mxu0
      %v1253 = vadd.f32 0.0, %v1252
      %v1254 = vpop.f32.mrb[0].mxu0
      %v1255 = vadd.f32 0.0, %v1254
      %1256 = vmatprep.mubr.bf16.mxu0 %v743
      %1257 = vmatmul.mubr.bf16.gmra.mrb[0].mxu0 %v606
      %v1258 = vpop.f32.mrb[0].mxu0
      %v1259 = vadd.f32 0.0, %v1258
      %v1260 = vpop.f32.mrb[0].mxu0
      %v1261 = vadd.f32 0.0, %v1260
      %v1262 = vpop.f32.mrb[0].mxu0
      %v1263 = vadd.f32 0.0, %v1262
      %v1264 = vpop.f32.mrb[0].mxu0
      %v1265 = vadd.f32 0.0, %v1264
      %1266 = vdwg.mxu0
      %v1267 = vmax.f32 %v954, %v1149
      %v1268 = vmax.f32 %v955, %v1151
      %v1269 = vmax.f32 %v956, %v1153
      %v1270 = vmax.f32 %v957, %v1155
      %v1271 = vmax.f32 %v958, %v1159
      %v1272 = vmax.f32 %v959, %v1161
      %v1273 = vmax.f32 %v960, %v1163
      %v1274 = vmax.f32 %v961, %v1165
      %v1275 = vmax.f32 %v962, %v1169
      %v1276 = vmax.f32 %v963, %v1171
      %v1277 = vmax.f32 %v964, %v1173
      %v1278 = vmax.f32 %v965, %v1175
      %v1279 = vmax.f32 %v966, %v1179
      %v1280 = vmax.f32 %v967, %v1181
      %v1281 = vmax.f32 %v968, %v1183
      %v1282 = vmax.f32 %v969, %v1185
      %v1283 = vmax.f32 %v970, %v1189
      %v1284 = vmax.f32 %v971, %v1191
      %v1285 = vmax.f32 %v972, %v1193
      %v1286 = vmax.f32 %v973, %v1195
      %v1287 = vmax.f32 %v974, %v1199
      %v1288 = vmax.f32 %v975, %v1201
      %v1289 = vmax.f32 %v976, %v1203
      %v1290 = vmax.f32 %v977, %v1205
      %v1291 = vmax.f32 %v978, %v1209
      %v1292 = vmax.f32 %v979, %v1211
      %v1293 = vmax.f32 %v980, %v1213
      %v1294 = vmax.f32 %v981, %v1215
      %v1295 = vmax.f32 %v982, %v1219
      %v1296 = vmax.f32 %v983, %v1221
      %v1297 = vmax.f32 %v984, %v1223
      %v1298 = vmax.f32 %v985, %v1225
      %v1299 = vmax.f32 %v986, %v1229
      %v1300 = vmax.f32 %v987, %v1231
      %v1301 = vmax.f32 %v988, %v1233
      %v1302 = vmax.f32 %v989, %v1235
      %v1303 = vmax.f32 %v990, %v1239
      %v1304 = vmax.f32 %v991, %v1241
      %v1305 = vmax.f32 %v992, %v1243
      %v1306 = vmax.f32 %v993, %v1245
      %v1307 = vmax.f32 %v994, %v1249
      %v1308 = vmax.f32 %v995, %v1251
      %v1309 = vmax.f32 %v996, %v1253
      %v1310 = vmax.f32 %v997, %v1255
      %v1311 = vmax.f32 %v998, %v1259
      %v1312 = vmax.f32 %v999, %v1261
      %v1313 = vmax.f32 %v1000, %v1263
      %v1314 = vmax.f32 %v1001, %v1265
      %1315 = vst [vmem:[#allocation2] sm:$0xff] %v1267
      %1316 = vst.msk [vmem:[#allocation2 + $0x8] sm:$0xff] %vm906, %v1268
      %1317 = vst [vmem:[#allocation2 + $0x10] sm:$0xff] %v1269
      %1318 = vst.msk [vmem:[#allocation2 + $0x18] sm:$0xff] %vm906, %v1270
      %1319 = vst [vmem:[#allocation2 + $0x20] sm:$0xff] %v1271
      %1320 = vst.msk [vmem:[#allocation2 + $0x28] sm:$0xff] %vm906, %v1272
      %1321 = vst [vmem:[#allocation2 + $0x30] sm:$0xff] %v1273
      %1322 = vst.msk [vmem:[#allocation2 + $0x38] sm:$0xff] %vm906, %v1274
      %1323 = vst [vmem:[#allocation2 + $0x40] sm:$0xff] %v1275
      %1324 = vst.msk [vmem:[#allocation2 + $0x48] sm:$0xff] %vm906, %v1276
      %1325 = vst [vmem:[#allocation2 + $0x50] sm:$0xff] %v1277
      %1326 = vst.msk [vmem:[#allocation2 + $0x58] sm:$0xff] %vm906, %v1278
      %1327 = vst [vmem:[#allocation2 + $0x60] sm:$0xff] %v1279
      %1328 = vst.msk [vmem:[#allocation2 + $0x68] sm:$0xff] %vm906, %v1280
      %1329 = vst [vmem:[#allocation2 + $0x70] sm:$0xff] %v1281
      %1330 = vst.msk [vmem:[#allocation2 + $0x78] sm:$0xff] %vm906, %v1282
      %1331 = vst [vmem:[#allocation2 + $0x80] sm:$0xff] %v1283
      %1332 = vst.msk [vmem:[#allocation2 + $0x88] sm:$0xff] %vm906, %v1284
      %1333 = vst [vmem:[#allocation2 + $0x90] sm:$0xff] %v1285
      %1334 = vst.msk [vmem:[#allocation2 + $0x98] sm:$0xff] %vm906, %v1286
      %1335 = vst [vmem:[#allocation2 + $0xa0] sm:$0xff] %v1287
      %1336 = vst.msk [vmem:[#allocation2 + $0xa8] sm:$0xff] %vm906, %v1288
      %1337 = vst [vmem:[#allocation2 + $0xb0] sm:$0xff] %v1289
      %1338 = vst.msk [vmem:[#allocation2 + $0xb8] sm:$0xff] %vm906, %v1290
      %1339 = vst [vmem:[#allocation2 + $0xc0] sm:$0xff] %v1291
      %1340 = vst.msk [vmem:[#allocation2 + $0xc8] sm:$0xff] %vm906, %v1292
      %1341 = vst [vmem:[#allocation2 + $0xd0] sm:$0xff] %v1293
      %1342 = vst.msk [vmem:[#allocation2 + $0xd8] sm:$0xff] %vm906, %v1294
      %1343 = vst [vmem:[#allocation2 + $0xe0] sm:$0xff] %v1295
      %1344 = vst.msk [vmem:[#allocation2 + $0xe8] sm:$0xff] %vm906, %v1296
      %1345 = vst [vmem:[#allocation2 + $0xf0] sm:$0xff] %v1297
      %1346 = vst.msk [vmem:[#allocation2 + $0xf8] sm:$0xff] %vm906, %v1298
      %1347 = vst [vmem:[#allocation2 + $0x100] sm:$0xff] %v1299
      %1348 = vst.msk [vmem:[#allocation2 + $0x108] sm:$0xff] %vm906, %v1300
      %1349 = vst [vmem:[#allocation2 + $0x110] sm:$0xff] %v1301
      %1350 = vst.msk [vmem:[#allocation2 + $0x118] sm:$0xff] %vm906, %v1302
      %1351 = vst [vmem:[#allocation2 + $0x120] sm:$0xff] %v1303
      %1352 = vst.msk [vmem:[#allocation2 + $0x128] sm:$0xff] %vm906, %v1304
      %1353 = vst [vmem:[#allocation2 + $0x130] sm:$0xff] %v1305
      %1354 = vst.msk [vmem:[#allocation2 + $0x138] sm:$0xff] %vm906, %v1306
      %1355 = vst [vmem:[#allocation2 + $0x140] sm:$0xff] %v1307
      %1356 = vst.msk [vmem:[#allocation2 + $0x148] sm:$0xff] %vm906, %v1308
      %1357 = vst [vmem:[#allocation2 + $0x150] sm:$0xff] %v1309
      %1358 = vst.msk [vmem:[#allocation2 + $0x158] sm:$0xff] %vm906, %v1310
      %1359 = vst [vmem:[#allocation2 + $0x160] sm:$0xff] %v1311
      %1360 = vst.msk [vmem:[#allocation2 + $0x168] sm:$0xff] %vm906, %v1312
      %1361 = vst [vmem:[#allocation2 + $0x170] sm:$0xff] %v1313
      %1362 = vst.msk [vmem:[#allocation2 + $0x178] sm:$0xff] %vm906, %v1314
      %v1363 = vld [vmem:[#allocation2] sm:$0xff]
      %v1364 = vld [vmem:[#allocation2 + $0x8] sm:$0xff]
      %v1365 = vld [vmem:[#allocation2 + $0x10] sm:$0xff]
      %v1366 = vld [vmem:[#allocation2 + $0x18] sm:$0xff]
      %v1367 = vld [vmem:[#allocation2 + $0x20] sm:$0xff]
      %v1368 = vld [vmem:[#allocation2 + $0x28] sm:$0xff]
      %v1369 = vld [vmem:[#allocation2 + $0x30] sm:$0xff]
      %v1370 = vld [vmem:[#allocation2 + $0x38] sm:$0xff]
      %v1371 = vld [vmem:[#allocation2 + $0x40] sm:$0xff]
      %v1372 = vld [vmem:[#allocation2 + $0x48] sm:$0xff]
      %v1373 = vld [vmem:[#allocation2 + $0x50] sm:$0xff]
      %v1374 = vld [vmem:[#allocation2 + $0x58] sm:$0xff]
      %v1375 = vld [vmem:[#allocation2 + $0x60] sm:$0xff]
      %v1376 = vld [vmem:[#allocation2 + $0x68] sm:$0xff]
      %v1377 = vld [vmem:[#allocation2 + $0x70] sm:$0xff]
      %v1378 = vld [vmem:[#allocation2 + $0x78] sm:$0xff]
      %v1379 = vld [vmem:[#allocation2 + $0x80] sm:$0xff]
      %v1380 = vld [vmem:[#allocation2 + $0x88] sm:$0xff]
      %v1381 = vld [vmem:[#allocation2 + $0x90] sm:$0xff]
      %v1382 = vld [vmem:[#allocation2 + $0x98] sm:$0xff]
      %v1383 = vld [vmem:[#allocation2 + $0xa0] sm:$0xff]
      %v1384 = vld [vmem:[#allocation2 + $0xa8] sm:$0xff]
      %v1385 = vld [vmem:[#allocation2 + $0xb0] sm:$0xff]
      %v1386 = vld [vmem:[#allocation2 + $0xb8] sm:$0xff]
      %v1387 = vld [vmem:[#allocation2 + $0xc0] sm:$0xff]
      %v1388 = vld [vmem:[#allocation2 + $0xc8] sm:$0xff]
      %v1389 = vld [vmem:[#allocation2 + $0xd0] sm:$0xff]
      %v1390 = vld [vmem:[#allocation2 + $0xd8] sm:$0xff]
      %v1391 = vld [vmem:[#allocation2 + $0xe0] sm:$0xff]
      %v1392 = vld [vmem:[#allocation2 + $0xe8] sm:$0xff]
      %v1393 = vld [vmem:[#allocation2 + $0xf0] sm:$0xff]
      %v1394 = vld [vmem:[#allocation2 + $0xf8] sm:$0xff]
      %v1395 = vld [vmem:[#allocation2 + $0x100] sm:$0xff]
      %v1396 = vld [vmem:[#allocation2 + $0x108] sm:$0xff]
      %v1397 = vld [vmem:[#allocation2 + $0x110] sm:$0xff]
      %v1398 = vld [vmem:[#allocation2 + $0x118] sm:$0xff]
      %v1399 = vld [vmem:[#allocation2 + $0x120] sm:$0xff]
      %v1400 = vld [vmem:[#allocation2 + $0x128] sm:$0xff]
      %v1401 = vld [vmem:[#allocation2 + $0x130] sm:$0xff]
      %v1402 = vld [vmem:[#allocation2 + $0x138] sm:$0xff]
      %v1403 = vld [vmem:[#allocation2 + $0x140] sm:$0xff]
      %v1404 = vld [vmem:[#allocation2 + $0x148] sm:$0xff]
      %v1405 = vld [vmem:[#allocation2 + $0x150] sm:$0xff]
      %v1406 = vld [vmem:[#allocation2 + $0x158] sm:$0xff]
      %v1407 = vld [vmem:[#allocation2 + $0x160] sm:$0xff]
      %v1408 = vld [vmem:[#allocation2 + $0x168] sm:$0xff]
      %v1409 = vld [vmem:[#allocation2 + $0x170] sm:$0xff]
      %v1410 = vld [vmem:[#allocation2 + $0x178] sm:$0xff]
      %v1411 = vld [vmem:[%s2] sm:$0xff]
      %v1412 = vld [vmem:[%s2 + $0x8] sm:$0xff]
      %v1413 = vld [vmem:[%s2 + $0x10] sm:$0xff]
      %v1414 = vld [vmem:[%s2 + $0x18] sm:$0xff]
      %v1415 = vld [vmem:[%s2 + $0x20] sm:$0xff]
      %v1416 = vld [vmem:[%s2 + $0x28] sm:$0xff]
      %v1417 = vld [vmem:[%s2 + $0x30] sm:$0xff]
      %v1418 = vld [vmem:[%s2 + $0x38] sm:$0xff]
      %v1419 = vld [vmem:[%s2 + $0x40] sm:$0xff]
      %v1420 = vld [vmem:[%s2 + $0x48] sm:$0xff]
      %v1421 = vld [vmem:[%s2 + $0x50] sm:$0xff]
      %v1422 = vld [vmem:[%s2 + $0x58] sm:$0xff]
      %v1423 = vld [vmem:[%s2 + $0x60] sm:$0xff]
      %v1424 = vld [vmem:[%s2 + $0x68] sm:$0xff]
      %v1425 = vld [vmem:[%s2 + $0x70] sm:$0xff]
      %v1426 = vld [vmem:[%s2 + $0x78] sm:$0xff]
      %v1427 = vld [vmem:[%s2 + $0x80] sm:$0xff]
      %v1428 = vld [vmem:[%s2 + $0x88] sm:$0x33]
      %v1453 = vunpack.c.l.b16 %v470
      %v1454 = vunpack.c.h.b16 %v470
      %v1455 = vunpack.c.l.b16 %v471
      %v1456 = vunpack.c.h.b16 %v471
      %v1457 = vunpack.c.l.b16 %v472
      %v1458 = vunpack.c.h.b16 %v472
      %v1459 = vunpack.c.l.b16 %v473
      %v1460 = vunpack.c.h.b16 %v473
      %v1461 = vunpack.c.l.b16 %v474
      %v1462 = vunpack.c.h.b16 %v474
      %v1463 = vunpack.c.l.b16 %v475
      %v1464 = vunpack.c.h.b16 %v475
      %v1465 = vunpack.c.l.b16 %v476
      %v1466 = vunpack.c.h.b16 %v476
      %v1467 = vunpack.c.l.b16 %v477
      %v1468 = vunpack.c.h.b16 %v477
      %v1469 = vunpack.c.l.b16 %v478
      %v1470 = vunpack.c.h.b16 %v478
      %v1471 = vunpack.c.l.b16 %v479
      %v1472 = vunpack.c.h.b16 %v479
      %v1473 = vunpack.c.l.b16 %v480
      %v1474 = vunpack.c.h.b16 %v480
      %v1475 = vunpack.c.l.b16 %v481
      %v1476 = vunpack.c.h.b16 %v481
      %v1477 = vunpack.c.l.b16 %v482
      %v1478 = vunpack.c.h.b16 %v482
      %v1479 = vunpack.c.l.b16 %v483
      %v1480 = vunpack.c.h.b16 %v483
      %v1481 = vunpack.c.l.b16 %v484
      %v1482 = vunpack.c.h.b16 %v484
      %v1483 = vunpack.c.l.b16 %v485
      %v1484 = vunpack.c.h.b16 %v485
      %v1485 = vunpack.c.l.b16 %v486
      %v1486 = vunpack.c.h.b16 %v486
      %v1487 = vunpack.c.l.b16 %v487
      %v1488 = vunpack.c.h.b16 %v487
      %v1489 = vunpack.c.l.b16 %v488
      %v1490 = vunpack.c.h.b16 %v488
      %v1491 = vunpack.c.l.b16 %v489
      %v1492 = vunpack.c.h.b16 %v489
      %v1493 = vunpack.c.l.b16 %v490
      %v1494 = vunpack.c.h.b16 %v490
      %v1495 = vunpack.c.l.b16 %v491
      %v1496 = vunpack.c.h.b16 %v491
      %v1497 = vunpack.c.l.b16 %v492
      %v1498 = vunpack.c.h.b16 %v492
      %v1499 = vunpack.c.l.b16 %v493
      %v1500 = vunpack.c.h.b16 %v493
      %v1501 = vpack.c.b16 %v1455, %v1453
      %v1502 = vpack.c.b16 %v1456, %v1454
      %v1503 = vpack.c.b16 %v1459, %v1457
      %v1504 = vpack.c.b16 %v1460, %v1458
      %v1505 = vpack.c.b16 %v1463, %v1461
      %v1506 = vpack.c.b16 %v1464, %v1462
      %v1507 = vpack.c.b16 %v1467, %v1465
      %v1508 = vpack.c.b16 %v1468, %v1466
      %v1509 = vpack.c.b16 %v1471, %v1469
      %v1510 = vpack.c.b16 %v1472, %v1470
      %v1511 = vpack.c.b16 %v1475, %v1473
      %v1512 = vpack.c.b16 %v1476, %v1474
      %v1513 = vpack.c.b16 %v1479, %v1477
      %v1514 = vpack.c.b16 %v1480, %v1478
      %v1515 = vpack.c.b16 %v1483, %v1481
      %v1516 = vpack.c.b16 %v1484, %v1482
      %v1517 = vpack.c.b16 %v1487, %v1485
      %v1518 = vpack.c.b16 %v1488, %v1486
      %v1519 = vpack.c.b16 %v1491, %v1489
      %v1520 = vpack.c.b16 %v1492, %v1490
      %v1521 = vpack.c.b16 %v1495, %v1493
      %v1522 = vpack.c.b16 %v1496, %v1494
      %v1523 = vpack.c.b16 %v1499, %v1497
      %v1524 = vpack.c.b16 %v1500, %v1498
      %v1555 = vunpack.c.l.b16 %v1411
      %v1556 = vunpack.c.h.b16 %v1411
      %v1557 = vunpack.c.l.b16 %v1412
      %v1558 = vunpack.c.h.b16 %v1412
      %v1559 = vunpack.c.l.b16 %v1413
      %v1560 = vunpack.c.h.b16 %v1413
      %v1561 = vunpack.c.l.b16 %v1414
      %v1562 = vunpack.c.h.b16 %v1414
      %v1563 = vunpack.c.l.b16 %v1415
      %v1564 = vunpack.c.h.b16 %v1415
      %v1565 = vunpack.c.l.b16 %v1416
      %v1566 = vunpack.c.h.b16 %v1416
      %v1567 = vunpack.c.l.b16 %v1417
      %v1568 = vunpack.c.h.b16 %v1417
      %v1569 = vunpack.c.l.b16 %v1418
      %v1570 = vunpack.c.h.b16 %v1418
      %v1571 = vunpack.c.l.b16 %v1419
      %v1572 = vunpack.c.h.b16 %v1419
      %v1573 = vunpack.c.l.b16 %v1420
      %v1574 = vunpack.c.h.b16 %v1420
      %v1575 = vunpack.c.l.b16 %v1421
      %v1576 = vunpack.c.h.b16 %v1421
      %v1577 = vunpack.c.l.b16 %v1422
      %v1578 = vunpack.c.h.b16 %v1422
      %v1579 = vunpack.c.l.b16 %v1423
      %v1580 = vunpack.c.h.b16 %v1423
      %v1581 = vunpack.c.l.b16 %v1424
      %v1582 = vunpack.c.h.b16 %v1424
      %v1583 = vunpack.c.l.b16 %v1425
      %v1584 = vunpack.c.h.b16 %v1425
      %v1585 = vunpack.c.l.b16 %v1426
      %v1586 = vunpack.c.h.b16 %v1426
      %v1587 = vunpack.c.l.b16 %v1427
      %v1588 = vunpack.c.h.b16 %v1427
      %v1589 = vunpack.c.l.b16 %v1428
      %v1590 = vunpack.c.h.b16 %v1428
      %v1591 = vpack.c.b16 %v1557, %v1555
      %v1592 = vpack.c.b16 %v1558, %v1556
      %v1593 = vpack.c.b16 %v1561, %v1559
      %v1594 = vpack.c.b16 %v1562, %v1560
      %v1595 = vpack.c.b16 %v1565, %v1563
      %v1596 = vpack.c.b16 %v1566, %v1564
      %v1597 = vpack.c.b16 %v1569, %v1567
      %v1598 = vpack.c.b16 %v1570, %v1568
      %v1599 = vpack.c.b16 %v1573, %v1571
      %v1600 = vpack.c.b16 %v1574, %v1572
      %v1601 = vpack.c.b16 %v1577, %v1575
      %v1602 = vpack.c.b16 %v1578, %v1576
      %v1603 = vpack.c.b16 %v1581, %v1579
      %v1604 = vpack.c.b16 %v1582, %v1580
      %v1605 = vpack.c.b16 %v1585, %v1583
      %v1606 = vpack.c.b16 %v1586, %v1584
      %v1607 = vpack.c.b16 %v1589, %v1587
      %v1608 = vpack.c.b16 %v1590, %v1588
      %v1626 = vsel %vm708, %v1502, 0
      %v1629 = vsel %vm708, %v1504, 0
      %v1632 = vsel %vm708, %v1506, 0
      %v1635 = vsel %vm708, %v1508, 0
      %v1638 = vsel %vm708, %v1510, 0
      %v1641 = vsel %vm708, %v1512, 0
      %v1644 = vsel %vm708, %v1514, 0
      %v1647 = vsel %vm708, %v1516, 0
      %v1650 = vsel %vm708, %v1518, 0
      %v1653 = vsel %vm708, %v1520, 0
      %v1656 = vsel %vm708, %v1522, 0
      %v1659 = vsel %vm708, %v1524, 0
      %v1662 = vsel %vm745, %v1607, 0
      %v1665 = vsel %vm745, %v1608, 0
      %1667 = vmatprep.subr.bf16.mxu0 %v1592
      %1668 = vmatpush1.bf16.msra.mxu0 %v1591
      %1669 = vmatprep.subr.bf16.mxu0 %v1594
      %1670 = vmatpush1.bf16.msra.mxu0 %v1593
      %1671 = vmatprep.subr.bf16.mxu0 %v1596
      %1672 = vmatpush1.bf16.msra.mxu0 %v1595
      %1673 = vmatprep.subr.bf16.mxu0 %v1598
      %1674 = vmatpush1.bf16.msra.mxu0 %v1597
      %1675 = vmatprep.subr.bf16.mxu0 %v1600
      %1676 = vmatpush1.bf16.msra.mxu0 %v1599
      %1677 = vmatprep.subr.bf16.mxu0 %v1602
      %1678 = vmatpush1.bf16.msra.mxu0 %v1601
      %1679 = vmatprep.subr.bf16.mxu0 %v1604
      %1680 = vmatpush1.bf16.msra.mxu0 %v1603
      %1681 = vmatprep.subr.bf16.mxu0 %v1606
      %1682 = vmatpush1.bf16.msra.mxu0 %v1605
      %1683 = vmatprep.subr.bf16.mxu0 %v1665
      %1684 = vmatpush1.bf16.msra.mxu0 %v1662
      %1685 = vmatprep.subr.bf16.mxu0 0
      %1686 = vmatpush1.bf16.msra.mxu0 0
      %1687 = vmatprep.subr.bf16.mxu0 0
      %1688 = vmatpush1.bf16.msra.mxu0 0
      %1689 = vmatprep.subr.bf16.mxu0 0
      %1690 = vmatpush1.bf16.msra.mxu0 0
      %1691 = vmatprep.subr.bf16.mxu0 0
      %1692 = vmatpush1.bf16.msra.mxu0 0
      %1693 = vmatprep.subr.bf16.mxu0 0
      %1694 = vmatpush1.bf16.msra.mxu0 0
      %1695 = vmatprep.subr.bf16.mxu0 0
      %1696 = vmatpush1.bf16.msra.mxu0 0
      %1697 = vmatprep.subr.bf16.mxu0 0
      %1698 = vmatpush1.bf16.msra.mxu0 0
      %1699 = vmatprep.mubr.bf16.mxu0 %v1626
      %1700 = vmatmul.mubr.bf16.gmra.mrb[0].mxu0 %v1501
      %v1701 = vpop.f32.mrb[0].mxu0
      %v1702 = vadd.f32 0.0, %v1701
      %v1703 = vpop.f32.mrb[0].mxu0
      %v1704 = vadd.f32 0.0, %v1703
      %v1705 = vpop.f32.mrb[0].mxu0
      %v1706 = vadd.f32 0.0, %v1705
      %v1707 = vpop.f32.mrb[0].mxu0
      %v1708 = vadd.f32 0.0, %v1707
      %1709 = vmatprep.mubr.bf16.mxu0 %v1629
      %1710 = vmatmul.mubr.bf16.gmra.mrb[0].mxu0 %v1503
      %v1711 = vpop.f32.mrb[0].mxu0
      %v1712 = vadd.f32 0.0, %v1711
      %v1713 = vpop.f32.mrb[0].mxu0
      %v1714 = vadd.f32 0.0, %v1713
      %v1715 = vpop.f32.mrb[0].mxu0
      %v1716 = vadd.f32 0.0, %v1715
      %v1717 = vpop.f32.mrb[0].mxu0
      %v1718 = vadd.f32 0.0, %v1717
      %1719 = vmatprep.mubr.bf16.mxu0 %v1632
      %1720 = vmatmul.mubr.bf16.gmra.mrb[0].mxu0 %v1505
      %v1721 = vpop.f32.mrb[0].mxu0
      %v1722 = vadd.f32 0.0, %v1721
      %v1723 = vpop.f32.mrb[0].mxu0
      %v1724 = vadd.f32 0.0, %v1723
      %v1725 = vpop.f32.mrb[0].mxu0
      %v1726 = vadd.f32 0.0, %v1725
      %v1727 = vpop.f32.mrb[0].mxu0
      %v1728 = vadd.f32 0.0, %v1727
      %1729 = vmatprep.mubr.bf16.mxu0 %v1635
      %1730 = vmatmul.mubr.bf16.gmra.mrb[0].mxu0 %v1507
      %v1731 = vpop.f32.mrb[0].mxu0
      %v1732 = vadd.f32 0.0, %v1731
      %v1733 = vpop.f32.mrb[0].mxu0
      %v1734 = vadd.f32 0.0, %v1733
      %v1735 = vpop.f32.mrb[0].mxu0
      %v1736 = vadd.f32 0.0, %v1735
      %v1737 = vpop.f32.mrb[0].mxu0
      %v1738 = vadd.f32 0.0, %v1737
      %1739 = vmatprep.mubr.bf16.mxu0 %v1638
      %1740 = vmatmul.mubr.bf16.gmra.mrb[0].mxu0 %v1509
      %v1741 = vpop.f32.mrb[0].mxu0
      %v1742 = vadd.f32 0.0, %v1741
      %v1743 = vpop.f32.mrb[0].mxu0
      %v1744 = vadd.f32 0.0, %v1743
      %v1745 = vpop.f32.mrb[0].mxu0
      %v1746 = vadd.f32 0.0, %v1745
      %v1747 = vpop.f32.mrb[0].mxu0
      %v1748 = vadd.f32 0.0, %v1747
      %1749 = vmatprep.mubr.bf16.mxu0 %v1641
      %1750 = vmatmul.mubr.bf16.gmra.mrb[0].mxu0 %v1511
      %v1751 = vpop.f32.mrb[0].mxu0
      %v1752 = vadd.f32 0.0, %v1751
      %v1753 = vpop.f32.mrb[0].mxu0
      %v1754 = vadd.f32 0.0, %v1753
      %v1755 = vpop.f32.mrb[0].mxu0
      %v1756 = vadd.f32 0.0, %v1755
      %v1757 = vpop.f32.mrb[0].mxu0
      %v1758 = vadd.f32 0.0, %v1757
      %1759 = vmatprep.mubr.bf16.mxu0 %v1644
      %1760 = vmatmul.mubr.bf16.gmra.mrb[0].mxu0 %v1513
      %v1761 = vpop.f32.mrb[0].mxu0
      %v1762 = vadd.f32 0.0, %v1761
      %v1763 = vpop.f32.mrb[0].mxu0
      %v1764 = vadd.f32 0.0, %v1763
      %v1765 = vpop.f32.mrb[0].mxu0
      %v1766 = vadd.f32 0.0, %v1765
      %v1767 = vpop.f32.mrb[0].mxu0
      %v1768 = vadd.f32 0.0, %v1767
      %1769 = vmatprep.mubr.bf16.mxu0 %v1647
      %1770 = vmatmul.mubr.bf16.gmra.mrb[0].mxu0 %v1515
      %v1771 = vpop.f32.mrb[0].mxu0
      %v1772 = vadd.f32 0.0, %v1771
      %v1773 = vpop.f32.mrb[0].mxu0
      %v1774 = vadd.f32 0.0, %v1773
      %v1775 = vpop.f32.mrb[0].mxu0
      %v1776 = vadd.f32 0.0, %v1775
      %v1777 = vpop.f32.mrb[0].mxu0
      %v1778 = vadd.f32 0.0, %v1777
      %1779 = vmatprep.mubr.bf16.mxu0 %v1650
      %1780 = vmatmul.mubr.bf16.gmra.mrb[0].mxu0 %v1517
      %v1781 = vpop.f32.mrb[0].mxu0
      %v1782 = vadd.f32 0.0, %v1781
      %v1783 = vpop.f32.mrb[0].mxu0
      %v1784 = vadd.f32 0.0, %v1783
      %v1785 = vpop.f32.mrb[0].mxu0
      %v1786 = vadd.f32 0.0, %v1785
      %v1787 = vpop.f32.mrb[0].mxu0
      %v1788 = vadd.f32 0.0, %v1787
      %1789 = vmatprep.mubr.bf16.mxu0 %v1653
      %1790 = vmatmul.mubr.bf16.gmra.mrb[0].mxu0 %v1519
      %v1791 = vpop.f32.mrb[0].mxu0
      %v1792 = vadd.f32 0.0, %v1791
      %v1793 = vpop.f32.mrb[0].mxu0
      %v1794 = vadd.f32 0.0, %v1793
      %v1795 = vpop.f32.mrb[0].mxu0
      %v1796 = vadd.f32 0.0, %v1795
      %v1797 = vpop.f32.mrb[0].mxu0
      %v1798 = vadd.f32 0.0, %v1797
      %1799 = vmatprep.mubr.bf16.mxu0 %v1656
      %1800 = vmatmul.mubr.bf16.gmra.mrb[0].mxu0 %v1521
      %v1801 = vpop.f32.mrb[0].mxu0
      %v1802 = vadd.f32 0.0, %v1801
      %v1803 = vpop.f32.mrb[0].mxu0
      %v1804 = vadd.f32 0.0, %v1803
      %v1805 = vpop.f32.mrb[0].mxu0
      %v1806 = vadd.f32 0.0, %v1805
      %v1807 = vpop.f32.mrb[0].mxu0
      %v1808 = vadd.f32 0.0, %v1807
      %1809 = vmatprep.mubr.bf16.mxu0 %v1659
      %1810 = vmatmul.mubr.bf16.gmra.mrb[0].mxu0 %v1523
      %v1811 = vpop.f32.mrb[0].mxu0
      %v1812 = vadd.f32 0.0, %v1811
      %v1813 = vpop.f32.mrb[0].mxu0
      %v1814 = vadd.f32 0.0, %v1813
      %v1815 = vpop.f32.mrb[0].mxu0
      %v1816 = vadd.f32 0.0, %v1815
      %v1817 = vpop.f32.mrb[0].mxu0
      %v1818 = vadd.f32 0.0, %v1817
      %1819 = vdwg.mxu0
      %v1820 = vmax.f32 %v1363, %v1702
      %v1821 = vmax.f32 %v1364, %v1704
      %v1822 = vmax.f32 %v1365, %v1706
      %v1823 = vmax.f32 %v1366, %v1708
      %v1824 = vmax.f32 %v1367, %v1712
      %v1825 = vmax.f32 %v1368, %v1714
      %v1826 = vmax.f32 %v1369, %v1716
      %v1827 = vmax.f32 %v1370, %v1718
      %v1828 = vmax.f32 %v1371, %v1722
      %v1829 = vmax.f32 %v1372, %v1724
      %v1830 = vmax.f32 %v1373, %v1726
      %v1831 = vmax.f32 %v1374, %v1728
      %v1832 = vmax.f32 %v1375, %v1732
      %v1833 = vmax.f32 %v1376, %v1734
      %v1834 = vmax.f32 %v1377, %v1736
      %v1835 = vmax.f32 %v1378, %v1738
      %v1836 = vmax.f32 %v1379, %v1742
      %v1837 = vmax.f32 %v1380, %v1744
      %v1838 = vmax.f32 %v1381, %v1746
      %v1839 = vmax.f32 %v1382, %v1748
      %v1840 = vmax.f32 %v1383, %v1752
      %v1841 = vmax.f32 %v1384, %v1754
      %v1842 = vmax.f32 %v1385, %v1756
      %v1843 = vmax.f32 %v1386, %v1758
      %v1844 = vmax.f32 %v1387, %v1762
      %v1845 = vmax.f32 %v1388, %v1764
      %v1846 = vmax.f32 %v1389, %v1766
      %v1847 = vmax.f32 %v1390, %v1768
      %v1848 = vmax.f32 %v1391, %v1772
      %v1849 = vmax.f32 %v1392, %v1774
      %v1850 = vmax.f32 %v1393, %v1776
      %v1851 = vmax.f32 %v1394, %v1778
      %v1852 = vmax.f32 %v1395, %v1782
      %v1853 = vmax.f32 %v1396, %v1784
      %v1854 = vmax.f32 %v1397, %v1786
      %v1855 = vmax.f32 %v1398, %v1788
      %v1856 = vmax.f32 %v1399, %v1792
      %v1857 = vmax.f32 %v1400, %v1794
      %v1858 = vmax.f32 %v1401, %v1796
      %v1859 = vmax.f32 %v1402, %v1798
      %v1860 = vmax.f32 %v1403, %v1802
      %v1861 = vmax.f32 %v1404, %v1804
      %v1862 = vmax.f32 %v1405, %v1806
      %v1863 = vmax.f32 %v1406, %v1808
      %v1864 = vmax.f32 %v1407, %v1812
      %v1865 = vmax.f32 %v1408, %v1814
      %v1866 = vmax.f32 %v1409, %v1816
      %v1867 = vmax.f32 %v1410, %v1818
      %1868 = vst [vmem:[#allocation2] sm:$0xff] %v1820
      %1869 = vst.msk [vmem:[#allocation2 + $0x8] sm:$0xff] %vm906, %v1821
      %1870 = vst [vmem:[#allocation2 + $0x10] sm:$0xff] %v1822
      %1871 = vst.msk [vmem:[#allocation2 + $0x18] sm:$0xff] %vm906, %v1823
      %1872 = vst [vmem:[#allocation2 + $0x20] sm:$0xff] %v1824
      %1873 = vst.msk [vmem:[#allocation2 + $0x28] sm:$0xff] %vm906, %v1825
      %1874 = vst [vmem:[#allocation2 + $0x30] sm:$0xff] %v1826
      %1875 = vst.msk [vmem:[#allocation2 + $0x38] sm:$0xff] %vm906, %v1827
      %1876 = vst [vmem:[#allocation2 + $0x40] sm:$0xff] %v1828
      %1877 = vst.msk [vmem:[#allocation2 + $0x48] sm:$0xff] %vm906, %v1829
      %1878 = vst [vmem:[#allocation2 + $0x50] sm:$0xff] %v1830
      %1879 = vst.msk [vmem:[#allocation2 + $0x58] sm:$0xff] %vm906, %v1831
      %1880 = vst [vmem:[#allocation2 + $0x60] sm:$0xff] %v1832
      %1881 = vst.msk [vmem:[#allocation2 + $0x68] sm:$0xff] %vm906, %v1833
      %1882 = vst [vmem:[#allocation2 + $0x70] sm:$0xff] %v1834
      %1883 = vst.msk [vmem:[#allocation2 + $0x78] sm:$0xff] %vm906, %v1835
      %1884 = vst [vmem:[#allocation2 + $0x80] sm:$0xff] %v1836
      %1885 = vst.msk [vmem:[#allocation2 + $0x88] sm:$0xff] %vm906, %v1837
      %1886 = vst [vmem:[#allocation2 + $0x90] sm:$0xff] %v1838
      %1887 = vst.msk [vmem:[#allocation2 + $0x98] sm:$0xff] %vm906, %v1839
      %1888 = vst [vmem:[#allocation2 + $0xa0] sm:$0xff] %v1840
      %1889 = vst.msk [vmem:[#allocation2 + $0xa8] sm:$0xff] %vm906, %v1841
      %1890 = vst [vmem:[#allocation2 + $0xb0] sm:$0xff] %v1842
      %1891 = vst.msk [vmem:[#allocation2 + $0xb8] sm:$0xff] %vm906, %v1843
      %1892 = vst [vmem:[#allocation2 + $0xc0] sm:$0xff] %v1844
      %1893 = vst.msk [vmem:[#allocation2 + $0xc8] sm:$0xff] %vm906, %v1845
      %1894 = vst [vmem:[#allocation2 + $0xd0] sm:$0xff] %v1846
      %1895 = vst.msk [vmem:[#allocation2 + $0xd8] sm:$0xff] %vm906, %v1847
      %1896 = vst [vmem:[#allocation2 + $0xe0] sm:$0xff] %v1848
      %1897 = vst.msk [vmem:[#allocation2 + $0xe8] sm:$0xff] %vm906, %v1849
      %1898 = vst [vmem:[#allocation2 + $0xf0] sm:$0xff] %v1850
      %1899 = vst.msk [vmem:[#allocation2 + $0xf8] sm:$0xff] %vm906, %v1851
      %1900 = vst [vmem:[#allocation2 + $0x100] sm:$0xff] %v1852
      %1901 = vst.msk [vmem:[#allocation2 + $0x108] sm:$0xff] %vm906, %v1853
      %1902 = vst [vmem:[#allocation2 + $0x110] sm:$0xff] %v1854
      %1903 = vst.msk [vmem:[#allocation2 + $0x118] sm:$0xff] %vm906, %v1855
      %1904 = vst [vmem:[#allocation2 + $0x120] sm:$0xff] %v1856
      %1905 = vst.msk [vmem:[#allocation2 + $0x128] sm:$0xff] %vm906, %v1857
      %1906 = vst [vmem:[#allocation2 + $0x130] sm:$0xff] %v1858
      %1907 = vst.msk [vmem:[#allocation2 + $0x138] sm:$0xff] %vm906, %v1859
      %1908 = vst [vmem:[#allocation2 + $0x140] sm:$0xff] %v1860
      %1909 = vst.msk [vmem:[#allocation2 + $0x148] sm:$0xff] %vm906, %v1861
      %1910 = vst [vmem:[#allocation2 + $0x150] sm:$0xff] %v1862
      %1911 = vst.msk [vmem:[#allocation2 + $0x158] sm:$0xff] %vm906, %v1863
      %1912 = vst [vmem:[#allocation2 + $0x160] sm:$0xff] %v1864
      %1913 = vst.msk [vmem:[#allocation2 + $0x168] sm:$0xff] %vm906, %v1865
      %1914 = vst [vmem:[#allocation2 + $0x170] sm:$0xff] %v1866
      %1915 = vst.msk [vmem:[#allocation2 + $0x178] sm:$0xff] %vm906, %v1867
      %v1916 = vld [vmem:[#allocation2] sm:$0xff]
      %v1917 = vld [vmem:[#allocation2 + $0x8] sm:$0xff]
      %v1918 = vld [vmem:[#allocation2 + $0x10] sm:$0xff]
      %v1919 = vld [vmem:[#allocation2 + $0x18] sm:$0xff]
      %v1920 = vld [vmem:[#allocation2 + $0x20] sm:$0xff]
      %v1921 = vld [vmem:[#allocation2 + $0x28] sm:$0xff]
      %v1922 = vld [vmem:[#allocation2 + $0x30] sm:$0xff]
      %v1923 = vld [vmem:[#allocation2 + $0x38] sm:$0xff]
      %v1924 = vld [vmem:[#allocation2 + $0x40] sm:$0xff]
      %v1925 = vld [vmem:[#allocation2 + $0x48] sm:$0xff]
      %v1926 = vld [vmem:[#allocation2 + $0x50] sm:$0xff]
      %v1927 = vld [vmem:[#allocation2 + $0x58] sm:$0xff]
      %v1928 = vld [vmem:[#allocation2 + $0x60] sm:$0xff]
      %v1929 = vld [vmem:[#allocation2 + $0x68] sm:$0xff]
      %v1930 = vld [vmem:[#allocation2 + $0x70] sm:$0xff]
      %v1931 = vld [vmem:[#allocation2 + $0x78] sm:$0xff]
      %v1932 = vld [vmem:[#allocation2 + $0x80] sm:$0xff]
      %v1933 = vld [vmem:[#allocation2 + $0x88] sm:$0xff]
      %v1934 = vld [vmem:[#allocation2 + $0x90] sm:$0xff]
      %v1935 = vld [vmem:[#allocation2 + $0x98] sm:$0xff]
      %v1936 = vld [vmem:[#allocation2 + $0xa0] sm:$0xff]
      %v1937 = vld [vmem:[#allocation2 + $0xa8] sm:$0xff]
      %v1938 = vld [vmem:[#allocation2 + $0xb0] sm:$0xff]
      %v1939 = vld [vmem:[#allocation2 + $0xb8] sm:$0xff]
      %v1940 = vld [vmem:[#allocation2 + $0xc0] sm:$0xff]
      %v1941 = vld [vmem:[#allocation2 + $0xc8] sm:$0xff]
      %v1942 = vld [vmem:[#allocation2 + $0xd0] sm:$0xff]
      %v1943 = vld [vmem:[#allocation2 + $0xd8] sm:$0xff]
      %v1944 = vld [vmem:[#allocation2 + $0xe0] sm:$0xff]
      %v1945 = vld [vmem:[#allocation2 + $0xe8] sm:$0xff]
      %v1946 = vld [vmem:[#allocation2 + $0xf0] sm:$0xff]
      %v1947 = vld [vmem:[#allocation2 + $0xf8] sm:$0xff]
      %v1948 = vld [vmem:[#allocation2 + $0x100] sm:$0xff]
      %v1949 = vld [vmem:[#allocation2 + $0x108] sm:$0xff]
      %v1950 = vld [vmem:[#allocation2 + $0x110] sm:$0xff]
      %v1951 = vld [vmem:[#allocation2 + $0x118] sm:$0xff]
      %v1952 = vld [vmem:[#allocation2 + $0x120] sm:$0xff]
      %v1953 = vld [vmem:[#allocation2 + $0x128] sm:$0xff]
      %v1954 = vld [vmem:[#allocation2 + $0x130] sm:$0xff]
      %v1955 = vld [vmem:[#allocation2 + $0x138] sm:$0xff]
      %v1956 = vld [vmem:[#allocation2 + $0x140] sm:$0xff]
      %v1957 = vld [vmem:[#allocation2 + $0x148] sm:$0xff]
      %v1958 = vld [vmem:[#allocation2 + $0x150] sm:$0xff]
      %v1959 = vld [vmem:[#allocation2 + $0x158] sm:$0xff]
      %v1960 = vld [vmem:[#allocation2 + $0x160] sm:$0xff]
      %v1961 = vld [vmem:[#allocation2 + $0x168] sm:$0xff]
      %v1962 = vld [vmem:[#allocation2 + $0x170] sm:$0xff]
      %v1963 = vld [vmem:[#allocation2 + $0x178] sm:$0xff]
      %v1964 = vld [vmem:[%s3] sm:$0xff]
      %v1965 = vld [vmem:[%s3 + $0x8] sm:$0xff]
      %v1966 = vld [vmem:[%s3 + $0x10] sm:$0xff]
      %v1967 = vld [vmem:[%s3 + $0x18] sm:$0xff]
      %v1968 = vld [vmem:[%s3 + $0x20] sm:$0xff]
      %v1969 = vld [vmem:[%s3 + $0x28] sm:$0xff]
      %v1970 = vld [vmem:[%s3 + $0x30] sm:$0xff]
      %v1971 = vld [vmem:[%s3 + $0x38] sm:$0xff]
      %v1972 = vld [vmem:[%s3 + $0x40] sm:$0xff]
      %v1973 = vld [vmem:[%s3 + $0x48] sm:$0xff]
      %v1974 = vld [vmem:[%s3 + $0x50] sm:$0xff]
      %v1975 = vld [vmem:[%s3 + $0x58] sm:$0xff]
      %v1976 = vld [vmem:[%s3 + $0x60] sm:$0xff]
      %v1977 = vld [vmem:[%s3 + $0x68] sm:$0xff]
      %v1978 = vld [vmem:[%s3 + $0x70] sm:$0xff]
      %v1979 = vld [vmem:[%s3 + $0x78] sm:$0xff]
      %v1980 = vld [vmem:[%s3 + $0x80] sm:$0xff]
      %v1981 = vld [vmem:[%s3 + $0x88] sm:$0x33]
      %v2000 = vunpack.c.l.b16 %v1964
      %v2001 = vunpack.c.h.b16 %v1964
      %v2002 = vunpack.c.l.b16 %v1965
      %v2003 = vunpack.c.h.b16 %v1965
      %v2004 = vunpack.c.l.b16 %v1966
      %v2005 = vunpack.c.h.b16 %v1966
      %v2006 = vunpack.c.l.b16 %v1967
      %v2007 = vunpack.c.h.b16 %v1967
      %v2008 = vunpack.c.l.b16 %v1968
      %v2009 = vunpack.c.h.b16 %v1968
      %v2010 = vunpack.c.l.b16 %v1969
      %v2011 = vunpack.c.h.b16 %v1969
      %v2012 = vunpack.c.l.b16 %v1970
      %v2013 = vunpack.c.h.b16 %v1970
      %v2014 = vunpack.c.l.b16 %v1971
      %v2015 = vunpack.c.h.b16 %v1971
      %v2016 = vunpack.c.l.b16 %v1972
      %v2017 = vunpack.c.h.b16 %v1972
      %v2018 = vunpack.c.l.b16 %v1973
      %v2019 = vunpack.c.h.b16 %v1973
      %v2020 = vunpack.c.l.b16 %v1974
      %v2021 = vunpack.c.h.b16 %v1974
      %v2022 = vunpack.c.l.b16 %v1975
      %v2023 = vunpack.c.h.b16 %v1975
      %v2024 = vunpack.c.l.b16 %v1976
      %v2025 = vunpack.c.h.b16 %v1976
      %v2026 = vunpack.c.l.b16 %v1977
      %v2027 = vunpack.c.h.b16 %v1977
      %v2028 = vunpack.c.l.b16 %v1978
      %v2029 = vunpack.c.h.b16 %v1978
      %v2030 = vunpack.c.l.b16 %v1979
      %v2031 = vunpack.c.h.b16 %v1979
      %v2032 = vunpack.c.l.b16 %v1980
      %v2033 = vunpack.c.h.b16 %v1980
      %v2034 = vunpack.c.l.b16 %v1981
      %v2035 = vunpack.c.h.b16 %v1981
      %v2036 = vpack.c.b16 %v2002, %v2000
      %v2037 = vpack.c.b16 %v2003, %v2001
      %v2038 = vpack.c.b16 %v2006, %v2004
      %v2039 = vpack.c.b16 %v2007, %v2005
      %v2040 = vpack.c.b16 %v2010, %v2008
      %v2041 = vpack.c.b16 %v2011, %v2009
      %v2042 = vpack.c.b16 %v2014, %v2012
      %v2043 = vpack.c.b16 %v2015, %v2013
      %v2044 = vpack.c.b16 %v2018, %v2016
      %v2045 = vpack.c.b16 %v2019, %v2017
      %v2046 = vpack.c.b16 %v2022, %v2020
      %v2047 = vpack.c.b16 %v2023, %v2021
      %v2048 = vpack.c.b16 %v2026, %v2024
      %v2049 = vpack.c.b16 %v2027, %v2025
      %v2050 = vpack.c.b16 %v2030, %v2028
      %v2051 = vpack.c.b16 %v2031, %v2029
      %v2052 = vpack.c.b16 %v2034, %v2032
      %v2053 = vpack.c.b16 %v2035, %v2033
      %v2071 = vsel %vm745, %v2052, 0
      %v2074 = vsel %vm745, %v2053, 0
      %2076 = vmatprep.subr.bf16.mxu0 %v2037
      %2077 = vmatpush1.bf16.msra.mxu0 %v2036
      %2078 = vmatprep.subr.bf16.mxu0 %v2039
      %2079 = vmatpush1.bf16.msra.mxu0 %v2038
      %2080 = vmatprep.subr.bf16.mxu0 %v2041
      %2081 = vmatpush1.bf16.msra.mxu0 %v2040
      %2082 = vmatprep.subr.bf16.mxu0 %v2043
      %2083 = vmatpush1.bf16.msra.mxu0 %v2042
      %2084 = vmatprep.subr.bf16.mxu0 %v2045
      %2085 = vmatpush1.bf16.msra.mxu0 %v2044
      %2086 = vmatprep.subr.bf16.mxu0 %v2047
      %2087 = vmatpush1.bf16.msra.mxu0 %v2046
      %2088 = vmatprep.subr.bf16.mxu0 %v2049
      %2089 = vmatpush1.bf16.msra.mxu0 %v2048
      %2090 = vmatprep.subr.bf16.mxu0 %v2051
      %2091 = vmatpush1.bf16.msra.mxu0 %v2050
      %2092 = vmatprep.subr.bf16.mxu0 %v2074
      %2093 = vmatpush1.bf16.msra.mxu0 %v2071
      %2094 = vmatprep.subr.bf16.mxu0 0
      %2095 = vmatpush1.bf16.msra.mxu0 0
      %2096 = vmatprep.subr.bf16.mxu0 0
      %2097 = vmatpush1.bf16.msra.mxu0 0
      %2098 = vmatprep.subr.bf16.mxu0 0
      %2099 = vmatpush1.bf16.msra.mxu0 0
      %2100 = vmatprep.subr.bf16.mxu0 0
      %2101 = vmatpush1.bf16.msra.mxu0 0
      %2102 = vmatprep.subr.bf16.mxu0 0
      %2103 = vmatpush1.bf16.msra.mxu0 0
      %2104 = vmatprep.subr.bf16.mxu0 0
      %2105 = vmatpush1.bf16.msra.mxu0 0
      %2106 = vmatprep.subr.bf16.mxu0 0
      %2107 = vmatpush1.bf16.msra.mxu0 0
      %2108 = vmatprep.mubr.bf16.mxu0 %v1626
      %2109 = vmatmul.mubr.bf16.gmra.mrb[0].mxu0 %v1501
      %v2110 = vpop.f32.mrb[0].mxu0
      %v2111 = vadd.f32 0.0, %v2110
      %v2112 = vpop.f32.mrb[0].mxu0
      %v2113 = vadd.f32 0.0, %v2112
      %v2114 = vpop.f32.mrb[0].mxu0
      %v2115 = vadd.f32 0.0, %v2114
      %v2116 = vpop.f32.mrb[0].mxu0
      %v2117 = vadd.f32 0.0, %v2116
      %2118 = vmatprep.mubr.bf16.mxu0 %v1629
      %2119 = vmatmul.mubr.bf16.gmra.mrb[0].mxu0 %v1503
      %v2120 = vpop.f32.mrb[0].mxu0
      %v2121 = vadd.f32 0.0, %v2120
      %v2122 = vpop.f32.mrb[0].mxu0
      %v2123 = vadd.f32 0.0, %v2122
      %v2124 = vpop.f32.mrb[0].mxu0
      %v2125 = vadd.f32 0.0, %v2124
      %v2126 = vpop.f32.mrb[0].mxu0
      %v2127 = vadd.f32 0.0, %v2126
      %2128 = vmatprep.mubr.bf16.mxu0 %v1632
      %2129 = vmatmul.mubr.bf16.gmra.mrb[0].mxu0 %v1505
      %v2130 = vpop.f32.mrb[0].mxu0
      %v2131 = vadd.f32 0.0, %v2130
      %v2132 = vpop.f32.mrb[0].mxu0
      %v2133 = vadd.f32 0.0, %v2132
      %v2134 = vpop.f32.mrb[0].mxu0
      %v2135 = vadd.f32 0.0, %v2134
      %v2136 = vpop.f32.mrb[0].mxu0
      %v2137 = vadd.f32 0.0, %v2136
      %2138 = vmatprep.mubr.bf16.mxu0 %v1635
      %2139 = vmatmul.mubr.bf16.gmra.mrb[0].mxu0 %v1507
      %v2140 = vpop.f32.mrb[0].mxu0
      %v2141 = vadd.f32 0.0, %v2140
      %v2142 = vpop.f32.mrb[0].mxu0
      %v2143 = vadd.f32 0.0, %v2142
      %v2144 = vpop.f32.mrb[0].mxu0
      %v2145 = vadd.f32 0.0, %v2144
      %v2146 = vpop.f32.mrb[0].mxu0
      %v2147 = vadd.f32 0.0, %v2146
      %2148 = vmatprep.mubr.bf16.mxu0 %v1638
      %2149 = vmatmul.mubr.bf16.gmra.mrb[0].mxu0 %v1509
      %v2150 = vpop.f32.mrb[0].mxu0
      %v2151 = vadd.f32 0.0, %v2150
      %v2152 = vpop.f32.mrb[0].mxu0
      %v2153 = vadd.f32 0.0, %v2152
      %v2154 = vpop.f32.mrb[0].mxu0
      %v2155 = vadd.f32 0.0, %v2154
      %v2156 = vpop.f32.mrb[0].mxu0
      %v2157 = vadd.f32 0.0, %v2156
      %2158 = vmatprep.mubr.bf16.mxu0 %v1641
      %2159 = vmatmul.mubr.bf16.gmra.mrb[0].mxu0 %v1511
      %v2160 = vpop.f32.mrb[0].mxu0
      %v2161 = vadd.f32 0.0, %v2160
      %v2162 = vpop.f32.mrb[0].mxu0
      %v2163 = vadd.f32 0.0, %v2162
      %v2164 = vpop.f32.mrb[0].mxu0
      %v2165 = vadd.f32 0.0, %v2164
      %v2166 = vpop.f32.mrb[0].mxu0
      %v2167 = vadd.f32 0.0, %v2166
      %2168 = vmatprep.mubr.bf16.mxu0 %v1644
      %2169 = vmatmul.mubr.bf16.gmra.mrb[0].mxu0 %v1513
      %v2170 = vpop.f32.mrb[0].mxu0
      %v2171 = vadd.f32 0.0, %v2170
      %v2172 = vpop.f32.mrb[0].mxu0
      %v2173 = vadd.f32 0.0, %v2172
      %v2174 = vpop.f32.mrb[0].mxu0
      %v2175 = vadd.f32 0.0, %v2174
      %v2176 = vpop.f32.mrb[0].mxu0
      %v2177 = vadd.f32 0.0, %v2176
      %2178 = vmatprep.mubr.bf16.mxu0 %v1647
      %2179 = vmatmul.mubr.bf16.gmra.mrb[0].mxu0 %v1515
      %v2180 = vpop.f32.mrb[0].mxu0
      %v2181 = vadd.f32 0.0, %v2180
      %v2182 = vpop.f32.mrb[0].mxu0
      %v2183 = vadd.f32 0.0, %v2182
      %v2184 = vpop.f32.mrb[0].mxu0
      %v2185 = vadd.f32 0.0, %v2184
      %v2186 = vpop.f32.mrb[0].mxu0
      %v2187 = vadd.f32 0.0, %v2186
      %2188 = vmatprep.mubr.bf16.mxu0 %v1650
      %2189 = vmatmul.mubr.bf16.gmra.mrb[0].mxu0 %v1517
      %v2190 = vpop.f32.mrb[0].mxu0
      %v2191 = vadd.f32 0.0, %v2190
      %v2192 = vpop.f32.mrb[0].mxu0
      %v2193 = vadd.f32 0.0, %v2192
      %v2194 = vpop.f32.mrb[0].mxu0
      %v2195 = vadd.f32 0.0, %v2194
      %v2196 = vpop.f32.mrb[0].mxu0
      %v2197 = vadd.f32 0.0, %v2196
      %2198 = vmatprep.mubr.bf16.mxu0 %v1653
      %2199 = vmatmul.mubr.bf16.gmra.mrb[0].mxu0 %v1519
      %v2200 = vpop.f32.mrb[0].mxu0
      %v2201 = vadd.f32 0.0, %v2200
      %v2202 = vpop.f32.mrb[0].mxu0
      %v2203 = vadd.f32 0.0, %v2202
      %v2204 = vpop.f32.mrb[0].mxu0
      %v2205 = vadd.f32 0.0, %v2204
      %v2206 = vpop.f32.mrb[0].mxu0
      %v2207 = vadd.f32 0.0, %v2206
      %2208 = vmatprep.mubr.bf16.mxu0 %v1656
      %2209 = vmatmul.mubr.bf16.gmra.mrb[0].mxu0 %v1521
      %v2210 = vpop.f32.mrb[0].mxu0
      %v2211 = vadd.f32 0.0, %v2210
      %v2212 = vpop.f32.mrb[0].mxu0
      %v2213 = vadd.f32 0.0, %v2212
      %v2214 = vpop.f32.mrb[0].mxu0
      %v2215 = vadd.f32 0.0, %v2214
      %v2216 = vpop.f32.mrb[0].mxu0
      %v2217 = vadd.f32 0.0, %v2216
      %2218 = vmatprep.mubr.bf16.mxu0 %v1659
      %2219 = vmatmul.mubr.bf16.gmra.mrb[0].mxu0 %v1523
      %v2220 = vpop.f32.mrb[0].mxu0
      %v2221 = vadd.f32 0.0, %v2220
      %v2222 = vpop.f32.mrb[0].mxu0
      %v2223 = vadd.f32 0.0, %v2222
      %v2224 = vpop.f32.mrb[0].mxu0
      %v2225 = vadd.f32 0.0, %v2224
      %v2226 = vpop.f32.mrb[0].mxu0
      %v2227 = vadd.f32 0.0, %v2226
      %2228 = vdwg.mxu0
      %v2229 = vmax.f32 %v1916, %v2111
      %v2230 = vmax.f32 %v1917, %v2113
      %v2231 = vmax.f32 %v1918, %v2115
      %v2232 = vmax.f32 %v1919, %v2117
      %v2233 = vmax.f32 %v1920, %v2121
      %v2234 = vmax.f32 %v1921, %v2123
      %v2235 = vmax.f32 %v1922, %v2125
      %v2236 = vmax.f32 %v1923, %v2127
      %v2237 = vmax.f32 %v1924, %v2131
      %v2238 = vmax.f32 %v1925, %v2133
      %v2239 = vmax.f32 %v1926, %v2135
      %v2240 = vmax.f32 %v1927, %v2137
      %v2241 = vmax.f32 %v1928, %v2141
      %v2242 = vmax.f32 %v1929, %v2143
      %v2243 = vmax.f32 %v1930, %v2145
      %v2244 = vmax.f32 %v1931, %v2147
      %v2245 = vmax.f32 %v1932, %v2151
      %v2246 = vmax.f32 %v1933, %v2153
      %v2247 = vmax.f32 %v1934, %v2155
      %v2248 = vmax.f32 %v1935, %v2157
      %v2249 = vmax.f32 %v1936, %v2161
      %v2250 = vmax.f32 %v1937, %v2163
      %v2251 = vmax.f32 %v1938, %v2165
      %v2252 = vmax.f32 %v1939, %v2167
      %v2253 = vmax.f32 %v1940, %v2171
      %v2254 = vmax.f32 %v1941, %v2173
      %v2255 = vmax.f32 %v1942, %v2175
      %v2256 = vmax.f32 %v1943, %v2177
      %v2257 = vmax.f32 %v1944, %v2181
      %v2258 = vmax.f32 %v1945, %v2183
      %v2259 = vmax.f32 %v1946, %v2185
      %v2260 = vmax.f32 %v1947, %v2187
      %v2261 = vmax.f32 %v1948, %v2191
      %v2262 = vmax.f32 %v1949, %v2193
      %v2263 = vmax.f32 %v1950, %v2195
      %v2264 = vmax.f32 %v1951, %v2197
      %v2265 = vmax.f32 %v1952, %v2201
      %v2266 = vmax.f32 %v1953, %v2203
      %v2267 = vmax.f32 %v1954, %v2205
      %v2268 = vmax.f32 %v1955, %v2207
      %v2269 = vmax.f32 %v1956, %v2211
      %v2270 = vmax.f32 %v1957, %v2213
      %v2271 = vmax.f32 %v1958, %v2215
      %v2272 = vmax.f32 %v1959, %v2217
      %v2273 = vmax.f32 %v1960, %v2221
      %v2274 = vmax.f32 %v1961, %v2223
      %v2275 = vmax.f32 %v1962, %v2225
      %v2276 = vmax.f32 %v1963, %v2227
      %2277 = vst [vmem:[#allocation2] sm:$0xff] %v2229
      %2278 = vst.msk [vmem:[#allocation2 + $0x8] sm:$0xff] %vm906, %v2230
      %2279 = vst [vmem:[#allocation2 + $0x10] sm:$0xff] %v2231
      %2280 = vst.msk [vmem:[#allocation2 + $0x18] sm:$0xff] %vm906, %v2232
      %2281 = vst [vmem:[#allocation2 + $0x20] sm:$0xff] %v2233
      %2282 = vst.msk [vmem:[#allocation2 + $0x28] sm:$0xff] %vm906, %v2234
      %2283 = vst [vmem:[#allocation2 + $0x30] sm:$0xff] %v2235
      %2284 = vst.msk [vmem:[#allocation2 + $0x38] sm:$0xff] %vm906, %v2236
      %2285 = vst [vmem:[#allocation2 + $0x40] sm:$0xff] %v2237
      %2286 = vst.msk [vmem:[#allocation2 + $0x48] sm:$0xff] %vm906, %v2238
      %2287 = vst [vmem:[#allocation2 + $0x50] sm:$0xff] %v2239
      %2288 = vst.msk [vmem:[#allocation2 + $0x58] sm:$0xff] %vm906, %v2240
      %2289 = vst [vmem:[#allocation2 + $0x60] sm:$0xff] %v2241
      %2290 = vst.msk [vmem:[#allocation2 + $0x68] sm:$0xff] %vm906, %v2242
      %2291 = vst [vmem:[#allocation2 + $0x70] sm:$0xff] %v2243
      %2292 = vst.msk [vmem:[#allocation2 + $0x78] sm:$0xff] %vm906, %v2244
      %2293 = vst [vmem:[#allocation2 + $0x80] sm:$0xff] %v2245
      %2294 = vst.msk [vmem:[#allocation2 + $0x88] sm:$0xff] %vm906, %v2246
      %2295 = vst [vmem:[#allocation2 + $0x90] sm:$0xff] %v2247
      %2296 = vst.msk [vmem:[#allocation2 + $0x98] sm:$0xff] %vm906, %v2248
      %2297 = vst [vmem:[#allocation2 + $0xa0] sm:$0xff] %v2249
      %2298 = vst.msk [vmem:[#allocation2 + $0xa8] sm:$0xff] %vm906, %v2250
      %2299 = vst [vmem:[#allocation2 + $0xb0] sm:$0xff] %v2251
      %2300 = vst.msk [vmem:[#allocation2 + $0xb8] sm:$0xff] %vm906, %v2252
      %2301 = vst [vmem:[#allocation2 + $0xc0] sm:$0xff] %v2253
      %2302 = vst.msk [vmem:[#allocation2 + $0xc8] sm:$0xff] %vm906, %v2254
      %2303 = vst [vmem:[#allocation2 + $0xd0] sm:$0xff] %v2255
      %2304 = vst.msk [vmem:[#allocation2 + $0xd8] sm:$0xff] %vm906, %v2256
      %2305 = vst [vmem:[#allocation2 + $0xe0] sm:$0xff] %v2257
      %2306 = vst.msk [vmem:[#allocation2 + $0xe8] sm:$0xff] %vm906, %v2258
      %2307 = vst [vmem:[#allocation2 + $0xf0] sm:$0xff] %v2259
      %2308 = vst.msk [vmem:[#allocation2 + $0xf8] sm:$0xff] %vm906, %v2260
      %2309 = vst [vmem:[#allocation2 + $0x100] sm:$0xff] %v2261
      %2310 = vst.msk [vmem:[#allocation2 + $0x108] sm:$0xff] %vm906, %v2262
      %2311 = vst [vmem:[#allocation2 + $0x110] sm:$0xff] %v2263
      %2312 = vst.msk [vmem:[#allocation2 + $0x118] sm:$0xff] %vm906, %v2264
      %2313 = vst [vmem:[#allocation2 + $0x120] sm:$0xff] %v2265
      %2314 = vst.msk [vmem:[#allocation2 + $0x128] sm:$0xff] %vm906, %v2266
      %2315 = vst [vmem:[#allocation2 + $0x130] sm:$0xff] %v2267
      %2316 = vst.msk [vmem:[#allocation2 + $0x138] sm:$0xff] %vm906, %v2268
      %2317 = vst [vmem:[#allocation2 + $0x140] sm:$0xff] %v2269
      %2318 = vst.msk [vmem:[#allocation2 + $0x148] sm:$0xff] %vm906, %v2270
      %2319 = vst [vmem:[#allocation2 + $0x150] sm:$0xff] %v2271
      %2320 = vst.msk [vmem:[#allocation2 + $0x158] sm:$0xff] %vm906, %v2272
      %2321 = vst [vmem:[#allocation2 + $0x160] sm:$0xff] %v2273
      %2322 = vst.msk [vmem:[#allocation2 + $0x168] sm:$0xff] %vm906, %v2274
      %2323 = vst [vmem:[#allocation2 + $0x170] sm:$0xff] %v2275
      %2324 = vst.msk [vmem:[#allocation2 + $0x178] sm:$0xff] %vm906, %v2276
      %v2325 = vld [vmem:[#allocation2] sm:$0xff]
      %v2326 = vld [vmem:[#allocation2 + $0x8] sm:$0xff]
      %v2327 = vld [vmem:[#allocation2 + $0x10] sm:$0xff]
      %v2328 = vld [vmem:[#allocation2 + $0x18] sm:$0xff]
      %v2329 = vld [vmem:[#allocation2 + $0x20] sm:$0xff]
      %v2330 = vld [vmem:[#allocation2 + $0x28] sm:$0xff]
      %v2331 = vld [vmem:[#allocation2 + $0x30] sm:$0xff]
      %v2332 = vld [vmem:[#allocation2 + $0x38] sm:$0xff]
      %v2333 = vld [vmem:[#allocation2 + $0x40] sm:$0xff]
      %v2334 = vld [vmem:[#allocation2 + $0x48] sm:$0xff]
      %v2335 = vld [vmem:[#allocation2 + $0x50] sm:$0xff]
      %v2336 = vld [vmem:[#allocation2 + $0x58] sm:$0xff]
      %v2337 = vld [vmem:[#allocation2 + $0x60] sm:$0xff]
      %v2338 = vld [vmem:[#allocation2 + $0x68] sm:$0xff]
      %v2339 = vld [vmem:[#allocation2 + $0x70] sm:$0xff]
      %v2340 = vld [vmem:[#allocation2 + $0x78] sm:$0xff]
      %v2341 = vld [vmem:[#allocation2 + $0x80] sm:$0xff]
      %v2342 = vld [vmem:[#allocation2 + $0x88] sm:$0xff]
      %v2343 = vld [vmem:[#allocation2 + $0x90] sm:$0xff]
      %v2344 = vld [vmem:[#allocation2 + $0x98] sm:$0xff]
      %v2345 = vld [vmem:[#allocation2 + $0xa0] sm:$0xff]
      %v2346 = vld [vmem:[#allocation2 + $0xa8] sm:$0xff]
      %v2347 = vld [vmem:[#allocation2 + $0xb0] sm:$0xff]
      %v2348 = vld [vmem:[#allocation2 + $0xb8] sm:$0xff]
      %v2349 = vld [vmem:[#allocation2 + $0xc0] sm:$0xff]
      %v2350 = vld [vmem:[#allocation2 + $0xc8] sm:$0xff]
      %v2351 = vld [vmem:[#allocation2 + $0xd0] sm:$0xff]
      %v2352 = vld [vmem:[#allocation2 + $0xd8] sm:$0xff]
      %v2353 = vld [vmem:[#allocation2 + $0xe0] sm:$0xff]
      %v2354 = vld [vmem:[#allocation2 + $0xe8] sm:$0xff]
      %v2355 = vld [vmem:[#allocation2 + $0xf0] sm:$0xff]
      %v2356 = vld [vmem:[#allocation2 + $0xf8] sm:$0xff]
      %v2357 = vld [vmem:[#allocation2 + $0x100] sm:$0xff]
      %v2358 = vld [vmem:[#allocation2 + $0x108] sm:$0xff]
      %v2359 = vld [vmem:[#allocation2 + $0x110] sm:$0xff]
      %v2360 = vld [vmem:[#allocation2 + $0x118] sm:$0xff]
      %v2361 = vld [vmem:[#allocation2 + $0x120] sm:$0xff]
      %v2362 = vld [vmem:[#allocation2 + $0x128] sm:$0xff]
      %v2363 = vld [vmem:[#allocation2 + $0x130] sm:$0xff]
      %v2364 = vld [vmem:[#allocation2 + $0x138] sm:$0xff]
      %v2365 = vld [vmem:[#allocation2 + $0x140] sm:$0xff]
      %v2366 = vld [vmem:[#allocation2 + $0x148] sm:$0xff]
      %v2367 = vld [vmem:[#allocation2 + $0x150] sm:$0xff]
      %v2368 = vld [vmem:[#allocation2 + $0x158] sm:$0xff]
      %v2369 = vld [vmem:[#allocation2 + $0x160] sm:$0xff]
      %v2370 = vld [vmem:[#allocation2 + $0x168] sm:$0xff]
      %v2371 = vld [vmem:[#allocation2 + $0x170] sm:$0xff]
      %v2372 = vld [vmem:[#allocation2 + $0x178] sm:$0xff]
      %v2373 = vld [vmem:[%s4] sm:$0x3]
      %v2375 = vlaneseq
      %v2376 = vshrl.u32 %v2375, 7
      %v2377 = vsub.s32 0, %v2376
      %v2378 = vrot.slane %v2373, %v2377
      %v2379 = vlaneseq
      %v2380 = vshrl.u32 %v2379, 7
      %v2381 = vsub.s32 1, %v2380
      %v2382 = vrot.slane %v2373, %v2381
      %v2385 = vadd.f32 %v2325, %v2378
      %v2386 = vadd.f32 %v2326, %v2382
      %v2387 = vadd.f32 %v2327, %v2378
      %v2388 = vadd.f32 %v2328, %v2382
      %v2389 = vadd.f32 %v2329, %v2378
      %v2390 = vadd.f32 %v2330, %v2382
      %v2391 = vadd.f32 %v2331, %v2378
      %v2392 = vadd.f32 %v2332, %v2382
      %v2393 = vadd.f32 %v2333, %v2378
      %v2394 = vadd.f32 %v2334, %v2382
      %v2395 = vadd.f32 %v2335, %v2378
      %v2396 = vadd.f32 %v2336, %v2382
      %v2397 = vadd.f32 %v2337, %v2378
      %v2398 = vadd.f32 %v2338, %v2382
      %v2399 = vadd.f32 %v2339, %v2378
      %v2400 = vadd.f32 %v2340, %v2382
      %v2401 = vadd.f32 %v2341, %v2378
      %v2402 = vadd.f32 %v2342, %v2382
      %v2403 = vadd.f32 %v2343, %v2378
      %v2404 = vadd.f32 %v2344, %v2382
      %v2405 = vadd.f32 %v2345, %v2378
      %v2406 = vadd.f32 %v2346, %v2382
      %v2407 = vadd.f32 %v2347, %v2378
      %v2408 = vadd.f32 %v2348, %v2382
      %v2409 = vadd.f32 %v2349, %v2378
      %v2410 = vadd.f32 %v2350, %v2382
      %v2411 = vadd.f32 %v2351, %v2378
      %v2412 = vadd.f32 %v2352, %v2382
      %v2413 = vadd.f32 %v2353, %v2378
      %v2414 = vadd.f32 %v2354, %v2382
      %v2415 = vadd.f32 %v2355, %v2378
      %v2416 = vadd.f32 %v2356, %v2382
      %v2417 = vadd.f32 %v2357, %v2378
      %v2418 = vadd.f32 %v2358, %v2382
      %v2419 = vadd.f32 %v2359, %v2378
      %v2420 = vadd.f32 %v2360, %v2382
      %v2421 = vadd.f32 %v2361, %v2378
      %v2422 = vadd.f32 %v2362, %v2382
      %v2423 = vadd.f32 %v2363, %v2378
      %v2424 = vadd.f32 %v2364, %v2382
      %v2425 = vadd.f32 %v2365, %v2378
      %v2426 = vadd.f32 %v2366, %v2382
      %v2427 = vadd.f32 %v2367, %v2378
      %v2428 = vadd.f32 %v2368, %v2382
      %v2429 = vadd.f32 %v2369, %v2378
      %v2430 = vadd.f32 %v2370, %v2382
      %v2431 = vadd.f32 %v2371, %v2378
      %v2432 = vadd.f32 %v2372, %v2382
      %v2433 = vmax.f32 %v2385, 0.0
      %v2434 = vmax.f32 %v2386, 0.0
      %v2435 = vmax.f32 %v2387, 0.0
      %v2436 = vmax.f32 %v2388, 0.0
      %v2437 = vmax.f32 %v2389, 0.0
      %v2438 = vmax.f32 %v2390, 0.0
      %v2439 = vmax.f32 %v2391, 0.0
      %v2440 = vmax.f32 %v2392, 0.0
      %v2441 = vmax.f32 %v2393, 0.0
      %v2442 = vmax.f32 %v2394, 0.0
      %v2443 = vmax.f32 %v2395, 0.0
      %v2444 = vmax.f32 %v2396, 0.0
      %v2445 = vmax.f32 %v2397, 0.0
      %v2446 = vmax.f32 %v2398, 0.0
      %v2447 = vmax.f32 %v2399, 0.0
      %v2448 = vmax.f32 %v2400, 0.0
      %v2449 = vmax.f32 %v2401, 0.0
      %v2450 = vmax.f32 %v2402, 0.0
      %v2451 = vmax.f32 %v2403, 0.0
      %v2452 = vmax.f32 %v2404, 0.0
      %v2453 = vmax.f32 %v2405, 0.0
      %v2454 = vmax.f32 %v2406, 0.0
      %v2455 = vmax.f32 %v2407, 0.0
      %v2456 = vmax.f32 %v2408, 0.0
      %v2457 = vmax.f32 %v2409, 0.0
      %v2458 = vmax.f32 %v2410, 0.0
      %v2459 = vmax.f32 %v2411, 0.0
      %v2460 = vmax.f32 %v2412, 0.0
      %v2461 = vmax.f32 %v2413, 0.0
      %v2462 = vmax.f32 %v2414, 0.0
      %v2463 = vmax.f32 %v2415, 0.0
      %v2464 = vmax.f32 %v2416, 0.0
      %v2465 = vmax.f32 %v2417, 0.0
      %v2466 = vmax.f32 %v2418, 0.0
      %v2467 = vmax.f32 %v2419, 0.0
      %v2468 = vmax.f32 %v2420, 0.0
      %v2469 = vmax.f32 %v2421, 0.0
      %v2470 = vmax.f32 %v2422, 0.0
      %v2471 = vmax.f32 %v2423, 0.0
      %v2472 = vmax.f32 %v2424, 0.0
      %v2473 = vmax.f32 %v2425, 0.0
      %v2474 = vmax.f32 %v2426, 0.0
      %v2475 = vmax.f32 %v2427, 0.0
      %v2476 = vmax.f32 %v2428, 0.0
      %v2477 = vmax.f32 %v2429, 0.0
      %v2478 = vmax.f32 %v2430, 0.0
      %v2479 = vmax.f32 %v2431, 0.0
      %v2480 = vmax.f32 %v2432, 0.0
      %v2481 = vpack.c.bf16 %v2435, %v2433
      %v2482 = vpack.c.bf16 %v2436, %v2434
      %v2483 = vpack.c.bf16 %v2439, %v2437
      %v2484 = vpack.c.bf16 %v2440, %v2438
      %v2485 = vpack.c.bf16 %v2443, %v2441
      %v2486 = vpack.c.bf16 %v2444, %v2442
      %v2487 = vpack.c.bf16 %v2447, %v2445
      %v2488 = vpack.c.bf16 %v2448, %v2446
      %v2489 = vpack.c.bf16 %v2451, %v2449
      %v2490 = vpack.c.bf16 %v2452, %v2450
      %v2491 = vpack.c.bf16 %v2455, %v2453
      %v2492 = vpack.c.bf16 %v2456, %v2454
      %v2493 = vpack.c.bf16 %v2459, %v2457
      %v2494 = vpack.c.bf16 %v2460, %v2458
      %v2495 = vpack.c.bf16 %v2463, %v2461
      %v2496 = vpack.c.bf16 %v2464, %v2462
      %v2497 = vpack.c.bf16 %v2467, %v2465
      %v2498 = vpack.c.bf16 %v2468, %v2466
      %v2499 = vpack.c.bf16 %v2471, %v2469
      %v2500 = vpack.c.bf16 %v2472, %v2470
      %v2501 = vpack.c.bf16 %v2475, %v2473
      %v2502 = vpack.c.bf16 %v2476, %v2474
      %v2503 = vpack.c.bf16 %v2479, %v2477
      %v2504 = vpack.c.bf16 %v2480, %v2478
      %2505 = vst [vmem:[#allocation3] sm:$0xff] %v2481
      %2506 = vst.msk [vmem:[#allocation3 + $0x8] sm:$0xff] %vm906, %v2482
      %2507 = vst [vmem:[#allocation3 + $0x10] sm:$0xff] %v2483
      %2508 = vst.msk [vmem:[#allocation3 + $0x18] sm:$0xff] %vm906, %v2484
      %2509 = vst [vmem:[#allocation3 + $0x20] sm:$0xff] %v2485
      %2510 = vst.msk [vmem:[#allocation3 + $0x28] sm:$0xff] %vm906, %v2486
      %2511 = vst [vmem:[#allocation3 + $0x30] sm:$0xff] %v2487
      %2512 = vst.msk [vmem:[#allocation3 + $0x38] sm:$0xff] %vm906, %v2488
      %2513 = vst [vmem:[#allocation3 + $0x40] sm:$0xff] %v2489
      %2514 = vst.msk [vmem:[#allocation3 + $0x48] sm:$0xff] %vm906, %v2490
      %2515 = vst [vmem:[#allocation3 + $0x50] sm:$0xff] %v2491
      %2516 = vst.msk [vmem:[#allocation3 + $0x58] sm:$0xff] %vm906, %v2492
      %2517 = vst [vmem:[#allocation3 + $0x60] sm:$0xff] %v2493
      %2518 = vst.msk [vmem:[#allocation3 + $0x68] sm:$0xff] %vm906, %v2494
      %2519 = vst [vmem:[#allocation3 + $0x70] sm:$0xff] %v2495
      %2520 = vst.msk [vmem:[#allocation3 + $0x78] sm:$0xff] %vm906, %v2496
      %2521 = vst [vmem:[#allocation3 + $0x80] sm:$0xff] %v2497
      %2522 = vst.msk [vmem:[#allocation3 + $0x88] sm:$0xff] %vm906, %v2498
      %2523 = vst [vmem:[#allocation3 + $0x90] sm:$0xff] %v2499
      %2524 = vst.msk [vmem:[#allocation3 + $0x98] sm:$0xff] %vm906, %v2500
      %2525 = vst [vmem:[#allocation3 + $0xa0] sm:$0xff] %v2501
      %2526 = vst.msk [vmem:[#allocation3 + $0xa8] sm:$0xff] %vm906, %v2502
      %2527 = vst [vmem:[#allocation3 + $0xb0] sm:$0xff] %v2503
      %2528 = vst.msk [vmem:[#allocation3 + $0xb8] sm:$0xff] %vm906, %v2504
      %v2529 = vld [vmem:[#allocation3] sm:$0xff]
      %v2530 = vld [vmem:[#allocation3 + $0x8] sm:$0xff]
      %v2531 = vld [vmem:[#allocation3 + $0x10] sm:$0xff]
      %v2532 = vld [vmem:[#allocation3 + $0x18] sm:$0xff]
      %v2533 = vld [vmem:[#allocation3 + $0x20] sm:$0xff]
      %v2534 = vld [vmem:[#allocation3 + $0x28] sm:$0xff]
      %v2535 = vld [vmem:[#allocation3 + $0x30] sm:$0xff]
      %v2536 = vld [vmem:[#allocation3 + $0x38] sm:$0xff]
      %v2537 = vld [vmem:[#allocation3 + $0x40] sm:$0xff]
      %v2538 = vld [vmem:[#allocation3 + $0x48] sm:$0xff]
      %v2539 = vld [vmem:[#allocation3 + $0x50] sm:$0xff]
      %v2540 = vld [vmem:[#allocation3 + $0x58] sm:$0xff]
      %v2541 = vld [vmem:[#allocation3 + $0x60] sm:$0xff]
      %v2542 = vld [vmem:[#allocation3 + $0x68] sm:$0xff]
      %v2543 = vld [vmem:[#allocation3 + $0x70] sm:$0xff]
      %v2544 = vld [vmem:[#allocation3 + $0x78] sm:$0xff]
      %v2545 = vld [vmem:[%s5] sm:$0xff]
      %v2546 = vld [vmem:[%s5 + $0x8] sm:$0xff]
      %v2547 = vld [vmem:[%s5 + $0x10] sm:$0xff]
      %v2548 = vld [vmem:[%s5 + $0x18] sm:$0xff]
      %v2549 = vld [vmem:[%s5 + $0x20] sm:$0xff]
      %v2550 = vld [vmem:[%s5 + $0x28] sm:$0xff]
      %v2551 = vld [vmem:[%s5 + $0x30] sm:$0xff]
      %v2552 = vld [vmem:[%s5 + $0x38] sm:$0xff]
      %v2553 = vld [vmem:[%s5 + $0x40] sm:$0xff]
      %v2554 = vld [vmem:[%s5 + $0x48] sm:$0xff]
      %v2555 = vld [vmem:[%s5 + $0x50] sm:$0xff]
      %v2556 = vld [vmem:[%s5 + $0x58] sm:$0xff]
      %v2557 = vld [vmem:[%s5 + $0x60] sm:$0xff]
      %v2558 = vld [vmem:[%s5 + $0x68] sm:$0xff]
      %v2559 = vld [vmem:[%s5 + $0x70] sm:$0xff]
      %v2560 = vld [vmem:[%s5 + $0x78] sm:$0xff]
      %v2561 = vld [vmem:[%s5 + $0x80] sm:$0xff]
      %v2562 = vld [vmem:[%s5 + $0x88] sm:$0xff]
      %v2563 = vld [vmem:[%s5 + $0x90] sm:$0xff]
      %v2564 = vld [vmem:[%s5 + $0x98] sm:$0xff]
      %v2565 = vld [vmem:[%s5 + $0xa0] sm:$0xff]
      %v2566 = vld [vmem:[%s5 + $0xa8] sm:$0xff]
      %v2567 = vld [vmem:[%s5 + $0xb0] sm:$0xff]
      %v2568 = vld [vmem:[%s5 + $0xb8] sm:$0xff]
      %v2569 = vld [vmem:[%s5 + $0xc0] sm:$0xff]
      %v2570 = vld [vmem:[%s5 + $0xc8] sm:$0xff]
      %v2571 = vld [vmem:[%s5 + $0xd0] sm:$0xff]
      %v2572 = vld [vmem:[%s5 + $0xd8] sm:$0xff]
      %v2573 = vld [vmem:[%s5 + $0xe0] sm:$0xff]
      %v2574 = vld [vmem:[%s5 + $0xe8] sm:$0xff]
      %v2605 = vunpack.c.l.b16 %v2545
      %v2606 = vunpack.c.h.b16 %v2545
      %v2607 = vunpack.c.l.b16 %v2546
      %v2608 = vunpack.c.h.b16 %v2546
      %v2609 = vunpack.c.l.b16 %v2547
      %v2610 = vunpack.c.h.b16 %v2547
      %v2611 = vunpack.c.l.b16 %v2548
      %v2612 = vunpack.c.h.b16 %v2548
      %v2613 = vunpack.c.l.b16 %v2549
      %v2614 = vunpack.c.h.b16 %v2549
      %v2615 = vunpack.c.l.b16 %v2550
      %v2616 = vunpack.c.h.b16 %v2550
      %v2617 = vunpack.c.l.b16 %v2551
      %v2618 = vunpack.c.h.b16 %v2551
      %v2619 = vunpack.c.l.b16 %v2552
      %v2620 = vunpack.c.h.b16 %v2552
      %v2621 = vunpack.c.l.b16 %v2553
      %v2622 = vunpack.c.h.b16 %v2553
      %v2623 = vunpack.c.l.b16 %v2554
      %v2624 = vunpack.c.h.b16 %v2554
      %v2625 = vunpack.c.l.b16 %v2555
      %v2626 = vunpack.c.h.b16 %v2555
      %v2627 = vunpack.c.l.b16 %v2556
      %v2628 = vunpack.c.h.b16 %v2556
      %v2629 = vunpack.c.l.b16 %v2557
      %v2630 = vunpack.c.h.b16 %v2557
      %v2631 = vunpack.c.l.b16 %v2558
      %v2632 = vunpack.c.h.b16 %v2558
      %v2633 = vunpack.c.l.b16 %v2559
      %v2634 = vunpack.c.h.b16 %v2559
      %v2635 = vunpack.c.l.b16 %v2560
      %v2636 = vunpack.c.h.b16 %v2560
      %v2637 = vunpack.c.l.b16 %v2561
      %v2638 = vunpack.c.h.b16 %v2561
      %v2639 = vunpack.c.l.b16 %v2562
      %v2640 = vunpack.c.h.b16 %v2562
      %v2641 = vunpack.c.l.b16 %v2563
      %v2642 = vunpack.c.h.b16 %v2563
      %v2643 = vunpack.c.l.b16 %v2564
      %v2644 = vunpack.c.h.b16 %v2564
      %v2645 = vunpack.c.l.b16 %v2565
      %v2646 = vunpack.c.h.b16 %v2565
      %v2647 = vunpack.c.l.b16 %v2566
      %v2648 = vunpack.c.h.b16 %v2566
      %v2649 = vunpack.c.l.b16 %v2567
      %v2650 = vunpack.c.h.b16 %v2567
      %v2651 = vunpack.c.l.b16 %v2568
      %v2652 = vunpack.c.h.b16 %v2568
      %v2653 = vunpack.c.l.b16 %v2569
      %v2654 = vunpack.c.h.b16 %v2569
      %v2655 = vunpack.c.l.b16 %v2570
      %v2656 = vunpack.c.h.b16 %v2570
      %v2657 = vunpack.c.l.b16 %v2571
      %v2658 = vunpack.c.h.b16 %v2571
      %v2659 = vunpack.c.l.b16 %v2572
      %v2660 = vunpack.c.h.b16 %v2572
      %v2661 = vunpack.c.l.b16 %v2573
      %v2662 = vunpack.c.h.b16 %v2573
      %v2663 = vunpack.c.l.b16 %v2574
      %v2664 = vunpack.c.h.b16 %v2574
      %v2665 = vpack.c.b16 %v2607, %v2605
      %v2666 = vpack.c.b16 %v2608, %v2606
      %v2667 = vpack.c.b16 %v2611, %v2609
      %v2668 = vpack.c.b16 %v2612, %v2610
      %v2669 = vpack.c.b16 %v2615, %v2613
      %v2670 = vpack.c.b16 %v2616, %v2614
      %v2671 = vpack.c.b16 %v2619, %v2617
      %v2672 = vpack.c.b16 %v2620, %v2618
      %v2673 = vpack.c.b16 %v2623, %v2621
      %v2674 = vpack.c.b16 %v2624, %v2622
      %v2675 = vpack.c.b16 %v2627, %v2625
      %v2676 = vpack.c.b16 %v2628, %v2626
      %v2677 = vpack.c.b16 %v2631, %v2629
      %v2678 = vpack.c.b16 %v2632, %v2630
      %v2679 = vpack.c.b16 %v2635, %v2633
      %v2680 = vpack.c.b16 %v2636, %v2634
      %v2681 = vpack.c.b16 %v2639, %v2637
      %v2682 = vpack.c.b16 %v2640, %v2638
      %v2683 = vpack.c.b16 %v2643, %v2641
      %v2684 = vpack.c.b16 %v2644, %v2642
      %v2685 = vpack.c.b16 %v2647, %v2645
      %v2686 = vpack.c.b16 %v2648, %v2646
      %v2687 = vpack.c.b16 %v2651, %v2649
      %v2688 = vpack.c.b16 %v2652, %v2650
      %v2689 = vpack.c.b16 %v2655, %v2653
      %v2690 = vpack.c.b16 %v2656, %v2654
      %v2691 = vpack.c.b16 %v2659, %v2657
      %v2692 = vpack.c.b16 %v2660, %v2658
      %v2693 = vpack.c.b16 %v2663, %v2661
      %v2694 = vpack.c.b16 %v2664, %v2662
      %v2726 = vsel %vm906, %v2530, 0
      %v2729 = vsel %vm906, %v2532, 0
      %v2732 = vsel %vm906, %v2534, 0
      %v2735 = vsel %vm906, %v2536, 0
      %v2738 = vsel %vm906, %v2538, 0
      %v2741 = vsel %vm906, %v2540, 0
      %v2744 = vsel %vm906, %v2542, 0
      %v2747 = vsel %vm906, %v2544, 0
      %2749 = vmatprep.subr.bf16.mxu0 %v2666
      %2750 = vmatpush1.bf16.msra.mxu0 %v2665
      %2751 = vmatprep.subr.bf16.mxu0 %v2668
      %2752 = vmatpush1.bf16.msra.mxu0 %v2667
      %2753 = vmatprep.subr.bf16.mxu0 %v2670
      %2754 = vmatpush1.bf16.msra.mxu0 %v2669
      %2755 = vmatprep.subr.bf16.mxu0 %v2672
      %2756 = vmatpush1.bf16.msra.mxu0 %v2671
      %2757 = vmatprep.subr.bf16.mxu0 %v2674
      %2758 = vmatpush1.bf16.msra.mxu0 %v2673
      %2759 = vmatprep.subr.bf16.mxu0 %v2676
      %2760 = vmatpush1.bf16.msra.mxu0 %v2675
      %2761 = vmatprep.subr.bf16.mxu0 %v2678
      %2762 = vmatpush1.bf16.msra.mxu0 %v2677
      %2763 = vmatprep.subr.bf16.mxu0 %v2680
      %2764 = vmatpush1.bf16.msra.mxu0 %v2679
      %2765 = vmatprep.subr.bf16.mxu0 %v2682
      %2766 = vmatpush1.bf16.msra.mxu0 %v2681
      %2767 = vmatprep.subr.bf16.mxu0 %v2684
      %2768 = vmatpush1.bf16.msra.mxu0 %v2683
      %2769 = vmatprep.subr.bf16.mxu0 %v2686
      %2770 = vmatpush1.bf16.msra.mxu0 %v2685
      %2771 = vmatprep.subr.bf16.mxu0 %v2688
      %2772 = vmatpush1.bf16.msra.mxu0 %v2687
      %2773 = vmatprep.subr.bf16.mxu0 %v2690
      %2774 = vmatpush1.bf16.msra.mxu0 %v2689
      %2775 = vmatprep.subr.bf16.mxu0 %v2692
      %2776 = vmatpush1.bf16.msra.mxu0 %v2691
      %2777 = vmatprep.subr.bf16.mxu0 %v2694
      %2778 = vmatpush1.bf16.msra.mxu0 %v2693
      %2779 = vmatprep.subr.bf16.mxu0 0
      %2780 = vmatpush1.bf16.msra.mxu0 0
      %2781 = vmatprep.mubr.bf16.mxu0 %v2726
      %2782 = vmatmul.mubr.bf16.gmra.mrb[0].mxu0 %v2529
      %v2783 = vpop.f32.mrb[0].mxu0
      %v2784 = vadd.f32 0.0, %v2783
      %v2785 = vpop.f32.mrb[0].mxu0
      %v2786 = vadd.f32 0.0, %v2785
      %v2787 = vpop.f32.mrb[0].mxu0
      %v2788 = vadd.f32 0.0, %v2787
      %v2789 = vpop.f32.mrb[0].mxu0
      %v2790 = vadd.f32 0.0, %v2789
      %2791 = vmatprep.mubr.bf16.mxu0 %v2729
      %2792 = vmatmul.mubr.bf16.gmra.mrb[0].mxu0 %v2531
      %v2793 = vpop.f32.mrb[0].mxu0
      %v2794 = vadd.f32 0.0, %v2793
      %v2795 = vpop.f32.mrb[0].mxu0
      %v2796 = vadd.f32 0.0, %v2795
      %v2797 = vpop.f32.mrb[0].mxu0
      %v2798 = vadd.f32 0.0, %v2797
      %v2799 = vpop.f32.mrb[0].mxu0
      %v2800 = vadd.f32 0.0, %v2799
      %2801 = vmatprep.mubr.bf16.mxu0 %v2732
      %2802 = vmatmul.mubr.bf16.gmra.mrb[0].mxu0 %v2533
      %v2803 = vpop.f32.mrb[0].mxu0
      %v2804 = vadd.f32 0.0, %v2803
      %v2805 = vpop.f32.mrb[0].mxu0
      %v2806 = vadd.f32 0.0, %v2805
      %v2807 = vpop.f32.mrb[0].mxu0
      %v2808 = vadd.f32 0.0, %v2807
      %v2809 = vpop.f32.mrb[0].mxu0
      %v2810 = vadd.f32 0.0, %v2809
      %2811 = vmatprep.mubr.bf16.mxu0 %v2735
      %2812 = vmatmul.mubr.bf16.gmra.mrb[0].mxu0 %v2535
      %v2813 = vpop.f32.mrb[0].mxu0
      %v2814 = vadd.f32 0.0, %v2813
      %v2815 = vpop.f32.mrb[0].mxu0
      %v2816 = vadd.f32 0.0, %v2815
      %v2817 = vpop.f32.mrb[0].mxu0
      %v2818 = vadd.f32 0.0, %v2817
      %v2819 = vpop.f32.mrb[0].mxu0
      %v2820 = vadd.f32 0.0, %v2819
      %2821 = vmatprep.mubr.bf16.mxu0 %v2738
      %2822 = vmatmul.mubr.bf16.gmra.mrb[0].mxu0 %v2537
      %v2823 = vpop.f32.mrb[0].mxu0
      %v2824 = vadd.f32 0.0, %v2823
      %v2825 = vpop.f32.mrb[0].mxu0
      %v2826 = vadd.f32 0.0, %v2825
      %v2827 = vpop.f32.mrb[0].mxu0
      %v2828 = vadd.f32 0.0, %v2827
      %v2829 = vpop.f32.mrb[0].mxu0
      %v2830 = vadd.f32 0.0, %v2829
      %2831 = vmatprep.mubr.bf16.mxu0 %v2741
      %2832 = vmatmul.mubr.bf16.gmra.mrb[0].mxu0 %v2539
      %v2833 = vpop.f32.mrb[0].mxu0
      %v2834 = vadd.f32 0.0, %v2833
      %v2835 = vpop.f32.mrb[0].mxu0
      %v2836 = vadd.f32 0.0, %v2835
      %v2837 = vpop.f32.mrb[0].mxu0
      %v2838 = vadd.f32 0.0, %v2837
      %v2839 = vpop.f32.mrb[0].mxu0
      %v2840 = vadd.f32 0.0, %v2839
      %2841 = vmatprep.mubr.bf16.mxu0 %v2744
      %2842 = vmatmul.mubr.bf16.gmra.mrb[0].mxu0 %v2541
      %v2843 = vpop.f32.mrb[0].mxu0
      %v2844 = vadd.f32 0.0, %v2843
      %v2845 = vpop.f32.mrb[0].mxu0
      %v2846 = vadd.f32 0.0, %v2845
      %v2847 = vpop.f32.mrb[0].mxu0
      %v2848 = vadd.f32 0.0, %v2847
      %v2849 = vpop.f32.mrb[0].mxu0
      %v2850 = vadd.f32 0.0, %v2849
      %2851 = vmatprep.mubr.bf16.mxu0 %v2747
      %2852 = vmatmul.mubr.bf16.gmra.mrb[0].mxu0 %v2543
      %v2853 = vpop.f32.mrb[0].mxu0
      %v2854 = vadd.f32 0.0, %v2853
      %v2855 = vpop.f32.mrb[0].mxu0
      %v2856 = vadd.f32 0.0, %v2855
      %v2857 = vpop.f32.mrb[0].mxu0
      %v2858 = vadd.f32 0.0, %v2857
      %v2859 = vpop.f32.mrb[0].mxu0
      %v2860 = vadd.f32 0.0, %v2859
      %2861 = vdwg.mxu0
      %v2862 = vld [vmem:[%s6] sm:$0xff]
      %v2863 = vld [vmem:[%s6 + $0x8] sm:$0xff]
      %v2864 = vld [vmem:[%s6 + $0x10] sm:$0xff]
      %v2865 = vld [vmem:[%s6 + $0x18] sm:$0xff]
      %v2866 = vld [vmem:[%s6 + $0x20] sm:$0xff]
      %v2867 = vld [vmem:[%s6 + $0x28] sm:$0xff]
      %v2868 = vld [vmem:[%s6 + $0x30] sm:$0xff]
      %v2869 = vld [vmem:[%s6 + $0x38] sm:$0xff]
      %v2870 = vld [vmem:[%s6 + $0x40] sm:$0xff]
      %v2871 = vld [vmem:[%s6 + $0x48] sm:$0xff]
      %v2872 = vld [vmem:[%s6 + $0x50] sm:$0xff]
      %v2873 = vld [vmem:[%s6 + $0x58] sm:$0xff]
      %v2874 = vld [vmem:[%s6 + $0x60] sm:$0xff]
      %v2875 = vld [vmem:[%s6 + $0x68] sm:$0xff]
      %v2876 = vld [vmem:[%s6 + $0x70] sm:$0xff]
      %v2877 = vld [vmem:[%s6 + $0x78] sm:$0xff]
      %v2878 = vld [vmem:[%s6 + $0x80] sm:$0xff]
      %v2879 = vld [vmem:[%s6 + $0x88] sm:$0xff]
      %v2880 = vld [vmem:[%s6 + $0x90] sm:$0xff]
      %v2881 = vld [vmem:[%s6 + $0x98] sm:$0xff]
      %v2882 = vld [vmem:[%s6 + $0xa0] sm:$0xff]
      %v2883 = vld [vmem:[%s6 + $0xa8] sm:$0xff]
      %v2884 = vld [vmem:[%s6 + $0xb0] sm:$0xff]
      %v2885 = vld [vmem:[%s6 + $0xb8] sm:$0xff]
      %v2886 = vld [vmem:[%s6 + $0xc0] sm:$0xff]
      %v2887 = vld [vmem:[%s6 + $0xc8] sm:$0xff]
      %v2888 = vld [vmem:[%s6 + $0xd0] sm:$0xff]
      %v2889 = vld [vmem:[%s6 + $0xd8] sm:$0xff]
      %v2890 = vld [vmem:[%s6 + $0xe0] sm:$0xff]
      %v2891 = vld [vmem:[%s6 + $0xe8] sm:$0xff]
      %v2922 = vunpack.c.l.b16 %v2862
      %v2923 = vunpack.c.h.b16 %v2862
      %v2924 = vunpack.c.l.b16 %v2863
      %v2925 = vunpack.c.h.b16 %v2863
      %v2926 = vunpack.c.l.b16 %v2864
      %v2927 = vunpack.c.h.b16 %v2864
      %v2928 = vunpack.c.l.b16 %v2865
      %v2929 = vunpack.c.h.b16 %v2865
      %v2930 = vunpack.c.l.b16 %v2866
      %v2931 = vunpack.c.h.b16 %v2866
      %v2932 = vunpack.c.l.b16 %v2867
      %v2933 = vunpack.c.h.b16 %v2867
      %v2934 = vunpack.c.l.b16 %v2868
      %v2935 = vunpack.c.h.b16 %v2868
      %v2936 = vunpack.c.l.b16 %v2869
      %v2937 = vunpack.c.h.b16 %v2869
      %v2938 = vunpack.c.l.b16 %v2870
      %v2939 = vunpack.c.h.b16 %v2870
      %v2940 = vunpack.c.l.b16 %v2871
      %v2941 = vunpack.c.h.b16 %v2871
      %v2942 = vunpack.c.l.b16 %v2872
      %v2943 = vunpack.c.h.b16 %v2872
      %v2944 = vunpack.c.l.b16 %v2873
      %v2945 = vunpack.c.h.b16 %v2873
      %v2946 = vunpack.c.l.b16 %v2874
      %v2947 = vunpack.c.h.b16 %v2874
      %v2948 = vunpack.c.l.b16 %v2875
      %v2949 = vunpack.c.h.b16 %v2875
      %v2950 = vunpack.c.l.b16 %v2876
      %v2951 = vunpack.c.h.b16 %v2876
      %v2952 = vunpack.c.l.b16 %v2877
      %v2953 = vunpack.c.h.b16 %v2877
      %v2954 = vunpack.c.l.b16 %v2878
      %v2955 = vunpack.c.h.b16 %v2878
      %v2956 = vunpack.c.l.b16 %v2879
      %v2957 = vunpack.c.h.b16 %v2879
      %v2958 = vunpack.c.l.b16 %v2880
      %v2959 = vunpack.c.h.b16 %v2880
      %v2960 = vunpack.c.l.b16 %v2881
      %v2961 = vunpack.c.h.b16 %v2881
      %v2962 = vunpack.c.l.b16 %v2882
      %v2963 = vunpack.c.h.b16 %v2882
      %v2964 = vunpack.c.l.b16 %v2883
      %v2965 = vunpack.c.h.b16 %v2883
      %v2966 = vunpack.c.l.b16 %v2884
      %v2967 = vunpack.c.h.b16 %v2884
      %v2968 = vunpack.c.l.b16 %v2885
      %v2969 = vunpack.c.h.b16 %v2885
      %v2970 = vunpack.c.l.b16 %v2886
      %v2971 = vunpack.c.h.b16 %v2886
      %v2972 = vunpack.c.l.b16 %v2887
      %v2973 = vunpack.c.h.b16 %v2887
      %v2974 = vunpack.c.l.b16 %v2888
      %v2975 = vunpack.c.h.b16 %v2888
      %v2976 = vunpack.c.l.b16 %v2889
      %v2977 = vunpack.c.h.b16 %v2889
      %v2978 = vunpack.c.l.b16 %v2890
      %v2979 = vunpack.c.h.b16 %v2890
      %v2980 = vunpack.c.l.b16 %v2891
      %v2981 = vunpack.c.h.b16 %v2891
      %v2982 = vpack.c.b16 %v2924, %v2922
      %v2983 = vpack.c.b16 %v2925, %v2923
      %v2984 = vpack.c.b16 %v2928, %v2926
      %v2985 = vpack.c.b16 %v2929, %v2927
      %v2986 = vpack.c.b16 %v2932, %v2930
      %v2987 = vpack.c.b16 %v2933, %v2931
      %v2988 = vpack.c.b16 %v2936, %v2934
      %v2989 = vpack.c.b16 %v2937, %v2935
      %v2990 = vpack.c.b16 %v2940, %v2938
      %v2991 = vpack.c.b16 %v2941, %v2939
      %v2992 = vpack.c.b16 %v2944, %v2942
      %v2993 = vpack.c.b16 %v2945, %v2943
      %v2994 = vpack.c.b16 %v2948, %v2946
      %v2995 = vpack.c.b16 %v2949, %v2947
      %v2996 = vpack.c.b16 %v2952, %v2950
      %v2997 = vpack.c.b16 %v2953, %v2951
      %v2998 = vpack.c.b16 %v2956, %v2954
      %v2999 = vpack.c.b16 %v2957, %v2955
      %v3000 = vpack.c.b16 %v2960, %v2958
      %v3001 = vpack.c.b16 %v2961, %v2959
      %v3002 = vpack.c.b16 %v2964, %v2962
      %v3003 = vpack.c.b16 %v2965, %v2963
      %v3004 = vpack.c.b16 %v2968, %v2966
      %v3005 = vpack.c.b16 %v2969, %v2967
      %v3006 = vpack.c.b16 %v2972, %v2970
      %v3007 = vpack.c.b16 %v2973, %v2971
      %v3008 = vpack.c.b16 %v2976, %v2974
      %v3009 = vpack.c.b16 %v2977, %v2975
      %v3010 = vpack.c.b16 %v2980, %v2978
      %v3011 = vpack.c.b16 %v2981, %v2979
      %3042 = vmatprep.subr.bf16.mxu0 %v2983
      %3043 = vmatpush1.bf16.msra.mxu0 %v2982
      %3044 = vmatprep.subr.bf16.mxu0 %v2985
      %3045 = vmatpush1.bf16.msra.mxu0 %v2984
      %3046 = vmatprep.subr.bf16.mxu0 %v2987
      %3047 = vmatpush1.bf16.msra.mxu0 %v2986
      %3048 = vmatprep.subr.bf16.mxu0 %v2989
      %3049 = vmatpush1.bf16.msra.mxu0 %v2988
      %3050 = vmatprep.subr.bf16.mxu0 %v2991
      %3051 = vmatpush1.bf16.msra.mxu0 %v2990
      %3052 = vmatprep.subr.bf16.mxu0 %v2993
      %3053 = vmatpush1.bf16.msra.mxu0 %v2992
      %3054 = vmatprep.subr.bf16.mxu0 %v2995
      %3055 = vmatpush1.bf16.msra.mxu0 %v2994
      %3056 = vmatprep.subr.bf16.mxu0 %v2997
      %3057 = vmatpush1.bf16.msra.mxu0 %v2996
      %3058 = vmatprep.subr.bf16.mxu0 %v2999
      %3059 = vmatpush1.bf16.msra.mxu0 %v2998
      %3060 = vmatprep.subr.bf16.mxu0 %v3001
      %3061 = vmatpush1.bf16.msra.mxu0 %v3000
      %3062 = vmatprep.subr.bf16.mxu0 %v3003
      %3063 = vmatpush1.bf16.msra.mxu0 %v3002
      %3064 = vmatprep.subr.bf16.mxu0 %v3005
      %3065 = vmatpush1.bf16.msra.mxu0 %v3004
      %3066 = vmatprep.subr.bf16.mxu0 %v3007
      %3067 = vmatpush1.bf16.msra.mxu0 %v3006
      %3068 = vmatprep.subr.bf16.mxu0 %v3009
      %3069 = vmatpush1.bf16.msra.mxu0 %v3008
      %3070 = vmatprep.subr.bf16.mxu0 %v3011
      %3071 = vmatpush1.bf16.msra.mxu0 %v3010
      %3072 = vmatprep.subr.bf16.mxu0 0
      %3073 = vmatpush1.bf16.msra.mxu0 0
      %3074 = vmatprep.mubr.bf16.mxu0 %v2726
      %3075 = vmatmul.mubr.bf16.gmra.mrb[0].mxu0 %v2529
      %v3076 = vpop.f32.mrb[0].mxu0
      %v3077 = vadd.f32 0.0, %v3076
      %v3078 = vpop.f32.mrb[0].mxu0
      %v3079 = vadd.f32 0.0, %v3078
      %v3080 = vpop.f32.mrb[0].mxu0
      %v3081 = vadd.f32 0.0, %v3080
      %v3082 = vpop.f32.mrb[0].mxu0
      %v3083 = vadd.f32 0.0, %v3082
      %3084 = vmatprep.mubr.bf16.mxu0 %v2729
      %3085 = vmatmul.mubr.bf16.gmra.mrb[0].mxu0 %v2531
      %v3086 = vpop.f32.mrb[0].mxu0
      %v3087 = vadd.f32 0.0, %v3086
      %v3088 = vpop.f32.mrb[0].mxu0
      %v3089 = vadd.f32 0.0, %v3088
      %v3090 = vpop.f32.mrb[0].mxu0
      %v3091 = vadd.f32 0.0, %v3090
      %v3092 = vpop.f32.mrb[0].mxu0
      %v3093 = vadd.f32 0.0, %v3092
      %3094 = vmatprep.mubr.bf16.mxu0 %v2732
      %3095 = vmatmul.mubr.bf16.gmra.mrb[0].mxu0 %v2533
      %v3096 = vpop.f32.mrb[0].mxu0
      %v3097 = vadd.f32 0.0, %v3096
      %v3098 = vpop.f32.mrb[0].mxu0
      %v3099 = vadd.f32 0.0, %v3098
      %v3100 = vpop.f32.mrb[0].mxu0
      %v3101 = vadd.f32 0.0, %v3100
      %v3102 = vpop.f32.mrb[0].mxu0
      %v3103 = vadd.f32 0.0, %v3102
      %3104 = vmatprep.mubr.bf16.mxu0 %v2735
      %3105 = vmatmul.mubr.bf16.gmra.mrb[0].mxu0 %v2535
      %v3106 = vpop.f32.mrb[0].mxu0
      %v3107 = vadd.f32 0.0, %v3106
      %v3108 = vpop.f32.mrb[0].mxu0
      %v3109 = vadd.f32 0.0, %v3108
      %v3110 = vpop.f32.mrb[0].mxu0
      %v3111 = vadd.f32 0.0, %v3110
      %v3112 = vpop.f32.mrb[0].mxu0
      %v3113 = vadd.f32 0.0, %v3112
      %3114 = vmatprep.mubr.bf16.mxu0 %v2738
      %3115 = vmatmul.mubr.bf16.gmra.mrb[0].mxu0 %v2537
      %v3116 = vpop.f32.mrb[0].mxu0
      %v3117 = vadd.f32 0.0, %v3116
      %v3118 = vpop.f32.mrb[0].mxu0
      %v3119 = vadd.f32 0.0, %v3118
      %v3120 = vpop.f32.mrb[0].mxu0
      %v3121 = vadd.f32 0.0, %v3120
      %v3122 = vpop.f32.mrb[0].mxu0
      %v3123 = vadd.f32 0.0, %v3122
      %3124 = vmatprep.mubr.bf16.mxu0 %v2741
      %3125 = vmatmul.mubr.bf16.gmra.mrb[0].mxu0 %v2539
      %v3126 = vpop.f32.mrb[0].mxu0
      %v3127 = vadd.f32 0.0, %v3126
      %v3128 = vpop.f32.mrb[0].mxu0
      %v3129 = vadd.f32 0.0, %v3128
      %v3130 = vpop.f32.mrb[0].mxu0
      %v3131 = vadd.f32 0.0, %v3130
      %v3132 = vpop.f32.mrb[0].mxu0
      %v3133 = vadd.f32 0.0, %v3132
      %3134 = vmatprep.mubr.bf16.mxu0 %v2744
      %3135 = vmatmul.mubr.bf16.gmra.mrb[0].mxu0 %v2541
      %v3136 = vpop.f32.mrb[0].mxu0
      %v3137 = vadd.f32 0.0, %v3136
      %v3138 = vpop.f32.mrb[0].mxu0
      %v3139 = vadd.f32 0.0, %v3138
      %v3140 = vpop.f32.mrb[0].mxu0
      %v3141 = vadd.f32 0.0, %v3140
      %v3142 = vpop.f32.mrb[0].mxu0
      %v3143 = vadd.f32 0.0, %v3142
      %3144 = vmatprep.mubr.bf16.mxu0 %v2747
      %3145 = vmatmul.mubr.bf16.gmra.mrb[0].mxu0 %v2543
      %v3146 = vpop.f32.mrb[0].mxu0
      %v3147 = vadd.f32 0.0, %v3146
      %v3148 = vpop.f32.mrb[0].mxu0
      %v3149 = vadd.f32 0.0, %v3148
      %v3150 = vpop.f32.mrb[0].mxu0
      %v3151 = vadd.f32 0.0, %v3150
      %v3152 = vpop.f32.mrb[0].mxu0
      %v3153 = vadd.f32 0.0, %v3152
      %3154 = vdwg.mxu0
      %3155 = vst [vmem:[#allocation4] sm:$0xff] %v2784
      %vm3156 = vcmask 588800
      %3157 = vst.msk [vmem:[#allocation4 + $0x8] sm:$0xff] %vm3156, %v2786
      %3158 = vst [vmem:[#allocation4 + $0x10] sm:$0xff] %v2788
      %3159 = vst.msk [vmem:[#allocation4 + $0x18] sm:$0xff] %vm3156, %v2790
      %3160 = vst [vmem:[#allocation4 + $0x20] sm:$0xff] %v2794
      %3161 = vst.msk [vmem:[#allocation4 + $0x28] sm:$0xff] %vm3156, %v2796
      %3162 = vst [vmem:[#allocation4 + $0x30] sm:$0xff] %v2798
      %3163 = vst.msk [vmem:[#allocation4 + $0x38] sm:$0xff] %vm3156, %v2800
      %3164 = vst [vmem:[#allocation4 + $0x40] sm:$0xff] %v2804
      %3165 = vst.msk [vmem:[#allocation4 + $0x48] sm:$0xff] %vm3156, %v2806
      %3166 = vst [vmem:[#allocation4 + $0x50] sm:$0xff] %v2808
      %3167 = vst.msk [vmem:[#allocation4 + $0x58] sm:$0xff] %vm3156, %v2810
      %3168 = vst [vmem:[#allocation4 + $0x60] sm:$0xff] %v2814
      %3169 = vst.msk [vmem:[#allocation4 + $0x68] sm:$0xff] %vm3156, %v2816
      %3170 = vst [vmem:[#allocation4 + $0x70] sm:$0xff] %v2818
      %3171 = vst.msk [vmem:[#allocation4 + $0x78] sm:$0xff] %vm3156, %v2820
      %3172 = vst [vmem:[#allocation4 + $0x80] sm:$0xff] %v2824
      %3173 = vst.msk [vmem:[#allocation4 + $0x88] sm:$0xff] %vm3156, %v2826
      %3174 = vst [vmem:[#allocation4 + $0x90] sm:$0xff] %v2828
      %3175 = vst.msk [vmem:[#allocation4 + $0x98] sm:$0xff] %vm3156, %v2830
      %3176 = vst [vmem:[#allocation4 + $0xa0] sm:$0xff] %v2834
      %3177 = vst.msk [vmem:[#allocation4 + $0xa8] sm:$0xff] %vm3156, %v2836
      %3178 = vst [vmem:[#allocation4 + $0xb0] sm:$0xff] %v2838
      %3179 = vst.msk [vmem:[#allocation4 + $0xb8] sm:$0xff] %vm3156, %v2840
      %3180 = vst [vmem:[#allocation4 + $0xc0] sm:$0xff] %v2844
      %3181 = vst.msk [vmem:[#allocation4 + $0xc8] sm:$0xff] %vm3156, %v2846
      %3182 = vst [vmem:[#allocation4 + $0xd0] sm:$0xff] %v2848
      %3183 = vst.msk [vmem:[#allocation4 + $0xd8] sm:$0xff] %vm3156, %v2850
      %3184 = vst [vmem:[#allocation4 + $0xe0] sm:$0xff] %v2854
      %3185 = vst.msk [vmem:[#allocation4 + $0xe8] sm:$0xff] %vm3156, %v2856
      %3186 = vst [vmem:[#allocation4 + $0xf0] sm:$0xff] %v2858
      %3187 = vst.msk [vmem:[#allocation4 + $0xf8] sm:$0xff] %vm3156, %v2860
      %3188 = vst [vmem:[#allocation5] sm:$0xff] %v3077
      %3189 = vst.msk [vmem:[#allocation5 + $0x8] sm:$0xff] %vm3156, %v3079
      %3190 = vst [vmem:[#allocation5 + $0x10] sm:$0xff] %v3081
      %3191 = vst.msk [vmem:[#allocation5 + $0x18] sm:$0xff] %vm3156, %v3083
      %3192 = vst [vmem:[#allocation5 + $0x20] sm:$0xff] %v3087
      %3193 = vst.msk [vmem:[#allocation5 + $0x28] sm:$0xff] %vm3156, %v3089
      %3194 = vst [vmem:[#allocation5 + $0x30] sm:$0xff] %v3091
      %3195 = vst.msk [vmem:[#allocation5 + $0x38] sm:$0xff] %vm3156, %v3093
      %3196 = vst [vmem:[#allocation5 + $0x40] sm:$0xff] %v3097
      %3197 = vst.msk [vmem:[#allocation5 + $0x48] sm:$0xff] %vm3156, %v3099
      %3198 = vst [vmem:[#allocation5 + $0x50] sm:$0xff] %v3101
      %3199 = vst.msk [vmem:[#allocation5 + $0x58] sm:$0xff] %vm3156, %v3103
      %3200 = vst [vmem:[#allocation5 + $0x60] sm:$0xff] %v3107
      %3201 = vst.msk [vmem:[#allocation5 + $0x68] sm:$0xff] %vm3156, %v3109
      %3202 = vst [vmem:[#allocation5 + $0x70] sm:$0xff] %v3111
      %3203 = vst.msk [vmem:[#allocation5 + $0x78] sm:$0xff] %vm3156, %v3113
      %3204 = vst [vmem:[#allocation5 + $0x80] sm:$0xff] %v3117
      %3205 = vst.msk [vmem:[#allocation5 + $0x88] sm:$0xff] %vm3156, %v3119
      %3206 = vst [vmem:[#allocation5 + $0x90] sm:$0xff] %v3121
      %3207 = vst.msk [vmem:[#allocation5 + $0x98] sm:$0xff] %vm3156, %v3123
      %3208 = vst [vmem:[#allocation5 + $0xa0] sm:$0xff] %v3127
      %3209 = vst.msk [vmem:[#allocation5 + $0xa8] sm:$0xff] %vm3156, %v3129
      %3210 = vst [vmem:[#allocation5 + $0xb0] sm:$0xff] %v3131
      %3211 = vst.msk [vmem:[#allocation5 + $0xb8] sm:$0xff] %vm3156, %v3133
      %3212 = vst [vmem:[#allocation5 + $0xc0] sm:$0xff] %v3137
      %3213 = vst.msk [vmem:[#allocation5 + $0xc8] sm:$0xff] %vm3156, %v3139
      %3214 = vst [vmem:[#allocation5 + $0xd0] sm:$0xff] %v3141
      %3215 = vst.msk [vmem:[#allocation5 + $0xd8] sm:$0xff] %vm3156, %v3143
      %3216 = vst [vmem:[#allocation5 + $0xe0] sm:$0xff] %v3147
      %3217 = vst.msk [vmem:[#allocation5 + $0xe8] sm:$0xff] %vm3156, %v3149
      %3218 = vst [vmem:[#allocation5 + $0xf0] sm:$0xff] %v3151
      %3219 = vst.msk [vmem:[#allocation5 + $0xf8] sm:$0xff] %vm3156, %v3153
      %v3220 = vld [vmem:[#allocation3 + $0x10] sm:$0xff]
      %v3221 = vld [vmem:[#allocation3 + $0x18] sm:$0xff]
      %v3222 = vld [vmem:[#allocation3 + $0x20] sm:$0xff]
      %v3223 = vld [vmem:[#allocation3 + $0x28] sm:$0xff]
      %v3224 = vld [vmem:[#allocation3 + $0x30] sm:$0xff]
      %v3225 = vld [vmem:[#allocation3 + $0x38] sm:$0xff]
      %v3226 = vld [vmem:[#allocation3 + $0x40] sm:$0xff]
      %v3227 = vld [vmem:[#allocation3 + $0x48] sm:$0xff]
      %v3228 = vld [vmem:[#allocation3 + $0x50] sm:$0xff]
      %v3229 = vld [vmem:[#allocation3 + $0x58] sm:$0xff]
      %v3230 = vld [vmem:[#allocation3 + $0x60] sm:$0xff]
      %v3231 = vld [vmem:[#allocation3 + $0x68] sm:$0xff]
      %v3232 = vld [vmem:[#allocation3 + $0x70] sm:$0xff]
      %v3233 = vld [vmem:[#allocation3 + $0x78] sm:$0xff]
      %v3234 = vld [vmem:[#allocation3 + $0x80] sm:$0xff]
      %v3235 = vld [vmem:[#allocation3 + $0x88] sm:$0xff]
      %s3236 = scalar_lea.vmem %s5, 240
      %v3237 = vld [vmem:[%s3236] sm:$0xff]
      %v3238 = vld [vmem:[%s3236 + $0x8] sm:$0xff]
      %v3239 = vld [vmem:[%s3236 + $0x10] sm:$0xff]
      %v3240 = vld [vmem:[%s3236 + $0x18] sm:$0xff]
      %v3241 = vld [vmem:[%s3236 + $0x20] sm:$0xff]
      %v3242 = vld [vmem:[%s3236 + $0x28] sm:$0xff]
      %v3243 = vld [vmem:[%s3236 + $0x30] sm:$0xff]
      %v3244 = vld [vmem:[%s3236 + $0x38] sm:$0xff]
      %v3245 = vld [vmem:[%s3236 + $0x40] sm:$0xff]
      %v3246 = vld [vmem:[%s3236 + $0x48] sm:$0xff]
      %v3247 = vld [vmem:[%s3236 + $0x50] sm:$0xff]
      %v3248 = vld [vmem:[%s3236 + $0x58] sm:$0xff]
      %v3249 = vld [vmem:[%s3236 + $0x60] sm:$0xff]
      %v3250 = vld [vmem:[%s3236 + $0x68] sm:$0xff]
      %v3251 = vld [vmem:[%s3236 + $0x70] sm:$0xff]
      %v3252 = vld [vmem:[%s3236 + $0x78] sm:$0xff]
      %v3253 = vld [vmem:[%s3236 + $0x80] sm:$0xff]
      %v3254 = vld [vmem:[%s3236 + $0x88] sm:$0xff]
      %v3255 = vld [vmem:[%s3236 + $0x90] sm:$0xff]
      %v3256 = vld [vmem:[%s3236 + $0x98] sm:$0xff]
      %v3257 = vld [vmem:[%s3236 + $0xa0] sm:$0xff]
      %v3258 = vld [vmem:[%s3236 + $0xa8] sm:$0xff]
      %v3259 = vld [vmem:[%s3236 + $0xb0] sm:$0xff]
      %v3260 = vld [vmem:[%s3236 + $0xb8] sm:$0xff]
      %v3261 = vld [vmem:[%s3236 + $0xc0] sm:$0xff]
      %v3262 = vld [vmem:[%s3236 + $0xc8] sm:$0xff]
      %v3263 = vld [vmem:[%s3236 + $0xd0] sm:$0xff]
      %v3264 = vld [vmem:[%s3236 + $0xd8] sm:$0xff]
      %v3265 = vld [vmem:[%s3236 + $0xe0] sm:$0xff]
      %v3266 = vld [vmem:[%s3236 + $0xe8] sm:$0xff]
      %v3297 = vunpack.c.l.b16 %v3237
      %v3298 = vunpack.c.h.b16 %v3237
      %v3299 = vunpack.c.l.b16 %v3238
      %v3300 = vunpack.c.h.b16 %v3238
      %v3301 = vunpack.c.l.b16 %v3239
      %v3302 = vunpack.c.h.b16 %v3239
      %v3303 = vunpack.c.l.b16 %v3240
      %v3304 = vunpack.c.h.b16 %v3240
      %v3305 = vunpack.c.l.b16 %v3241
      %v3306 = vunpack.c.h.b16 %v3241
      %v3307 = vunpack.c.l.b16 %v3242
      %v3308 = vunpack.c.h.b16 %v3242
      %v3309 = vunpack.c.l.b16 %v3243
      %v3310 = vunpack.c.h.b16 %v3243
      %v3311 = vunpack.c.l.b16 %v3244
      %v3312 = vunpack.c.h.b16 %v3244
      %v3313 = vunpack.c.l.b16 %v3245
      %v3314 = vunpack.c.h.b16 %v3245
      %v3315 = vunpack.c.l.b16 %v3246
      %v3316 = vunpack.c.h.b16 %v3246
      %v3317 = vunpack.c.l.b16 %v3247
      %v3318 = vunpack.c.h.b16 %v3247
      %v3319 = vunpack.c.l.b16 %v3248
      %v3320 = vunpack.c.h.b16 %v3248
      %v3321 = vunpack.c.l.b16 %v3249
      %v3322 = vunpack.c.h.b16 %v3249
      %v3323 = vunpack.c.l.b16 %v3250
      %v3324 = vunpack.c.h.b16 %v3250
      %v3325 = vunpack.c.l.b16 %v3251
      %v3326 = vunpack.c.h.b16 %v3251
      %v3327 = vunpack.c.l.b16 %v3252
      %v3328 = vunpack.c.h.b16 %v3252
      %v3329 = vunpack.c.l.b16 %v3253
      %v3330 = vunpack.c.h.b16 %v3253
      %v3331 = vunpack.c.l.b16 %v3254
      %v3332 = vunpack.c.h.b16 %v3254
      %v3333 = vunpack.c.l.b16 %v3255
      %v3334 = vunpack.c.h.b16 %v3255
      %v3335 = vunpack.c.l.b16 %v3256
      %v3336 = vunpack.c.h.b16 %v3256
      %v3337 = vunpack.c.l.b16 %v3257
      %v3338 = vunpack.c.h.b16 %v3257
      %v3339 = vunpack.c.l.b16 %v3258
      %v3340 = vunpack.c.h.b16 %v3258
      %v3341 = vunpack.c.l.b16 %v3259
      %v3342 = vunpack.c.h.b16 %v3259
      %v3343 = vunpack.c.l.b16 %v3260
      %v3344 = vunpack.c.h.b16 %v3260
      %v3345 = vunpack.c.l.b16 %v3261
      %v3346 = vunpack.c.h.b16 %v3261
      %v3347 = vunpack.c.l.b16 %v3262
      %v3348 = vunpack.c.h.b16 %v3262
      %v3349 = vunpack.c.l.b16 %v3263
      %v3350 = vunpack.c.h.b16 %v3263
      %v3351 = vunpack.c.l.b16 %v3264
      %v3352 = vunpack.c.h.b16 %v3264
      %v3353 = vunpack.c.l.b16 %v3265
      %v3354 = vunpack.c.h.b16 %v3265
      %v3355 = vunpack.c.l.b16 %v3266
      %v3356 = vunpack.c.h.b16 %v3266
      %v3357 = vpack.c.b16 %v3299, %v3297
      %v3358 = vpack.c.b16 %v3300, %v3298
      %v3359 = vpack.c.b16 %v3303, %v3301
      %v3360 = vpack.c.b16 %v3304, %v3302
      %v3361 = vpack.c.b16 %v3307, %v3305
      %v3362 = vpack.c.b16 %v3308, %v3306
      %v3363 = vpack.c.b16 %v3311, %v3309
      %v3364 = vpack.c.b16 %v3312, %v3310
      %v3365 = vpack.c.b16 %v3315, %v3313
      %v3366 = vpack.c.b16 %v3316, %v3314
      %v3367 = vpack.c.b16 %v3319, %v3317
      %v3368 = vpack.c.b16 %v3320, %v3318
      %v3369 = vpack.c.b16 %v3323, %v3321
      %v3370 = vpack.c.b16 %v3324, %v3322
      %v3371 = vpack.c.b16 %v3327, %v3325
      %v3372 = vpack.c.b16 %v3328, %v3326
      %v3373 = vpack.c.b16 %v3331, %v3329
      %v3374 = vpack.c.b16 %v3332, %v3330
      %v3375 = vpack.c.b16 %v3335, %v3333
      %v3376 = vpack.c.b16 %v3336, %v3334
      %v3377 = vpack.c.b16 %v3339, %v3337
      %v3378 = vpack.c.b16 %v3340, %v3338
      %v3379 = vpack.c.b16 %v3343, %v3341
      %v3380 = vpack.c.b16 %v3344, %v3342
      %v3381 = vpack.c.b16 %v3347, %v3345
      %v3382 = vpack.c.b16 %v3348, %v3346
      %v3383 = vpack.c.b16 %v3351, %v3349
      %v3384 = vpack.c.b16 %v3352, %v3350
      %v3385 = vpack.c.b16 %v3355, %v3353
      %v3386 = vpack.c.b16 %v3356, %v3354
      %v3418 = vsel %vm906, %v3221, 0
      %v3421 = vsel %vm906, %v3223, 0
      %v3424 = vsel %vm906, %v3225, 0
      %v3427 = vsel %vm906, %v3227, 0
      %v3430 = vsel %vm906, %v3229, 0
      %v3433 = vsel %vm906, %v3231, 0
      %v3436 = vsel %vm906, %v3233, 0
      %v3439 = vsel %vm906, %v3235, 0
      %3441 = vmatprep.subr.bf16.mxu0 %v3358
      %3442 = vmatpush1.bf16.msra.mxu0 %v3357
      %3443 = vmatprep.subr.bf16.mxu0 %v3360
      %3444 = vmatpush1.bf16.msra.mxu0 %v3359
      %3445 = vmatprep.subr.bf16.mxu0 %v3362
      %3446 = vmatpush1.bf16.msra.mxu0 %v3361
      %3447 = vmatprep.subr.bf16.mxu0 %v3364
      %3448 = vmatpush1.bf16.msra.mxu0 %v3363
      %3449 = vmatprep.subr.bf16.mxu0 %v3366
      %3450 = vmatpush1.bf16.msra.mxu0 %v3365
      %3451 = vmatprep.subr.bf16.mxu0 %v3368
      %3452 = vmatpush1.bf16.msra.mxu0 %v3367
      %3453 = vmatprep.subr.bf16.mxu0 %v3370
      %3454 = vmatpush1.bf16.msra.mxu0 %v3369
      %3455 = vmatprep.subr.bf16.mxu0 %v3372
      %3456 = vmatpush1.bf16.msra.mxu0 %v3371
      %3457 = vmatprep.subr.bf16.mxu0 %v3374
      %3458 = vmatpush1.bf16.msra.mxu0 %v3373
      %3459 = vmatprep.subr.bf16.mxu0 %v3376
      %3460 = vmatpush1.bf16.msra.mxu0 %v3375
      %3461 = vmatprep.subr.bf16.mxu0 %v3378
      %3462 = vmatpush1.bf16.msra.mxu0 %v3377
      %3463 = vmatprep.subr.bf16.mxu0 %v3380
      %3464 = vmatpush1.bf16.msra.mxu0 %v3379
      %3465 = vmatprep.subr.bf16.mxu0 %v3382
      %3466 = vmatpush1.bf16.msra.mxu0 %v3381
      %3467 = vmatprep.subr.bf16.mxu0 %v3384
      %3468 = vmatpush1.bf16.msra.mxu0 %v3383
      %3469 = vmatprep.subr.bf16.mxu0 %v3386
      %3470 = vmatpush1.bf16.msra.mxu0 %v3385
      %3471 = vmatprep.subr.bf16.mxu0 0
      %3472 = vmatpush1.bf16.msra.mxu0 0
      %3473 = vmatprep.mubr.bf16.mxu0 %v3418
      %3474 = vmatmul.mubr.bf16.gmra.mrb[0].mxu0 %v3220
      %v3475 = vpop.f32.mrb[0].mxu0
      %v3476 = vadd.f32 0.0, %v3475
      %v3477 = vpop.f32.mrb[0].mxu0
      %v3478 = vadd.f32 0.0, %v3477
      %v3479 = vpop.f32.mrb[0].mxu0
      %v3480 = vadd.f32 0.0, %v3479
      %v3481 = vpop.f32.mrb[0].mxu0
      %v3482 = vadd.f32 0.0, %v3481
      %3483 = vmatprep.mubr.bf16.mxu0 %v3421
      %3484 = vmatmul.mubr.bf16.gmra.mrb[0].mxu0 %v3222
      %v3485 = vpop.f32.mrb[0].mxu0
      %v3486 = vadd.f32 0.0, %v3485
      %v3487 = vpop.f32.mrb[0].mxu0
      %v3488 = vadd.f32 0.0, %v3487
      %v3489 = vpop.f32.mrb[0].mxu0
      %v3490 = vadd.f32 0.0, %v3489
      %v3491 = vpop.f32.mrb[0].mxu0
      %v3492 = vadd.f32 0.0, %v3491
      %3493 = vmatprep.mubr.bf16.mxu0 %v3424
      %3494 = vmatmul.mubr.bf16.gmra.mrb[0].mxu0 %v3224
      %v3495 = vpop.f32.mrb[0].mxu0
      %v3496 = vadd.f32 0.0, %v3495
      %v3497 = vpop.f32.mrb[0].mxu0
      %v3498 = vadd.f32 0.0, %v3497
      %v3499 = vpop.f32.mrb[0].mxu0
      %v3500 = vadd.f32 0.0, %v3499
      %v3501 = vpop.f32.mrb[0].mxu0
      %v3502 = vadd.f32 0.0, %v3501
      %3503 = vmatprep.mubr.bf16.mxu0 %v3427
      %3504 = vmatmul.mubr.bf16.gmra.mrb[0].mxu0 %v3226
      %v3505 = vpop.f32.mrb[0].mxu0
      %v3506 = vadd.f32 0.0, %v3505
      %v3507 = vpop.f32.mrb[0].mxu0
      %v3508 = vadd.f32 0.0, %v3507
      %v3509 = vpop.f32.mrb[0].mxu0
      %v3510 = vadd.f32 0.0, %v3509
      %v3511 = vpop.f32.mrb[0].mxu0
      %v3512 = vadd.f32 0.0, %v3511
      %3513 = vmatprep.mubr.bf16.mxu0 %v3430
      %3514 = vmatmul.mubr.bf16.gmra.mrb[0].mxu0 %v3228
      %v3515 = vpop.f32.mrb[0].mxu0
      %v3516 = vadd.f32 0.0, %v3515
      %v3517 = vpop.f32.mrb[0].mxu0
      %v3518 = vadd.f32 0.0, %v3517
      %v3519 = vpop.f32.mrb[0].mxu0
      %v3520 = vadd.f32 0.0, %v3519
      %v3521 = vpop.f32.mrb[0].mxu0
      %v3522 = vadd.f32 0.0, %v3521
      %3523 = vmatprep.mubr.bf16.mxu0 %v3433
      %3524 = vmatmul.mubr.bf16.gmra.mrb[0].mxu0 %v3230
      %v3525 = vpop.f32.mrb[0].mxu0
      %v3526 = vadd.f32 0.0, %v3525
      %v3527 = vpop.f32.mrb[0].mxu0
      %v3528 = vadd.f32 0.0, %v3527
      %v3529 = vpop.f32.mrb[0].mxu0
      %v3530 = vadd.f32 0.0, %v3529
      %v3531 = vpop.f32.mrb[0].mxu0
      %v3532 = vadd.f32 0.0, %v3531
      %3533 = vmatprep.mubr.bf16.mxu0 %v3436
      %3534 = vmatmul.mubr.bf16.gmra.mrb[0].mxu0 %v3232
      %v3535 = vpop.f32.mrb[0].mxu0
      %v3536 = vadd.f32 0.0, %v3535
      %v3537 = vpop.f32.mrb[0].mxu0
      %v3538 = vadd.f32 0.0, %v3537
      %v3539 = vpop.f32.mrb[0].mxu0
      %v3540 = vadd.f32 0.0, %v3539
      %v3541 = vpop.f32.mrb[0].mxu0
      %v3542 = vadd.f32 0.0, %v3541
      %3543 = vmatprep.mubr.bf16.mxu0 %v3439
      %3544 = vmatmul.mubr.bf16.gmra.mrb[0].mxu0 %v3234
      %v3545 = vpop.f32.mrb[0].mxu0
      %v3546 = vadd.f32 0.0, %v3545
      %v3547 = vpop.f32.mrb[0].mxu0
      %v3548 = vadd.f32 0.0, %v3547
      %v3549 = vpop.f32.mrb[0].mxu0
      %v3550 = vadd.f32 0.0, %v3549
      %v3551 = vpop.f32.mrb[0].mxu0
      %v3552 = vadd.f32 0.0, %v3551
      %3553 = vdwg.mxu0
      %s3554 = scalar_lea.vmem %s6, 240
      %v3555 = vld [vmem:[%s3554] sm:$0xff]
      %v3556 = vld [vmem:[%s3554 + $0x8] sm:$0xff]
      %v3557 = vld [vmem:[%s3554 + $0x10] sm:$0xff]
      %v3558 = vld [vmem:[%s3554 + $0x18] sm:$0xff]
      %v3559 = vld [vmem:[%s3554 + $0x20] sm:$0xff]
      %v3560 = vld [vmem:[%s3554 + $0x28] sm:$0xff]
      %v3561 = vld [vmem:[%s3554 + $0x30] sm:$0xff]
      %v3562 = vld [vmem:[%s3554 + $0x38] sm:$0xff]
      %v3563 = vld [vmem:[%s3554 + $0x40] sm:$0xff]
      %v3564 = vld [vmem:[%s3554 + $0x48] sm:$0xff]
      %v3565 = vld [vmem:[%s3554 + $0x50] sm:$0xff]
      %v3566 = vld [vmem:[%s3554 + $0x58] sm:$0xff]
      %v3567 = vld [vmem:[%s3554 + $0x60] sm:$0xff]
      %v3568 = vld [vmem:[%s3554 + $0x68] sm:$0xff]
      %v3569 = vld [vmem:[%s3554 + $0x70] sm:$0xff]
      %v3570 = vld [vmem:[%s3554 + $0x78] sm:$0xff]
      %v3571 = vld [vmem:[%s3554 + $0x80] sm:$0xff]
      %v3572 = vld [vmem:[%s3554 + $0x88] sm:$0xff]
      %v3573 = vld [vmem:[%s3554 + $0x90] sm:$0xff]
      %v3574 = vld [vmem:[%s3554 + $0x98] sm:$0xff]
      %v3575 = vld [vmem:[%s3554 + $0xa0] sm:$0xff]
      %v3576 = vld [vmem:[%s3554 + $0xa8] sm:$0xff]
      %v3577 = vld [vmem:[%s3554 + $0xb0] sm:$0xff]
      %v3578 = vld [vmem:[%s3554 + $0xb8] sm:$0xff]
      %v3579 = vld [vmem:[%s3554 + $0xc0] sm:$0xff]
      %v3580 = vld [vmem:[%s3554 + $0xc8] sm:$0xff]
      %v3581 = vld [vmem:[%s3554 + $0xd0] sm:$0xff]
      %v3582 = vld [vmem:[%s3554 + $0xd8] sm:$0xff]
      %v3583 = vld [vmem:[%s3554 + $0xe0] sm:$0xff]
      %v3584 = vld [vmem:[%s3554 + $0xe8] sm:$0xff]
      %v3615 = vunpack.c.l.b16 %v3555
      %v3616 = vunpack.c.h.b16 %v3555
      %v3617 = vunpack.c.l.b16 %v3556
      %v3618 = vunpack.c.h.b16 %v3556
      %v3619 = vunpack.c.l.b16 %v3557
      %v3620 = vunpack.c.h.b16 %v3557
      %v3621 = vunpack.c.l.b16 %v3558
      %v3622 = vunpack.c.h.b16 %v3558
      %v3623 = vunpack.c.l.b16 %v3559
      %v3624 = vunpack.c.h.b16 %v3559
      %v3625 = vunpack.c.l.b16 %v3560
      %v3626 = vunpack.c.h.b16 %v3560
      %v3627 = vunpack.c.l.b16 %v3561
      %v3628 = vunpack.c.h.b16 %v3561
      %v3629 = vunpack.c.l.b16 %v3562
      %v3630 = vunpack.c.h.b16 %v3562
      %v3631 = vunpack.c.l.b16 %v3563
      %v3632 = vunpack.c.h.b16 %v3563
      %v3633 = vunpack.c.l.b16 %v3564
      %v3634 = vunpack.c.h.b16 %v3564
      %v3635 = vunpack.c.l.b16 %v3565
      %v3636 = vunpack.c.h.b16 %v3565
      %v3637 = vunpack.c.l.b16 %v3566
      %v3638 = vunpack.c.h.b16 %v3566
      %v3639 = vunpack.c.l.b16 %v3567
      %v3640 = vunpack.c.h.b16 %v3567
      %v3641 = vunpack.c.l.b16 %v3568
      %v3642 = vunpack.c.h.b16 %v3568
      %v3643 = vunpack.c.l.b16 %v3569
      %v3644 = vunpack.c.h.b16 %v3569
      %v3645 = vunpack.c.l.b16 %v3570
      %v3646 = vunpack.c.h.b16 %v3570
      %v3647 = vunpack.c.l.b16 %v3571
      %v3648 = vunpack.c.h.b16 %v3571
      %v3649 = vunpack.c.l.b16 %v3572
      %v3650 = vunpack.c.h.b16 %v3572
      %v3651 = vunpack.c.l.b16 %v3573
      %v3652 = vunpack.c.h.b16 %v3573
      %v3653 = vunpack.c.l.b16 %v3574
      %v3654 = vunpack.c.h.b16 %v3574
      %v3655 = vunpack.c.l.b16 %v3575
      %v3656 = vunpack.c.h.b16 %v3575
      %v3657 = vunpack.c.l.b16 %v3576
      %v3658 = vunpack.c.h.b16 %v3576
      %v3659 = vunpack.c.l.b16 %v3577
      %v3660 = vunpack.c.h.b16 %v3577
      %v3661 = vunpack.c.l.b16 %v3578
      %v3662 = vunpack.c.h.b16 %v3578
      %v3663 = vunpack.c.l.b16 %v3579
      %v3664 = vunpack.c.h.b16 %v3579
      %v3665 = vunpack.c.l.b16 %v3580
      %v3666 = vunpack.c.h.b16 %v3580
      %v3667 = vunpack.c.l.b16 %v3581
      %v3668 = vunpack.c.h.b16 %v3581
      %v3669 = vunpack.c.l.b16 %v3582
      %v3670 = vunpack.c.h.b16 %v3582
      %v3671 = vunpack.c.l.b16 %v3583
      %v3672 = vunpack.c.h.b16 %v3583
      %v3673 = vunpack.c.l.b16 %v3584
      %v3674 = vunpack.c.h.b16 %v3584
      %v3675 = vpack.c.b16 %v3617, %v3615
      %v3676 = vpack.c.b16 %v3618, %v3616
      %v3677 = vpack.c.b16 %v3621, %v3619
      %v3678 = vpack.c.b16 %v3622, %v3620
      %v3679 = vpack.c.b16 %v3625, %v3623
      %v3680 = vpack.c.b16 %v3626, %v3624
      %v3681 = vpack.c.b16 %v3629, %v3627
      %v3682 = vpack.c.b16 %v3630, %v3628
      %v3683 = vpack.c.b16 %v3633, %v3631
      %v3684 = vpack.c.b16 %v3634, %v3632
      %v3685 = vpack.c.b16 %v3637, %v3635
      %v3686 = vpack.c.b16 %v3638, %v3636
      %v3687 = vpack.c.b16 %v3641, %v3639
      %v3688 = vpack.c.b16 %v3642, %v3640
      %v3689 = vpack.c.b16 %v3645, %v3643
      %v3690 = vpack.c.b16 %v3646, %v3644
      %v3691 = vpack.c.b16 %v3649, %v3647
      %v3692 = vpack.c.b16 %v3650, %v3648
      %v3693 = vpack.c.b16 %v3653, %v3651
      %v3694 = vpack.c.b16 %v3654, %v3652
      %v3695 = vpack.c.b16 %v3657, %v3655
      %v3696 = vpack.c.b16 %v3658, %v3656
      %v3697 = vpack.c.b16 %v3661, %v3659
      %v3698 = vpack.c.b16 %v3662, %v3660
      %v3699 = vpack.c.b16 %v3665, %v3663
      %v3700 = vpack.c.b16 %v3666, %v3664
      %v3701 = vpack.c.b16 %v3669, %v3667
      %v3702 = vpack.c.b16 %v3670, %v3668
      %v3703 = vpack.c.b16 %v3673, %v3671
      %v3704 = vpack.c.b16 %v3674, %v3672
      %3735 = vmatprep.subr.bf16.mxu0 %v3676
      %3736 = vmatpush1.bf16.msra.mxu0 %v3675
      %3737 = vmatprep.subr.bf16.mxu0 %v3678
      %3738 = vmatpush1.bf16.msra.mxu0 %v3677
      %3739 = vmatprep.subr.bf16.mxu0 %v3680
      %3740 = vmatpush1.bf16.msra.mxu0 %v3679
      %3741 = vmatprep.subr.bf16.mxu0 %v3682
      %3742 = vmatpush1.bf16.msra.mxu0 %v3681
      %3743 = vmatprep.subr.bf16.mxu0 %v3684
      %3744 = vmatpush1.bf16.msra.mxu0 %v3683
      %3745 = vmatprep.subr.bf16.mxu0 %v3686
      %3746 = vmatpush1.bf16.msra.mxu0 %v3685
      %3747 = vmatprep.subr.bf16.mxu0 %v3688
      %3748 = vmatpush1.bf16.msra.mxu0 %v3687
      %3749 = vmatprep.subr.bf16.mxu0 %v3690
      %3750 = vmatpush1.bf16.msra.mxu0 %v3689
      %3751 = vmatprep.subr.bf16.mxu0 %v3692
      %3752 = vmatpush1.bf16.msra.mxu0 %v3691
      %3753 = vmatprep.subr.bf16.mxu0 %v3694
      %3754 = vmatpush1.bf16.msra.mxu0 %v3693
      %3755 = vmatprep.subr.bf16.mxu0 %v3696
      %3756 = vmatpush1.bf16.msra.mxu0 %v3695
      %3757 = vmatprep.subr.bf16.mxu0 %v3698
      %3758 = vmatpush1.bf16.msra.mxu0 %v3697
      %3759 = vmatprep.subr.bf16.mxu0 %v3700
      %3760 = vmatpush1.bf16.msra.mxu0 %v3699
      %3761 = vmatprep.subr.bf16.mxu0 %v3702
      %3762 = vmatpush1.bf16.msra.mxu0 %v3701
      %3763 = vmatprep.subr.bf16.mxu0 %v3704
      %3764 = vmatpush1.bf16.msra.mxu0 %v3703
      %3765 = vmatprep.subr.bf16.mxu0 0
      %3766 = vmatpush1.bf16.msra.mxu0 0
      %3767 = vmatprep.mubr.bf16.mxu0 %v3418
      %3768 = vmatmul.mubr.bf16.gmra.mrb[0].mxu0 %v3220
      %v3769 = vpop.f32.mrb[0].mxu0
      %v3770 = vadd.f32 0.0, %v3769
      %v3771 = vpop.f32.mrb[0].mxu0
      %v3772 = vadd.f32 0.0, %v3771
      %v3773 = vpop.f32.mrb[0].mxu0
      %v3774 = vadd.f32 0.0, %v3773
      %v3775 = vpop.f32.mrb[0].mxu0
      %v3776 = vadd.f32 0.0, %v3775
      %3777 = vmatprep.mubr.bf16.mxu0 %v3421
      %3778 = vmatmul.mubr.bf16.gmra.mrb[0].mxu0 %v3222
      %v3779 = vpop.f32.mrb[0].mxu0
      %v3780 = vadd.f32 0.0, %v3779
      %v3781 = vpop.f32.mrb[0].mxu0
      %v3782 = vadd.f32 0.0, %v3781
      %v3783 = vpop.f32.mrb[0].mxu0
      %v3784 = vadd.f32 0.0, %v3783
      %v3785 = vpop.f32.mrb[0].mxu0
      %v3786 = vadd.f32 0.0, %v3785
      %3787 = vmatprep.mubr.bf16.mxu0 %v3424
      %3788 = vmatmul.mubr.bf16.gmra.mrb[0].mxu0 %v3224
      %v3789 = vpop.f32.mrb[0].mxu0
      %v3790 = vadd.f32 0.0, %v3789
      %v3791 = vpop.f32.mrb[0].mxu0
      %v3792 = vadd.f32 0.0, %v3791
      %v3793 = vpop.f32.mrb[0].mxu0
      %v3794 = vadd.f32 0.0, %v3793
      %v3795 = vpop.f32.mrb[0].mxu0
      %v3796 = vadd.f32 0.0, %v3795
      %3797 = vmatprep.mubr.bf16.mxu0 %v3427
      %3798 = vmatmul.mubr.bf16.gmra.mrb[0].mxu0 %v3226
      %v3799 = vpop.f32.mrb[0].mxu0
      %v3800 = vadd.f32 0.0, %v3799
      %v3801 = vpop.f32.mrb[0].mxu0
      %v3802 = vadd.f32 0.0, %v3801
      %v3803 = vpop.f32.mrb[0].mxu0
      %v3804 = vadd.f32 0.0, %v3803
      %v3805 = vpop.f32.mrb[0].mxu0
      %v3806 = vadd.f32 0.0, %v3805
      %3807 = vmatprep.mubr.bf16.mxu0 %v3430
      %3808 = vmatmul.mubr.bf16.gmra.mrb[0].mxu0 %v3228
      %v3809 = vpop.f32.mrb[0].mxu0
      %v3810 = vadd.f32 0.0, %v3809
      %v3811 = vpop.f32.mrb[0].mxu0
      %v3812 = vadd.f32 0.0, %v3811
      %v3813 = vpop.f32.mrb[0].mxu0
      %v3814 = vadd.f32 0.0, %v3813
      %v3815 = vpop.f32.mrb[0].mxu0
      %v3816 = vadd.f32 0.0, %v3815
      %3817 = vmatprep.mubr.bf16.mxu0 %v3433
      %3818 = vmatmul.mubr.bf16.gmra.mrb[0].mxu0 %v3230
      %v3819 = vpop.f32.mrb[0].mxu0
      %v3820 = vadd.f32 0.0, %v3819
      %v3821 = vpop.f32.mrb[0].mxu0
      %v3822 = vadd.f32 0.0, %v3821
      %v3823 = vpop.f32.mrb[0].mxu0
      %v3824 = vadd.f32 0.0, %v3823
      %v3825 = vpop.f32.mrb[0].mxu0
      %v3826 = vadd.f32 0.0, %v3825
      %3827 = vmatprep.mubr.bf16.mxu0 %v3436
      %3828 = vmatmul.mubr.bf16.gmra.mrb[0].mxu0 %v3232
      %v3829 = vpop.f32.mrb[0].mxu0
      %v3830 = vadd.f32 0.0, %v3829
      %v3831 = vpop.f32.mrb[0].mxu0
      %v3832 = vadd.f32 0.0, %v3831
      %v3833 = vpop.f32.mrb[0].mxu0
      %v3834 = vadd.f32 0.0, %v3833
      %v3835 = vpop.f32.mrb[0].mxu0
      %v3836 = vadd.f32 0.0, %v3835
      %3837 = vmatprep.mubr.bf16.mxu0 %v3439
      %3838 = vmatmul.mubr.bf16.gmra.mrb[0].mxu0 %v3234
      %v3839 = vpop.f32.mrb[0].mxu0
      %v3840 = vadd.f32 0.0, %v3839
      %v3841 = vpop.f32.mrb[0].mxu0
      %v3842 = vadd.f32 0.0, %v3841
      %v3843 = vpop.f32.mrb[0].mxu0
      %v3844 = vadd.f32 0.0, %v3843
      %v3845 = vpop.f32.mrb[0].mxu0
      %v3846 = vadd.f32 0.0, %v3845
      %3847 = vdwg.mxu0
      %v3848 = vld [vmem:[#allocation4] sm:$0xff]
      %v3849 = vld [vmem:[#allocation4 + $0x8] sm:$0xff]
      %v3850 = vld [vmem:[#allocation4 + $0x10] sm:$0xff]
      %v3851 = vld [vmem:[#allocation4 + $0x18] sm:$0xff]
      %v3852 = vld [vmem:[#allocation4 + $0x20] sm:$0xff]
      %v3853 = vld [vmem:[#allocation4 + $0x28] sm:$0xff]
      %v3854 = vld [vmem:[#allocation4 + $0x30] sm:$0xff]
      %v3855 = vld [vmem:[#allocation4 + $0x38] sm:$0xff]
      %v3856 = vld [vmem:[#allocation4 + $0x40] sm:$0xff]
      %v3857 = vld [vmem:[#allocation4 + $0x48] sm:$0xff]
      %v3858 = vld [vmem:[#allocation4 + $0x50] sm:$0xff]
      %v3859 = vld [vmem:[#allocation4 + $0x58] sm:$0xff]
      %v3860 = vld [vmem:[#allocation4 + $0x60] sm:$0xff]
      %v3861 = vld [vmem:[#allocation4 + $0x68] sm:$0xff]
      %v3862 = vld [vmem:[#allocation4 + $0x70] sm:$0xff]
      %v3863 = vld [vmem:[#allocation4 + $0x78] sm:$0xff]
      %v3864 = vld [vmem:[#allocation4 + $0x80] sm:$0xff]
      %v3865 = vld [vmem:[#allocation4 + $0x88] sm:$0xff]
      %v3866 = vld [vmem:[#allocation4 + $0x90] sm:$0xff]
      %v3867 = vld [vmem:[#allocation4 + $0x98] sm:$0xff]
      %v3868 = vld [vmem:[#allocation4 + $0xa0] sm:$0xff]
      %v3869 = vld [vmem:[#allocation4 + $0xa8] sm:$0xff]
      %v3870 = vld [vmem:[#allocation4 + $0xb0] sm:$0xff]
      %v3871 = vld [vmem:[#allocation4 + $0xb8] sm:$0xff]
      %v3872 = vld [vmem:[#allocation4 + $0xc0] sm:$0xff]
      %v3873 = vld [vmem:[#allocation4 + $0xc8] sm:$0xff]
      %v3874 = vld [vmem:[#allocation4 + $0xd0] sm:$0xff]
      %v3875 = vld [vmem:[#allocation4 + $0xd8] sm:$0xff]
      %v3876 = vld [vmem:[#allocation4 + $0xe0] sm:$0xff]
      %v3877 = vld [vmem:[#allocation4 + $0xe8] sm:$0xff]
      %v3878 = vld [vmem:[#allocation4 + $0xf0] sm:$0xff]
      %v3879 = vld [vmem:[#allocation4 + $0xf8] sm:$0xff]
      %v3880 = vadd.f32 %v3848, %v3476
      %v3881 = vadd.f32 %v3849, %v3478
      %v3882 = vadd.f32 %v3850, %v3480
      %v3883 = vadd.f32 %v3851, %v3482
      %v3884 = vadd.f32 %v3852, %v3486
      %v3885 = vadd.f32 %v3853, %v3488
      %v3886 = vadd.f32 %v3854, %v3490
      %v3887 = vadd.f32 %v3855, %v3492
      %v3888 = vadd.f32 %v3856, %v3496
      %v3889 = vadd.f32 %v3857, %v3498
      %v3890 = vadd.f32 %v3858, %v3500
      %v3891 = vadd.f32 %v3859, %v3502
      %v3892 = vadd.f32 %v3860, %v3506
      %v3893 = vadd.f32 %v3861, %v3508
      %v3894 = vadd.f32 %v3862, %v3510
      %v3895 = vadd.f32 %v3863, %v3512
      %v3896 = vadd.f32 %v3864, %v3516
      %v3897 = vadd.f32 %v3865, %v3518
      %v3898 = vadd.f32 %v3866, %v3520
      %v3899 = vadd.f32 %v3867, %v3522
      %v3900 = vadd.f32 %v3868, %v3526
      %v3901 = vadd.f32 %v3869, %v3528
      %v3902 = vadd.f32 %v3870, %v3530
      %v3903 = vadd.f32 %v3871, %v3532
      %v3904 = vadd.f32 %v3872, %v3536
      %v3905 = vadd.f32 %v3873, %v3538
      %v3906 = vadd.f32 %v3874, %v3540
      %v3907 = vadd.f32 %v3875, %v3542
      %v3908 = vadd.f32 %v3876, %v3546
      %v3909 = vadd.f32 %v3877, %v3548
      %v3910 = vadd.f32 %v3878, %v3550
      %v3911 = vadd.f32 %v3879, %v3552
      %3912 = vst [vmem:[#allocation4] sm:$0xff] %v3880
      %3913 = vst.msk [vmem:[#allocation4 + $0x8] sm:$0xff] %vm3156, %v3881
      %3914 = vst [vmem:[#allocation4 + $0x10] sm:$0xff] %v3882
      %3915 = vst.msk [vmem:[#allocation4 + $0x18] sm:$0xff] %vm3156, %v3883
      %3916 = vst [vmem:[#allocation4 + $0x20] sm:$0xff] %v3884
      %3917 = vst.msk [vmem:[#allocation4 + $0x28] sm:$0xff] %vm3156, %v3885
      %3918 = vst [vmem:[#allocation4 + $0x30] sm:$0xff] %v3886
      %3919 = vst.msk [vmem:[#allocation4 + $0x38] sm:$0xff] %vm3156, %v3887
      %3920 = vst [vmem:[#allocation4 + $0x40] sm:$0xff] %v3888
      %3921 = vst.msk [vmem:[#allocation4 + $0x48] sm:$0xff] %vm3156, %v3889
      %3922 = vst [vmem:[#allocation4 + $0x50] sm:$0xff] %v3890
      %3923 = vst.msk [vmem:[#allocation4 + $0x58] sm:$0xff] %vm3156, %v3891
      %3924 = vst [vmem:[#allocation4 + $0x60] sm:$0xff] %v3892
      %3925 = vst.msk [vmem:[#allocation4 + $0x68] sm:$0xff] %vm3156, %v3893
      %3926 = vst [vmem:[#allocation4 + $0x70] sm:$0xff] %v3894
      %3927 = vst.msk [vmem:[#allocation4 + $0x78] sm:$0xff] %vm3156, %v3895
      %3928 = vst [vmem:[#allocation4 + $0x80] sm:$0xff] %v3896
      %3929 = vst.msk [vmem:[#allocation4 + $0x88] sm:$0xff] %vm3156, %v3897
      %3930 = vst [vmem:[#allocation4 + $0x90] sm:$0xff] %v3898
      %3931 = vst.msk [vmem:[#allocation4 + $0x98] sm:$0xff] %vm3156, %v3899
      %3932 = vst [vmem:[#allocation4 + $0xa0] sm:$0xff] %v3900
      %3933 = vst.msk [vmem:[#allocation4 + $0xa8] sm:$0xff] %vm3156, %v3901
      %3934 = vst [vmem:[#allocation4 + $0xb0] sm:$0xff] %v3902
      %3935 = vst.msk [vmem:[#allocation4 + $0xb8] sm:$0xff] %vm3156, %v3903
      %3936 = vst [vmem:[#allocation4 + $0xc0] sm:$0xff] %v3904
      %3937 = vst.msk [vmem:[#allocation4 + $0xc8] sm:$0xff] %vm3156, %v3905
      %3938 = vst [vmem:[#allocation4 + $0xd0] sm:$0xff] %v3906
      %3939 = vst.msk [vmem:[#allocation4 + $0xd8] sm:$0xff] %vm3156, %v3907
      %3940 = vst [vmem:[#allocation4 + $0xe0] sm:$0xff] %v3908
      %3941 = vst.msk [vmem:[#allocation4 + $0xe8] sm:$0xff] %vm3156, %v3909
      %3942 = vst [vmem:[#allocation4 + $0xf0] sm:$0xff] %v3910
      %3943 = vst.msk [vmem:[#allocation4 + $0xf8] sm:$0xff] %vm3156, %v3911
      %v3944 = vld [vmem:[#allocation5] sm:$0xff]
      %v3945 = vld [vmem:[#allocation5 + $0x8] sm:$0xff]
      %v3946 = vld [vmem:[#allocation5 + $0x10] sm:$0xff]
      %v3947 = vld [vmem:[#allocation5 + $0x18] sm:$0xff]
      %v3948 = vld [vmem:[#allocation5 + $0x20] sm:$0xff]
      %v3949 = vld [vmem:[#allocation5 + $0x28] sm:$0xff]
      %v3950 = vld [vmem:[#allocation5 + $0x30] sm:$0xff]
      %v3951 = vld [vmem:[#allocation5 + $0x38] sm:$0xff]
      %v3952 = vld [vmem:[#allocation5 + $0x40] sm:$0xff]
      %v3953 = vld [vmem:[#allocation5 + $0x48] sm:$0xff]
      %v3954 = vld [vmem:[#allocation5 + $0x50] sm:$0xff]
      %v3955 = vld [vmem:[#allocation5 + $0x58] sm:$0xff]
      %v3956 = vld [vmem:[#allocation5 + $0x60] sm:$0xff]
      %v3957 = vld [vmem:[#allocation5 + $0x68] sm:$0xff]
      %v3958 = vld [vmem:[#allocation5 + $0x70] sm:$0xff]
      %v3959 = vld [vmem:[#allocation5 + $0x78] sm:$0xff]
      %v3960 = vld [vmem:[#allocation5 + $0x80] sm:$0xff]
      %v3961 = vld [vmem:[#allocation5 + $0x88] sm:$0xff]
      %v3962 = vld [vmem:[#allocation5 + $0x90] sm:$0xff]
      %v3963 = vld [vmem:[#allocation5 + $0x98] sm:$0xff]
      %v3964 = vld [vmem:[#allocation5 + $0xa0] sm:$0xff]
      %v3965 = vld [vmem:[#allocation5 + $0xa8] sm:$0xff]
      %v3966 = vld [vmem:[#allocation5 + $0xb0] sm:$0xff]
      %v3967 = vld [vmem:[#allocation5 + $0xb8] sm:$0xff]
      %v3968 = vld [vmem:[#allocation5 + $0xc0] sm:$0xff]
      %v3969 = vld [vmem:[#allocation5 + $0xc8] sm:$0xff]
      %v3970 = vld [vmem:[#allocation5 + $0xd0] sm:$0xff]
      %v3971 = vld [vmem:[#allocation5 + $0xd8] sm:$0xff]
      %v3972 = vld [vmem:[#allocation5 + $0xe0] sm:$0xff]
      %v3973 = vld [vmem:[#allocation5 + $0xe8] sm:$0xff]
      %v3974 = vld [vmem:[#allocation5 + $0xf0] sm:$0xff]
      %v3975 = vld [vmem:[#allocation5 + $0xf8] sm:$0xff]
      %v3976 = vadd.f32 %v3944, %v3770
      %v3977 = vadd.f32 %v3945, %v3772
      %v3978 = vadd.f32 %v3946, %v3774
      %v3979 = vadd.f32 %v3947, %v3776
      %v3980 = vadd.f32 %v3948, %v3780
      %v3981 = vadd.f32 %v3949, %v3782
      %v3982 = vadd.f32 %v3950, %v3784
      %v3983 = vadd.f32 %v3951, %v3786
      %v3984 = vadd.f32 %v3952, %v3790
      %v3985 = vadd.f32 %v3953, %v3792
      %v3986 = vadd.f32 %v3954, %v3794
      %v3987 = vadd.f32 %v3955, %v3796
      %v3988 = vadd.f32 %v3956, %v3800
      %v3989 = vadd.f32 %v3957, %v3802
      %v3990 = vadd.f32 %v3958, %v3804
      %v3991 = vadd.f32 %v3959, %v3806
      %v3992 = vadd.f32 %v3960, %v3810
      %v3993 = vadd.f32 %v3961, %v3812
      %v3994 = vadd.f32 %v3962, %v3814
      %v3995 = vadd.f32 %v3963, %v3816
      %v3996 = vadd.f32 %v3964, %v3820
      %v3997 = vadd.f32 %v3965, %v3822
      %v3998 = vadd.f32 %v3966, %v3824
      %v3999 = vadd.f32 %v3967, %v3826
      %v4000 = vadd.f32 %v3968, %v3830
      %v4001 = vadd.f32 %v3969, %v3832
      %v4002 = vadd.f32 %v3970, %v3834
      %v4003 = vadd.f32 %v3971, %v3836
      %v4004 = vadd.f32 %v3972, %v3840
      %v4005 = vadd.f32 %v3973, %v3842
      %v4006 = vadd.f32 %v3974, %v3844
      %v4007 = vadd.f32 %v3975, %v3846
      %4008 = vst [vmem:[#allocation5] sm:$0xff] %v3976
      %4009 = vst.msk [vmem:[#allocation5 + $0x8] sm:$0xff] %vm3156, %v3977
      %4010 = vst [vmem:[#allocation5 + $0x10] sm:$0xff] %v3978
      %4011 = vst.msk [vmem:[#allocation5 + $0x18] sm:$0xff] %vm3156, %v3979
      %4012 = vst [vmem:[#allocation5 + $0x20] sm:$0xff] %v3980
      %4013 = vst.msk [vmem:[#allocation5 + $0x28] sm:$0xff] %vm3156, %v3981
      %4014 = vst [vmem:[#allocation5 + $0x30] sm:$0xff] %v3982
      %4015 = vst.msk [vmem:[#allocation5 + $0x38] sm:$0xff] %vm3156, %v3983
      %4016 = vst [vmem:[#allocation5 + $0x40] sm:$0xff] %v3984
      %4017 = vst.msk [vmem:[#allocation5 + $0x48] sm:$0xff] %vm3156, %v3985
      %4018 = vst [vmem:[#allocation5 + $0x50] sm:$0xff] %v3986
      %4019 = vst.msk [vmem:[#allocation5 + $0x58] sm:$0xff] %vm3156, %v3987
      %4020 = vst [vmem:[#allocation5 + $0x60] sm:$0xff] %v3988
      %4021 = vst.msk [vmem:[#allocation5 + $0x68] sm:$0xff] %vm3156, %v3989
      %4022 = vst [vmem:[#allocation5 + $0x70] sm:$0xff] %v3990
      %4023 = vst.msk [vmem:[#allocation5 + $0x78] sm:$0xff] %vm3156, %v3991
      %4024 = vst [vmem:[#allocation5 + $0x80] sm:$0xff] %v3992
      %4025 = vst.msk [vmem:[#allocation5 + $0x88] sm:$0xff] %vm3156, %v3993
      %4026 = vst [vmem:[#allocation5 + $0x90] sm:$0xff] %v3994
      %4027 = vst.msk [vmem:[#allocation5 + $0x98] sm:$0xff] %vm3156, %v3995
      %4028 = vst [vmem:[#allocation5 + $0xa0] sm:$0xff] %v3996
      %4029 = vst.msk [vmem:[#allocation5 + $0xa8] sm:$0xff] %vm3156, %v3997
      %4030 = vst [vmem:[#allocation5 + $0xb0] sm:$0xff] %v3998
      %4031 = vst.msk [vmem:[#allocation5 + $0xb8] sm:$0xff] %vm3156, %v3999
      %4032 = vst [vmem:[#allocation5 + $0xc0] sm:$0xff] %v4000
      %4033 = vst.msk [vmem:[#allocation5 + $0xc8] sm:$0xff] %vm3156, %v4001
      %4034 = vst [vmem:[#allocation5 + $0xd0] sm:$0xff] %v4002
      %4035 = vst.msk [vmem:[#allocation5 + $0xd8] sm:$0xff] %vm3156, %v4003
      %4036 = vst [vmem:[#allocation5 + $0xe0] sm:$0xff] %v4004
      %4037 = vst.msk [vmem:[#allocation5 + $0xe8] sm:$0xff] %vm3156, %v4005
      %4038 = vst [vmem:[#allocation5 + $0xf0] sm:$0xff] %v4006
      %4039 = vst.msk [vmem:[#allocation5 + $0xf8] sm:$0xff] %vm3156, %v4007
      %v4040 = vld [vmem:[#allocation3 + $0x20] sm:$0xff]
      %v4041 = vld [vmem:[#allocation3 + $0x28] sm:$0xff]
      %v4042 = vld [vmem:[#allocation3 + $0x30] sm:$0xff]
      %v4043 = vld [vmem:[#allocation3 + $0x38] sm:$0xff]
      %v4044 = vld [vmem:[#allocation3 + $0x40] sm:$0xff]
      %v4045 = vld [vmem:[#allocation3 + $0x48] sm:$0xff]
      %v4046 = vld [vmem:[#allocation3 + $0x50] sm:$0xff]
      %v4047 = vld [vmem:[#allocation3 + $0x58] sm:$0xff]
      %v4048 = vld [vmem:[#allocation3 + $0x60] sm:$0xff]
      %v4049 = vld [vmem:[#allocation3 + $0x68] sm:$0xff]
      %v4050 = vld [vmem:[#allocation3 + $0x70] sm:$0xff]
      %v4051 = vld [vmem:[#allocation3 + $0x78] sm:$0xff]
      %v4052 = vld [vmem:[#allocation3 + $0x80] sm:$0xff]
      %v4053 = vld [vmem:[#allocation3 + $0x88] sm:$0xff]
      %v4054 = vld [vmem:[#allocation3 + $0x90] sm:$0xff]
      %v4055 = vld [vmem:[#allocation3 + $0x98] sm:$0xff]
      %s4056 = scalar_lea.vmem %s5, 480
      %v4057 = vld [vmem:[%s4056] sm:$0xff]
      %v4058 = vld [vmem:[%s4056 + $0x8] sm:$0xff]
      %v4059 = vld [vmem:[%s4056 + $0x10] sm:$0xff]
      %v4060 = vld [vmem:[%s4056 + $0x18] sm:$0xff]
      %v4061 = vld [vmem:[%s4056 + $0x20] sm:$0xff]
      %v4062 = vld [vmem:[%s4056 + $0x28] sm:$0xff]
      %v4063 = vld [vmem:[%s4056 + $0x30] sm:$0xff]
      %v4064 = vld [vmem:[%s4056 + $0x38] sm:$0xff]
      %v4065 = vld [vmem:[%s4056 + $0x40] sm:$0xff]
      %v4066 = vld [vmem:[%s4056 + $0x48] sm:$0xff]
      %v4067 = vld [vmem:[%s4056 + $0x50] sm:$0xff]
      %v4068 = vld [vmem:[%s4056 + $0x58] sm:$0xff]
      %v4069 = vld [vmem:[%s4056 + $0x60] sm:$0xff]
      %v4070 = vld [vmem:[%s4056 + $0x68] sm:$0xff]
      %v4071 = vld [vmem:[%s4056 + $0x70] sm:$0xff]
      %v4072 = vld [vmem:[%s4056 + $0x78] sm:$0xff]
      %v4073 = vld [vmem:[%s4056 + $0x80] sm:$0xff]
      %v4074 = vld [vmem:[%s4056 + $0x88] sm:$0xff]
      %v4075 = vld [vmem:[%s4056 + $0x90] sm:$0xff]
      %v4076 = vld [vmem:[%s4056 + $0x98] sm:$0xff]
      %v4077 = vld [vmem:[%s4056 + $0xa0] sm:$0xff]
      %v4078 = vld [vmem:[%s4056 + $0xa8] sm:$0xff]
      %v4079 = vld [vmem:[%s4056 + $0xb0] sm:$0xff]
      %v4080 = vld [vmem:[%s4056 + $0xb8] sm:$0xff]
      %v4081 = vld [vmem:[%s4056 + $0xc0] sm:$0xff]
      %v4082 = vld [vmem:[%s4056 + $0xc8] sm:$0xff]
      %v4083 = vld [vmem:[%s4056 + $0xd0] sm:$0xff]
      %v4084 = vld [vmem:[%s4056 + $0xd8] sm:$0xff]
      %v4085 = vld [vmem:[%s4056 + $0xe0] sm:$0xff]
      %v4086 = vld [vmem:[%s4056 + $0xe8] sm:$0xff]
      %v4117 = vunpack.c.l.b16 %v4057
      %v4118 = vunpack.c.h.b16 %v4057
      %v4119 = vunpack.c.l.b16 %v4058
      %v4120 = vunpack.c.h.b16 %v4058
      %v4121 = vunpack.c.l.b16 %v4059
      %v4122 = vunpack.c.h.b16 %v4059
      %v4123 = vunpack.c.l.b16 %v4060
      %v4124 = vunpack.c.h.b16 %v4060
      %v4125 = vunpack.c.l.b16 %v4061
      %v4126 = vunpack.c.h.b16 %v4061
      %v4127 = vunpack.c.l.b16 %v4062
      %v4128 = vunpack.c.h.b16 %v4062
      %v4129 = vunpack.c.l.b16 %v4063
      %v4130 = vunpack.c.h.b16 %v4063
      %v4131 = vunpack.c.l.b16 %v4064
      %v4132 = vunpack.c.h.b16 %v4064
      %v4133 = vunpack.c.l.b16 %v4065
      %v4134 = vunpack.c.h.b16 %v4065
      %v4135 = vunpack.c.l.b16 %v4066
      %v4136 = vunpack.c.h.b16 %v4066
      %v4137 = vunpack.c.l.b16 %v4067
      %v4138 = vunpack.c.h.b16 %v4067
      %v4139 = vunpack.c.l.b16 %v4068
      %v4140 = vunpack.c.h.b16 %v4068
      %v4141 = vunpack.c.l.b16 %v4069
      %v4142 = vunpack.c.h.b16 %v4069
      %v4143 = vunpack.c.l.b16 %v4070
      %v4144 = vunpack.c.h.b16 %v4070
      %v4145 = vunpack.c.l.b16 %v4071
      %v4146 = vunpack.c.h.b16 %v4071
      %v4147 = vunpack.c.l.b16 %v4072
      %v4148 = vunpack.c.h.b16 %v4072
      %v4149 = vunpack.c.l.b16 %v4073
      %v4150 = vunpack.c.h.b16 %v4073
      %v4151 = vunpack.c.l.b16 %v4074
      %v4152 = vunpack.c.h.b16 %v4074
      %v4153 = vunpack.c.l.b16 %v4075
      %v4154 = vunpack.c.h.b16 %v4075
      %v4155 = vunpack.c.l.b16 %v4076
      %v4156 = vunpack.c.h.b16 %v4076
      %v4157 = vunpack.c.l.b16 %v4077
      %v4158 = vunpack.c.h.b16 %v4077
      %v4159 = vunpack.c.l.b16 %v4078
      %v4160 = vunpack.c.h.b16 %v4078
      %v4161 = vunpack.c.l.b16 %v4079
      %v4162 = vunpack.c.h.b16 %v4079
      %v4163 = vunpack.c.l.b16 %v4080
      %v4164 = vunpack.c.h.b16 %v4080
      %v4165 = vunpack.c.l.b16 %v4081
      %v4166 = vunpack.c.h.b16 %v4081
      %v4167 = vunpack.c.l.b16 %v4082
      %v4168 = vunpack.c.h.b16 %v4082
      %v4169 = vunpack.c.l.b16 %v4083
      %v4170 = vunpack.c.h.b16 %v4083
      %v4171 = vunpack.c.l.b16 %v4084
      %v4172 = vunpack.c.h.b16 %v4084
      %v4173 = vunpack.c.l.b16 %v4085
      %v4174 = vunpack.c.h.b16 %v4085
      %v4175 = vunpack.c.l.b16 %v4086
      %v4176 = vunpack.c.h.b16 %v4086
      %v4177 = vpack.c.b16 %v4119, %v4117
      %v4178 = vpack.c.b16 %v4120, %v4118
      %v4179 = vpack.c.b16 %v4123, %v4121
      %v4180 = vpack.c.b16 %v4124, %v4122
      %v4181 = vpack.c.b16 %v4127, %v4125
      %v4182 = vpack.c.b16 %v4128, %v4126
      %v4183 = vpack.c.b16 %v4131, %v4129
      %v4184 = vpack.c.b16 %v4132, %v4130
      %v4185 = vpack.c.b16 %v4135, %v4133
      %v4186 = vpack.c.b16 %v4136, %v4134
      %v4187 = vpack.c.b16 %v4139, %v4137
      %v4188 = vpack.c.b16 %v4140, %v4138
      %v4189 = vpack.c.b16 %v4143, %v4141
      %v4190 = vpack.c.b16 %v4144, %v4142
      %v4191 = vpack.c.b16 %v4147, %v4145
      %v4192 = vpack.c.b16 %v4148, %v4146
      %v4193 = vpack.c.b16 %v4151, %v4149
      %v4194 = vpack.c.b16 %v4152, %v4150
      %v4195 = vpack.c.b16 %v4155, %v4153
      %v4196 = vpack.c.b16 %v4156, %v4154
      %v4197 = vpack.c.b16 %v4159, %v4157
      %v4198 = vpack.c.b16 %v4160, %v4158
      %v4199 = vpack.c.b16 %v4163, %v4161
      %v4200 = vpack.c.b16 %v4164, %v4162
      %v4201 = vpack.c.b16 %v4167, %v4165
      %v4202 = vpack.c.b16 %v4168, %v4166
      %v4203 = vpack.c.b16 %v4171, %v4169
      %v4204 = vpack.c.b16 %v4172, %v4170
      %v4205 = vpack.c.b16 %v4175, %v4173
      %v4206 = vpack.c.b16 %v4176, %v4174
      %v4238 = vsel %vm906, %v4041, 0
      %v4241 = vsel %vm906, %v4043, 0
      %v4244 = vsel %vm906, %v4045, 0
      %v4247 = vsel %vm906, %v4047, 0
      %v4250 = vsel %vm906, %v4049, 0
      %v4253 = vsel %vm906, %v4051, 0
      %v4256 = vsel %vm906, %v4053, 0
      %v4259 = vsel %vm906, %v4055, 0
      %4261 = vmatprep.subr.bf16.mxu0 %v4178
      %4262 = vmatpush1.bf16.msra.mxu0 %v4177
      %4263 = vmatprep.subr.bf16.mxu0 %v4180
      %4264 = vmatpush1.bf16.msra.mxu0 %v4179
      %4265 = vmatprep.subr.bf16.mxu0 %v4182
      %4266 = vmatpush1.bf16.msra.mxu0 %v4181
      %4267 = vmatprep.subr.bf16.mxu0 %v4184
      %4268 = vmatpush1.bf16.msra.mxu0 %v4183
      %4269 = vmatprep.subr.bf16.mxu0 %v4186
      %4270 = vmatpush1.bf16.msra.mxu0 %v4185
      %4271 = vmatprep.subr.bf16.mxu0 %v4188
      %4272 = vmatpush1.bf16.msra.mxu0 %v4187
      %4273 = vmatprep.subr.bf16.mxu0 %v4190
      %4274 = vmatpush1.bf16.msra.mxu0 %v4189
      %4275 = vmatprep.subr.bf16.mxu0 %v4192
      %4276 = vmatpush1.bf16.msra.mxu0 %v4191
      %4277 = vmatprep.subr.bf16.mxu0 %v4194
      %4278 = vmatpush1.bf16.msra.mxu0 %v4193
      %4279 = vmatprep.subr.bf16.mxu0 %v4196
      %4280 = vmatpush1.bf16.msra.mxu0 %v4195
      %4281 = vmatprep.subr.bf16.mxu0 %v4198
      %4282 = vmatpush1.bf16.msra.mxu0 %v4197
      %4283 = vmatprep.subr.bf16.mxu0 %v4200
      %4284 = vmatpush1.bf16.msra.mxu0 %v4199
      %4285 = vmatprep.subr.bf16.mxu0 %v4202
      %4286 = vmatpush1.bf16.msra.mxu0 %v4201
      %4287 = vmatprep.subr.bf16.mxu0 %v4204
      %4288 = vmatpush1.bf16.msra.mxu0 %v4203
      %4289 = vmatprep.subr.bf16.mxu0 %v4206
      %4290 = vmatpush1.bf16.msra.mxu0 %v4205
      %4291 = vmatprep.subr.bf16.mxu0 0
      %4292 = vmatpush1.bf16.msra.mxu0 0
      %4293 = vmatprep.mubr.bf16.mxu0 %v4238
      %4294 = vmatmul.mubr.bf16.gmra.mrb[0].mxu0 %v4040
      %v4295 = vpop.f32.mrb[0].mxu0
      %v4296 = vadd.f32 0.0, %v4295
      %v4297 = vpop.f32.mrb[0].mxu0
      %v4298 = vadd.f32 0.0, %v4297
      %v4299 = vpop.f32.mrb[0].mxu0
      %v4300 = vadd.f32 0.0, %v4299
      %v4301 = vpop.f32.mrb[0].mxu0
      %v4302 = vadd.f32 0.0, %v4301
      %4303 = vmatprep.mubr.bf16.mxu0 %v4241
      %4304 = vmatmul.mubr.bf16.gmra.mrb[0].mxu0 %v4042
      %v4305 = vpop.f32.mrb[0].mxu0
      %v4306 = vadd.f32 0.0, %v4305
      %v4307 = vpop.f32.mrb[0].mxu0
      %v4308 = vadd.f32 0.0, %v4307
      %v4309 = vpop.f32.mrb[0].mxu0
      %v4310 = vadd.f32 0.0, %v4309
      %v4311 = vpop.f32.mrb[0].mxu0
      %v4312 = vadd.f32 0.0, %v4311
      %4313 = vmatprep.mubr.bf16.mxu0 %v4244
      %4314 = vmatmul.mubr.bf16.gmra.mrb[0].mxu0 %v4044
      %v4315 = vpop.f32.mrb[0].mxu0
      %v4316 = vadd.f32 0.0, %v4315
      %v4317 = vpop.f32.mrb[0].mxu0
      %v4318 = vadd.f32 0.0, %v4317
      %v4319 = vpop.f32.mrb[0].mxu0
      %v4320 = vadd.f32 0.0, %v4319
      %v4321 = vpop.f32.mrb[0].mxu0
      %v4322 = vadd.f32 0.0, %v4321
      %4323 = vmatprep.mubr.bf16.mxu0 %v4247
      %4324 = vmatmul.mubr.bf16.gmra.mrb[0].mxu0 %v4046
      %v4325 = vpop.f32.mrb[0].mxu0
      %v4326 = vadd.f32 0.0, %v4325
      %v4327 = vpop.f32.mrb[0].mxu0
      %v4328 = vadd.f32 0.0, %v4327
      %v4329 = vpop.f32.mrb[0].mxu0
      %v4330 = vadd.f32 0.0, %v4329
      %v4331 = vpop.f32.mrb[0].mxu0
      %v4332 = vadd.f32 0.0, %v4331
      %4333 = vmatprep.mubr.bf16.mxu0 %v4250
      %4334 = vmatmul.mubr.bf16.gmra.mrb[0].mxu0 %v4048
      %v4335 = vpop.f32.mrb[0].mxu0
      %v4336 = vadd.f32 0.0, %v4335
      %v4337 = vpop.f32.mrb[0].mxu0
      %v4338 = vadd.f32 0.0, %v4337
      %v4339 = vpop.f32.mrb[0].mxu0
      %v4340 = vadd.f32 0.0, %v4339
      %v4341 = vpop.f32.mrb[0].mxu0
      %v4342 = vadd.f32 0.0, %v4341
      %4343 = vmatprep.mubr.bf16.mxu0 %v4253
      %4344 = vmatmul.mubr.bf16.gmra.mrb[0].mxu0 %v4050
      %v4345 = vpop.f32.mrb[0].mxu0
      %v4346 = vadd.f32 0.0, %v4345
      %v4347 = vpop.f32.mrb[0].mxu0
      %v4348 = vadd.f32 0.0, %v4347
      %v4349 = vpop.f32.mrb[0].mxu0
      %v4350 = vadd.f32 0.0, %v4349
      %v4351 = vpop.f32.mrb[0].mxu0
      %v4352 = vadd.f32 0.0, %v4351
      %4353 = vmatprep.mubr.bf16.mxu0 %v4256
      %4354 = vmatmul.mubr.bf16.gmra.mrb[0].mxu0 %v4052
      %v4355 = vpop.f32.mrb[0].mxu0
      %v4356 = vadd.f32 0.0, %v4355
      %v4357 = vpop.f32.mrb[0].mxu0
      %v4358 = vadd.f32 0.0, %v4357
      %v4359 = vpop.f32.mrb[0].mxu0
      %v4360 = vadd.f32 0.0, %v4359
      %v4361 = vpop.f32.mrb[0].mxu0
      %v4362 = vadd.f32 0.0, %v4361
      %4363 = vmatprep.mubr.bf16.mxu0 %v4259
      %4364 = vmatmul.mubr.bf16.gmra.mrb[0].mxu0 %v4054
      %v4365 = vpop.f32.mrb[0].mxu0
      %v4366 = vadd.f32 0.0, %v4365
      %v4367 = vpop.f32.mrb[0].mxu0
      %v4368 = vadd.f32 0.0, %v4367
      %v4369 = vpop.f32.mrb[0].mxu0
      %v4370 = vadd.f32 0.0, %v4369
      %v4371 = vpop.f32.mrb[0].mxu0
      %v4372 = vadd.f32 0.0, %v4371
      %4373 = vdwg.mxu0
      %s4374 = scalar_lea.vmem %s6, 480
      %v4375 = vld [vmem:[%s4374] sm:$0xff]
      %v4376 = vld [vmem:[%s4374 + $0x8] sm:$0xff]
      %v4377 = vld [vmem:[%s4374 + $0x10] sm:$0xff]
      %v4378 = vld [vmem:[%s4374 + $0x18] sm:$0xff]
      %v4379 = vld [vmem:[%s4374 + $0x20] sm:$0xff]
      %v4380 = vld [vmem:[%s4374 + $0x28] sm:$0xff]
      %v4381 = vld [vmem:[%s4374 + $0x30] sm:$0xff]
      %v4382 = vld [vmem:[%s4374 + $0x38] sm:$0xff]
      %v4383 = vld [vmem:[%s4374 + $0x40] sm:$0xff]
      %v4384 = vld [vmem:[%s4374 + $0x48] sm:$0xff]
      %v4385 = vld [vmem:[%s4374 + $0x50] sm:$0xff]
      %v4386 = vld [vmem:[%s4374 + $0x58] sm:$0xff]
      %v4387 = vld [vmem:[%s4374 + $0x60] sm:$0xff]
      %v4388 = vld [vmem:[%s4374 + $0x68] sm:$0xff]
      %v4389 = vld [vmem:[%s4374 + $0x70] sm:$0xff]
      %v4390 = vld [vmem:[%s4374 + $0x78] sm:$0xff]
      %v4391 = vld [vmem:[%s4374 + $0x80] sm:$0xff]
      %v4392 = vld [vmem:[%s4374 + $0x88] sm:$0xff]
      %v4393 = vld [vmem:[%s4374 + $0x90] sm:$0xff]
      %v4394 = vld [vmem:[%s4374 + $0x98] sm:$0xff]
      %v4395 = vld [vmem:[%s4374 + $0xa0] sm:$0xff]
      %v4396 = vld [vmem:[%s4374 + $0xa8] sm:$0xff]
      %v4397 = vld [vmem:[%s4374 + $0xb0] sm:$0xff]
      %v4398 = vld [vmem:[%s4374 + $0xb8] sm:$0xff]
      %v4399 = vld [vmem:[%s4374 + $0xc0] sm:$0xff]
      %v4400 = vld [vmem:[%s4374 + $0xc8] sm:$0xff]
      %v4401 = vld [vmem:[%s4374 + $0xd0] sm:$0xff]
      %v4402 = vld [vmem:[%s4374 + $0xd8] sm:$0xff]
      %v4403 = vld [vmem:[%s4374 + $0xe0] sm:$0xff]
      %v4404 = vld [vmem:[%s4374 + $0xe8] sm:$0xff]
      %v4435 = vunpack.c.l.b16 %v4375
      %v4436 = vunpack.c.h.b16 %v4375
      %v4437 = vunpack.c.l.b16 %v4376
      %v4438 = vunpack.c.h.b16 %v4376
      %v4439 = vunpack.c.l.b16 %v4377
      %v4440 = vunpack.c.h.b16 %v4377
      %v4441 = vunpack.c.l.b16 %v4378
      %v4442 = vunpack.c.h.b16 %v4378
      %v4443 = vunpack.c.l.b16 %v4379
      %v4444 = vunpack.c.h.b16 %v4379
      %v4445 = vunpack.c.l.b16 %v4380
      %v4446 = vunpack.c.h.b16 %v4380
      %v4447 = vunpack.c.l.b16 %v4381
      %v4448 = vunpack.c.h.b16 %v4381
      %v4449 = vunpack.c.l.b16 %v4382
      %v4450 = vunpack.c.h.b16 %v4382
      %v4451 = vunpack.c.l.b16 %v4383
      %v4452 = vunpack.c.h.b16 %v4383
      %v4453 = vunpack.c.l.b16 %v4384
      %v4454 = vunpack.c.h.b16 %v4384
      %v4455 = vunpack.c.l.b16 %v4385
      %v4456 = vunpack.c.h.b16 %v4385
      %v4457 = vunpack.c.l.b16 %v4386
      %v4458 = vunpack.c.h.b16 %v4386
      %v4459 = vunpack.c.l.b16 %v4387
      %v4460 = vunpack.c.h.b16 %v4387
      %v4461 = vunpack.c.l.b16 %v4388
      %v4462 = vunpack.c.h.b16 %v4388
      %v4463 = vunpack.c.l.b16 %v4389
      %v4464 = vunpack.c.h.b16 %v4389
      %v4465 = vunpack.c.l.b16 %v4390
      %v4466 = vunpack.c.h.b16 %v4390
      %v4467 = vunpack.c.l.b16 %v4391
      %v4468 = vunpack.c.h.b16 %v4391
      %v4469 = vunpack.c.l.b16 %v4392
      %v4470 = vunpack.c.h.b16 %v4392
      %v4471 = vunpack.c.l.b16 %v4393
      %v4472 = vunpack.c.h.b16 %v4393
      %v4473 = vunpack.c.l.b16 %v4394
      %v4474 = vunpack.c.h.b16 %v4394
      %v4475 = vunpack.c.l.b16 %v4395
      %v4476 = vunpack.c.h.b16 %v4395
      %v4477 = vunpack.c.l.b16 %v4396
      %v4478 = vunpack.c.h.b16 %v4396
      %v4479 = vunpack.c.l.b16 %v4397
      %v4480 = vunpack.c.h.b16 %v4397
      %v4481 = vunpack.c.l.b16 %v4398
      %v4482 = vunpack.c.h.b16 %v4398
      %v4483 = vunpack.c.l.b16 %v4399
      %v4484 = vunpack.c.h.b16 %v4399
      %v4485 = vunpack.c.l.b16 %v4400
      %v4486 = vunpack.c.h.b16 %v4400
      %v4487 = vunpack.c.l.b16 %v4401
      %v4488 = vunpack.c.h.b16 %v4401
      %v4489 = vunpack.c.l.b16 %v4402
      %v4490 = vunpack.c.h.b16 %v4402
      %v4491 = vunpack.c.l.b16 %v4403
      %v4492 = vunpack.c.h.b16 %v4403
      %v4493 = vunpack.c.l.b16 %v4404
      %v4494 = vunpack.c.h.b16 %v4404
      %v4495 = vpack.c.b16 %v4437, %v4435
      %v4496 = vpack.c.b16 %v4438, %v4436
      %v4497 = vpack.c.b16 %v4441, %v4439
      %v4498 = vpack.c.b16 %v4442, %v4440
      %v4499 = vpack.c.b16 %v4445, %v4443
      %v4500 = vpack.c.b16 %v4446, %v4444
      %v4501 = vpack.c.b16 %v4449, %v4447
      %v4502 = vpack.c.b16 %v4450, %v4448
      %v4503 = vpack.c.b16 %v4453, %v4451
      %v4504 = vpack.c.b16 %v4454, %v4452
      %v4505 = vpack.c.b16 %v4457, %v4455
      %v4506 = vpack.c.b16 %v4458, %v4456
      %v4507 = vpack.c.b16 %v4461, %v4459
      %v4508 = vpack.c.b16 %v4462, %v4460
      %v4509 = vpack.c.b16 %v4465, %v4463
      %v4510 = vpack.c.b16 %v4466, %v4464
      %v4511 = vpack.c.b16 %v4469, %v4467
      %v4512 = vpack.c.b16 %v4470, %v4468
      %v4513 = vpack.c.b16 %v4473, %v4471
      %v4514 = vpack.c.b16 %v4474, %v4472
      %v4515 = vpack.c.b16 %v4477, %v4475
      %v4516 = vpack.c.b16 %v4478, %v4476
      %v4517 = vpack.c.b16 %v4481, %v4479
      %v4518 = vpack.c.b16 %v4482, %v4480
      %v4519 = vpack.c.b16 %v4485, %v4483
      %v4520 = vpack.c.b16 %v4486, %v4484
      %v4521 = vpack.c.b16 %v4489, %v4487
      %v4522 = vpack.c.b16 %v4490, %v4488
      %v4523 = vpack.c.b16 %v4493, %v4491
      %v4524 = vpack.c.b16 %v4494, %v4492
      %4555 = vmatprep.subr.bf16.mxu0 %v4496
      %4556 = vmatpush1.bf16.msra.mxu0 %v4495
      %4557 = vmatprep.subr.bf16.mxu0 %v4498
      %4558 = vmatpush1.bf16.msra.mxu0 %v4497
      %4559 = vmatprep.subr.bf16.mxu0 %v4500
      %4560 = vmatpush1.bf16.msra.mxu0 %v4499
      %4561 = vmatprep.subr.bf16.mxu0 %v4502
      %4562 = vmatpush1.bf16.msra.mxu0 %v4501
      %4563 = vmatprep.subr.bf16.mxu0 %v4504
      %4564 = vmatpush1.bf16.msra.mxu0 %v4503
      %4565 = vmatprep.subr.bf16.mxu0 %v4506
      %4566 = vmatpush1.bf16.msra.mxu0 %v4505
      %4567 = vmatprep.subr.bf16.mxu0 %v4508
      %4568 = vmatpush1.bf16.msra.mxu0 %v4507
      %4569 = vmatprep.subr.bf16.mxu0 %v4510
      %4570 = vmatpush1.bf16.msra.mxu0 %v4509
      %4571 = vmatprep.subr.bf16.mxu0 %v4512
      %4572 = vmatpush1.bf16.msra.mxu0 %v4511
      %4573 = vmatprep.subr.bf16.mxu0 %v4514
      %4574 = vmatpush1.bf16.msra.mxu0 %v4513
      %4575 = vmatprep.subr.bf16.mxu0 %v4516
      %4576 = vmatpush1.bf16.msra.mxu0 %v4515
      %4577 = vmatprep.subr.bf16.mxu0 %v4518
      %4578 = vmatpush1.bf16.msra.mxu0 %v4517
      %4579 = vmatprep.subr.bf16.mxu0 %v4520
      %4580 = vmatpush1.bf16.msra.mxu0 %v4519
      %4581 = vmatprep.subr.bf16.mxu0 %v4522
      %4582 = vmatpush1.bf16.msra.mxu0 %v4521
      %4583 = vmatprep.subr.bf16.mxu0 %v4524
      %4584 = vmatpush1.bf16.msra.mxu0 %v4523
      %4585 = vmatprep.subr.bf16.mxu0 0
      %4586 = vmatpush1.bf16.msra.mxu0 0
      %4587 = vmatprep.mubr.bf16.mxu0 %v4238
      %4588 = vmatmul.mubr.bf16.gmra.mrb[0].mxu0 %v4040
      %v4589 = vpop.f32.mrb[0].mxu0
      %v4590 = vadd.f32 0.0, %v4589
      %v4591 = vpop.f32.mrb[0].mxu0
      %v4592 = vadd.f32 0.0, %v4591
      %v4593 = vpop.f32.mrb[0].mxu0
      %v4594 = vadd.f32 0.0, %v4593
      %v4595 = vpop.f32.mrb[0].mxu0
      %v4596 = vadd.f32 0.0, %v4595
      %4597 = vmatprep.mubr.bf16.mxu0 %v4241
      %4598 = vmatmul.mubr.bf16.gmra.mrb[0].mxu0 %v4042
      %v4599 = vpop.f32.mrb[0].mxu0
      %v4600 = vadd.f32 0.0, %v4599
      %v4601 = vpop.f32.mrb[0].mxu0
      %v4602 = vadd.f32 0.0, %v4601
      %v4603 = vpop.f32.mrb[0].mxu0
      %v4604 = vadd.f32 0.0, %v4603
      %v4605 = vpop.f32.mrb[0].mxu0
      %v4606 = vadd.f32 0.0, %v4605
      %4607 = vmatprep.mubr.bf16.mxu0 %v4244
      %4608 = vmatmul.mubr.bf16.gmra.mrb[0].mxu0 %v4044
      %v4609 = vpop.f32.mrb[0].mxu0
      %v4610 = vadd.f32 0.0, %v4609
      %v4611 = vpop.f32.mrb[0].mxu0
      %v4612 = vadd.f32 0.0, %v4611
      %v4613 = vpop.f32.mrb[0].mxu0
      %v4614 = vadd.f32 0.0, %v4613
      %v4615 = vpop.f32.mrb[0].mxu0
      %v4616 = vadd.f32 0.0, %v4615
      %4617 = vmatprep.mubr.bf16.mxu0 %v4247
      %4618 = vmatmul.mubr.bf16.gmra.mrb[0].mxu0 %v4046
      %v4619 = vpop.f32.mrb[0].mxu0
      %v4620 = vadd.f32 0.0, %v4619
      %v4621 = vpop.f32.mrb[0].mxu0
      %v4622 = vadd.f32 0.0, %v4621
      %v4623 = vpop.f32.mrb[0].mxu0
      %v4624 = vadd.f32 0.0, %v4623
      %v4625 = vpop.f32.mrb[0].mxu0
      %v4626 = vadd.f32 0.0, %v4625
      %4627 = vmatprep.mubr.bf16.mxu0 %v4250
      %4628 = vmatmul.mubr.bf16.gmra.mrb[0].mxu0 %v4048
      %v4629 = vpop.f32.mrb[0].mxu0
      %v4630 = vadd.f32 0.0, %v4629
      %v4631 = vpop.f32.mrb[0].mxu0
      %v4632 = vadd.f32 0.0, %v4631
      %v4633 = vpop.f32.mrb[0].mxu0
      %v4634 = vadd.f32 0.0, %v4633
      %v4635 = vpop.f32.mrb[0].mxu0
      %v4636 = vadd.f32 0.0, %v4635
      %4637 = vmatprep.mubr.bf16.mxu0 %v4253
      %4638 = vmatmul.mubr.bf16.gmra.mrb[0].mxu0 %v4050
      %v4639 = vpop.f32.mrb[0].mxu0
      %v4640 = vadd.f32 0.0, %v4639
      %v4641 = vpop.f32.mrb[0].mxu0
      %v4642 = vadd.f32 0.0, %v4641
      %v4643 = vpop.f32.mrb[0].mxu0
      %v4644 = vadd.f32 0.0, %v4643
      %v4645 = vpop.f32.mrb[0].mxu0
      %v4646 = vadd.f32 0.0, %v4645
      %4647 = vmatprep.mubr.bf16.mxu0 %v4256
      %4648 = vmatmul.mubr.bf16.gmra.mrb[0].mxu0 %v4052
      %v4649 = vpop.f32.mrb[0].mxu0
      %v4650 = vadd.f32 0.0, %v4649
      %v4651 = vpop.f32.mrb[0].mxu0
      %v4652 = vadd.f32 0.0, %v4651
      %v4653 = vpop.f32.mrb[0].mxu0
      %v4654 = vadd.f32 0.0, %v4653
      %v4655 = vpop.f32.mrb[0].mxu0
      %v4656 = vadd.f32 0.0, %v4655
      %4657 = vmatprep.mubr.bf16.mxu0 %v4259
      %4658 = vmatmul.mubr.bf16.gmra.mrb[0].mxu0 %v4054
      %v4659 = vpop.f32.mrb[0].mxu0
      %v4660 = vadd.f32 0.0, %v4659
      %v4661 = vpop.f32.mrb[0].mxu0
      %v4662 = vadd.f32 0.0, %v4661
      %v4663 = vpop.f32.mrb[0].mxu0
      %v4664 = vadd.f32 0.0, %v4663
      %v4665 = vpop.f32.mrb[0].mxu0
      %v4666 = vadd.f32 0.0, %v4665
      %4667 = vdwg.mxu0
      %v4668 = vld [vmem:[#allocation4] sm:$0xff]
      %v4669 = vld [vmem:[#allocation4 + $0x8] sm:$0xff]
      %v4670 = vld [vmem:[#allocation4 + $0x10] sm:$0xff]
      %v4671 = vld [vmem:[#allocation4 + $0x18] sm:$0xff]
      %v4672 = vld [vmem:[#allocation4 + $0x20] sm:$0xff]
      %v4673 = vld [vmem:[#allocation4 + $0x28] sm:$0xff]
      %v4674 = vld [vmem:[#allocation4 + $0x30] sm:$0xff]
      %v4675 = vld [vmem:[#allocation4 + $0x38] sm:$0xff]
      %v4676 = vld [vmem:[#allocation4 + $0x40] sm:$0xff]
      %v4677 = vld [vmem:[#allocation4 + $0x48] sm:$0xff]
      %v4678 = vld [vmem:[#allocation4 + $0x50] sm:$0xff]
      %v4679 = vld [vmem:[#allocation4 + $0x58] sm:$0xff]
      %v4680 = vld [vmem:[#allocation4 + $0x60] sm:$0xff]
      %v4681 = vld [vmem:[#allocation4 + $0x68] sm:$0xff]
      %v4682 = vld [vmem:[#allocation4 + $0x70] sm:$0xff]
      %v4683 = vld [vmem:[#allocation4 + $0x78] sm:$0xff]
      %v4684 = vld [vmem:[#allocation4 + $0x80] sm:$0xff]
      %v4685 = vld [vmem:[#allocation4 + $0x88] sm:$0xff]
      %v4686 = vld [vmem:[#allocation4 + $0x90] sm:$0xff]
      %v4687 = vld [vmem:[#allocation4 + $0x98] sm:$0xff]
      %v4688 = vld [vmem:[#allocation4 + $0xa0] sm:$0xff]
      %v4689 = vld [vmem:[#allocation4 + $0xa8] sm:$0xff]
      %v4690 = vld [vmem:[#allocation4 + $0xb0] sm:$0xff]
      %v4691 = vld [vmem:[#allocation4 + $0xb8] sm:$0xff]
      %v4692 = vld [vmem:[#allocation4 + $0xc0] sm:$0xff]
      %v4693 = vld [vmem:[#allocation4 + $0xc8] sm:$0xff]
      %v4694 = vld [vmem:[#allocation4 + $0xd0] sm:$0xff]
      %v4695 = vld [vmem:[#allocation4 + $0xd8] sm:$0xff]
      %v4696 = vld [vmem:[#allocation4 + $0xe0] sm:$0xff]
      %v4697 = vld [vmem:[#allocation4 + $0xe8] sm:$0xff]
      %v4698 = vld [vmem:[#allocation4 + $0xf0] sm:$0xff]
      %v4699 = vld [vmem:[#allocation4 + $0xf8] sm:$0xff]
      %v4700 = vadd.f32 %v4668, %v4296
      %v4701 = vadd.f32 %v4669, %v4298
      %v4702 = vadd.f32 %v4670, %v4300
      %v4703 = vadd.f32 %v4671, %v4302
      %v4704 = vadd.f32 %v4672, %v4306
      %v4705 = vadd.f32 %v4673, %v4308
      %v4706 = vadd.f32 %v4674, %v4310
      %v4707 = vadd.f32 %v4675, %v4312
      %v4708 = vadd.f32 %v4676, %v4316
      %v4709 = vadd.f32 %v4677, %v4318
      %v4710 = vadd.f32 %v4678, %v4320
      %v4711 = vadd.f32 %v4679, %v4322
      %v4712 = vadd.f32 %v4680, %v4326
      %v4713 = vadd.f32 %v4681, %v4328
      %v4714 = vadd.f32 %v4682, %v4330
      %v4715 = vadd.f32 %v4683, %v4332
      %v4716 = vadd.f32 %v4684, %v4336
      %v4717 = vadd.f32 %v4685, %v4338
      %v4718 = vadd.f32 %v4686, %v4340
      %v4719 = vadd.f32 %v4687, %v4342
      %v4720 = vadd.f32 %v4688, %v4346
      %v4721 = vadd.f32 %v4689, %v4348
      %v4722 = vadd.f32 %v4690, %v4350
      %v4723 = vadd.f32 %v4691, %v4352
      %v4724 = vadd.f32 %v4692, %v4356
      %v4725 = vadd.f32 %v4693, %v4358
      %v4726 = vadd.f32 %v4694, %v4360
      %v4727 = vadd.f32 %v4695, %v4362
      %v4728 = vadd.f32 %v4696, %v4366
      %v4729 = vadd.f32 %v4697, %v4368
      %v4730 = vadd.f32 %v4698, %v4370
      %v4731 = vadd.f32 %v4699, %v4372
      %4732 = vst [vmem:[#allocation4] sm:$0xff] %v4700
      %4733 = vst.msk [vmem:[#allocation4 + $0x8] sm:$0xff] %vm3156, %v4701
      %4734 = vst [vmem:[#allocation4 + $0x10] sm:$0xff] %v4702
      %4735 = vst.msk [vmem:[#allocation4 + $0x18] sm:$0xff] %vm3156, %v4703
      %4736 = vst [vmem:[#allocation4 + $0x20] sm:$0xff] %v4704
      %4737 = vst.msk [vmem:[#allocation4 + $0x28] sm:$0xff] %vm3156, %v4705
      %4738 = vst [vmem:[#allocation4 + $0x30] sm:$0xff] %v4706
      %4739 = vst.msk [vmem:[#allocation4 + $0x38] sm:$0xff] %vm3156, %v4707
      %4740 = vst [vmem:[#allocation4 + $0x40] sm:$0xff] %v4708
      %4741 = vst.msk [vmem:[#allocation4 + $0x48] sm:$0xff] %vm3156, %v4709
      %4742 = vst [vmem:[#allocation4 + $0x50] sm:$0xff] %v4710
      %4743 = vst.msk [vmem:[#allocation4 + $0x58] sm:$0xff] %vm3156, %v4711
      %4744 = vst [vmem:[#allocation4 + $0x60] sm:$0xff] %v4712
      %4745 = vst.msk [vmem:[#allocation4 + $0x68] sm:$0xff] %vm3156, %v4713
      %4746 = vst [vmem:[#allocation4 + $0x70] sm:$0xff] %v4714
      %4747 = vst.msk [vmem:[#allocation4 + $0x78] sm:$0xff] %vm3156, %v4715
      %4748 = vst [vmem:[#allocation4 + $0x80] sm:$0xff] %v4716
      %4749 = vst.msk [vmem:[#allocation4 + $0x88] sm:$0xff] %vm3156, %v4717
      %4750 = vst [vmem:[#allocation4 + $0x90] sm:$0xff] %v4718
      %4751 = vst.msk [vmem:[#allocation4 + $0x98] sm:$0xff] %vm3156, %v4719
      %4752 = vst [vmem:[#allocation4 + $0xa0] sm:$0xff] %v4720
      %4753 = vst.msk [vmem:[#allocation4 + $0xa8] sm:$0xff] %vm3156, %v4721
      %4754 = vst [vmem:[#allocation4 + $0xb0] sm:$0xff] %v4722
      %4755 = vst.msk [vmem:[#allocation4 + $0xb8] sm:$0xff] %vm3156, %v4723
      %4756 = vst [vmem:[#allocation4 + $0xc0] sm:$0xff] %v4724
      %4757 = vst.msk [vmem:[#allocation4 + $0xc8] sm:$0xff] %vm3156, %v4725
      %4758 = vst [vmem:[#allocation4 + $0xd0] sm:$0xff] %v4726
      %4759 = vst.msk [vmem:[#allocation4 + $0xd8] sm:$0xff] %vm3156, %v4727
      %4760 = vst [vmem:[#allocation4 + $0xe0] sm:$0xff] %v4728
      %4761 = vst.msk [vmem:[#allocation4 + $0xe8] sm:$0xff] %vm3156, %v4729
      %4762 = vst [vmem:[#allocation4 + $0xf0] sm:$0xff] %v4730
      %4763 = vst.msk [vmem:[#allocation4 + $0xf8] sm:$0xff] %vm3156, %v4731
      %v4764 = vld [vmem:[#allocation5] sm:$0xff]
      %v4765 = vld [vmem:[#allocation5 + $0x8] sm:$0xff]
      %v4766 = vld [vmem:[#allocation5 + $0x10] sm:$0xff]
      %v4767 = vld [vmem:[#allocation5 + $0x18] sm:$0xff]
      %v4768 = vld [vmem:[#allocation5 + $0x20] sm:$0xff]
      %v4769 = vld [vmem:[#allocation5 + $0x28] sm:$0xff]
      %v4770 = vld [vmem:[#allocation5 + $0x30] sm:$0xff]
      %v4771 = vld [vmem:[#allocation5 + $0x38] sm:$0xff]
      %v4772 = vld [vmem:[#allocation5 + $0x40] sm:$0xff]
      %v4773 = vld [vmem:[#allocation5 + $0x48] sm:$0xff]
      %v4774 = vld [vmem:[#allocation5 + $0x50] sm:$0xff]
      %v4775 = vld [vmem:[#allocation5 + $0x58] sm:$0xff]
      %v4776 = vld [vmem:[#allocation5 + $0x60] sm:$0xff]
      %v4777 = vld [vmem:[#allocation5 + $0x68] sm:$0xff]
      %v4778 = vld [vmem:[#allocation5 + $0x70] sm:$0xff]
      %v4779 = vld [vmem:[#allocation5 + $0x78] sm:$0xff]
      %v4780 = vld [vmem:[#allocation5 + $0x80] sm:$0xff]
      %v4781 = vld [vmem:[#allocation5 + $0x88] sm:$0xff]
      %v4782 = vld [vmem:[#allocation5 + $0x90] sm:$0xff]
      %v4783 = vld [vmem:[#allocation5 + $0x98] sm:$0xff]
      %v4784 = vld [vmem:[#allocation5 + $0xa0] sm:$0xff]
      %v4785 = vld [vmem:[#allocation5 + $0xa8] sm:$0xff]
      %v4786 = vld [vmem:[#allocation5 + $0xb0] sm:$0xff]
      %v4787 = vld [vmem:[#allocation5 + $0xb8] sm:$0xff]
      %v4788 = vld [vmem:[#allocation5 + $0xc0] sm:$0xff]
      %v4789 = vld [vmem:[#allocation5 + $0xc8] sm:$0xff]
      %v4790 = vld [vmem:[#allocation5 + $0xd0] sm:$0xff]
      %v4791 = vld [vmem:[#allocation5 + $0xd8] sm:$0xff]
      %v4792 = vld [vmem:[#allocation5 + $0xe0] sm:$0xff]
      %v4793 = vld [vmem:[#allocation5 + $0xe8] sm:$0xff]
      %v4794 = vld [vmem:[#allocation5 + $0xf0] sm:$0xff]
      %v4795 = vld [vmem:[#allocation5 + $0xf8] sm:$0xff]
      %v4796 = vadd.f32 %v4764, %v4590
      %v4797 = vadd.f32 %v4765, %v4592
      %v4798 = vadd.f32 %v4766, %v4594
      %v4799 = vadd.f32 %v4767, %v4596
      %v4800 = vadd.f32 %v4768, %v4600
      %v4801 = vadd.f32 %v4769, %v4602
      %v4802 = vadd.f32 %v4770, %v4604
      %v4803 = vadd.f32 %v4771, %v4606
      %v4804 = vadd.f32 %v4772, %v4610
      %v4805 = vadd.f32 %v4773, %v4612
      %v4806 = vadd.f32 %v4774, %v4614
      %v4807 = vadd.f32 %v4775, %v4616
      %v4808 = vadd.f32 %v4776, %v4620
      %v4809 = vadd.f32 %v4777, %v4622
      %v4810 = vadd.f32 %v4778, %v4624
      %v4811 = vadd.f32 %v4779, %v4626
      %v4812 = vadd.f32 %v4780, %v4630
      %v4813 = vadd.f32 %v4781, %v4632
      %v4814 = vadd.f32 %v4782, %v4634
      %v4815 = vadd.f32 %v4783, %v4636
      %v4816 = vadd.f32 %v4784, %v4640
      %v4817 = vadd.f32 %v4785, %v4642
      %v4818 = vadd.f32 %v4786, %v4644
      %v4819 = vadd.f32 %v4787, %v4646
      %v4820 = vadd.f32 %v4788, %v4650
      %v4821 = vadd.f32 %v4789, %v4652
      %v4822 = vadd.f32 %v4790, %v4654
      %v4823 = vadd.f32 %v4791, %v4656
      %v4824 = vadd.f32 %v4792, %v4660
      %v4825 = vadd.f32 %v4793, %v4662
      %v4826 = vadd.f32 %v4794, %v4664
      %v4827 = vadd.f32 %v4795, %v4666
      %4828 = vst [vmem:[#allocation5] sm:$0xff] %v4796
      %4829 = vst.msk [vmem:[#allocation5 + $0x8] sm:$0xff] %vm3156, %v4797
      %4830 = vst [vmem:[#allocation5 + $0x10] sm:$0xff] %v4798
      %4831 = vst.msk [vmem:[#allocation5 + $0x18] sm:$0xff] %vm3156, %v4799
      %4832 = vst [vmem:[#allocation5 + $0x20] sm:$0xff] %v4800
      %4833 = vst.msk [vmem:[#allocation5 + $0x28] sm:$0xff] %vm3156, %v4801
      %4834 = vst [vmem:[#allocation5 + $0x30] sm:$0xff] %v4802
      %4835 = vst.msk [vmem:[#allocation5 + $0x38] sm:$0xff] %vm3156, %v4803
      %4836 = vst [vmem:[#allocation5 + $0x40] sm:$0xff] %v4804
      %4837 = vst.msk [vmem:[#allocation5 + $0x48] sm:$0xff] %vm3156, %v4805
      %4838 = vst [vmem:[#allocation5 + $0x50] sm:$0xff] %v4806
      %4839 = vst.msk [vmem:[#allocation5 + $0x58] sm:$0xff] %vm3156, %v4807
      %4840 = vst [vmem:[#allocation5 + $0x60] sm:$0xff] %v4808
      %4841 = vst.msk [vmem:[#allocation5 + $0x68] sm:$0xff] %vm3156, %v4809
      %4842 = vst [vmem:[#allocation5 + $0x70] sm:$0xff] %v4810
      %4843 = vst.msk [vmem:[#allocation5 + $0x78] sm:$0xff] %vm3156, %v4811
      %4844 = vst [vmem:[#allocation5 + $0x80] sm:$0xff] %v4812
      %4845 = vst.msk [vmem:[#allocation5 + $0x88] sm:$0xff] %vm3156, %v4813
      %4846 = vst [vmem:[#allocation5 + $0x90] sm:$0xff] %v4814
      %4847 = vst.msk [vmem:[#allocation5 + $0x98] sm:$0xff] %vm3156, %v4815
      %4848 = vst [vmem:[#allocation5 + $0xa0] sm:$0xff] %v4816
      %4849 = vst.msk [vmem:[#allocation5 + $0xa8] sm:$0xff] %vm3156, %v4817
      %4850 = vst [vmem:[#allocation5 + $0xb0] sm:$0xff] %v4818
      %4851 = vst.msk [vmem:[#allocation5 + $0xb8] sm:$0xff] %vm3156, %v4819
      %4852 = vst [vmem:[#allocation5 + $0xc0] sm:$0xff] %v4820
      %4853 = vst.msk [vmem:[#allocation5 + $0xc8] sm:$0xff] %vm3156, %v4821
      %4854 = vst [vmem:[#allocation5 + $0xd0] sm:$0xff] %v4822
      %4855 = vst.msk [vmem:[#allocation5 + $0xd8] sm:$0xff] %vm3156, %v4823
      %4856 = vst [vmem:[#allocation5 + $0xe0] sm:$0xff] %v4824
      %4857 = vst.msk [vmem:[#allocation5 + $0xe8] sm:$0xff] %vm3156, %v4825
      %4858 = vst [vmem:[#allocation5 + $0xf0] sm:$0xff] %v4826
      %4859 = vst.msk [vmem:[#allocation5 + $0xf8] sm:$0xff] %vm3156, %v4827
      %v4860 = vld [vmem:[#allocation3 + $0x30] sm:$0xff]
      %v4861 = vld [vmem:[#allocation3 + $0x38] sm:$0xff]
      %v4862 = vld [vmem:[#allocation3 + $0x40] sm:$0xff]
      %v4863 = vld [vmem:[#allocation3 + $0x48] sm:$0xff]
      %v4864 = vld [vmem:[#allocation3 + $0x50] sm:$0xff]
      %v4865 = vld [vmem:[#allocation3 + $0x58] sm:$0xff]
      %v4866 = vld [vmem:[#allocation3 + $0x60] sm:$0xff]
      %v4867 = vld [vmem:[#allocation3 + $0x68] sm:$0xff]
      %v4868 = vld [vmem:[#allocation3 + $0x70] sm:$0xff]
      %v4869 = vld [vmem:[#allocation3 + $0x78] sm:$0xff]
      %v4870 = vld [vmem:[#allocation3 + $0x80] sm:$0xff]
      %v4871 = vld [vmem:[#allocation3 + $0x88] sm:$0xff]
      %v4872 = vld [vmem:[#allocation3 + $0x90] sm:$0xff]
      %v4873 = vld [vmem:[#allocation3 + $0x98] sm:$0xff]
      %v4874 = vld [vmem:[#allocation3 + $0xa0] sm:$0xff]
      %v4875 = vld [vmem:[#allocation3 + $0xa8] sm:$0xff]
      %s4876 = scalar_lea.vmem %s5, 720
      %v4877 = vld [vmem:[%s4876] sm:$0xff]
      %v4878 = vld [vmem:[%s4876 + $0x8] sm:$0xff]
      %v4879 = vld [vmem:[%s4876 + $0x10] sm:$0xff]
      %v4880 = vld [vmem:[%s4876 + $0x18] sm:$0xff]
      %v4881 = vld [vmem:[%s4876 + $0x20] sm:$0xff]
      %v4882 = vld [vmem:[%s4876 + $0x28] sm:$0xff]
      %v4883 = vld [vmem:[%s4876 + $0x30] sm:$0xff]
      %v4884 = vld [vmem:[%s4876 + $0x38] sm:$0xff]
      %v4885 = vld [vmem:[%s4876 + $0x40] sm:$0xff]
      %v4886 = vld [vmem:[%s4876 + $0x48] sm:$0xff]
      %v4887 = vld [vmem:[%s4876 + $0x50] sm:$0xff]
      %v4888 = vld [vmem:[%s4876 + $0x58] sm:$0xff]
      %v4889 = vld [vmem:[%s4876 + $0x60] sm:$0xff]
      %v4890 = vld [vmem:[%s4876 + $0x68] sm:$0xff]
      %v4891 = vld [vmem:[%s4876 + $0x70] sm:$0xff]
      %v4892 = vld [vmem:[%s4876 + $0x78] sm:$0xff]
      %v4893 = vld [vmem:[%s4876 + $0x80] sm:$0xff]
      %v4894 = vld [vmem:[%s4876 + $0x88] sm:$0xff]
      %v4895 = vld [vmem:[%s4876 + $0x90] sm:$0xff]
      %v4896 = vld [vmem:[%s4876 + $0x98] sm:$0xff]
      %v4897 = vld [vmem:[%s4876 + $0xa0] sm:$0xff]
      %v4898 = vld [vmem:[%s4876 + $0xa8] sm:$0xff]
      %v4899 = vld [vmem:[%s4876 + $0xb0] sm:$0xff]
      %v4900 = vld [vmem:[%s4876 + $0xb8] sm:$0xff]
      %v4901 = vld [vmem:[%s4876 + $0xc0] sm:$0xff]
      %v4902 = vld [vmem:[%s4876 + $0xc8] sm:$0xff]
      %v4903 = vld [vmem:[%s4876 + $0xd0] sm:$0xff]
      %v4904 = vld [vmem:[%s4876 + $0xd8] sm:$0xff]
      %v4905 = vld [vmem:[%s4876 + $0xe0] sm:$0xff]
      %v4906 = vld [vmem:[%s4876 + $0xe8] sm:$0xff]
      %v4937 = vunpack.c.l.b16 %v4877
      %v4938 = vunpack.c.h.b16 %v4877
      %v4939 = vunpack.c.l.b16 %v4878
      %v4940 = vunpack.c.h.b16 %v4878
      %v4941 = vunpack.c.l.b16 %v4879
      %v4942 = vunpack.c.h.b16 %v4879
      %v4943 = vunpack.c.l.b16 %v4880
      %v4944 = vunpack.c.h.b16 %v4880
      %v4945 = vunpack.c.l.b16 %v4881
      %v4946 = vunpack.c.h.b16 %v4881
      %v4947 = vunpack.c.l.b16 %v4882
      %v4948 = vunpack.c.h.b16 %v4882
      %v4949 = vunpack.c.l.b16 %v4883
      %v4950 = vunpack.c.h.b16 %v4883
      %v4951 = vunpack.c.l.b16 %v4884
      %v4952 = vunpack.c.h.b16 %v4884
      %v4953 = vunpack.c.l.b16 %v4885
      %v4954 = vunpack.c.h.b16 %v4885
      %v4955 = vunpack.c.l.b16 %v4886
      %v4956 = vunpack.c.h.b16 %v4886
      %v4957 = vunpack.c.l.b16 %v4887
      %v4958 = vunpack.c.h.b16 %v4887
      %v4959 = vunpack.c.l.b16 %v4888
      %v4960 = vunpack.c.h.b16 %v4888
      %v4961 = vunpack.c.l.b16 %v4889
      %v4962 = vunpack.c.h.b16 %v4889
      %v4963 = vunpack.c.l.b16 %v4890
      %v4964 = vunpack.c.h.b16 %v4890
      %v4965 = vunpack.c.l.b16 %v4891
      %v4966 = vunpack.c.h.b16 %v4891
      %v4967 = vunpack.c.l.b16 %v4892
      %v4968 = vunpack.c.h.b16 %v4892
      %v4969 = vunpack.c.l.b16 %v4893
      %v4970 = vunpack.c.h.b16 %v4893
      %v4971 = vunpack.c.l.b16 %v4894
      %v4972 = vunpack.c.h.b16 %v4894
      %v4973 = vunpack.c.l.b16 %v4895
      %v4974 = vunpack.c.h.b16 %v4895
      %v4975 = vunpack.c.l.b16 %v4896
      %v4976 = vunpack.c.h.b16 %v4896
      %v4977 = vunpack.c.l.b16 %v4897
      %v4978 = vunpack.c.h.b16 %v4897
      %v4979 = vunpack.c.l.b16 %v4898
      %v4980 = vunpack.c.h.b16 %v4898
      %v4981 = vunpack.c.l.b16 %v4899
      %v4982 = vunpack.c.h.b16 %v4899
      %v4983 = vunpack.c.l.b16 %v4900
      %v4984 = vunpack.c.h.b16 %v4900
      %v4985 = vunpack.c.l.b16 %v4901
      %v4986 = vunpack.c.h.b16 %v4901
      %v4987 = vunpack.c.l.b16 %v4902
      %v4988 = vunpack.c.h.b16 %v4902
      %v4989 = vunpack.c.l.b16 %v4903
      %v4990 = vunpack.c.h.b16 %v4903
      %v4991 = vunpack.c.l.b16 %v4904
      %v4992 = vunpack.c.h.b16 %v4904
      %v4993 = vunpack.c.l.b16 %v4905
      %v4994 = vunpack.c.h.b16 %v4905
      %v4995 = vunpack.c.l.b16 %v4906
      %v4996 = vunpack.c.h.b16 %v4906
      %v4997 = vpack.c.b16 %v4939, %v4937
      %v4998 = vpack.c.b16 %v4940, %v4938
      %v4999 = vpack.c.b16 %v4943, %v4941
      %v5000 = vpack.c.b16 %v4944, %v4942
      %v5001 = vpack.c.b16 %v4947, %v4945
      %v5002 = vpack.c.b16 %v4948, %v4946
      %v5003 = vpack.c.b16 %v4951, %v4949
      %v5004 = vpack.c.b16 %v4952, %v4950
      %v5005 = vpack.c.b16 %v4955, %v4953
      %v5006 = vpack.c.b16 %v4956, %v4954
      %v5007 = vpack.c.b16 %v4959, %v4957
      %v5008 = vpack.c.b16 %v4960, %v4958
      %v5009 = vpack.c.b16 %v4963, %v4961
      %v5010 = vpack.c.b16 %v4964, %v4962
      %v5011 = vpack.c.b16 %v4967, %v4965
      %v5012 = vpack.c.b16 %v4968, %v4966
      %v5013 = vpack.c.b16 %v4971, %v4969
      %v5014 = vpack.c.b16 %v4972, %v4970
      %v5015 = vpack.c.b16 %v4975, %v4973
      %v5016 = vpack.c.b16 %v4976, %v4974
      %v5017 = vpack.c.b16 %v4979, %v4977
      %v5018 = vpack.c.b16 %v4980, %v4978
      %v5019 = vpack.c.b16 %v4983, %v4981
      %v5020 = vpack.c.b16 %v4984, %v4982
      %v5021 = vpack.c.b16 %v4987, %v4985
      %v5022 = vpack.c.b16 %v4988, %v4986
      %v5023 = vpack.c.b16 %v4991, %v4989
      %v5024 = vpack.c.b16 %v4992, %v4990
      %v5025 = vpack.c.b16 %v4995, %v4993
      %v5026 = vpack.c.b16 %v4996, %v4994
      %v5058 = vsel %vm906, %v4861, 0
      %v5061 = vsel %vm906, %v4863, 0
      %v5064 = vsel %vm906, %v4865, 0
      %v5067 = vsel %vm906, %v4867, 0
      %v5070 = vsel %vm906, %v4869, 0
      %v5073 = vsel %vm906, %v4871, 0
      %v5076 = vsel %vm906, %v4873, 0
      %v5079 = vsel %vm906, %v4875, 0
      %5081 = vmatprep.subr.bf16.mxu0 %v4998
      %5082 = vmatpush1.bf16.msra.mxu0 %v4997
      %5083 = vmatprep.subr.bf16.mxu0 %v5000
      %5084 = vmatpush1.bf16.msra.mxu0 %v4999
      %5085 = vmatprep.subr.bf16.mxu0 %v5002
      %5086 = vmatpush1.bf16.msra.mxu0 %v5001
      %5087 = vmatprep.subr.bf16.mxu0 %v5004
      %5088 = vmatpush1.bf16.msra.mxu0 %v5003
      %5089 = vmatprep.subr.bf16.mxu0 %v5006
      %5090 = vmatpush1.bf16.msra.mxu0 %v5005
      %5091 = vmatprep.subr.bf16.mxu0 %v5008
      %5092 = vmatpush1.bf16.msra.mxu0 %v5007
      %5093 = vmatprep.subr.bf16.mxu0 %v5010
      %5094 = vmatpush1.bf16.msra.mxu0 %v5009
      %5095 = vmatprep.subr.bf16.mxu0 %v5012
      %5096 = vmatpush1.bf16.msra.mxu0 %v5011
      %5097 = vmatprep.subr.bf16.mxu0 %v5014
      %5098 = vmatpush1.bf16.msra.mxu0 %v5013
      %5099 = vmatprep.subr.bf16.mxu0 %v5016
      %5100 = vmatpush1.bf16.msra.mxu0 %v5015
      %5101 = vmatprep.subr.bf16.mxu0 %v5018
      %5102 = vmatpush1.bf16.msra.mxu0 %v5017
      %5103 = vmatprep.subr.bf16.mxu0 %v5020
      %5104 = vmatpush1.bf16.msra.mxu0 %v5019
      %5105 = vmatprep.subr.bf16.mxu0 %v5022
      %5106 = vmatpush1.bf16.msra.mxu0 %v5021
      %5107 = vmatprep.subr.bf16.mxu0 %v5024
      %5108 = vmatpush1.bf16.msra.mxu0 %v5023
      %5109 = vmatprep.subr.bf16.mxu0 %v5026
      %5110 = vmatpush1.bf16.msra.mxu0 %v5025
      %5111 = vmatprep.subr.bf16.mxu0 0
      %5112 = vmatpush1.bf16.msra.mxu0 0
      %5113 = vmatprep.mubr.bf16.mxu0 %v5058
      %5114 = vmatmul.mubr.bf16.gmra.mrb[0].mxu0 %v4860
      %v5115 = vpop.f32.mrb[0].mxu0
      %v5116 = vadd.f32 0.0, %v5115
      %v5117 = vpop.f32.mrb[0].mxu0
      %v5118 = vadd.f32 0.0, %v5117
      %v5119 = vpop.f32.mrb[0].mxu0
      %v5120 = vadd.f32 0.0, %v5119
      %v5121 = vpop.f32.mrb[0].mxu0
      %v5122 = vadd.f32 0.0, %v5121
      %5123 = vmatprep.mubr.bf16.mxu0 %v5061
      %5124 = vmatmul.mubr.bf16.gmra.mrb[0].mxu0 %v4862
      %v5125 = vpop.f32.mrb[0].mxu0
      %v5126 = vadd.f32 0.0, %v5125
      %v5127 = vpop.f32.mrb[0].mxu0
      %v5128 = vadd.f32 0.0, %v5127
      %v5129 = vpop.f32.mrb[0].mxu0
      %v5130 = vadd.f32 0.0, %v5129
      %v5131 = vpop.f32.mrb[0].mxu0
      %v5132 = vadd.f32 0.0, %v5131
      %5133 = vmatprep.mubr.bf16.mxu0 %v5064
      %5134 = vmatmul.mubr.bf16.gmra.mrb[0].mxu0 %v4864
      %v5135 = vpop.f32.mrb[0].mxu0
      %v5136 = vadd.f32 0.0, %v5135
      %v5137 = vpop.f32.mrb[0].mxu0
      %v5138 = vadd.f32 0.0, %v5137
      %v5139 = vpop.f32.mrb[0].mxu0
      %v5140 = vadd.f32 0.0, %v5139
      %v5141 = vpop.f32.mrb[0].mxu0
      %v5142 = vadd.f32 0.0, %v5141
      %5143 = vmatprep.mubr.bf16.mxu0 %v5067
      %5144 = vmatmul.mubr.bf16.gmra.mrb[0].mxu0 %v4866
      %v5145 = vpop.f32.mrb[0].mxu0
      %v5146 = vadd.f32 0.0, %v5145
      %v5147 = vpop.f32.mrb[0].mxu0
      %v5148 = vadd.f32 0.0, %v5147
      %v5149 = vpop.f32.mrb[0].mxu0
      %v5150 = vadd.f32 0.0, %v5149
      %v5151 = vpop.f32.mrb[0].mxu0
      %v5152 = vadd.f32 0.0, %v5151
      %5153 = vmatprep.mubr.bf16.mxu0 %v5070
      %5154 = vmatmul.mubr.bf16.gmra.mrb[0].mxu0 %v4868
      %v5155 = vpop.f32.mrb[0].mxu0
      %v5156 = vadd.f32 0.0, %v5155
      %v5157 = vpop.f32.mrb[0].mxu0
      %v5158 = vadd.f32 0.0, %v5157
      %v5159 = vpop.f32.mrb[0].mxu0
      %v5160 = vadd.f32 0.0, %v5159
      %v5161 = vpop.f32.mrb[0].mxu0
      %v5162 = vadd.f32 0.0, %v5161
      %5163 = vmatprep.mubr.bf16.mxu0 %v5073
      %5164 = vmatmul.mubr.bf16.gmra.mrb[0].mxu0 %v4870
      %v5165 = vpop.f32.mrb[0].mxu0
      %v5166 = vadd.f32 0.0, %v5165
      %v5167 = vpop.f32.mrb[0].mxu0
      %v5168 = vadd.f32 0.0, %v5167
      %v5169 = vpop.f32.mrb[0].mxu0
      %v5170 = vadd.f32 0.0, %v5169
      %v5171 = vpop.f32.mrb[0].mxu0
      %v5172 = vadd.f32 0.0, %v5171
      %5173 = vmatprep.mubr.bf16.mxu0 %v5076
      %5174 = vmatmul.mubr.bf16.gmra.mrb[0].mxu0 %v4872
      %v5175 = vpop.f32.mrb[0].mxu0
      %v5176 = vadd.f32 0.0, %v5175
      %v5177 = vpop.f32.mrb[0].mxu0
      %v5178 = vadd.f32 0.0, %v5177
      %v5179 = vpop.f32.mrb[0].mxu0
      %v5180 = vadd.f32 0.0, %v5179
      %v5181 = vpop.f32.mrb[0].mxu0
      %v5182 = vadd.f32 0.0, %v5181
      %5183 = vmatprep.mubr.bf16.mxu0 %v5079
      %5184 = vmatmul.mubr.bf16.gmra.mrb[0].mxu0 %v4874
      %v5185 = vpop.f32.mrb[0].mxu0
      %v5186 = vadd.f32 0.0, %v5185
      %v5187 = vpop.f32.mrb[0].mxu0
      %v5188 = vadd.f32 0.0, %v5187
      %v5189 = vpop.f32.mrb[0].mxu0
      %v5190 = vadd.f32 0.0, %v5189
      %v5191 = vpop.f32.mrb[0].mxu0
      %v5192 = vadd.f32 0.0, %v5191
      %5193 = vdwg.mxu0
      %s5194 = scalar_lea.vmem %s6, 720
      %v5195 = vld [vmem:[%s5194] sm:$0xff]
      %v5196 = vld [vmem:[%s5194 + $0x8] sm:$0xff]
      %v5197 = vld [vmem:[%s5194 + $0x10] sm:$0xff]
      %v5198 = vld [vmem:[%s5194 + $0x18] sm:$0xff]
      %v5199 = vld [vmem:[%s5194 + $0x20] sm:$0xff]
      %v5200 = vld [vmem:[%s5194 + $0x28] sm:$0xff]
      %v5201 = vld [vmem:[%s5194 + $0x30] sm:$0xff]
      %v5202 = vld [vmem:[%s5194 + $0x38] sm:$0xff]
      %v5203 = vld [vmem:[%s5194 + $0x40] sm:$0xff]
      %v5204 = vld [vmem:[%s5194 + $0x48] sm:$0xff]
      %v5205 = vld [vmem:[%s5194 + $0x50] sm:$0xff]
      %v5206 = vld [vmem:[%s5194 + $0x58] sm:$0xff]
      %v5207 = vld [vmem:[%s5194 + $0x60] sm:$0xff]
      %v5208 = vld [vmem:[%s5194 + $0x68] sm:$0xff]
      %v5209 = vld [vmem:[%s5194 + $0x70] sm:$0xff]
      %v5210 = vld [vmem:[%s5194 + $0x78] sm:$0xff]
      %v5211 = vld [vmem:[%s5194 + $0x80] sm:$0xff]
      %v5212 = vld [vmem:[%s5194 + $0x88] sm:$0xff]
      %v5213 = vld [vmem:[%s5194 + $0x90] sm:$0xff]
      %v5214 = vld [vmem:[%s5194 + $0x98] sm:$0xff]
      %v5215 = vld [vmem:[%s5194 + $0xa0] sm:$0xff]
      %v5216 = vld [vmem:[%s5194 + $0xa8] sm:$0xff]
      %v5217 = vld [vmem:[%s5194 + $0xb0] sm:$0xff]
      %v5218 = vld [vmem:[%s5194 + $0xb8] sm:$0xff]
      %v5219 = vld [vmem:[%s5194 + $0xc0] sm:$0xff]
      %v5220 = vld [vmem:[%s5194 + $0xc8] sm:$0xff]
      %v5221 = vld [vmem:[%s5194 + $0xd0] sm:$0xff]
      %v5222 = vld [vmem:[%s5194 + $0xd8] sm:$0xff]
      %v5223 = vld [vmem:[%s5194 + $0xe0] sm:$0xff]
      %v5224 = vld [vmem:[%s5194 + $0xe8] sm:$0xff]
      %v5255 = vunpack.c.l.b16 %v5195
      %v5256 = vunpack.c.h.b16 %v5195
      %v5257 = vunpack.c.l.b16 %v5196
      %v5258 = vunpack.c.h.b16 %v5196
      %v5259 = vunpack.c.l.b16 %v5197
      %v5260 = vunpack.c.h.b16 %v5197
      %v5261 = vunpack.c.l.b16 %v5198
      %v5262 = vunpack.c.h.b16 %v5198
      %v5263 = vunpack.c.l.b16 %v5199
      %v5264 = vunpack.c.h.b16 %v5199
      %v5265 = vunpack.c.l.b16 %v5200
      %v5266 = vunpack.c.h.b16 %v5200
      %v5267 = vunpack.c.l.b16 %v5201
      %v5268 = vunpack.c.h.b16 %v5201
      %v5269 = vunpack.c.l.b16 %v5202
      %v5270 = vunpack.c.h.b16 %v5202
      %v5271 = vunpack.c.l.b16 %v5203
      %v5272 = vunpack.c.h.b16 %v5203
      %v5273 = vunpack.c.l.b16 %v5204
      %v5274 = vunpack.c.h.b16 %v5204
      %v5275 = vunpack.c.l.b16 %v5205
      %v5276 = vunpack.c.h.b16 %v5205
      %v5277 = vunpack.c.l.b16 %v5206
      %v5278 = vunpack.c.h.b16 %v5206
      %v5279 = vunpack.c.l.b16 %v5207
      %v5280 = vunpack.c.h.b16 %v5207
      %v5281 = vunpack.c.l.b16 %v5208
      %v5282 = vunpack.c.h.b16 %v5208
      %v5283 = vunpack.c.l.b16 %v5209
      %v5284 = vunpack.c.h.b16 %v5209
      %v5285 = vunpack.c.l.b16 %v5210
      %v5286 = vunpack.c.h.b16 %v5210
      %v5287 = vunpack.c.l.b16 %v5211
      %v5288 = vunpack.c.h.b16 %v5211
      %v5289 = vunpack.c.l.b16 %v5212
      %v5290 = vunpack.c.h.b16 %v5212
      %v5291 = vunpack.c.l.b16 %v5213
      %v5292 = vunpack.c.h.b16 %v5213
      %v5293 = vunpack.c.l.b16 %v5214
      %v5294 = vunpack.c.h.b16 %v5214
      %v5295 = vunpack.c.l.b16 %v5215
      %v5296 = vunpack.c.h.b16 %v5215
      %v5297 = vunpack.c.l.b16 %v5216
      %v5298 = vunpack.c.h.b16 %v5216
      %v5299 = vunpack.c.l.b16 %v5217
      %v5300 = vunpack.c.h.b16 %v5217
      %v5301 = vunpack.c.l.b16 %v5218
      %v5302 = vunpack.c.h.b16 %v5218
      %v5303 = vunpack.c.l.b16 %v5219
      %v5304 = vunpack.c.h.b16 %v5219
      %v5305 = vunpack.c.l.b16 %v5220
      %v5306 = vunpack.c.h.b16 %v5220
      %v5307 = vunpack.c.l.b16 %v5221
      %v5308 = vunpack.c.h.b16 %v5221
      %v5309 = vunpack.c.l.b16 %v5222
      %v5310 = vunpack.c.h.b16 %v5222
      %v5311 = vunpack.c.l.b16 %v5223
      %v5312 = vunpack.c.h.b16 %v5223
      %v5313 = vunpack.c.l.b16 %v5224
      %v5314 = vunpack.c.h.b16 %v5224
      %v5315 = vpack.c.b16 %v5257, %v5255
      %v5316 = vpack.c.b16 %v5258, %v5256
      %v5317 = vpack.c.b16 %v5261, %v5259
      %v5318 = vpack.c.b16 %v5262, %v5260
      %v5319 = vpack.c.b16 %v5265, %v5263
      %v5320 = vpack.c.b16 %v5266, %v5264
      %v5321 = vpack.c.b16 %v5269, %v5267
      %v5322 = vpack.c.b16 %v5270, %v5268
      %v5323 = vpack.c.b16 %v5273, %v5271
      %v5324 = vpack.c.b16 %v5274, %v5272
      %v5325 = vpack.c.b16 %v5277, %v5275
      %v5326 = vpack.c.b16 %v5278, %v5276
      %v5327 = vpack.c.b16 %v5281, %v5279
      %v5328 = vpack.c.b16 %v5282, %v5280
      %v5329 = vpack.c.b16 %v5285, %v5283
      %v5330 = vpack.c.b16 %v5286, %v5284
      %v5331 = vpack.c.b16 %v5289, %v5287
      %v5332 = vpack.c.b16 %v5290, %v5288
      %v5333 = vpack.c.b16 %v5293, %v5291
      %v5334 = vpack.c.b16 %v5294, %v5292
      %v5335 = vpack.c.b16 %v5297, %v5295
      %v5336 = vpack.c.b16 %v5298, %v5296
      %v5337 = vpack.c.b16 %v5301, %v5299
      %v5338 = vpack.c.b16 %v5302, %v5300
      %v5339 = vpack.c.b16 %v5305, %v5303
      %v5340 = vpack.c.b16 %v5306, %v5304
      %v5341 = vpack.c.b16 %v5309, %v5307
      %v5342 = vpack.c.b16 %v5310, %v5308
      %v5343 = vpack.c.b16 %v5313, %v5311
      %v5344 = vpack.c.b16 %v5314, %v5312
      %5375 = vmatprep.subr.bf16.mxu0 %v5316
      %5376 = vmatpush1.bf16.msra.mxu0 %v5315
      %5377 = vmatprep.subr.bf16.mxu0 %v5318
      %5378 = vmatpush1.bf16.msra.mxu0 %v5317
      %5379 = vmatprep.subr.bf16.mxu0 %v5320
      %5380 = vmatpush1.bf16.msra.mxu0 %v5319
      %5381 = vmatprep.subr.bf16.mxu0 %v5322
      %5382 = vmatpush1.bf16.msra.mxu0 %v5321
      %5383 = vmatprep.subr.bf16.mxu0 %v5324
      %5384 = vmatpush1.bf16.msra.mxu0 %v5323
      %5385 = vmatprep.subr.bf16.mxu0 %v5326
      %5386 = vmatpush1.bf16.msra.mxu0 %v5325
      %5387 = vmatprep.subr.bf16.mxu0 %v5328
      %5388 = vmatpush1.bf16.msra.mxu0 %v5327
      %5389 = vmatprep.subr.bf16.mxu0 %v5330
      %5390 = vmatpush1.bf16.msra.mxu0 %v5329
      %5391 = vmatprep.subr.bf16.mxu0 %v5332
      %5392 = vmatpush1.bf16.msra.mxu0 %v5331
      %5393 = vmatprep.subr.bf16.mxu0 %v5334
      %5394 = vmatpush1.bf16.msra.mxu0 %v5333
      %5395 = vmatprep.subr.bf16.mxu0 %v5336
      %5396 = vmatpush1.bf16.msra.mxu0 %v5335
      %5397 = vmatprep.subr.bf16.mxu0 %v5338
      %5398 = vmatpush1.bf16.msra.mxu0 %v5337
      %5399 = vmatprep.subr.bf16.mxu0 %v5340
      %5400 = vmatpush1.bf16.msra.mxu0 %v5339
      %5401 = vmatprep.subr.bf16.mxu0 %v5342
      %5402 = vmatpush1.bf16.msra.mxu0 %v5341
      %5403 = vmatprep.subr.bf16.mxu0 %v5344
      %5404 = vmatpush1.bf16.msra.mxu0 %v5343
      %5405 = vmatprep.subr.bf16.mxu0 0
      %5406 = vmatpush1.bf16.msra.mxu0 0
      %5407 = vmatprep.mubr.bf16.mxu0 %v5058
      %5408 = vmatmul.mubr.bf16.gmra.mrb[0].mxu0 %v4860
      %v5409 = vpop.f32.mrb[0].mxu0
      %v5410 = vadd.f32 0.0, %v5409
      %v5411 = vpop.f32.mrb[0].mxu0
      %v5412 = vadd.f32 0.0, %v5411
      %v5413 = vpop.f32.mrb[0].mxu0
      %v5414 = vadd.f32 0.0, %v5413
      %v5415 = vpop.f32.mrb[0].mxu0
      %v5416 = vadd.f32 0.0, %v5415
      %5417 = vmatprep.mubr.bf16.mxu0 %v5061
      %5418 = vmatmul.mubr.bf16.gmra.mrb[0].mxu0 %v4862
      %v5419 = vpop.f32.mrb[0].mxu0
      %v5420 = vadd.f32 0.0, %v5419
      %v5421 = vpop.f32.mrb[0].mxu0
      %v5422 = vadd.f32 0.0, %v5421
      %v5423 = vpop.f32.mrb[0].mxu0
      %v5424 = vadd.f32 0.0, %v5423
      %v5425 = vpop.f32.mrb[0].mxu0
      %v5426 = vadd.f32 0.0, %v5425
      %5427 = vmatprep.mubr.bf16.mxu0 %v5064
      %5428 = vmatmul.mubr.bf16.gmra.mrb[0].mxu0 %v4864
      %v5429 = vpop.f32.mrb[0].mxu0
      %v5430 = vadd.f32 0.0, %v5429
      %v5431 = vpop.f32.mrb[0].mxu0
      %v5432 = vadd.f32 0.0, %v5431
      %v5433 = vpop.f32.mrb[0].mxu0
      %v5434 = vadd.f32 0.0, %v5433
      %v5435 = vpop.f32.mrb[0].mxu0
      %v5436 = vadd.f32 0.0, %v5435
      %5437 = vmatprep.mubr.bf16.mxu0 %v5067
      %5438 = vmatmul.mubr.bf16.gmra.mrb[0].mxu0 %v4866
      %v5439 = vpop.f32.mrb[0].mxu0
      %v5440 = vadd.f32 0.0, %v5439
      %v5441 = vpop.f32.mrb[0].mxu0
      %v5442 = vadd.f32 0.0, %v5441
      %v5443 = vpop.f32.mrb[0].mxu0
      %v5444 = vadd.f32 0.0, %v5443
      %v5445 = vpop.f32.mrb[0].mxu0
      %v5446 = vadd.f32 0.0, %v5445
      %5447 = vmatprep.mubr.bf16.mxu0 %v5070
      %5448 = vmatmul.mubr.bf16.gmra.mrb[0].mxu0 %v4868
      %v5449 = vpop.f32.mrb[0].mxu0
      %v5450 = vadd.f32 0.0, %v5449
      %v5451 = vpop.f32.mrb[0].mxu0
      %v5452 = vadd.f32 0.0, %v5451
      %v5453 = vpop.f32.mrb[0].mxu0
      %v5454 = vadd.f32 0.0, %v5453
      %v5455 = vpop.f32.mrb[0].mxu0
      %v5456 = vadd.f32 0.0, %v5455
      %5457 = vmatprep.mubr.bf16.mxu0 %v5073
      %5458 = vmatmul.mubr.bf16.gmra.mrb[0].mxu0 %v4870
      %v5459 = vpop.f32.mrb[0].mxu0
      %v5460 = vadd.f32 0.0, %v5459
      %v5461 = vpop.f32.mrb[0].mxu0
      %v5462 = vadd.f32 0.0, %v5461
      %v5463 = vpop.f32.mrb[0].mxu0
      %v5464 = vadd.f32 0.0, %v5463
      %v5465 = vpop.f32.mrb[0].mxu0
      %v5466 = vadd.f32 0.0, %v5465
      %5467 = vmatprep.mubr.bf16.mxu0 %v5076
      %5468 = vmatmul.mubr.bf16.gmra.mrb[0].mxu0 %v4872
      %v5469 = vpop.f32.mrb[0].mxu0
      %v5470 = vadd.f32 0.0, %v5469
      %v5471 = vpop.f32.mrb[0].mxu0
      %v5472 = vadd.f32 0.0, %v5471
      %v5473 = vpop.f32.mrb[0].mxu0
      %v5474 = vadd.f32 0.0, %v5473
      %v5475 = vpop.f32.mrb[0].mxu0
      %v5476 = vadd.f32 0.0, %v5475
      %5477 = vmatprep.mubr.bf16.mxu0 %v5079
      %5478 = vmatmul.mubr.bf16.gmra.mrb[0].mxu0 %v4874
      %v5479 = vpop.f32.mrb[0].mxu0
      %v5480 = vadd.f32 0.0, %v5479
      %v5481 = vpop.f32.mrb[0].mxu0
      %v5482 = vadd.f32 0.0, %v5481
      %v5483 = vpop.f32.mrb[0].mxu0
      %v5484 = vadd.f32 0.0, %v5483
      %v5485 = vpop.f32.mrb[0].mxu0
      %v5486 = vadd.f32 0.0, %v5485
      %5487 = vdwg.mxu0
      %v5488 = vld [vmem:[#allocation4] sm:$0xff]
      %v5489 = vld [vmem:[#allocation4 + $0x8] sm:$0xff]
      %v5490 = vld [vmem:[#allocation4 + $0x10] sm:$0xff]
      %v5491 = vld [vmem:[#allocation4 + $0x18] sm:$0xff]
      %v5492 = vld [vmem:[#allocation4 + $0x20] sm:$0xff]
      %v5493 = vld [vmem:[#allocation4 + $0x28] sm:$0xff]
      %v5494 = vld [vmem:[#allocation4 + $0x30] sm:$0xff]
      %v5495 = vld [vmem:[#allocation4 + $0x38] sm:$0xff]
      %v5496 = vld [vmem:[#allocation4 + $0x40] sm:$0xff]
      %v5497 = vld [vmem:[#allocation4 + $0x48] sm:$0xff]
      %v5498 = vld [vmem:[#allocation4 + $0x50] sm:$0xff]
      %v5499 = vld [vmem:[#allocation4 + $0x58] sm:$0xff]
      %v5500 = vld [vmem:[#allocation4 + $0x60] sm:$0xff]
      %v5501 = vld [vmem:[#allocation4 + $0x68] sm:$0xff]
      %v5502 = vld [vmem:[#allocation4 + $0x70] sm:$0xff]
      %v5503 = vld [vmem:[#allocation4 + $0x78] sm:$0xff]
      %v5504 = vld [vmem:[#allocation4 + $0x80] sm:$0xff]
      %v5505 = vld [vmem:[#allocation4 + $0x88] sm:$0xff]
      %v5506 = vld [vmem:[#allocation4 + $0x90] sm:$0xff]
      %v5507 = vld [vmem:[#allocation4 + $0x98] sm:$0xff]
      %v5508 = vld [vmem:[#allocation4 + $0xa0] sm:$0xff]
      %v5509 = vld [vmem:[#allocation4 + $0xa8] sm:$0xff]
      %v5510 = vld [vmem:[#allocation4 + $0xb0] sm:$0xff]
      %v5511 = vld [vmem:[#allocation4 + $0xb8] sm:$0xff]
      %v5512 = vld [vmem:[#allocation4 + $0xc0] sm:$0xff]
      %v5513 = vld [vmem:[#allocation4 + $0xc8] sm:$0xff]
      %v5514 = vld [vmem:[#allocation4 + $0xd0] sm:$0xff]
      %v5515 = vld [vmem:[#allocation4 + $0xd8] sm:$0xff]
      %v5516 = vld [vmem:[#allocation4 + $0xe0] sm:$0xff]
      %v5517 = vld [vmem:[#allocation4 + $0xe8] sm:$0xff]
      %v5518 = vld [vmem:[#allocation4 + $0xf0] sm:$0xff]
      %v5519 = vld [vmem:[#allocation4 + $0xf8] sm:$0xff]
      %v5520 = vadd.f32 %v5488, %v5116
      %v5521 = vadd.f32 %v5489, %v5118
      %v5522 = vadd.f32 %v5490, %v5120
      %v5523 = vadd.f32 %v5491, %v5122
      %v5524 = vadd.f32 %v5492, %v5126
      %v5525 = vadd.f32 %v5493, %v5128
      %v5526 = vadd.f32 %v5494, %v5130
      %v5527 = vadd.f32 %v5495, %v5132
      %v5528 = vadd.f32 %v5496, %v5136
      %v5529 = vadd.f32 %v5497, %v5138
      %v5530 = vadd.f32 %v5498, %v5140
      %v5531 = vadd.f32 %v5499, %v5142
      %v5532 = vadd.f32 %v5500, %v5146
      %v5533 = vadd.f32 %v5501, %v5148
      %v5534 = vadd.f32 %v5502, %v5150
      %v5535 = vadd.f32 %v5503, %v5152
      %v5536 = vadd.f32 %v5504, %v5156
      %v5537 = vadd.f32 %v5505, %v5158
      %v5538 = vadd.f32 %v5506, %v5160
      %v5539 = vadd.f32 %v5507, %v5162
      %v5540 = vadd.f32 %v5508, %v5166
      %v5541 = vadd.f32 %v5509, %v5168
      %v5542 = vadd.f32 %v5510, %v5170
      %v5543 = vadd.f32 %v5511, %v5172
      %v5544 = vadd.f32 %v5512, %v5176
      %v5545 = vadd.f32 %v5513, %v5178
      %v5546 = vadd.f32 %v5514, %v5180
      %v5547 = vadd.f32 %v5515, %v5182
      %v5548 = vadd.f32 %v5516, %v5186
      %v5549 = vadd.f32 %v5517, %v5188
      %v5550 = vadd.f32 %v5518, %v5190
      %v5551 = vadd.f32 %v5519, %v5192
      %5552 = vst [vmem:[#allocation4] sm:$0xff] %v5520
      %5553 = vst.msk [vmem:[#allocation4 + $0x8] sm:$0xff] %vm3156, %v5521
      %5554 = vst [vmem:[#allocation4 + $0x10] sm:$0xff] %v5522
      %5555 = vst.msk [vmem:[#allocation4 + $0x18] sm:$0xff] %vm3156, %v5523
      %5556 = vst [vmem:[#allocation4 + $0x20] sm:$0xff] %v5524
      %5557 = vst.msk [vmem:[#allocation4 + $0x28] sm:$0xff] %vm3156, %v5525
      %5558 = vst [vmem:[#allocation4 + $0x30] sm:$0xff] %v5526
      %5559 = vst.msk [vmem:[#allocation4 + $0x38] sm:$0xff] %vm3156, %v5527
      %5560 = vst [vmem:[#allocation4 + $0x40] sm:$0xff] %v5528
      %5561 = vst.msk [vmem:[#allocation4 + $0x48] sm:$0xff] %vm3156, %v5529
      %5562 = vst [vmem:[#allocation4 + $0x50] sm:$0xff] %v5530
      %5563 = vst.msk [vmem:[#allocation4 + $0x58] sm:$0xff] %vm3156, %v5531
      %5564 = vst [vmem:[#allocation4 + $0x60] sm:$0xff] %v5532
      %5565 = vst.msk [vmem:[#allocation4 + $0x68] sm:$0xff] %vm3156, %v5533
      %5566 = vst [vmem:[#allocation4 + $0x70] sm:$0xff] %v5534
      %5567 = vst.msk [vmem:[#allocation4 + $0x78] sm:$0xff] %vm3156, %v5535
      %5568 = vst [vmem:[#allocation4 + $0x80] sm:$0xff] %v5536
      %5569 = vst.msk [vmem:[#allocation4 + $0x88] sm:$0xff] %vm3156, %v5537
      %5570 = vst [vmem:[#allocation4 + $0x90] sm:$0xff] %v5538
      %5571 = vst.msk [vmem:[#allocation4 + $0x98] sm:$0xff] %vm3156, %v5539
      %5572 = vst [vmem:[#allocation4 + $0xa0] sm:$0xff] %v5540
      %5573 = vst.msk [vmem:[#allocation4 + $0xa8] sm:$0xff] %vm3156, %v5541
      %5574 = vst [vmem:[#allocation4 + $0xb0] sm:$0xff] %v5542
      %5575 = vst.msk [vmem:[#allocation4 + $0xb8] sm:$0xff] %vm3156, %v5543
      %5576 = vst [vmem:[#allocation4 + $0xc0] sm:$0xff] %v5544
      %5577 = vst.msk [vmem:[#allocation4 + $0xc8] sm:$0xff] %vm3156, %v5545
      %5578 = vst [vmem:[#allocation4 + $0xd0] sm:$0xff] %v5546
      %5579 = vst.msk [vmem:[#allocation4 + $0xd8] sm:$0xff] %vm3156, %v5547
      %5580 = vst [vmem:[#allocation4 + $0xe0] sm:$0xff] %v5548
      %5581 = vst.msk [vmem:[#allocation4 + $0xe8] sm:$0xff] %vm3156, %v5549
      %5582 = vst [vmem:[#allocation4 + $0xf0] sm:$0xff] %v5550
      %5583 = vst.msk [vmem:[#allocation4 + $0xf8] sm:$0xff] %vm3156, %v5551
      %v5584 = vld [vmem:[#allocation5] sm:$0xff]
      %v5585 = vld [vmem:[#allocation5 + $0x8] sm:$0xff]
      %v5586 = vld [vmem:[#allocation5 + $0x10] sm:$0xff]
      %v5587 = vld [vmem:[#allocation5 + $0x18] sm:$0xff]
      %v5588 = vld [vmem:[#allocation5 + $0x20] sm:$0xff]
      %v5589 = vld [vmem:[#allocation5 + $0x28] sm:$0xff]
      %v5590 = vld [vmem:[#allocation5 + $0x30] sm:$0xff]
      %v5591 = vld [vmem:[#allocation5 + $0x38] sm:$0xff]
      %v5592 = vld [vmem:[#allocation5 + $0x40] sm:$0xff]
      %v5593 = vld [vmem:[#allocation5 + $0x48] sm:$0xff]
      %v5594 = vld [vmem:[#allocation5 + $0x50] sm:$0xff]
      %v5595 = vld [vmem:[#allocation5 + $0x58] sm:$0xff]
      %v5596 = vld [vmem:[#allocation5 + $0x60] sm:$0xff]
      %v5597 = vld [vmem:[#allocation5 + $0x68] sm:$0xff]
      %v5598 = vld [vmem:[#allocation5 + $0x70] sm:$0xff]
      %v5599 = vld [vmem:[#allocation5 + $0x78] sm:$0xff]
      %v5600 = vld [vmem:[#allocation5 + $0x80] sm:$0xff]
      %v5601 = vld [vmem:[#allocation5 + $0x88] sm:$0xff]
      %v5602 = vld [vmem:[#allocation5 + $0x90] sm:$0xff]
      %v5603 = vld [vmem:[#allocation5 + $0x98] sm:$0xff]
      %v5604 = vld [vmem:[#allocation5 + $0xa0] sm:$0xff]
      %v5605 = vld [vmem:[#allocation5 + $0xa8] sm:$0xff]
      %v5606 = vld [vmem:[#allocation5 + $0xb0] sm:$0xff]
      %v5607 = vld [vmem:[#allocation5 + $0xb8] sm:$0xff]
      %v5608 = vld [vmem:[#allocation5 + $0xc0] sm:$0xff]
      %v5609 = vld [vmem:[#allocation5 + $0xc8] sm:$0xff]
      %v5610 = vld [vmem:[#allocation5 + $0xd0] sm:$0xff]
      %v5611 = vld [vmem:[#allocation5 + $0xd8] sm:$0xff]
      %v5612 = vld [vmem:[#allocation5 + $0xe0] sm:$0xff]
      %v5613 = vld [vmem:[#allocation5 + $0xe8] sm:$0xff]
      %v5614 = vld [vmem:[#allocation5 + $0xf0] sm:$0xff]
      %v5615 = vld [vmem:[#allocation5 + $0xf8] sm:$0xff]
      %v5616 = vadd.f32 %v5584, %v5410
      %v5617 = vadd.f32 %v5585, %v5412
      %v5618 = vadd.f32 %v5586, %v5414
      %v5619 = vadd.f32 %v5587, %v5416
      %v5620 = vadd.f32 %v5588, %v5420
      %v5621 = vadd.f32 %v5589, %v5422
      %v5622 = vadd.f32 %v5590, %v5424
      %v5623 = vadd.f32 %v5591, %v5426
      %v5624 = vadd.f32 %v5592, %v5430
      %v5625 = vadd.f32 %v5593, %v5432
      %v5626 = vadd.f32 %v5594, %v5434
      %v5627 = vadd.f32 %v5595, %v5436
      %v5628 = vadd.f32 %v5596, %v5440
      %v5629 = vadd.f32 %v5597, %v5442
      %v5630 = vadd.f32 %v5598, %v5444
      %v5631 = vadd.f32 %v5599, %v5446
      %v5632 = vadd.f32 %v5600, %v5450
      %v5633 = vadd.f32 %v5601, %v5452
      %v5634 = vadd.f32 %v5602, %v5454
      %v5635 = vadd.f32 %v5603, %v5456
      %v5636 = vadd.f32 %v5604, %v5460
      %v5637 = vadd.f32 %v5605, %v5462
      %v5638 = vadd.f32 %v5606, %v5464
      %v5639 = vadd.f32 %v5607, %v5466
      %v5640 = vadd.f32 %v5608, %v5470
      %v5641 = vadd.f32 %v5609, %v5472
      %v5642 = vadd.f32 %v5610, %v5474
      %v5643 = vadd.f32 %v5611, %v5476
      %v5644 = vadd.f32 %v5612, %v5480
      %v5645 = vadd.f32 %v5613, %v5482
      %v5646 = vadd.f32 %v5614, %v5484
      %v5647 = vadd.f32 %v5615, %v5486
      %5648 = vst [vmem:[#allocation5] sm:$0xff] %v5616
      %5649 = vst.msk [vmem:[#allocation5 + $0x8] sm:$0xff] %vm3156, %v5617
      %5650 = vst [vmem:[#allocation5 + $0x10] sm:$0xff] %v5618
      %5651 = vst.msk [vmem:[#allocation5 + $0x18] sm:$0xff] %vm3156, %v5619
      %5652 = vst [vmem:[#allocation5 + $0x20] sm:$0xff] %v5620
      %5653 = vst.msk [vmem:[#allocation5 + $0x28] sm:$0xff] %vm3156, %v5621
      %5654 = vst [vmem:[#allocation5 + $0x30] sm:$0xff] %v5622
      %5655 = vst.msk [vmem:[#allocation5 + $0x38] sm:$0xff] %vm3156, %v5623
      %5656 = vst [vmem:[#allocation5 + $0x40] sm:$0xff] %v5624
      %5657 = vst.msk [vmem:[#allocation5 + $0x48] sm:$0xff] %vm3156, %v5625
      %5658 = vst [vmem:[#allocation5 + $0x50] sm:$0xff] %v5626
      %5659 = vst.msk [vmem:[#allocation5 + $0x58] sm:$0xff] %vm3156, %v5627
      %5660 = vst [vmem:[#allocation5 + $0x60] sm:$0xff] %v5628
      %5661 = vst.msk [vmem:[#allocation5 + $0x68] sm:$0xff] %vm3156, %v5629
      %5662 = vst [vmem:[#allocation5 + $0x70] sm:$0xff] %v5630
      %5663 = vst.msk [vmem:[#allocation5 + $0x78] sm:$0xff] %vm3156, %v5631
      %5664 = vst [vmem:[#allocation5 + $0x80] sm:$0xff] %v5632
      %5665 = vst.msk [vmem:[#allocation5 + $0x88] sm:$0xff] %vm3156, %v5633
      %5666 = vst [vmem:[#allocation5 + $0x90] sm:$0xff] %v5634
      %5667 = vst.msk [vmem:[#allocation5 + $0x98] sm:$0xff] %vm3156, %v5635
      %5668 = vst [vmem:[#allocation5 + $0xa0] sm:$0xff] %v5636
      %5669 = vst.msk [vmem:[#allocation5 + $0xa8] sm:$0xff] %vm3156, %v5637
      %5670 = vst [vmem:[#allocation5 + $0xb0] sm:$0xff] %v5638
      %5671 = vst.msk [vmem:[#allocation5 + $0xb8] sm:$0xff] %vm3156, %v5639
      %5672 = vst [vmem:[#allocation5 + $0xc0] sm:$0xff] %v5640
      %5673 = vst.msk [vmem:[#allocation5 + $0xc8] sm:$0xff] %vm3156, %v5641
      %5674 = vst [vmem:[#allocation5 + $0xd0] sm:$0xff] %v5642
      %5675 = vst.msk [vmem:[#allocation5 + $0xd8] sm:$0xff] %vm3156, %v5643
      %5676 = vst [vmem:[#allocation5 + $0xe0] sm:$0xff] %v5644
      %5677 = vst.msk [vmem:[#allocation5 + $0xe8] sm:$0xff] %vm3156, %v5645
      %5678 = vst [vmem:[#allocation5 + $0xf0] sm:$0xff] %v5646
      %5679 = vst.msk [vmem:[#allocation5 + $0xf8] sm:$0xff] %vm3156, %v5647
      %v5680 = vld [vmem:[#allocation3 + $0x40] sm:$0xff]
      %v5681 = vld [vmem:[#allocation3 + $0x48] sm:$0xff]
      %v5682 = vld [vmem:[#allocation3 + $0x50] sm:$0xff]
      %v5683 = vld [vmem:[#allocation3 + $0x58] sm:$0xff]
      %v5684 = vld [vmem:[#allocation3 + $0x60] sm:$0xff]
      %v5685 = vld [vmem:[#allocation3 + $0x68] sm:$0xff]
      %v5686 = vld [vmem:[#allocation3 + $0x70] sm:$0xff]
      %v5687 = vld [vmem:[#allocation3 + $0x78] sm:$0xff]
      %v5688 = vld [vmem:[#allocation3 + $0x80] sm:$0xff]
      %v5689 = vld [vmem:[#allocation3 + $0x88] sm:$0xff]
      %v5690 = vld [vmem:[#allocation3 + $0x90] sm:$0xff]
      %v5691 = vld [vmem:[#allocation3 + $0x98] sm:$0xff]
      %v5692 = vld [vmem:[#allocation3 + $0xa0] sm:$0xff]
      %v5693 = vld [vmem:[#allocation3 + $0xa8] sm:$0xff]
      %v5694 = vld [vmem:[#allocation3 + $0xb0] sm:$0xff]
      %v5695 = vld [vmem:[#allocation3 + $0xb8] sm:$0xff]
      %s5696 = scalar_lea.vmem %s5, 960
      %v5697 = vld [vmem:[%s5696] sm:$0xff]
      %v5698 = vld [vmem:[%s5696 + $0x8] sm:$0xff]
      %v5699 = vld [vmem:[%s5696 + $0x10] sm:$0xff]
      %v5700 = vld [vmem:[%s5696 + $0x18] sm:$0xff]
      %v5701 = vld [vmem:[%s5696 + $0x20] sm:$0xff]
      %v5702 = vld [vmem:[%s5696 + $0x28] sm:$0xff]
      %v5703 = vld [vmem:[%s5696 + $0x30] sm:$0xff]
      %v5704 = vld [vmem:[%s5696 + $0x38] sm:$0xff]
      %v5705 = vld [vmem:[%s5696 + $0x40] sm:$0xff]
      %v5706 = vld [vmem:[%s5696 + $0x48] sm:$0xff]
      %v5707 = vld [vmem:[%s5696 + $0x50] sm:$0xff]
      %v5708 = vld [vmem:[%s5696 + $0x58] sm:$0xff]
      %v5709 = vld [vmem:[%s5696 + $0x60] sm:$0xff]
      %v5710 = vld [vmem:[%s5696 + $0x68] sm:$0xff]
      %v5711 = vld [vmem:[%s5696 + $0x70] sm:$0xff]
      %v5712 = vld [vmem:[%s5696 + $0x78] sm:$0xff]
      %v5713 = vld [vmem:[%s5696 + $0x80] sm:$0xff]
      %v5714 = vld [vmem:[%s5696 + $0x88] sm:$0xff]
      %v5715 = vld [vmem:[%s5696 + $0x90] sm:$0xff]
      %v5716 = vld [vmem:[%s5696 + $0x98] sm:$0xff]
      %v5717 = vld [vmem:[%s5696 + $0xa0] sm:$0xff]
      %v5718 = vld [vmem:[%s5696 + $0xa8] sm:$0xff]
      %v5719 = vld [vmem:[%s5696 + $0xb0] sm:$0xff]
      %v5720 = vld [vmem:[%s5696 + $0xb8] sm:$0xff]
      %v5721 = vld [vmem:[%s5696 + $0xc0] sm:$0xff]
      %v5722 = vld [vmem:[%s5696 + $0xc8] sm:$0xff]
      %v5723 = vld [vmem:[%s5696 + $0xd0] sm:$0xff]
      %v5724 = vld [vmem:[%s5696 + $0xd8] sm:$0xff]
      %v5725 = vld [vmem:[%s5696 + $0xe0] sm:$0xff]
      %v5726 = vld [vmem:[%s5696 + $0xe8] sm:$0xff]
      %v5757 = vunpack.c.l.b16 %v5697
      %v5758 = vunpack.c.h.b16 %v5697
      %v5759 = vunpack.c.l.b16 %v5698
      %v5760 = vunpack.c.h.b16 %v5698
      %v5761 = vunpack.c.l.b16 %v5699
      %v5762 = vunpack.c.h.b16 %v5699
      %v5763 = vunpack.c.l.b16 %v5700
      %v5764 = vunpack.c.h.b16 %v5700
      %v5765 = vunpack.c.l.b16 %v5701
      %v5766 = vunpack.c.h.b16 %v5701
      %v5767 = vunpack.c.l.b16 %v5702
      %v5768 = vunpack.c.h.b16 %v5702
      %v5769 = vunpack.c.l.b16 %v5703
      %v5770 = vunpack.c.h.b16 %v5703
      %v5771 = vunpack.c.l.b16 %v5704
      %v5772 = vunpack.c.h.b16 %v5704
      %v5773 = vunpack.c.l.b16 %v5705
      %v5774 = vunpack.c.h.b16 %v5705
      %v5775 = vunpack.c.l.b16 %v5706
      %v5776 = vunpack.c.h.b16 %v5706
      %v5777 = vunpack.c.l.b16 %v5707
      %v5778 = vunpack.c.h.b16 %v5707
      %v5779 = vunpack.c.l.b16 %v5708
      %v5780 = vunpack.c.h.b16 %v5708
      %v5781 = vunpack.c.l.b16 %v5709
      %v5782 = vunpack.c.h.b16 %v5709
      %v5783 = vunpack.c.l.b16 %v5710
      %v5784 = vunpack.c.h.b16 %v5710
      %v5785 = vunpack.c.l.b16 %v5711
      %v5786 = vunpack.c.h.b16 %v5711
      %v5787 = vunpack.c.l.b16 %v5712
      %v5788 = vunpack.c.h.b16 %v5712
      %v5789 = vunpack.c.l.b16 %v5713
      %v5790 = vunpack.c.h.b16 %v5713
      %v5791 = vunpack.c.l.b16 %v5714
      %v5792 = vunpack.c.h.b16 %v5714
      %v5793 = vunpack.c.l.b16 %v5715
      %v5794 = vunpack.c.h.b16 %v5715
      %v5795 = vunpack.c.l.b16 %v5716
      %v5796 = vunpack.c.h.b16 %v5716
      %v5797 = vunpack.c.l.b16 %v5717
      %v5798 = vunpack.c.h.b16 %v5717
      %v5799 = vunpack.c.l.b16 %v5718
      %v5800 = vunpack.c.h.b16 %v5718
      %v5801 = vunpack.c.l.b16 %v5719
      %v5802 = vunpack.c.h.b16 %v5719
      %v5803 = vunpack.c.l.b16 %v5720
      %v5804 = vunpack.c.h.b16 %v5720
      %v5805 = vunpack.c.l.b16 %v5721
      %v5806 = vunpack.c.h.b16 %v5721
      %v5807 = vunpack.c.l.b16 %v5722
      %v5808 = vunpack.c.h.b16 %v5722
      %v5809 = vunpack.c.l.b16 %v5723
      %v5810 = vunpack.c.h.b16 %v5723
      %v5811 = vunpack.c.l.b16 %v5724
      %v5812 = vunpack.c.h.b16 %v5724
      %v5813 = vunpack.c.l.b16 %v5725
      %v5814 = vunpack.c.h.b16 %v5725
      %v5815 = vunpack.c.l.b16 %v5726
      %v5816 = vunpack.c.h.b16 %v5726
      %v5817 = vpack.c.b16 %v5759, %v5757
      %v5818 = vpack.c.b16 %v5760, %v5758
      %v5819 = vpack.c.b16 %v5763, %v5761
      %v5820 = vpack.c.b16 %v5764, %v5762
      %v5821 = vpack.c.b16 %v5767, %v5765
      %v5822 = vpack.c.b16 %v5768, %v5766
      %v5823 = vpack.c.b16 %v5771, %v5769
      %v5824 = vpack.c.b16 %v5772, %v5770
      %v5825 = vpack.c.b16 %v5775, %v5773
      %v5826 = vpack.c.b16 %v5776, %v5774
      %v5827 = vpack.c.b16 %v5779, %v5777
      %v5828 = vpack.c.b16 %v5780, %v5778
      %v5829 = vpack.c.b16 %v5783, %v5781
      %v5830 = vpack.c.b16 %v5784, %v5782
      %v5831 = vpack.c.b16 %v5787, %v5785
      %v5832 = vpack.c.b16 %v5788, %v5786
      %v5833 = vpack.c.b16 %v5791, %v5789
      %v5834 = vpack.c.b16 %v5792, %v5790
      %v5835 = vpack.c.b16 %v5795, %v5793
      %v5836 = vpack.c.b16 %v5796, %v5794
      %v5837 = vpack.c.b16 %v5799, %v5797
      %v5838 = vpack.c.b16 %v5800, %v5798
      %v5839 = vpack.c.b16 %v5803, %v5801
      %v5840 = vpack.c.b16 %v5804, %v5802
      %v5841 = vpack.c.b16 %v5807, %v5805
      %v5842 = vpack.c.b16 %v5808, %v5806
      %v5843 = vpack.c.b16 %v5811, %v5809
      %v5844 = vpack.c.b16 %v5812, %v5810
      %v5845 = vpack.c.b16 %v5815, %v5813
      %v5846 = vpack.c.b16 %v5816, %v5814
      %v5878 = vsel %vm906, %v5681, 0
      %v5881 = vsel %vm906, %v5683, 0
      %v5884 = vsel %vm906, %v5685, 0
      %v5887 = vsel %vm906, %v5687, 0
      %v5890 = vsel %vm906, %v5689, 0
      %v5893 = vsel %vm906, %v5691, 0
      %v5896 = vsel %vm906, %v5693, 0
      %v5899 = vsel %vm906, %v5695, 0
      %5901 = vmatprep.subr.bf16.mxu0 %v5818
      %5902 = vmatpush1.bf16.msra.mxu0 %v5817
      %5903 = vmatprep.subr.bf16.mxu0 %v5820
      %5904 = vmatpush1.bf16.msra.mxu0 %v5819
      %5905 = vmatprep.subr.bf16.mxu0 %v5822
      %5906 = vmatpush1.bf16.msra.mxu0 %v5821
      %5907 = vmatprep.subr.bf16.mxu0 %v5824
      %5908 = vmatpush1.bf16.msra.mxu0 %v5823
      %5909 = vmatprep.subr.bf16.mxu0 %v5826
      %5910 = vmatpush1.bf16.msra.mxu0 %v5825
      %5911 = vmatprep.subr.bf16.mxu0 %v5828
      %5912 = vmatpush1.bf16.msra.mxu0 %v5827
      %5913 = vmatprep.subr.bf16.mxu0 %v5830
      %5914 = vmatpush1.bf16.msra.mxu0 %v5829
      %5915 = vmatprep.subr.bf16.mxu0 %v5832
      %5916 = vmatpush1.bf16.msra.mxu0 %v5831
      %5917 = vmatprep.subr.bf16.mxu0 %v5834
      %5918 = vmatpush1.bf16.msra.mxu0 %v5833
      %5919 = vmatprep.subr.bf16.mxu0 %v5836
      %5920 = vmatpush1.bf16.msra.mxu0 %v5835
      %5921 = vmatprep.subr.bf16.mxu0 %v5838
      %5922 = vmatpush1.bf16.msra.mxu0 %v5837
      %5923 = vmatprep.subr.bf16.mxu0 %v5840
      %5924 = vmatpush1.bf16.msra.mxu0 %v5839
      %5925 = vmatprep.subr.bf16.mxu0 %v5842
      %5926 = vmatpush1.bf16.msra.mxu0 %v5841
      %5927 = vmatprep.subr.bf16.mxu0 %v5844
      %5928 = vmatpush1.bf16.msra.mxu0 %v5843
      %5929 = vmatprep.subr.bf16.mxu0 %v5846
      %5930 = vmatpush1.bf16.msra.mxu0 %v5845
      %5931 = vmatprep.subr.bf16.mxu0 0
      %5932 = vmatpush1.bf16.msra.mxu0 0
      %5933 = vmatprep.mubr.bf16.mxu0 %v5878
      %5934 = vmatmul.mubr.bf16.gmra.mrb[0].mxu0 %v5680
      %v5935 = vpop.f32.mrb[0].mxu0
      %v5936 = vadd.f32 0.0, %v5935
      %v5937 = vpop.f32.mrb[0].mxu0
      %v5938 = vadd.f32 0.0, %v5937
      %v5939 = vpop.f32.mrb[0].mxu0
      %v5940 = vadd.f32 0.0, %v5939
      %v5941 = vpop.f32.mrb[0].mxu0
      %v5942 = vadd.f32 0.0, %v5941
      %5943 = vmatprep.mubr.bf16.mxu0 %v5881
      %5944 = vmatmul.mubr.bf16.gmra.mrb[0].mxu0 %v5682
      %v5945 = vpop.f32.mrb[0].mxu0
      %v5946 = vadd.f32 0.0, %v5945
      %v5947 = vpop.f32.mrb[0].mxu0
      %v5948 = vadd.f32 0.0, %v5947
      %v5949 = vpop.f32.mrb[0].mxu0
      %v5950 = vadd.f32 0.0, %v5949
      %v5951 = vpop.f32.mrb[0].mxu0
      %v5952 = vadd.f32 0.0, %v5951
      %5953 = vmatprep.mubr.bf16.mxu0 %v5884
      %5954 = vmatmul.mubr.bf16.gmra.mrb[0].mxu0 %v5684
      %v5955 = vpop.f32.mrb[0].mxu0
      %v5956 = vadd.f32 0.0, %v5955
      %v5957 = vpop.f32.mrb[0].mxu0
      %v5958 = vadd.f32 0.0, %v5957
      %v5959 = vpop.f32.mrb[0].mxu0
      %v5960 = vadd.f32 0.0, %v5959
      %v5961 = vpop.f32.mrb[0].mxu0
      %v5962 = vadd.f32 0.0, %v5961
      %5963 = vmatprep.mubr.bf16.mxu0 %v5887
      %5964 = vmatmul.mubr.bf16.gmra.mrb[0].mxu0 %v5686
      %v5965 = vpop.f32.mrb[0].mxu0
      %v5966 = vadd.f32 0.0, %v5965
      %v5967 = vpop.f32.mrb[0].mxu0
      %v5968 = vadd.f32 0.0, %v5967
      %v5969 = vpop.f32.mrb[0].mxu0
      %v5970 = vadd.f32 0.0, %v5969
      %v5971 = vpop.f32.mrb[0].mxu0
      %v5972 = vadd.f32 0.0, %v5971
      %5973 = vmatprep.mubr.bf16.mxu0 %v5890
      %5974 = vmatmul.mubr.bf16.gmra.mrb[0].mxu0 %v5688
      %v5975 = vpop.f32.mrb[0].mxu0
      %v5976 = vadd.f32 0.0, %v5975
      %v5977 = vpop.f32.mrb[0].mxu0
      %v5978 = vadd.f32 0.0, %v5977
      %v5979 = vpop.f32.mrb[0].mxu0
      %v5980 = vadd.f32 0.0, %v5979
      %v5981 = vpop.f32.mrb[0].mxu0
      %v5982 = vadd.f32 0.0, %v5981
      %5983 = vmatprep.mubr.bf16.mxu0 %v5893
      %5984 = vmatmul.mubr.bf16.gmra.mrb[0].mxu0 %v5690
      %v5985 = vpop.f32.mrb[0].mxu0
      %v5986 = vadd.f32 0.0, %v5985
      %v5987 = vpop.f32.mrb[0].mxu0
      %v5988 = vadd.f32 0.0, %v5987
      %v5989 = vpop.f32.mrb[0].mxu0
      %v5990 = vadd.f32 0.0, %v5989
      %v5991 = vpop.f32.mrb[0].mxu0
      %v5992 = vadd.f32 0.0, %v5991
      %5993 = vmatprep.mubr.bf16.mxu0 %v5896
      %5994 = vmatmul.mubr.bf16.gmra.mrb[0].mxu0 %v5692
      %v5995 = vpop.f32.mrb[0].mxu0
      %v5996 = vadd.f32 0.0, %v5995
      %v5997 = vpop.f32.mrb[0].mxu0
      %v5998 = vadd.f32 0.0, %v5997
      %v5999 = vpop.f32.mrb[0].mxu0
      %v6000 = vadd.f32 0.0, %v5999
      %v6001 = vpop.f32.mrb[0].mxu0
      %v6002 = vadd.f32 0.0, %v6001
      %6003 = vmatprep.mubr.bf16.mxu0 %v5899
      %6004 = vmatmul.mubr.bf16.gmra.mrb[0].mxu0 %v5694
      %v6005 = vpop.f32.mrb[0].mxu0
      %v6006 = vadd.f32 0.0, %v6005
      %v6007 = vpop.f32.mrb[0].mxu0
      %v6008 = vadd.f32 0.0, %v6007
      %v6009 = vpop.f32.mrb[0].mxu0
      %v6010 = vadd.f32 0.0, %v6009
      %v6011 = vpop.f32.mrb[0].mxu0
      %v6012 = vadd.f32 0.0, %v6011
      %6013 = vdwg.mxu0
      %s6014 = scalar_lea.vmem %s6, 960
      %v6015 = vld [vmem:[%s6014] sm:$0xff]
      %v6016 = vld [vmem:[%s6014 + $0x8] sm:$0xff]
      %v6017 = vld [vmem:[%s6014 + $0x10] sm:$0xff]
      %v6018 = vld [vmem:[%s6014 + $0x18] sm:$0xff]
      %v6019 = vld [vmem:[%s6014 + $0x20] sm:$0xff]
      %v6020 = vld [vmem:[%s6014 + $0x28] sm:$0xff]
      %v6021 = vld [vmem:[%s6014 + $0x30] sm:$0xff]
      %v6022 = vld [vmem:[%s6014 + $0x38] sm:$0xff]
      %v6023 = vld [vmem:[%s6014 + $0x40] sm:$0xff]
      %v6024 = vld [vmem:[%s6014 + $0x48] sm:$0xff]
      %v6025 = vld [vmem:[%s6014 + $0x50] sm:$0xff]
      %v6026 = vld [vmem:[%s6014 + $0x58] sm:$0xff]
      %v6027 = vld [vmem:[%s6014 + $0x60] sm:$0xff]
      %v6028 = vld [vmem:[%s6014 + $0x68] sm:$0xff]
      %v6029 = vld [vmem:[%s6014 + $0x70] sm:$0xff]
      %v6030 = vld [vmem:[%s6014 + $0x78] sm:$0xff]
      %v6031 = vld [vmem:[%s6014 + $0x80] sm:$0xff]
      %v6032 = vld [vmem:[%s6014 + $0x88] sm:$0xff]
      %v6033 = vld [vmem:[%s6014 + $0x90] sm:$0xff]
      %v6034 = vld [vmem:[%s6014 + $0x98] sm:$0xff]
      %v6035 = vld [vmem:[%s6014 + $0xa0] sm:$0xff]
      %v6036 = vld [vmem:[%s6014 + $0xa8] sm:$0xff]
      %v6037 = vld [vmem:[%s6014 + $0xb0] sm:$0xff]
      %v6038 = vld [vmem:[%s6014 + $0xb8] sm:$0xff]
      %v6039 = vld [vmem:[%s6014 + $0xc0] sm:$0xff]
      %v6040 = vld [vmem:[%s6014 + $0xc8] sm:$0xff]
      %v6041 = vld [vmem:[%s6014 + $0xd0] sm:$0xff]
      %v6042 = vld [vmem:[%s6014 + $0xd8] sm:$0xff]
      %v6043 = vld [vmem:[%s6014 + $0xe0] sm:$0xff]
      %v6044 = vld [vmem:[%s6014 + $0xe8] sm:$0xff]
      %v6075 = vunpack.c.l.b16 %v6015
      %v6076 = vunpack.c.h.b16 %v6015
      %v6077 = vunpack.c.l.b16 %v6016
      %v6078 = vunpack.c.h.b16 %v6016
      %v6079 = vunpack.c.l.b16 %v6017
      %v6080 = vunpack.c.h.b16 %v6017
      %v6081 = vunpack.c.l.b16 %v6018
      %v6082 = vunpack.c.h.b16 %v6018
      %v6083 = vunpack.c.l.b16 %v6019
      %v6084 = vunpack.c.h.b16 %v6019
      %v6085 = vunpack.c.l.b16 %v6020
      %v6086 = vunpack.c.h.b16 %v6020
      %v6087 = vunpack.c.l.b16 %v6021
      %v6088 = vunpack.c.h.b16 %v6021
      %v6089 = vunpack.c.l.b16 %v6022
      %v6090 = vunpack.c.h.b16 %v6022
      %v6091 = vunpack.c.l.b16 %v6023
      %v6092 = vunpack.c.h.b16 %v6023
      %v6093 = vunpack.c.l.b16 %v6024
      %v6094 = vunpack.c.h.b16 %v6024
      %v6095 = vunpack.c.l.b16 %v6025
      %v6096 = vunpack.c.h.b16 %v6025
      %v6097 = vunpack.c.l.b16 %v6026
      %v6098 = vunpack.c.h.b16 %v6026
      %v6099 = vunpack.c.l.b16 %v6027
      %v6100 = vunpack.c.h.b16 %v6027
      %v6101 = vunpack.c.l.b16 %v6028
      %v6102 = vunpack.c.h.b16 %v6028
      %v6103 = vunpack.c.l.b16 %v6029
      %v6104 = vunpack.c.h.b16 %v6029
      %v6105 = vunpack.c.l.b16 %v6030
      %v6106 = vunpack.c.h.b16 %v6030
      %v6107 = vunpack.c.l.b16 %v6031
      %v6108 = vunpack.c.h.b16 %v6031
      %v6109 = vunpack.c.l.b16 %v6032
      %v6110 = vunpack.c.h.b16 %v6032
      %v6111 = vunpack.c.l.b16 %v6033
      %v6112 = vunpack.c.h.b16 %v6033
      %v6113 = vunpack.c.l.b16 %v6034
      %v6114 = vunpack.c.h.b16 %v6034
      %v6115 = vunpack.c.l.b16 %v6035
      %v6116 = vunpack.c.h.b16 %v6035
      %v6117 = vunpack.c.l.b16 %v6036
      %v6118 = vunpack.c.h.b16 %v6036
      %v6119 = vunpack.c.l.b16 %v6037
      %v6120 = vunpack.c.h.b16 %v6037
      %v6121 = vunpack.c.l.b16 %v6038
      %v6122 = vunpack.c.h.b16 %v6038
      %v6123 = vunpack.c.l.b16 %v6039
      %v6124 = vunpack.c.h.b16 %v6039
      %v6125 = vunpack.c.l.b16 %v6040
      %v6126 = vunpack.c.h.b16 %v6040
      %v6127 = vunpack.c.l.b16 %v6041
      %v6128 = vunpack.c.h.b16 %v6041
      %v6129 = vunpack.c.l.b16 %v6042
      %v6130 = vunpack.c.h.b16 %v6042
      %v6131 = vunpack.c.l.b16 %v6043
      %v6132 = vunpack.c.h.b16 %v6043
      %v6133 = vunpack.c.l.b16 %v6044
      %v6134 = vunpack.c.h.b16 %v6044
      %v6135 = vpack.c.b16 %v6077, %v6075
      %v6136 = vpack.c.b16 %v6078, %v6076
      %v6137 = vpack.c.b16 %v6081, %v6079
      %v6138 = vpack.c.b16 %v6082, %v6080
      %v6139 = vpack.c.b16 %v6085, %v6083
      %v6140 = vpack.c.b16 %v6086, %v6084
      %v6141 = vpack.c.b16 %v6089, %v6087
      %v6142 = vpack.c.b16 %v6090, %v6088
      %v6143 = vpack.c.b16 %v6093, %v6091
      %v6144 = vpack.c.b16 %v6094, %v6092
      %v6145 = vpack.c.b16 %v6097, %v6095
      %v6146 = vpack.c.b16 %v6098, %v6096
      %v6147 = vpack.c.b16 %v6101, %v6099
      %v6148 = vpack.c.b16 %v6102, %v6100
      %v6149 = vpack.c.b16 %v6105, %v6103
      %v6150 = vpack.c.b16 %v6106, %v6104
      %v6151 = vpack.c.b16 %v6109, %v6107
      %v6152 = vpack.c.b16 %v6110, %v6108
      %v6153 = vpack.c.b16 %v6113, %v6111
      %v6154 = vpack.c.b16 %v6114, %v6112
      %v6155 = vpack.c.b16 %v6117, %v6115
      %v6156 = vpack.c.b16 %v6118, %v6116
      %v6157 = vpack.c.b16 %v6121, %v6119
      %v6158 = vpack.c.b16 %v6122, %v6120
      %v6159 = vpack.c.b16 %v6125, %v6123
      %v6160 = vpack.c.b16 %v6126, %v6124
      %v6161 = vpack.c.b16 %v6129, %v6127
      %v6162 = vpack.c.b16 %v6130, %v6128
      %v6163 = vpack.c.b16 %v6133, %v6131
      %v6164 = vpack.c.b16 %v6134, %v6132
      %6195 = vmatprep.subr.bf16.mxu0 %v6136
      %6196 = vmatpush1.bf16.msra.mxu0 %v6135
      %6197 = vmatprep.subr.bf16.mxu0 %v6138
      %6198 = vmatpush1.bf16.msra.mxu0 %v6137
      %6199 = vmatprep.subr.bf16.mxu0 %v6140
      %6200 = vmatpush1.bf16.msra.mxu0 %v6139
      %6201 = vmatprep.subr.bf16.mxu0 %v6142
      %6202 = vmatpush1.bf16.msra.mxu0 %v6141
      %6203 = vmatprep.subr.bf16.mxu0 %v6144
      %6204 = vmatpush1.bf16.msra.mxu0 %v6143
      %6205 = vmatprep.subr.bf16.mxu0 %v6146
      %6206 = vmatpush1.bf16.msra.mxu0 %v6145
      %6207 = vmatprep.subr.bf16.mxu0 %v6148
      %6208 = vmatpush1.bf16.msra.mxu0 %v6147
      %6209 = vmatprep.subr.bf16.mxu0 %v6150
      %6210 = vmatpush1.bf16.msra.mxu0 %v6149
      %6211 = vmatprep.subr.bf16.mxu0 %v6152
      %6212 = vmatpush1.bf16.msra.mxu0 %v6151
      %6213 = vmatprep.subr.bf16.mxu0 %v6154
      %6214 = vmatpush1.bf16.msra.mxu0 %v6153
      %6215 = vmatprep.subr.bf16.mxu0 %v6156
      %6216 = vmatpush1.bf16.msra.mxu0 %v6155
      %6217 = vmatprep.subr.bf16.mxu0 %v6158
      %6218 = vmatpush1.bf16.msra.mxu0 %v6157
      %6219 = vmatprep.subr.bf16.mxu0 %v6160
      %6220 = vmatpush1.bf16.msra.mxu0 %v6159
      %6221 = vmatprep.subr.bf16.mxu0 %v6162
      %6222 = vmatpush1.bf16.msra.mxu0 %v6161
      %6223 = vmatprep.subr.bf16.mxu0 %v6164
      %6224 = vmatpush1.bf16.msra.mxu0 %v6163
      %6225 = vmatprep.subr.bf16.mxu0 0
      %6226 = vmatpush1.bf16.msra.mxu0 0
      %6227 = vmatprep.mubr.bf16.mxu0 %v5878
      %6228 = vmatmul.mubr.bf16.gmra.mrb[0].mxu0 %v5680
      %v6229 = vpop.f32.mrb[0].mxu0
      %v6230 = vadd.f32 0.0, %v6229
      %v6231 = vpop.f32.mrb[0].mxu0
      %v6232 = vadd.f32 0.0, %v6231
      %v6233 = vpop.f32.mrb[0].mxu0
      %v6234 = vadd.f32 0.0, %v6233
      %v6235 = vpop.f32.mrb[0].mxu0
      %v6236 = vadd.f32 0.0, %v6235
      %6237 = vmatprep.mubr.bf16.mxu0 %v5881
      %6238 = vmatmul.mubr.bf16.gmra.mrb[0].mxu0 %v5682
      %v6239 = vpop.f32.mrb[0].mxu0
      %v6240 = vadd.f32 0.0, %v6239
      %v6241 = vpop.f32.mrb[0].mxu0
      %v6242 = vadd.f32 0.0, %v6241
      %v6243 = vpop.f32.mrb[0].mxu0
      %v6244 = vadd.f32 0.0, %v6243
      %v6245 = vpop.f32.mrb[0].mxu0
      %v6246 = vadd.f32 0.0, %v6245
      %6247 = vmatprep.mubr.bf16.mxu0 %v5884
      %6248 = vmatmul.mubr.bf16.gmra.mrb[0].mxu0 %v5684
      %v6249 = vpop.f32.mrb[0].mxu0
      %v6250 = vadd.f32 0.0, %v6249
      %v6251 = vpop.f32.mrb[0].mxu0
      %v6252 = vadd.f32 0.0, %v6251
      %v6253 = vpop.f32.mrb[0].mxu0
      %v6254 = vadd.f32 0.0, %v6253
      %v6255 = vpop.f32.mrb[0].mxu0
      %v6256 = vadd.f32 0.0, %v6255
      %6257 = vmatprep.mubr.bf16.mxu0 %v5887
      %6258 = vmatmul.mubr.bf16.gmra.mrb[0].mxu0 %v5686
      %v6259 = vpop.f32.mrb[0].mxu0
      %v6260 = vadd.f32 0.0, %v6259
      %v6261 = vpop.f32.mrb[0].mxu0
      %v6262 = vadd.f32 0.0, %v6261
      %v6263 = vpop.f32.mrb[0].mxu0
      %v6264 = vadd.f32 0.0, %v6263
      %v6265 = vpop.f32.mrb[0].mxu0
      %v6266 = vadd.f32 0.0, %v6265
      %6267 = vmatprep.mubr.bf16.mxu0 %v5890
      %6268 = vmatmul.mubr.bf16.gmra.mrb[0].mxu0 %v5688
      %v6269 = vpop.f32.mrb[0].mxu0
      %v6270 = vadd.f32 0.0, %v6269
      %v6271 = vpop.f32.mrb[0].mxu0
      %v6272 = vadd.f32 0.0, %v6271
      %v6273 = vpop.f32.mrb[0].mxu0
      %v6274 = vadd.f32 0.0, %v6273
      %v6275 = vpop.f32.mrb[0].mxu0
      %v6276 = vadd.f32 0.0, %v6275
      %6277 = vmatprep.mubr.bf16.mxu0 %v5893
      %6278 = vmatmul.mubr.bf16.gmra.mrb[0].mxu0 %v5690
      %v6279 = vpop.f32.mrb[0].mxu0
      %v6280 = vadd.f32 0.0, %v6279
      %v6281 = vpop.f32.mrb[0].mxu0
      %v6282 = vadd.f32 0.0, %v6281
      %v6283 = vpop.f32.mrb[0].mxu0
      %v6284 = vadd.f32 0.0, %v6283
      %v6285 = vpop.f32.mrb[0].mxu0
      %v6286 = vadd.f32 0.0, %v6285
      %6287 = vmatprep.mubr.bf16.mxu0 %v5896
      %6288 = vmatmul.mubr.bf16.gmra.mrb[0].mxu0 %v5692
      %v6289 = vpop.f32.mrb[0].mxu0
      %v6290 = vadd.f32 0.0, %v6289
      %v6291 = vpop.f32.mrb[0].mxu0
      %v6292 = vadd.f32 0.0, %v6291
      %v6293 = vpop.f32.mrb[0].mxu0
      %v6294 = vadd.f32 0.0, %v6293
      %v6295 = vpop.f32.mrb[0].mxu0
      %v6296 = vadd.f32 0.0, %v6295
      %6297 = vmatprep.mubr.bf16.mxu0 %v5899
      %6298 = vmatmul.mubr.bf16.gmra.mrb[0].mxu0 %v5694
      %v6299 = vpop.f32.mrb[0].mxu0
      %v6300 = vadd.f32 0.0, %v6299
      %v6301 = vpop.f32.mrb[0].mxu0
      %v6302 = vadd.f32 0.0, %v6301
      %v6303 = vpop.f32.mrb[0].mxu0
      %v6304 = vadd.f32 0.0, %v6303
      %v6305 = vpop.f32.mrb[0].mxu0
      %v6306 = vadd.f32 0.0, %v6305
      %6307 = vdwg.mxu0
      %v6308 = vld [vmem:[#allocation4] sm:$0xff]
      %v6309 = vld [vmem:[#allocation4 + $0x8] sm:$0xff]
      %v6310 = vld [vmem:[#allocation4 + $0x10] sm:$0xff]
      %v6311 = vld [vmem:[#allocation4 + $0x18] sm:$0xff]
      %v6312 = vld [vmem:[#allocation4 + $0x20] sm:$0xff]
      %v6313 = vld [vmem:[#allocation4 + $0x28] sm:$0xff]
      %v6314 = vld [vmem:[#allocation4 + $0x30] sm:$0xff]
      %v6315 = vld [vmem:[#allocation4 + $0x38] sm:$0xff]
      %v6316 = vld [vmem:[#allocation4 + $0x40] sm:$0xff]
      %v6317 = vld [vmem:[#allocation4 + $0x48] sm:$0xff]
      %v6318 = vld [vmem:[#allocation4 + $0x50] sm:$0xff]
      %v6319 = vld [vmem:[#allocation4 + $0x58] sm:$0xff]
      %v6320 = vld [vmem:[#allocation4 + $0x60] sm:$0xff]
      %v6321 = vld [vmem:[#allocation4 + $0x68] sm:$0xff]
      %v6322 = vld [vmem:[#allocation4 + $0x70] sm:$0xff]
      %v6323 = vld [vmem:[#allocation4 + $0x78] sm:$0xff]
      %v6324 = vld [vmem:[#allocation4 + $0x80] sm:$0xff]
      %v6325 = vld [vmem:[#allocation4 + $0x88] sm:$0xff]
      %v6326 = vld [vmem:[#allocation4 + $0x90] sm:$0xff]
      %v6327 = vld [vmem:[#allocation4 + $0x98] sm:$0xff]
      %v6328 = vld [vmem:[#allocation4 + $0xa0] sm:$0xff]
      %v6329 = vld [vmem:[#allocation4 + $0xa8] sm:$0xff]
      %v6330 = vld [vmem:[#allocation4 + $0xb0] sm:$0xff]
      %v6331 = vld [vmem:[#allocation4 + $0xb8] sm:$0xff]
      %v6332 = vld [vmem:[#allocation4 + $0xc0] sm:$0xff]
      %v6333 = vld [vmem:[#allocation4 + $0xc8] sm:$0xff]
      %v6334 = vld [vmem:[#allocation4 + $0xd0] sm:$0xff]
      %v6335 = vld [vmem:[#allocation4 + $0xd8] sm:$0xff]
      %v6336 = vld [vmem:[#allocation4 + $0xe0] sm:$0xff]
      %v6337 = vld [vmem:[#allocation4 + $0xe8] sm:$0xff]
      %v6338 = vld [vmem:[#allocation4 + $0xf0] sm:$0xff]
      %v6339 = vld [vmem:[#allocation4 + $0xf8] sm:$0xff]
      %v6340 = vadd.f32 %v6308, %v5936
      %v6341 = vadd.f32 %v6309, %v5938
      %v6342 = vadd.f32 %v6310, %v5940
      %v6343 = vadd.f32 %v6311, %v5942
      %v6344 = vadd.f32 %v6312, %v5946
      %v6345 = vadd.f32 %v6313, %v5948
      %v6346 = vadd.f32 %v6314, %v5950
      %v6347 = vadd.f32 %v6315, %v5952
      %v6348 = vadd.f32 %v6316, %v5956
      %v6349 = vadd.f32 %v6317, %v5958
      %v6350 = vadd.f32 %v6318, %v5960
      %v6351 = vadd.f32 %v6319, %v5962
      %v6352 = vadd.f32 %v6320, %v5966
      %v6353 = vadd.f32 %v6321, %v5968
      %v6354 = vadd.f32 %v6322, %v5970
      %v6355 = vadd.f32 %v6323, %v5972
      %v6356 = vadd.f32 %v6324, %v5976
      %v6357 = vadd.f32 %v6325, %v5978
      %v6358 = vadd.f32 %v6326, %v5980
      %v6359 = vadd.f32 %v6327, %v5982
      %v6360 = vadd.f32 %v6328, %v5986
      %v6361 = vadd.f32 %v6329, %v5988
      %v6362 = vadd.f32 %v6330, %v5990
      %v6363 = vadd.f32 %v6331, %v5992
      %v6364 = vadd.f32 %v6332, %v5996
      %v6365 = vadd.f32 %v6333, %v5998
      %v6366 = vadd.f32 %v6334, %v6000
      %v6367 = vadd.f32 %v6335, %v6002
      %v6368 = vadd.f32 %v6336, %v6006
      %v6369 = vadd.f32 %v6337, %v6008
      %v6370 = vadd.f32 %v6338, %v6010
      %v6371 = vadd.f32 %v6339, %v6012
      %6372 = vst [vmem:[#allocation4] sm:$0xff] %v6340
      %6373 = vst.msk [vmem:[#allocation4 + $0x8] sm:$0xff] %vm3156, %v6341
      %6374 = vst [vmem:[#allocation4 + $0x10] sm:$0xff] %v6342
      %6375 = vst.msk [vmem:[#allocation4 + $0x18] sm:$0xff] %vm3156, %v6343
      %6376 = vst [vmem:[#allocation4 + $0x20] sm:$0xff] %v6344
      %6377 = vst.msk [vmem:[#allocation4 + $0x28] sm:$0xff] %vm3156, %v6345
      %6378 = vst [vmem:[#allocation4 + $0x30] sm:$0xff] %v6346
      %6379 = vst.msk [vmem:[#allocation4 + $0x38] sm:$0xff] %vm3156, %v6347
      %6380 = vst [vmem:[#allocation4 + $0x40] sm:$0xff] %v6348
      %6381 = vst.msk [vmem:[#allocation4 + $0x48] sm:$0xff] %vm3156, %v6349
      %6382 = vst [vmem:[#allocation4 + $0x50] sm:$0xff] %v6350
      %6383 = vst.msk [vmem:[#allocation4 + $0x58] sm:$0xff] %vm3156, %v6351
      %6384 = vst [vmem:[#allocation4 + $0x60] sm:$0xff] %v6352
      %6385 = vst.msk [vmem:[#allocation4 + $0x68] sm:$0xff] %vm3156, %v6353
      %6386 = vst [vmem:[#allocation4 + $0x70] sm:$0xff] %v6354
      %6387 = vst.msk [vmem:[#allocation4 + $0x78] sm:$0xff] %vm3156, %v6355
      %6388 = vst [vmem:[#allocation4 + $0x80] sm:$0xff] %v6356
      %6389 = vst.msk [vmem:[#allocation4 + $0x88] sm:$0xff] %vm3156, %v6357
      %6390 = vst [vmem:[#allocation4 + $0x90] sm:$0xff] %v6358
      %6391 = vst.msk [vmem:[#allocation4 + $0x98] sm:$0xff] %vm3156, %v6359
      %6392 = vst [vmem:[#allocation4 + $0xa0] sm:$0xff] %v6360
      %6393 = vst.msk [vmem:[#allocation4 + $0xa8] sm:$0xff] %vm3156, %v6361
      %6394 = vst [vmem:[#allocation4 + $0xb0] sm:$0xff] %v6362
      %6395 = vst.msk [vmem:[#allocation4 + $0xb8] sm:$0xff] %vm3156, %v6363
      %6396 = vst [vmem:[#allocation4 + $0xc0] sm:$0xff] %v6364
      %6397 = vst.msk [vmem:[#allocation4 + $0xc8] sm:$0xff] %vm3156, %v6365
      %6398 = vst [vmem:[#allocation4 + $0xd0] sm:$0xff] %v6366
      %6399 = vst.msk [vmem:[#allocation4 + $0xd8] sm:$0xff] %vm3156, %v6367
      %6400 = vst [vmem:[#allocation4 + $0xe0] sm:$0xff] %v6368
      %6401 = vst.msk [vmem:[#allocation4 + $0xe8] sm:$0xff] %vm3156, %v6369
      %6402 = vst [vmem:[#allocation4 + $0xf0] sm:$0xff] %v6370
      %6403 = vst.msk [vmem:[#allocation4 + $0xf8] sm:$0xff] %vm3156, %v6371
      %v6404 = vld [vmem:[#allocation5] sm:$0xff]
      %v6405 = vld [vmem:[#allocation5 + $0x8] sm:$0xff]
      %v6406 = vld [vmem:[#allocation5 + $0x10] sm:$0xff]
      %v6407 = vld [vmem:[#allocation5 + $0x18] sm:$0xff]
      %v6408 = vld [vmem:[#allocation5 + $0x20] sm:$0xff]
      %v6409 = vld [vmem:[#allocation5 + $0x28] sm:$0xff]
      %v6410 = vld [vmem:[#allocation5 + $0x30] sm:$0xff]
      %v6411 = vld [vmem:[#allocation5 + $0x38] sm:$0xff]
      %v6412 = vld [vmem:[#allocation5 + $0x40] sm:$0xff]
      %v6413 = vld [vmem:[#allocation5 + $0x48] sm:$0xff]
      %v6414 = vld [vmem:[#allocation5 + $0x50] sm:$0xff]
      %v6415 = vld [vmem:[#allocation5 + $0x58] sm:$0xff]
      %v6416 = vld [vmem:[#allocation5 + $0x60] sm:$0xff]
      %v6417 = vld [vmem:[#allocation5 + $0x68] sm:$0xff]
      %v6418 = vld [vmem:[#allocation5 + $0x70] sm:$0xff]
      %v6419 = vld [vmem:[#allocation5 + $0x78] sm:$0xff]
      %v6420 = vld [vmem:[#allocation5 + $0x80] sm:$0xff]
      %v6421 = vld [vmem:[#allocation5 + $0x88] sm:$0xff]
      %v6422 = vld [vmem:[#allocation5 + $0x90] sm:$0xff]
      %v6423 = vld [vmem:[#allocation5 + $0x98] sm:$0xff]
      %v6424 = vld [vmem:[#allocation5 + $0xa0] sm:$0xff]
      %v6425 = vld [vmem:[#allocation5 + $0xa8] sm:$0xff]
      %v6426 = vld [vmem:[#allocation5 + $0xb0] sm:$0xff]
      %v6427 = vld [vmem:[#allocation5 + $0xb8] sm:$0xff]
      %v6428 = vld [vmem:[#allocation5 + $0xc0] sm:$0xff]
      %v6429 = vld [vmem:[#allocation5 + $0xc8] sm:$0xff]
      %v6430 = vld [vmem:[#allocation5 + $0xd0] sm:$0xff]
      %v6431 = vld [vmem:[#allocation5 + $0xd8] sm:$0xff]
      %v6432 = vld [vmem:[#allocation5 + $0xe0] sm:$0xff]
      %v6433 = vld [vmem:[#allocation5 + $0xe8] sm:$0xff]
      %v6434 = vld [vmem:[#allocation5 + $0xf0] sm:$0xff]
      %v6435 = vld [vmem:[#allocation5 + $0xf8] sm:$0xff]
      %v6436 = vadd.f32 %v6404, %v6230
      %v6437 = vadd.f32 %v6405, %v6232
      %v6438 = vadd.f32 %v6406, %v6234
      %v6439 = vadd.f32 %v6407, %v6236
      %v6440 = vadd.f32 %v6408, %v6240
      %v6441 = vadd.f32 %v6409, %v6242
      %v6442 = vadd.f32 %v6410, %v6244
      %v6443 = vadd.f32 %v6411, %v6246
      %v6444 = vadd.f32 %v6412, %v6250
      %v6445 = vadd.f32 %v6413, %v6252
      %v6446 = vadd.f32 %v6414, %v6254
      %v6447 = vadd.f32 %v6415, %v6256
      %v6448 = vadd.f32 %v6416, %v6260
      %v6449 = vadd.f32 %v6417, %v6262
      %v6450 = vadd.f32 %v6418, %v6264
      %v6451 = vadd.f32 %v6419, %v6266
      %v6452 = vadd.f32 %v6420, %v6270
      %v6453 = vadd.f32 %v6421, %v6272
      %v6454 = vadd.f32 %v6422, %v6274
      %v6455 = vadd.f32 %v6423, %v6276
      %v6456 = vadd.f32 %v6424, %v6280
      %v6457 = vadd.f32 %v6425, %v6282
      %v6458 = vadd.f32 %v6426, %v6284
      %v6459 = vadd.f32 %v6427, %v6286
      %v6460 = vadd.f32 %v6428, %v6290
      %v6461 = vadd.f32 %v6429, %v6292
      %v6462 = vadd.f32 %v6430, %v6294
      %v6463 = vadd.f32 %v6431, %v6296
      %v6464 = vadd.f32 %v6432, %v6300
      %v6465 = vadd.f32 %v6433, %v6302
      %v6466 = vadd.f32 %v6434, %v6304
      %v6467 = vadd.f32 %v6435, %v6306
      %6468 = vst [vmem:[#allocation5] sm:$0xff] %v6436
      %6469 = vst.msk [vmem:[#allocation5 + $0x8] sm:$0xff] %vm3156, %v6437
      %6470 = vst [vmem:[#allocation5 + $0x10] sm:$0xff] %v6438
      %6471 = vst.msk [vmem:[#allocation5 + $0x18] sm:$0xff] %vm3156, %v6439
      %6472 = vst [vmem:[#allocation5 + $0x20] sm:$0xff] %v6440
      %6473 = vst.msk [vmem:[#allocation5 + $0x28] sm:$0xff] %vm3156, %v6441
      %6474 = vst [vmem:[#allocation5 + $0x30] sm:$0xff] %v6442
      %6475 = vst.msk [vmem:[#allocation5 + $0x38] sm:$0xff] %vm3156, %v6443
      %6476 = vst [vmem:[#allocation5 + $0x40] sm:$0xff] %v6444
      %6477 = vst.msk [vmem:[#allocation5 + $0x48] sm:$0xff] %vm3156, %v6445
      %6478 = vst [vmem:[#allocation5 + $0x50] sm:$0xff] %v6446
      %6479 = vst.msk [vmem:[#allocation5 + $0x58] sm:$0xff] %vm3156, %v6447
      %6480 = vst [vmem:[#allocation5 + $0x60] sm:$0xff] %v6448
      %6481 = vst.msk [vmem:[#allocation5 + $0x68] sm:$0xff] %vm3156, %v6449
      %6482 = vst [vmem:[#allocation5 + $0x70] sm:$0xff] %v6450
      %6483 = vst.msk [vmem:[#allocation5 + $0x78] sm:$0xff] %vm3156, %v6451
      %6484 = vst [vmem:[#allocation5 + $0x80] sm:$0xff] %v6452
      %6485 = vst.msk [vmem:[#allocation5 + $0x88] sm:$0xff] %vm3156, %v6453
      %6486 = vst [vmem:[#allocation5 + $0x90] sm:$0xff] %v6454
      %6487 = vst.msk [vmem:[#allocation5 + $0x98] sm:$0xff] %vm3156, %v6455
      %6488 = vst [vmem:[#allocation5 + $0xa0] sm:$0xff] %v6456
      %6489 = vst.msk [vmem:[#allocation5 + $0xa8] sm:$0xff] %vm3156, %v6457
      %6490 = vst [vmem:[#allocation5 + $0xb0] sm:$0xff] %v6458
      %6491 = vst.msk [vmem:[#allocation5 + $0xb8] sm:$0xff] %vm3156, %v6459
      %6492 = vst [vmem:[#allocation5 + $0xc0] sm:$0xff] %v6460
      %6493 = vst.msk [vmem:[#allocation5 + $0xc8] sm:$0xff] %vm3156, %v6461
      %6494 = vst [vmem:[#allocation5 + $0xd0] sm:$0xff] %v6462
      %6495 = vst.msk [vmem:[#allocation5 + $0xd8] sm:$0xff] %vm3156, %v6463
      %6496 = vst [vmem:[#allocation5 + $0xe0] sm:$0xff] %v6464
      %6497 = vst.msk [vmem:[#allocation5 + $0xe8] sm:$0xff] %vm3156, %v6465
      %6498 = vst [vmem:[#allocation5 + $0xf0] sm:$0xff] %v6466
      %6499 = vst.msk [vmem:[#allocation5 + $0xf8] sm:$0xff] %vm3156, %v6467
      %v6500 = vld [vmem:[#allocation4] sm:$0xff]
      %v6501 = vld [vmem:[#allocation4 + $0x8] sm:$0xff]
      %v6502 = vld [vmem:[#allocation4 + $0x10] sm:$0xff]
      %v6503 = vld [vmem:[#allocation4 + $0x18] sm:$0xff]
      %v6504 = vld [vmem:[#allocation4 + $0x20] sm:$0xff]
      %v6505 = vld [vmem:[#allocation4 + $0x28] sm:$0xff]
      %v6506 = vld [vmem:[#allocation4 + $0x30] sm:$0xff]
      %v6507 = vld [vmem:[#allocation4 + $0x38] sm:$0xff]
      %v6508 = vld [vmem:[#allocation4 + $0x40] sm:$0xff]
      %v6509 = vld [vmem:[#allocation4 + $0x48] sm:$0xff]
      %v6510 = vld [vmem:[#allocation4 + $0x50] sm:$0xff]
      %v6511 = vld [vmem:[#allocation4 + $0x58] sm:$0xff]
      %v6512 = vld [vmem:[#allocation4 + $0x60] sm:$0xff]
      %v6513 = vld [vmem:[#allocation4 + $0x68] sm:$0xff]
      %v6514 = vld [vmem:[#allocation4 + $0x70] sm:$0xff]
      %v6515 = vld [vmem:[#allocation4 + $0x78] sm:$0xff]
      %v6516 = vld [vmem:[#allocation4 + $0x80] sm:$0xff]
      %v6517 = vld [vmem:[#allocation4 + $0x88] sm:$0xff]
      %v6518 = vld [vmem:[#allocation4 + $0x90] sm:$0xff]
      %v6519 = vld [vmem:[#allocation4 + $0x98] sm:$0xff]
      %v6520 = vld [vmem:[#allocation4 + $0xa0] sm:$0xff]
      %v6521 = vld [vmem:[#allocation4 + $0xa8] sm:$0xff]
      %v6522 = vld [vmem:[#allocation4 + $0xb0] sm:$0xff]
      %v6523 = vld [vmem:[#allocation4 + $0xb8] sm:$0xff]
      %v6524 = vld [vmem:[#allocation4 + $0xc0] sm:$0xff]
      %v6525 = vld [vmem:[#allocation4 + $0xc8] sm:$0xff]
      %v6526 = vld [vmem:[#allocation4 + $0xd0] sm:$0xff]
      %v6527 = vld [vmem:[#allocation4 + $0xd8] sm:$0xff]
      %v6528 = vld [vmem:[#allocation4 + $0xe0] sm:$0xff]
      %v6529 = vld [vmem:[#allocation4 + $0xe8] sm:$0xff]
      %v6530 = vld [vmem:[#allocation4 + $0xf0] sm:$0xff]
      %v6531 = vld [vmem:[#allocation4 + $0xf8] sm:$0xff]
      %v6532 = vld [vmem:[#allocation5] sm:$0xff]
      %v6533 = vld [vmem:[#allocation5 + $0x8] sm:$0xff]
      %v6534 = vld [vmem:[#allocation5 + $0x10] sm:$0xff]
      %v6535 = vld [vmem:[#allocation5 + $0x18] sm:$0xff]
      %v6536 = vld [vmem:[#allocation5 + $0x20] sm:$0xff]
      %v6537 = vld [vmem:[#allocation5 + $0x28] sm:$0xff]
      %v6538 = vld [vmem:[#allocation5 + $0x30] sm:$0xff]
      %v6539 = vld [vmem:[#allocation5 + $0x38] sm:$0xff]
      %v6540 = vld [vmem:[#allocation5 + $0x40] sm:$0xff]
      %v6541 = vld [vmem:[#allocation5 + $0x48] sm:$0xff]
      %v6542 = vld [vmem:[#allocation5 + $0x50] sm:$0xff]
      %v6543 = vld [vmem:[#allocation5 + $0x58] sm:$0xff]
      %v6544 = vld [vmem:[#allocation5 + $0x60] sm:$0xff]
      %v6545 = vld [vmem:[#allocation5 + $0x68] sm:$0xff]
      %v6546 = vld [vmem:[#allocation5 + $0x70] sm:$0xff]
      %v6547 = vld [vmem:[#allocation5 + $0x78] sm:$0xff]
      %v6548 = vld [vmem:[#allocation5 + $0x80] sm:$0xff]
      %v6549 = vld [vmem:[#allocation5 + $0x88] sm:$0xff]
      %v6550 = vld [vmem:[#allocation5 + $0x90] sm:$0xff]
      %v6551 = vld [vmem:[#allocation5 + $0x98] sm:$0xff]
      %v6552 = vld [vmem:[#allocation5 + $0xa0] sm:$0xff]
      %v6553 = vld [vmem:[#allocation5 + $0xa8] sm:$0xff]
      %v6554 = vld [vmem:[#allocation5 + $0xb0] sm:$0xff]
      %v6555 = vld [vmem:[#allocation5 + $0xb8] sm:$0xff]
      %v6556 = vld [vmem:[#allocation5 + $0xc0] sm:$0xff]
      %v6557 = vld [vmem:[#allocation5 + $0xc8] sm:$0xff]
      %v6558 = vld [vmem:[#allocation5 + $0xd0] sm:$0xff]
      %v6559 = vld [vmem:[#allocation5 + $0xd8] sm:$0xff]
      %v6560 = vld [vmem:[#allocation5 + $0xe0] sm:$0xff]
      %v6561 = vld [vmem:[#allocation5 + $0xe8] sm:$0xff]
      %v6562 = vld [vmem:[#allocation5 + $0xf0] sm:$0xff]
      %v6563 = vld [vmem:[#allocation5 + $0xf8] sm:$0xff]
      %v6564 = vmax.f32 %v6500, %v6532
      %v6565 = vmax.f32 %v6501, %v6533
      %v6566 = vmax.f32 %v6502, %v6534
      %v6567 = vmax.f32 %v6503, %v6535
      %v6568 = vmax.f32 %v6504, %v6536
      %v6569 = vmax.f32 %v6505, %v6537
      %v6570 = vmax.f32 %v6506, %v6538
      %v6571 = vmax.f32 %v6507, %v6539
      %v6572 = vmax.f32 %v6508, %v6540
      %v6573 = vmax.f32 %v6509, %v6541
      %v6574 = vmax.f32 %v6510, %v6542
      %v6575 = vmax.f32 %v6511, %v6543
      %v6576 = vmax.f32 %v6512, %v6544
      %v6577 = vmax.f32 %v6513, %v6545
      %v6578 = vmax.f32 %v6514, %v6546
      %v6579 = vmax.f32 %v6515, %v6547
      %v6580 = vmax.f32 %v6516, %v6548
      %v6581 = vmax.f32 %v6517, %v6549
      %v6582 = vmax.f32 %v6518, %v6550
      %v6583 = vmax.f32 %v6519, %v6551
      %v6584 = vmax.f32 %v6520, %v6552
      %v6585 = vmax.f32 %v6521, %v6553
      %v6586 = vmax.f32 %v6522, %v6554
      %v6587 = vmax.f32 %v6523, %v6555
      %v6588 = vmax.f32 %v6524, %v6556
      %v6589 = vmax.f32 %v6525, %v6557
      %v6590 = vmax.f32 %v6526, %v6558
      %v6591 = vmax.f32 %v6527, %v6559
      %v6592 = vmax.f32 %v6528, %v6560
      %v6593 = vmax.f32 %v6529, %v6561
      %v6594 = vmax.f32 %v6530, %v6562
      %v6595 = vmax.f32 %v6531, %v6563
      %v6596 = vld [vmem:[%s7] sm:$0x3]
      %v6598 = vlaneseq
      %v6599 = vshrl.u32 %v6598, 7
      %v6600 = vsub.s32 0, %v6599
      %v6601 = vrot.slane %v6596, %v6600
      %v6602 = vlaneseq
      %v6603 = vshrl.u32 %v6602, 7
      %v6604 = vsub.s32 1, %v6603
      %v6605 = vrot.slane %v6596, %v6604
      %v6608 = vadd.f32 %v6564, %v6601
      %v6609 = vadd.f32 %v6565, %v6605
      %v6610 = vadd.f32 %v6566, %v6601
      %v6611 = vadd.f32 %v6567, %v6605
      %v6612 = vadd.f32 %v6568, %v6601
      %v6613 = vadd.f32 %v6569, %v6605
      %v6614 = vadd.f32 %v6570, %v6601
      %v6615 = vadd.f32 %v6571, %v6605
      %v6616 = vadd.f32 %v6572, %v6601
      %v6617 = vadd.f32 %v6573, %v6605
      %v6618 = vadd.f32 %v6574, %v6601
      %v6619 = vadd.f32 %v6575, %v6605
      %v6620 = vadd.f32 %v6576, %v6601
      %v6621 = vadd.f32 %v6577, %v6605
      %v6622 = vadd.f32 %v6578, %v6601
      %v6623 = vadd.f32 %v6579, %v6605
      %v6624 = vadd.f32 %v6580, %v6601
      %v6625 = vadd.f32 %v6581, %v6605
      %v6626 = vadd.f32 %v6582, %v6601
      %v6627 = vadd.f32 %v6583, %v6605
      %v6628 = vadd.f32 %v6584, %v6601
      %v6629 = vadd.f32 %v6585, %v6605
      %v6630 = vadd.f32 %v6586, %v6601
      %v6631 = vadd.f32 %v6587, %v6605
      %v6632 = vadd.f32 %v6588, %v6601
      %v6633 = vadd.f32 %v6589, %v6605
      %v6634 = vadd.f32 %v6590, %v6601
      %v6635 = vadd.f32 %v6591, %v6605
      %v6636 = vadd.f32 %v6592, %v6601
      %v6637 = vadd.f32 %v6593, %v6605
      %v6638 = vadd.f32 %v6594, %v6601
      %v6639 = vadd.f32 %v6595, %v6605
      %v6640 = vmax.f32 %v6608, 0.0
      %v6641 = vmax.f32 %v6609, 0.0
      %v6642 = vmax.f32 %v6610, 0.0
      %v6643 = vmax.f32 %v6611, 0.0
      %v6644 = vmax.f32 %v6612, 0.0
      %v6645 = vmax.f32 %v6613, 0.0
      %v6646 = vmax.f32 %v6614, 0.0
      %v6647 = vmax.f32 %v6615, 0.0
      %v6648 = vmax.f32 %v6616, 0.0
      %v6649 = vmax.f32 %v6617, 0.0
      %v6650 = vmax.f32 %v6618, 0.0
      %v6651 = vmax.f32 %v6619, 0.0
      %v6652 = vmax.f32 %v6620, 0.0
      %v6653 = vmax.f32 %v6621, 0.0
      %v6654 = vmax.f32 %v6622, 0.0
      %v6655 = vmax.f32 %v6623, 0.0
      %v6656 = vmax.f32 %v6624, 0.0
      %v6657 = vmax.f32 %v6625, 0.0
      %v6658 = vmax.f32 %v6626, 0.0
      %v6659 = vmax.f32 %v6627, 0.0
      %v6660 = vmax.f32 %v6628, 0.0
      %v6661 = vmax.f32 %v6629, 0.0
      %v6662 = vmax.f32 %v6630, 0.0
      %v6663 = vmax.f32 %v6631, 0.0
      %v6664 = vmax.f32 %v6632, 0.0
      %v6665 = vmax.f32 %v6633, 0.0
      %v6666 = vmax.f32 %v6634, 0.0
      %v6667 = vmax.f32 %v6635, 0.0
      %v6668 = vmax.f32 %v6636, 0.0
      %v6669 = vmax.f32 %v6637, 0.0
      %v6670 = vmax.f32 %v6638, 0.0
      %v6671 = vmax.f32 %v6639, 0.0
      %6672 = vst [vmem:[#allocation4] sm:$0xff] %v6640
      %6673 = vst.msk [vmem:[#allocation4 + $0x8] sm:$0xff] %vm3156, %v6641
      %6674 = vst [vmem:[#allocation4 + $0x10] sm:$0xff] %v6642
      %6675 = vst.msk [vmem:[#allocation4 + $0x18] sm:$0xff] %vm3156, %v6643
      %6676 = vst [vmem:[#allocation4 + $0x20] sm:$0xff] %v6644
      %6677 = vst.msk [vmem:[#allocation4 + $0x28] sm:$0xff] %vm3156, %v6645
      %6678 = vst [vmem:[#allocation4 + $0x30] sm:$0xff] %v6646
      %6679 = vst.msk [vmem:[#allocation4 + $0x38] sm:$0xff] %vm3156, %v6647
      %6680 = vst [vmem:[#allocation4 + $0x40] sm:$0xff] %v6648
      %6681 = vst.msk [vmem:[#allocation4 + $0x48] sm:$0xff] %vm3156, %v6649
      %6682 = vst [vmem:[#allocation4 + $0x50] sm:$0xff] %v6650
      %6683 = vst.msk [vmem:[#allocation4 + $0x58] sm:$0xff] %vm3156, %v6651
      %6684 = vst [vmem:[#allocation4 + $0x60] sm:$0xff] %v6652
      %6685 = vst.msk [vmem:[#allocation4 + $0x68] sm:$0xff] %vm3156, %v6653
      %6686 = vst [vmem:[#allocation4 + $0x70] sm:$0xff] %v6654
      %6687 = vst.msk [vmem:[#allocation4 + $0x78] sm:$0xff] %vm3156, %v6655
      %6688 = vst [vmem:[#allocation4 + $0x80] sm:$0xff] %v6656
      %6689 = vst.msk [vmem:[#allocation4 + $0x88] sm:$0xff] %vm3156, %v6657
      %6690 = vst [vmem:[#allocation4 + $0x90] sm:$0xff] %v6658
      %6691 = vst.msk [vmem:[#allocation4 + $0x98] sm:$0xff] %vm3156, %v6659
      %6692 = vst [vmem:[#allocation4 + $0xa0] sm:$0xff] %v6660
      %6693 = vst.msk [vmem:[#allocation4 + $0xa8] sm:$0xff] %vm3156, %v6661
      %6694 = vst [vmem:[#allocation4 + $0xb0] sm:$0xff] %v6662
      %6695 = vst.msk [vmem:[#allocation4 + $0xb8] sm:$0xff] %vm3156, %v6663
      %6696 = vst [vmem:[#allocation4 + $0xc0] sm:$0xff] %v6664
      %6697 = vst.msk [vmem:[#allocation4 + $0xc8] sm:$0xff] %vm3156, %v6665
      %6698 = vst [vmem:[#allocation4 + $0xd0] sm:$0xff] %v6666
      %6699 = vst.msk [vmem:[#allocation4 + $0xd8] sm:$0xff] %vm3156, %v6667
      %6700 = vst [vmem:[#allocation4 + $0xe0] sm:$0xff] %v6668
      %6701 = vst.msk [vmem:[#allocation4 + $0xe8] sm:$0xff] %vm3156, %v6669
      %6702 = vst [vmem:[#allocation4 + $0xf0] sm:$0xff] %v6670
      %6703 = vst.msk [vmem:[#allocation4 + $0xf8] sm:$0xff] %vm3156, %v6671
      %v6704 = vld [vmem:[#allocation4] sm:$0xff]
      %v6705 = vld [vmem:[#allocation4 + $0x8] sm:$0xff]
      %v6706 = vld [vmem:[#allocation4 + $0x10] sm:$0xff]
      %v6707 = vld [vmem:[#allocation4 + $0x18] sm:$0xff]
      %v6708 = vld [vmem:[#allocation4 + $0x20] sm:$0xff]
      %v6709 = vld [vmem:[#allocation4 + $0x28] sm:$0xff]
      %v6710 = vld [vmem:[#allocation4 + $0x30] sm:$0xff]
      %v6711 = vld [vmem:[#allocation4 + $0x38] sm:$0xff]
      %v6712 = vmax.f32 %v6704, %v6708
      %v6713 = vmax.f32 %v6705, %v6709
      %v6714 = vmax.f32 %v6706, %v6710
      %v6715 = vmax.f32 %v6707, %v6711
      %v6716 = vpack.c.bf16 %v6714, %v6712
      %v6717 = vpack.c.bf16 %v6715, %v6713
      %6718 = vst [vmem:[#allocation6] sm:$0xff] %v6716
      %6719 = vst.msk [vmem:[#allocation6 + $0x8] sm:$0xff] %vm3156, %v6717
      %v6720 = vld [vmem:[#allocation4 + $0x40] sm:$0xff]
      %v6721 = vld [vmem:[#allocation4 + $0x48] sm:$0xff]
      %v6722 = vld [vmem:[#allocation4 + $0x50] sm:$0xff]
      %v6723 = vld [vmem:[#allocation4 + $0x58] sm:$0xff]
      %v6724 = vld [vmem:[#allocation4 + $0x60] sm:$0xff]
      %v6725 = vld [vmem:[#allocation4 + $0x68] sm:$0xff]
      %v6726 = vld [vmem:[#allocation4 + $0x70] sm:$0xff]
      %v6727 = vld [vmem:[#allocation4 + $0x78] sm:$0xff]
      %v6728 = vmax.f32 %v6720, %v6724
      %v6729 = vmax.f32 %v6721, %v6725
      %v6730 = vmax.f32 %v6722, %v6726
      %v6731 = vmax.f32 %v6723, %v6727
      %v6732 = vpack.c.bf16 %v6730, %v6728
      %v6733 = vpack.c.bf16 %v6731, %v6729
      %6734 = vst [vmem:[#allocation6 + $0x10] sm:$0xff] %v6732
      %6735 = vst.msk [vmem:[#allocation6 + $0x18] sm:$0xff] %vm3156, %v6733
      %v6736 = vld [vmem:[#allocation4 + $0x80] sm:$0xff]
      %v6737 = vld [vmem:[#allocation4 + $0x88] sm:$0xff]
      %v6738 = vld [vmem:[#allocation4 + $0x90] sm:$0xff]
      %v6739 = vld [vmem:[#allocation4 + $0x98] sm:$0xff]
      %v6740 = vld [vmem:[#allocation4 + $0xa0] sm:$0xff]
      %v6741 = vld [vmem:[#allocation4 + $0xa8] sm:$0xff]
      %v6742 = vld [vmem:[#allocation4 + $0xb0] sm:$0xff]
      %v6743 = vld [vmem:[#allocation4 + $0xb8] sm:$0xff]
      %v6744 = vmax.f32 %v6736, %v6740
      %v6745 = vmax.f32 %v6737, %v6741
      %v6746 = vmax.f32 %v6738, %v6742
      %v6747 = vmax.f32 %v6739, %v6743
      %v6748 = vpack.c.bf16 %v6746, %v6744
      %v6749 = vpack.c.bf16 %v6747, %v6745
      %6750 = vst [vmem:[#allocation6 + $0x20] sm:$0xff] %v6748
      %6751 = vst.msk [vmem:[#allocation6 + $0x28] sm:$0xff] %vm3156, %v6749
      %v6752 = vld [vmem:[#allocation4 + $0xc0] sm:$0xff]
      %v6753 = vld [vmem:[#allocation4 + $0xc8] sm:$0xff]
      %v6754 = vld [vmem:[#allocation4 + $0xd0] sm:$0xff]
      %v6755 = vld [vmem:[#allocation4 + $0xd8] sm:$0xff]
      %v6756 = vld [vmem:[#allocation4 + $0xe0] sm:$0xff]
      %v6757 = vld [vmem:[#allocation4 + $0xe8] sm:$0xff]
      %v6758 = vld [vmem:[#allocation4 + $0xf0] sm:$0xff]
      %v6759 = vld [vmem:[#allocation4 + $0xf8] sm:$0xff]
      %v6760 = vmax.f32 %v6752, %v6756
      %v6761 = vmax.f32 %v6753, %v6757
      %v6762 = vmax.f32 %v6754, %v6758
      %v6763 = vmax.f32 %v6755, %v6759
      %v6764 = vpack.c.bf16 %v6762, %v6760
      %v6765 = vpack.c.bf16 %v6763, %v6761
      %6766 = vst [vmem:[#allocation6 + $0x30] sm:$0xff] %v6764
      %6767 = vst.msk [vmem:[#allocation6 + $0x38] sm:$0xff] %vm3156, %v6765
      %v6768 = vld [vmem:[#allocation6] sm:$0xff]
      %v6769 = vld [vmem:[#allocation6 + $0x8] sm:$0xff]
      %v6770 = vld [vmem:[%s8] sm:$0xff]
      %v6771 = vld [vmem:[%s8 + $0x8] sm:$0xff]
      %v6772 = vld [vmem:[%s8 + $0x10] sm:$0xff]
      %v6773 = vld [vmem:[%s8 + $0x18] sm:$0xff]
      %v6774 = vld [vmem:[%s8 + $0x20] sm:$0xff]
      %v6775 = vld [vmem:[%s8 + $0x28] sm:$0xff]
      %v6776 = vld [vmem:[%s8 + $0x30] sm:$0xff]
      %v6777 = vld [vmem:[%s8 + $0x38] sm:$0xff]
      %v6778 = vld [vmem:[%s8 + $0x40] sm:$0xff]
      %v6779 = vld [vmem:[%s8 + $0x48] sm:$0xff]
      %v6780 = vld [vmem:[%s8 + $0x50] sm:$0xff]
      %v6781 = vld [vmem:[%s8 + $0x58] sm:$0xff]
      %v6782 = vld [vmem:[%s8 + $0x60] sm:$0xff]
      %v6783 = vld [vmem:[%s8 + $0x68] sm:$0xff]
      %v6784 = vld [vmem:[%s8 + $0x70] sm:$0xff]
      %v6785 = vld [vmem:[%s8 + $0x78] sm:$0xff]
      %v6786 = vld [vmem:[%s8 + $0x80] sm:$0xff]
      %v6787 = vld [vmem:[%s8 + $0x88] sm:$0xff]
      %v6788 = vld [vmem:[%s8 + $0x90] sm:$0xff]
      %v6789 = vld [vmem:[%s8 + $0x98] sm:$0xff]
      %v6790 = vld [vmem:[%s8 + $0xa0] sm:$0xff]
      %v6791 = vld [vmem:[%s8 + $0xa8] sm:$0xff]
      %v6792 = vld [vmem:[%s8 + $0xb0] sm:$0xff]
      %v6793 = vld [vmem:[%s8 + $0xb8] sm:$0xff]
      %v6794 = vld [vmem:[%s8 + $0xc0] sm:$0xff]
      %v6795 = vld [vmem:[%s8 + $0xc8] sm:$0xff]
      %v6796 = vld [vmem:[%s8 + $0xd0] sm:$0xff]
      %v6797 = vld [vmem:[%s8 + $0xd8] sm:$0xff]
      %v6798 = vld [vmem:[%s8 + $0xe0] sm:$0xff]
      %v6799 = vld [vmem:[%s8 + $0xe8] sm:$0xff]
      %v6800 = vld [vmem:[%s8 + $0xf0] sm:$0xff]
      %v6801 = vld [vmem:[%s8 + $0xf8] sm:$0xff]
      %v6802 = vld [vmem:[%s8 + $0x100] sm:$0xff]
      %v6803 = vld [vmem:[%s8 + $0x108] sm:$0xff]
      %v6804 = vld [vmem:[%s8 + $0x110] sm:$0xff]
      %v6805 = vld [vmem:[%s8 + $0x118] sm:$0xff]
      %v6806 = vld [vmem:[%s8 + $0x120] sm:$0xff]
      %v6807 = vld [vmem:[%s8 + $0x128] sm:$0xff]
      %v6808 = vld [vmem:[%s8 + $0x130] sm:$0xff]
      %v6809 = vld [vmem:[%s8 + $0x138] sm:$0xff]
      %v6810 = vld [vmem:[%s8 + $0x140] sm:$0xff]
      %v6811 = vld [vmem:[%s8 + $0x148] sm:$0xff]
      %v6812 = vld [vmem:[%s8 + $0x150] sm:$0xff]
      %v6813 = vld [vmem:[%s8 + $0x158] sm:$0xff]
      %v6814 = vld [vmem:[%s8 + $0x160] sm:$0xff]
      %v6815 = vld [vmem:[%s8 + $0x168] sm:$0xff]
      %v6816 = vld [vmem:[%s8 + $0x170] sm:$0xff]
      %v6817 = vld [vmem:[%s8 + $0x178] sm:$0xff]
      %v6818 = vld [vmem:[%s8 + $0x180] sm:$0xff]
      %v6819 = vld [vmem:[%s8 + $0x188] sm:$0xff]
      %v6820 = vld [vmem:[#allocation6 + $0x10] sm:$0xff]
      %v6821 = vld [vmem:[#allocation6 + $0x18] sm:$0xff]
      %s6822 = scalar_lea.vmem %s8, 400
      %v6823 = vld [vmem:[%s6822] sm:$0xff]
      %v6824 = vld [vmem:[%s6822 + $0x8] sm:$0xff]
      %v6825 = vld [vmem:[%s6822 + $0x10] sm:$0xff]
      %v6826 = vld [vmem:[%s6822 + $0x18] sm:$0xff]
      %v6827 = vld [vmem:[%s6822 + $0x20] sm:$0xff]
      %v6828 = vld [vmem:[%s6822 + $0x28] sm:$0xff]
      %v6829 = vld [vmem:[%s6822 + $0x30] sm:$0xff]
      %v6830 = vld [vmem:[%s6822 + $0x38] sm:$0xff]
      %v6831 = vld [vmem:[%s6822 + $0x40] sm:$0xff]
      %v6832 = vld [vmem:[%s6822 + $0x48] sm:$0xff]
      %v6833 = vld [vmem:[%s6822 + $0x50] sm:$0xff]
      %v6834 = vld [vmem:[%s6822 + $0x58] sm:$0xff]
      %v6835 = vld [vmem:[%s6822 + $0x60] sm:$0xff]
      %v6836 = vld [vmem:[%s6822 + $0x68] sm:$0xff]
      %v6837 = vld [vmem:[%s6822 + $0x70] sm:$0xff]
      %v6838 = vld [vmem:[%s6822 + $0x78] sm:$0xff]
      %v6839 = vld [vmem:[%s6822 + $0x80] sm:$0xff]
      %v6840 = vld [vmem:[%s6822 + $0x88] sm:$0xff]
      %v6841 = vld [vmem:[%s6822 + $0x90] sm:$0xff]
      %v6842 = vld [vmem:[%s6822 + $0x98] sm:$0xff]
      %v6843 = vld [vmem:[%s6822 + $0xa0] sm:$0xff]
      %v6844 = vld [vmem:[%s6822 + $0xa8] sm:$0xff]
      %v6845 = vld [vmem:[%s6822 + $0xb0] sm:$0xff]
      %v6846 = vld [vmem:[%s6822 + $0xb8] sm:$0xff]
      %v6847 = vld [vmem:[%s6822 + $0xc0] sm:$0xff]
      %v6848 = vld [vmem:[%s6822 + $0xc8] sm:$0xff]
      %v6849 = vld [vmem:[%s6822 + $0xd0] sm:$0xff]
      %v6850 = vld [vmem:[%s6822 + $0xd8] sm:$0xff]
      %v6851 = vld [vmem:[%s6822 + $0xe0] sm:$0xff]
      %v6852 = vld [vmem:[%s6822 + $0xe8] sm:$0xff]
      %v6853 = vld [vmem:[%s6822 + $0xf0] sm:$0xff]
      %v6854 = vld [vmem:[%s6822 + $0xf8] sm:$0xff]
      %v6855 = vld [vmem:[%s6822 + $0x100] sm:$0xff]
      %v6856 = vld [vmem:[%s6822 + $0x108] sm:$0xff]
      %v6857 = vld [vmem:[%s6822 + $0x110] sm:$0xff]
      %v6858 = vld [vmem:[%s6822 + $0x118] sm:$0xff]
      %v6859 = vld [vmem:[%s6822 + $0x120] sm:$0xff]
      %v6860 = vld [vmem:[%s6822 + $0x128] sm:$0xff]
      %v6861 = vld [vmem:[%s6822 + $0x130] sm:$0xff]
      %v6862 = vld [vmem:[%s6822 + $0x138] sm:$0xff]
      %v6863 = vld [vmem:[%s6822 + $0x140] sm:$0xff]
      %v6864 = vld [vmem:[%s6822 + $0x148] sm:$0xff]
      %v6865 = vld [vmem:[%s6822 + $0x150] sm:$0xff]
      %v6866 = vld [vmem:[%s6822 + $0x158] sm:$0xff]
      %v6867 = vld [vmem:[%s6822 + $0x160] sm:$0xff]
      %v6868 = vld [vmem:[%s6822 + $0x168] sm:$0xff]
      %v6869 = vld [vmem:[%s6822 + $0x170] sm:$0xff]
      %v6870 = vld [vmem:[%s6822 + $0x178] sm:$0xff]
      %v6871 = vld [vmem:[%s6822 + $0x180] sm:$0xff]
      %v6872 = vld [vmem:[%s6822 + $0x188] sm:$0xff]
      %v6923 = vunpack.c.l.b16 %v6823
      %v6924 = vunpack.c.h.b16 %v6823
      %v6925 = vunpack.c.l.b16 %v6824
      %v6926 = vunpack.c.h.b16 %v6824
      %v6927 = vunpack.c.l.b16 %v6825
      %v6928 = vunpack.c.h.b16 %v6825
      %v6929 = vunpack.c.l.b16 %v6826
      %v6930 = vunpack.c.h.b16 %v6826
      %v6931 = vunpack.c.l.b16 %v6827
      %v6932 = vunpack.c.h.b16 %v6827
      %v6933 = vunpack.c.l.b16 %v6828
      %v6934 = vunpack.c.h.b16 %v6828
      %v6935 = vunpack.c.l.b16 %v6829
      %v6936 = vunpack.c.h.b16 %v6829
      %v6937 = vunpack.c.l.b16 %v6830
      %v6938 = vunpack.c.h.b16 %v6830
      %v6939 = vunpack.c.l.b16 %v6831
      %v6940 = vunpack.c.h.b16 %v6831
      %v6941 = vunpack.c.l.b16 %v6832
      %v6942 = vunpack.c.h.b16 %v6832
      %v6943 = vunpack.c.l.b16 %v6833
      %v6944 = vunpack.c.h.b16 %v6833
      %v6945 = vunpack.c.l.b16 %v6834
      %v6946 = vunpack.c.h.b16 %v6834
      %v6947 = vunpack.c.l.b16 %v6835
      %v6948 = vunpack.c.h.b16 %v6835
      %v6949 = vunpack.c.l.b16 %v6836
      %v6950 = vunpack.c.h.b16 %v6836
      %v6951 = vunpack.c.l.b16 %v6837
      %v6952 = vunpack.c.h.b16 %v6837
      %v6953 = vunpack.c.l.b16 %v6838
      %v6954 = vunpack.c.h.b16 %v6838
      %v6955 = vunpack.c.l.b16 %v6839
      %v6956 = vunpack.c.h.b16 %v6839
      %v6957 = vunpack.c.l.b16 %v6840
      %v6958 = vunpack.c.h.b16 %v6840
      %v6959 = vunpack.c.l.b16 %v6841
      %v6960 = vunpack.c.h.b16 %v6841
      %v6961 = vunpack.c.l.b16 %v6842
      %v6962 = vunpack.c.h.b16 %v6842
      %v6963 = vunpack.c.l.b16 %v6843
      %v6964 = vunpack.c.h.b16 %v6843
      %v6965 = vunpack.c.l.b16 %v6844
      %v6966 = vunpack.c.h.b16 %v6844
      %v6967 = vunpack.c.l.b16 %v6845
      %v6968 = vunpack.c.h.b16 %v6845
      %v6969 = vunpack.c.l.b16 %v6846
      %v6970 = vunpack.c.h.b16 %v6846
      %v6971 = vunpack.c.l.b16 %v6847
      %v6972 = vunpack.c.h.b16 %v6847
      %v6973 = vunpack.c.l.b16 %v6848
      %v6974 = vunpack.c.h.b16 %v6848
      %v6975 = vunpack.c.l.b16 %v6849
      %v6976 = vunpack.c.h.b16 %v6849
      %v6977 = vunpack.c.l.b16 %v6850
      %v6978 = vunpack.c.h.b16 %v6850
      %v6979 = vunpack.c.l.b16 %v6851
      %v6980 = vunpack.c.h.b16 %v6851
      %v6981 = vunpack.c.l.b16 %v6852
      %v6982 = vunpack.c.h.b16 %v6852
      %v6983 = vunpack.c.l.b16 %v6853
      %v6984 = vunpack.c.h.b16 %v6853
      %v6985 = vunpack.c.l.b16 %v6854
      %v6986 = vunpack.c.h.b16 %v6854
      %v6987 = vunpack.c.l.b16 %v6855
      %v6988 = vunpack.c.h.b16 %v6855
      %v6989 = vunpack.c.l.b16 %v6856
      %v6990 = vunpack.c.h.b16 %v6856
      %v6991 = vunpack.c.l.b16 %v6857
      %v6992 = vunpack.c.h.b16 %v6857
      %v6993 = vunpack.c.l.b16 %v6858
      %v6994 = vunpack.c.h.b16 %v6858
      %v6995 = vunpack.c.l.b16 %v6859
      %v6996 = vunpack.c.h.b16 %v6859
      %v6997 = vunpack.c.l.b16 %v6860
      %v6998 = vunpack.c.h.b16 %v6860
      %v6999 = vunpack.c.l.b16 %v6861
      %v7000 = vunpack.c.h.b16 %v6861
      %v7001 = vunpack.c.l.b16 %v6862
      %v7002 = vunpack.c.h.b16 %v6862
      %v7003 = vunpack.c.l.b16 %v6863
      %v7004 = vunpack.c.h.b16 %v6863
      %v7005 = vunpack.c.l.b16 %v6864
      %v7006 = vunpack.c.h.b16 %v6864
      %v7007 = vunpack.c.l.b16 %v6865
      %v7008 = vunpack.c.h.b16 %v6865
      %v7009 = vunpack.c.l.b16 %v6866
      %v7010 = vunpack.c.h.b16 %v6866
      %v7011 = vunpack.c.l.b16 %v6867
      %v7012 = vunpack.c.h.b16 %v6867
      %v7013 = vunpack.c.l.b16 %v6868
      %v7014 = vunpack.c.h.b16 %v6868
      %v7015 = vunpack.c.l.b16 %v6869
      %v7016 = vunpack.c.h.b16 %v6869
      %v7017 = vunpack.c.l.b16 %v6870
      %v7018 = vunpack.c.h.b16 %v6870
      %v7019 = vunpack.c.l.b16 %v6871
      %v7020 = vunpack.c.h.b16 %v6871
      %v7021 = vunpack.c.l.b16 %v6872
      %v7022 = vunpack.c.h.b16 %v6872
      %v7023 = vpack.c.b16 %v6927, %v6923
      %v7024 = vpack.c.b16 %v6928, %v6924
      %v7025 = vpack.c.b16 %v6929, %v6925
      %v7026 = vpack.c.b16 %v6930, %v6926
      %v7027 = vpack.c.b16 %v6935, %v6931
      %v7028 = vpack.c.b16 %v6936, %v6932
      %v7029 = vpack.c.b16 %v6937, %v6933
      %v7030 = vpack.c.b16 %v6938, %v6934
      %v7031 = vpack.c.b16 %v6943, %v6939
      %v7032 = vpack.c.b16 %v6944, %v6940
      %v7033 = vpack.c.b16 %v6945, %v6941
      %v7034 = vpack.c.b16 %v6946, %v6942
      %v7035 = vpack.c.b16 %v6951, %v6947
      %v7036 = vpack.c.b16 %v6952, %v6948
      %v7037 = vpack.c.b16 %v6953, %v6949
      %v7038 = vpack.c.b16 %v6954, %v6950
      %v7039 = vpack.c.b16 %v6959, %v6955
      %v7040 = vpack.c.b16 %v6960, %v6956
      %v7041 = vpack.c.b16 %v6961, %v6957
      %v7042 = vpack.c.b16 %v6962, %v6958
      %v7043 = vpack.c.b16 %v6967, %v6963
      %v7044 = vpack.c.b16 %v6968, %v6964
      %v7045 = vpack.c.b16 %v6969, %v6965
      %v7046 = vpack.c.b16 %v6970, %v6966
      %v7047 = vpack.c.b16 %v6975, %v6971
      %v7048 = vpack.c.b16 %v6976, %v6972
      %v7049 = vpack.c.b16 %v6977, %v6973
      %v7050 = vpack.c.b16 %v6978, %v6974
      %v7051 = vpack.c.b16 %v6983, %v6979
      %v7052 = vpack.c.b16 %v6984, %v6980
      %v7053 = vpack.c.b16 %v6985, %v6981
      %v7054 = vpack.c.b16 %v6986, %v6982
      %v7055 = vpack.c.b16 %v6991, %v6987
      %v7056 = vpack.c.b16 %v6992, %v6988
      %v7057 = vpack.c.b16 %v6993, %v6989
      %v7058 = vpack.c.b16 %v6994, %v6990
      %v7059 = vpack.c.b16 %v6999, %v6995
      %v7060 = vpack.c.b16 %v7000, %v6996
      %v7061 = vpack.c.b16 %v7001, %v6997
      %v7062 = vpack.c.b16 %v7002, %v6998
      %v7063 = vpack.c.b16 %v7007, %v7003
      %v7064 = vpack.c.b16 %v7008, %v7004
      %v7065 = vpack.c.b16 %v7009, %v7005
      %v7066 = vpack.c.b16 %v7010, %v7006
      %v7067 = vpack.c.b16 %v7015, %v7011
      %v7068 = vpack.c.b16 %v7016, %v7012
      %v7069 = vpack.c.b16 %v7017, %v7013
      %v7070 = vpack.c.b16 %v7018, %v7014
      %v7071 = vpack.c.b16 %v7019, %v7019
      %v7072 = vpack.c.b16 %v7020, %v7020
      %v7073 = vpack.c.b16 %v7021, %v7021
      %v7074 = vpack.c.b16 %v7022, %v7022
      %v7124 = vsel %vm3156, %v6821, 0
      %vm7126 = vcmask 1043456
      %v7128 = vsel %vm7126, %v7071, 0
      %v7131 = vsel %vm7126, %v7072, 0
      %v7134 = vsel %vm7126, %v7073, 0
      %v7137 = vsel %vm7126, %v7074, 0
      %7139 = vmatprep.subr.bf16.mxu0 %v7024
      %7140 = vmatpush1.bf16.msra.mxu0 %v7023
      %7141 = vmatprep.subr.bf16.mxu0 %v7028
      %7142 = vmatpush1.bf16.msra.mxu0 %v7027
      %7143 = vmatprep.subr.bf16.mxu0 %v7032
      %7144 = vmatpush1.bf16.msra.mxu0 %v7031
      %7145 = vmatprep.subr.bf16.mxu0 %v7036
      %7146 = vmatpush1.bf16.msra.mxu0 %v7035
      %7147 = vmatprep.subr.bf16.mxu0 %v7040
      %7148 = vmatpush1.bf16.msra.mxu0 %v7039
      %7149 = vmatprep.subr.bf16.mxu0 %v7044
      %7150 = vmatpush1.bf16.msra.mxu0 %v7043
      %7151 = vmatprep.subr.bf16.mxu0 %v7048
      %7152 = vmatpush1.bf16.msra.mxu0 %v7047
      %7153 = vmatprep.subr.bf16.mxu0 %v7052
      %7154 = vmatpush1.bf16.msra.mxu0 %v7051
      %7155 = vmatprep.subr.bf16.mxu0 %v7056
      %7156 = vmatpush1.bf16.msra.mxu0 %v7055
      %7157 = vmatprep.subr.bf16.mxu0 %v7060
      %7158 = vmatpush1.bf16.msra.mxu0 %v7059
      %7159 = vmatprep.subr.bf16.mxu0 %v7064
      %7160 = vmatpush1.bf16.msra.mxu0 %v7063
      %7161 = vmatprep.subr.bf16.mxu0 %v7068
      %7162 = vmatpush1.bf16.msra.mxu0 %v7067
      %7163 = vmatprep.subr.bf16.mxu0 %v7131
      %7164 = vmatpush1.bf16.msra.mxu0 %v7128
      %7165 = vmatprep.subr.bf16.mxu0 0
      %7166 = vmatpush1.bf16.msra.mxu0 0
      %7167 = vmatprep.subr.bf16.mxu0 0
      %7168 = vmatpush1.bf16.msra.mxu0 0
      %7169 = vmatprep.subr.bf16.mxu0 0
      %7170 = vmatpush1.bf16.msra.mxu0 0
      %7171 = vmatprep.mubr.bf16.mxu0 %v7124
      %7172 = vmatmul.mubr.bf16.gmra.mrb[0].mxu0 %v6820
      %v7173 = vpop.f32.mrb[0].mxu0
      %v7174 = vadd.f32 0.0, %v7173
      %v7175 = vpop.f32.mrb[0].mxu0
      %v7176 = vadd.f32 0.0, %v7175
      %v7177 = vpop.f32.mrb[0].mxu0
      %v7178 = vadd.f32 0.0, %v7177
      %v7179 = vpop.f32.mrb[0].mxu0
      %v7180 = vadd.f32 0.0, %v7179
      %7181 = vdwg.mxu0
      %7182 = vmatprep.subr.bf16.mxu0 %v7026
      %7183 = vmatpush1.bf16.msra.mxu0 %v7025
      %7184 = vmatprep.subr.bf16.mxu0 %v7030
      %7185 = vmatpush1.bf16.msra.mxu0 %v7029
      %7186 = vmatprep.subr.bf16.mxu0 %v7034
      %7187 = vmatpush1.bf16.msra.mxu0 %v7033
      %7188 = vmatprep.subr.bf16.mxu0 %v7038
      %7189 = vmatpush1.bf16.msra.mxu0 %v7037
      %7190 = vmatprep.subr.bf16.mxu0 %v7042
      %7191 = vmatpush1.bf16.msra.mxu0 %v7041
      %7192 = vmatprep.subr.bf16.mxu0 %v7046
      %7193 = vmatpush1.bf16.msra.mxu0 %v7045
      %7194 = vmatprep.subr.bf16.mxu0 %v7050
      %7195 = vmatpush1.bf16.msra.mxu0 %v7049
      %7196 = vmatprep.subr.bf16.mxu0 %v7054
      %7197 = vmatpush1.bf16.msra.mxu0 %v7053
      %7198 = vmatprep.subr.bf16.mxu0 %v7058
      %7199 = vmatpush1.bf16.msra.mxu0 %v7057
      %7200 = vmatprep.subr.bf16.mxu0 %v7062
      %7201 = vmatpush1.bf16.msra.mxu0 %v7061
      %7202 = vmatprep.subr.bf16.mxu0 %v7066
      %7203 = vmatpush1.bf16.msra.mxu0 %v7065
      %7204 = vmatprep.subr.bf16.mxu0 %v7070
      %7205 = vmatpush1.bf16.msra.mxu0 %v7069
      %7206 = vmatprep.subr.bf16.mxu0 %v7137
      %7207 = vmatpush1.bf16.msra.mxu0 %v7134
      %7208 = vmatprep.subr.bf16.mxu0 0
      %7209 = vmatpush1.bf16.msra.mxu0 0
      %7210 = vmatprep.subr.bf16.mxu0 0
      %7211 = vmatpush1.bf16.msra.mxu0 0
      %7212 = vmatprep.subr.bf16.mxu0 0
      %7213 = vmatpush1.bf16.msra.mxu0 0
      %7214 = vmatprep.mubr.bf16.mxu0 %v7124
      %7215 = vmatmul.mubr.bf16.gmra.mrb[0].mxu0 %v6820
      %v7216 = vpop.f32.mrb[0].mxu0
      %v7217 = vadd.f32 0.0, %v7216
      %v7218 = vpop.f32.mrb[0].mxu0
      %v7219 = vadd.f32 0.0, %v7218
      %v7220 = vpop.f32.mrb[0].mxu0
      %v7221 = vadd.f32 0.0, %v7220
      %v7222 = vpop.f32.mrb[0].mxu0
      %v7223 = vadd.f32 0.0, %v7222
      %7224 = vdwg.mxu0
      %v7275 = vunpack.c.l.b16 %v6770
      %v7276 = vunpack.c.h.b16 %v6770
      %v7277 = vunpack.c.l.b16 %v6771
      %v7278 = vunpack.c.h.b16 %v6771
      %v7279 = vunpack.c.l.b16 %v6772
      %v7280 = vunpack.c.h.b16 %v6772
      %v7281 = vunpack.c.l.b16 %v6773
      %v7282 = vunpack.c.h.b16 %v6773
      %v7283 = vunpack.c.l.b16 %v6774
      %v7284 = vunpack.c.h.b16 %v6774
      %v7285 = vunpack.c.l.b16 %v6775
      %v7286 = vunpack.c.h.b16 %v6775
      %v7287 = vunpack.c.l.b16 %v6776
      %v7288 = vunpack.c.h.b16 %v6776
      %v7289 = vunpack.c.l.b16 %v6777
      %v7290 = vunpack.c.h.b16 %v6777
      %v7291 = vunpack.c.l.b16 %v6778
      %v7292 = vunpack.c.h.b16 %v6778
      %v7293 = vunpack.c.l.b16 %v6779
      %v7294 = vunpack.c.h.b16 %v6779
      %v7295 = vunpack.c.l.b16 %v6780
      %v7296 = vunpack.c.h.b16 %v6780
      %v7297 = vunpack.c.l.b16 %v6781
      %v7298 = vunpack.c.h.b16 %v6781
      %v7299 = vunpack.c.l.b16 %v6782
      %v7300 = vunpack.c.h.b16 %v6782
      %v7301 = vunpack.c.l.b16 %v6783
      %v7302 = vunpack.c.h.b16 %v6783
      %v7303 = vunpack.c.l.b16 %v6784
      %v7304 = vunpack.c.h.b16 %v6784
      %v7305 = vunpack.c.l.b16 %v6785
      %v7306 = vunpack.c.h.b16 %v6785
      %v7307 = vunpack.c.l.b16 %v6786
      %v7308 = vunpack.c.h.b16 %v6786
      %v7309 = vunpack.c.l.b16 %v6787
      %v7310 = vunpack.c.h.b16 %v6787
      %v7311 = vunpack.c.l.b16 %v6788
      %v7312 = vunpack.c.h.b16 %v6788
      %v7313 = vunpack.c.l.b16 %v6789
      %v7314 = vunpack.c.h.b16 %v6789
      %v7315 = vunpack.c.l.b16 %v6790
      %v7316 = vunpack.c.h.b16 %v6790
      %v7317 = vunpack.c.l.b16 %v6791
      %v7318 = vunpack.c.h.b16 %v6791
      %v7319 = vunpack.c.l.b16 %v6792
      %v7320 = vunpack.c.h.b16 %v6792
      %v7321 = vunpack.c.l.b16 %v6793
      %v7322 = vunpack.c.h.b16 %v6793
      %v7323 = vunpack.c.l.b16 %v6794
      %v7324 = vunpack.c.h.b16 %v6794
      %v7325 = vunpack.c.l.b16 %v6795
      %v7326 = vunpack.c.h.b16 %v6795
      %v7327 = vunpack.c.l.b16 %v6796
      %v7328 = vunpack.c.h.b16 %v6796
      %v7329 = vunpack.c.l.b16 %v6797
      %v7330 = vunpack.c.h.b16 %v6797
      %v7331 = vunpack.c.l.b16 %v6798
      %v7332 = vunpack.c.h.b16 %v6798
      %v7333 = vunpack.c.l.b16 %v6799
      %v7334 = vunpack.c.h.b16 %v6799
      %v7335 = vunpack.c.l.b16 %v6800
      %v7336 = vunpack.c.h.b16 %v6800
      %v7337 = vunpack.c.l.b16 %v6801
      %v7338 = vunpack.c.h.b16 %v6801
      %v7339 = vunpack.c.l.b16 %v6802
      %v7340 = vunpack.c.h.b16 %v6802
      %v7341 = vunpack.c.l.b16 %v6803
      %v7342 = vunpack.c.h.b16 %v6803
      %v7343 = vunpack.c.l.b16 %v6804
      %v7344 = vunpack.c.h.b16 %v6804
      %v7345 = vunpack.c.l.b16 %v6805
      %v7346 = vunpack.c.h.b16 %v6805
      %v7347 = vunpack.c.l.b16 %v6806
      %v7348 = vunpack.c.h.b16 %v6806
      %v7349 = vunpack.c.l.b16 %v6807
      %v7350 = vunpack.c.h.b16 %v6807
      %v7351 = vunpack.c.l.b16 %v6808
      %v7352 = vunpack.c.h.b16 %v6808
      %v7353 = vunpack.c.l.b16 %v6809
      %v7354 = vunpack.c.h.b16 %v6809
      %v7355 = vunpack.c.l.b16 %v6810
      %v7356 = vunpack.c.h.b16 %v6810
      %v7357 = vunpack.c.l.b16 %v6811
      %v7358 = vunpack.c.h.b16 %v6811
      %v7359 = vunpack.c.l.b16 %v6812
      %v7360 = vunpack.c.h.b16 %v6812
      %v7361 = vunpack.c.l.b16 %v6813
      %v7362 = vunpack.c.h.b16 %v6813
      %v7363 = vunpack.c.l.b16 %v6814
      %v7364 = vunpack.c.h.b16 %v6814
      %v7365 = vunpack.c.l.b16 %v6815
      %v7366 = vunpack.c.h.b16 %v6815
      %v7367 = vunpack.c.l.b16 %v6816
      %v7368 = vunpack.c.h.b16 %v6816
      %v7369 = vunpack.c.l.b16 %v6817
      %v7370 = vunpack.c.h.b16 %v6817
      %v7371 = vunpack.c.l.b16 %v6818
      %v7372 = vunpack.c.h.b16 %v6818
      %v7373 = vunpack.c.l.b16 %v6819
      %v7374 = vunpack.c.h.b16 %v6819
      %v7375 = vpack.c.b16 %v7279, %v7275
      %v7376 = vpack.c.b16 %v7280, %v7276
      %v7377 = vpack.c.b16 %v7281, %v7277
      %v7378 = vpack.c.b16 %v7282, %v7278
      %v7379 = vpack.c.b16 %v7287, %v7283
      %v7380 = vpack.c.b16 %v7288, %v7284
      %v7381 = vpack.c.b16 %v7289, %v7285
      %v7382 = vpack.c.b16 %v7290, %v7286
      %v7383 = vpack.c.b16 %v7295, %v7291
      %v7384 = vpack.c.b16 %v7296, %v7292
      %v7385 = vpack.c.b16 %v7297, %v7293
      %v7386 = vpack.c.b16 %v7298, %v7294
      %v7387 = vpack.c.b16 %v7303, %v7299
      %v7388 = vpack.c.b16 %v7304, %v7300
      %v7389 = vpack.c.b16 %v7305, %v7301
      %v7390 = vpack.c.b16 %v7306, %v7302
      %v7391 = vpack.c.b16 %v7311, %v7307
      %v7392 = vpack.c.b16 %v7312, %v7308
      %v7393 = vpack.c.b16 %v7313, %v7309
      %v7394 = vpack.c.b16 %v7314, %v7310
      %v7395 = vpack.c.b16 %v7319, %v7315
      %v7396 = vpack.c.b16 %v7320, %v7316
      %v7397 = vpack.c.b16 %v7321, %v7317
      %v7398 = vpack.c.b16 %v7322, %v7318
      %v7399 = vpack.c.b16 %v7327, %v7323
      %v7400 = vpack.c.b16 %v7328, %v7324
      %v7401 = vpack.c.b16 %v7329, %v7325
      %v7402 = vpack.c.b16 %v7330, %v7326
      %v7403 = vpack.c.b16 %v7335, %v7331
      %v7404 = vpack.c.b16 %v7336, %v7332
      %v7405 = vpack.c.b16 %v7337, %v7333
      %v7406 = vpack.c.b16 %v7338, %v7334
      %v7407 = vpack.c.b16 %v7343, %v7339
      %v7408 = vpack.c.b16 %v7344, %v7340
      %v7409 = vpack.c.b16 %v7345, %v7341
      %v7410 = vpack.c.b16 %v7346, %v7342
      %v7411 = vpack.c.b16 %v7351, %v7347
      %v7412 = vpack.c.b16 %v7352, %v7348
      %v7413 = vpack.c.b16 %v7353, %v7349
      %v7414 = vpack.c.b16 %v7354, %v7350
      %v7415 = vpack.c.b16 %v7359, %v7355
      %v7416 = vpack.c.b16 %v7360, %v7356
      %v7417 = vpack.c.b16 %v7361, %v7357
      %v7418 = vpack.c.b16 %v7362, %v7358
      %v7419 = vpack.c.b16 %v7367, %v7363
      %v7420 = vpack.c.b16 %v7368, %v7364
      %v7421 = vpack.c.b16 %v7369, %v7365
      %v7422 = vpack.c.b16 %v7370, %v7366
      %v7423 = vpack.c.b16 %v7371, %v7371
      %v7424 = vpack.c.b16 %v7372, %v7372
      %v7425 = vpack.c.b16 %v7373, %v7373
      %v7426 = vpack.c.b16 %v7374, %v7374
      %v7476 = vsel %vm3156, %v6769, 0
      %v7479 = vsel %vm7126, %v7423, 0
      %v7482 = vsel %vm7126, %v7424, 0
      %v7485 = vsel %vm7126, %v7425, 0
      %v7488 = vsel %vm7126, %v7426, 0
      %7490 = vmatprep.subr.bf16.mxu0 %v7376
      %7491 = vmatpush1.bf16.msra.mxu0 %v7375
      %7492 = vmatprep.subr.bf16.mxu0 %v7380
      %7493 = vmatpush1.bf16.msra.mxu0 %v7379
      %7494 = vmatprep.subr.bf16.mxu0 %v7384
      %7495 = vmatpush1.bf16.msra.mxu0 %v7383
      %7496 = vmatprep.subr.bf16.mxu0 %v7388
      %7497 = vmatpush1.bf16.msra.mxu0 %v7387
      %7498 = vmatprep.subr.bf16.mxu0 %v7392
      %7499 = vmatpush1.bf16.msra.mxu0 %v7391
      %7500 = vmatprep.subr.bf16.mxu0 %v7396
      %7501 = vmatpush1.bf16.msra.mxu0 %v7395
      %7502 = vmatprep.subr.bf16.mxu0 %v7400
      %7503 = vmatpush1.bf16.msra.mxu0 %v7399
      %7504 = vmatprep.subr.bf16.mxu0 %v7404
      %7505 = vmatpush1.bf16.msra.mxu0 %v7403
      %7506 = vmatprep.subr.bf16.mxu0 %v7408
      %7507 = vmatpush1.bf16.msra.mxu0 %v7407
      %7508 = vmatprep.subr.bf16.mxu0 %v7412
      %7509 = vmatpush1.bf16.msra.mxu0 %v7411
      %7510 = vmatprep.subr.bf16.mxu0 %v7416
      %7511 = vmatpush1.bf16.msra.mxu0 %v7415
      %7512 = vmatprep.subr.bf16.mxu0 %v7420
      %7513 = vmatpush1.bf16.msra.mxu0 %v7419
      %7514 = vmatprep.subr.bf16.mxu0 %v7482
      %7515 = vmatpush1.bf16.msra.mxu0 %v7479
      %7516 = vmatprep.subr.bf16.mxu0 0
      %7517 = vmatpush1.bf16.msra.mxu0 0
      %7518 = vmatprep.subr.bf16.mxu0 0
      %7519 = vmatpush1.bf16.msra.mxu0 0
      %7520 = vmatprep.subr.bf16.mxu0 0
      %7521 = vmatpush1.bf16.msra.mxu0 0
      %7522 = vmatprep.mubr.bf16.mxu0 %v7476
      %7523 = vmatmul.mubr.bf16.gmra.mrb[0].mxu0 %v6768
      %v7524 = vpop.f32.mrb[0].mxu0
      %v7525 = vadd.f32 %v7174, %v7524
      %v7526 = vpop.f32.mrb[0].mxu0
      %v7527 = vadd.f32 %v7176, %v7526
      %v7528 = vpop.f32.mrb[0].mxu0
      %v7529 = vadd.f32 %v7178, %v7528
      %v7530 = vpop.f32.mrb[0].mxu0
      %v7531 = vadd.f32 %v7180, %v7530
      %7532 = vdwg.mxu0
      %7533 = vmatprep.subr.bf16.mxu0 %v7378
      %7534 = vmatpush1.bf16.msra.mxu0 %v7377
      %7535 = vmatprep.subr.bf16.mxu0 %v7382
      %7536 = vmatpush1.bf16.msra.mxu0 %v7381
      %7537 = vmatprep.subr.bf16.mxu0 %v7386
      %7538 = vmatpush1.bf16.msra.mxu0 %v7385
      %7539 = vmatprep.subr.bf16.mxu0 %v7390
      %7540 = vmatpush1.bf16.msra.mxu0 %v7389
      %7541 = vmatprep.subr.bf16.mxu0 %v7394
      %7542 = vmatpush1.bf16.msra.mxu0 %v7393
      %7543 = vmatprep.subr.bf16.mxu0 %v7398
      %7544 = vmatpush1.bf16.msra.mxu0 %v7397
      %7545 = vmatprep.subr.bf16.mxu0 %v7402
      %7546 = vmatpush1.bf16.msra.mxu0 %v7401
      %7547 = vmatprep.subr.bf16.mxu0 %v7406
      %7548 = vmatpush1.bf16.msra.mxu0 %v7405
      %7549 = vmatprep.subr.bf16.mxu0 %v7410
      %7550 = vmatpush1.bf16.msra.mxu0 %v7409
      %7551 = vmatprep.subr.bf16.mxu0 %v7414
      %7552 = vmatpush1.bf16.msra.mxu0 %v7413
      %7553 = vmatprep.subr.bf16.mxu0 %v7418
      %7554 = vmatpush1.bf16.msra.mxu0 %v7417
      %7555 = vmatprep.subr.bf16.mxu0 %v7422
      %7556 = vmatpush1.bf16.msra.mxu0 %v7421
      %7557 = vmatprep.subr.bf16.mxu0 %v7488
      %7558 = vmatpush1.bf16.msra.mxu0 %v7485
      %7559 = vmatprep.subr.bf16.mxu0 0
      %7560 = vmatpush1.bf16.msra.mxu0 0
      %7561 = vmatprep.subr.bf16.mxu0 0
      %7562 = vmatpush1.bf16.msra.mxu0 0
      %7563 = vmatprep.subr.bf16.mxu0 0
      %7564 = vmatpush1.bf16.msra.mxu0 0
      %7565 = vmatprep.mubr.bf16.mxu0 %v7476
      %7566 = vmatmul.mubr.bf16.gmra.mrb[0].mxu0 %v6768
      %v7567 = vpop.f32.mrb[0].mxu0
      %v7568 = vadd.f32 %v7217, %v7567
      %v7569 = vpop.f32.mrb[0].mxu0
      %v7570 = vadd.f32 %v7219, %v7569
      %v7571 = vpop.f32.mrb[0].mxu0
      %v7572 = vadd.f32 %v7221, %v7571
      %v7573 = vpop.f32.mrb[0].mxu0
      %v7574 = vadd.f32 %v7223, %v7573
      %7575 = vdwg.mxu0
      %v7576 = vld [vmem:[#allocation6 + $0x20] sm:$0xff]
      %v7577 = vld [vmem:[#allocation6 + $0x28] sm:$0xff]
      %s7578 = scalar_lea.vmem %s8, 800
      %v7579 = vld [vmem:[%s7578] sm:$0xff]
      %v7580 = vld [vmem:[%s7578 + $0x8] sm:$0xff]
      %v7581 = vld [vmem:[%s7578 + $0x10] sm:$0xff]
      %v7582 = vld [vmem:[%s7578 + $0x18] sm:$0xff]
      %v7583 = vld [vmem:[%s7578 + $0x20] sm:$0xff]
      %v7584 = vld [vmem:[%s7578 + $0x28] sm:$0xff]
      %v7585 = vld [vmem:[%s7578 + $0x30] sm:$0xff]
      %v7586 = vld [vmem:[%s7578 + $0x38] sm:$0xff]
      %v7587 = vld [vmem:[%s7578 + $0x40] sm:$0xff]
      %v7588 = vld [vmem:[%s7578 + $0x48] sm:$0xff]
      %v7589 = vld [vmem:[%s7578 + $0x50] sm:$0xff]
      %v7590 = vld [vmem:[%s7578 + $0x58] sm:$0xff]
      %v7591 = vld [vmem:[%s7578 + $0x60] sm:$0xff]
      %v7592 = vld [vmem:[%s7578 + $0x68] sm:$0xff]
      %v7593 = vld [vmem:[%s7578 + $0x70] sm:$0xff]
      %v7594 = vld [vmem:[%s7578 + $0x78] sm:$0xff]
      %v7595 = vld [vmem:[%s7578 + $0x80] sm:$0xff]
      %v7596 = vld [vmem:[%s7578 + $0x88] sm:$0xff]
      %v7597 = vld [vmem:[%s7578 + $0x90] sm:$0xff]
      %v7598 = vld [vmem:[%s7578 + $0x98] sm:$0xff]
      %v7599 = vld [vmem:[%s7578 + $0xa0] sm:$0xff]
      %v7600 = vld [vmem:[%s7578 + $0xa8] sm:$0xff]
      %v7601 = vld [vmem:[%s7578 + $0xb0] sm:$0xff]
      %v7602 = vld [vmem:[%s7578 + $0xb8] sm:$0xff]
      %v7603 = vld [vmem:[%s7578 + $0xc0] sm:$0xff]
      %v7604 = vld [vmem:[%s7578 + $0xc8] sm:$0xff]
      %v7605 = vld [vmem:[%s7578 + $0xd0] sm:$0xff]
      %v7606 = vld [vmem:[%s7578 + $0xd8] sm:$0xff]
      %v7607 = vld [vmem:[%s7578 + $0xe0] sm:$0xff]
      %v7608 = vld [vmem:[%s7578 + $0xe8] sm:$0xff]
      %v7609 = vld [vmem:[%s7578 + $0xf0] sm:$0xff]
      %v7610 = vld [vmem:[%s7578 + $0xf8] sm:$0xff]
      %v7611 = vld [vmem:[%s7578 + $0x100] sm:$0xff]
      %v7612 = vld [vmem:[%s7578 + $0x108] sm:$0xff]
      %v7613 = vld [vmem:[%s7578 + $0x110] sm:$0xff]
      %v7614 = vld [vmem:[%s7578 + $0x118] sm:$0xff]
      %v7615 = vld [vmem:[%s7578 + $0x120] sm:$0xff]
      %v7616 = vld [vmem:[%s7578 + $0x128] sm:$0xff]
      %v7617 = vld [vmem:[%s7578 + $0x130] sm:$0xff]
      %v7618 = vld [vmem:[%s7578 + $0x138] sm:$0xff]
      %v7619 = vld [vmem:[%s7578 + $0x140] sm:$0xff]
      %v7620 = vld [vmem:[%s7578 + $0x148] sm:$0xff]
      %v7621 = vld [vmem:[%s7578 + $0x150] sm:$0xff]
      %v7622 = vld [vmem:[%s7578 + $0x158] sm:$0xff]
      %v7623 = vld [vmem:[%s7578 + $0x160] sm:$0xff]
      %v7624 = vld [vmem:[%s7578 + $0x168] sm:$0xff]
      %v7625 = vld [vmem:[%s7578 + $0x170] sm:$0xff]
      %v7626 = vld [vmem:[%s7578 + $0x178] sm:$0xff]
      %v7627 = vld [vmem:[%s7578 + $0x180] sm:$0xff]
      %v7628 = vld [vmem:[%s7578 + $0x188] sm:$0xff]
      %v7679 = vunpack.c.l.b16 %v7579
      %v7680 = vunpack.c.h.b16 %v7579
      %v7681 = vunpack.c.l.b16 %v7580
      %v7682 = vunpack.c.h.b16 %v7580
      %v7683 = vunpack.c.l.b16 %v7581
      %v7684 = vunpack.c.h.b16 %v7581
      %v7685 = vunpack.c.l.b16 %v7582
      %v7686 = vunpack.c.h.b16 %v7582
      %v7687 = vunpack.c.l.b16 %v7583
      %v7688 = vunpack.c.h.b16 %v7583
      %v7689 = vunpack.c.l.b16 %v7584
      %v7690 = vunpack.c.h.b16 %v7584
      %v7691 = vunpack.c.l.b16 %v7585
      %v7692 = vunpack.c.h.b16 %v7585
      %v7693 = vunpack.c.l.b16 %v7586
      %v7694 = vunpack.c.h.b16 %v7586
      %v7695 = vunpack.c.l.b16 %v7587
      %v7696 = vunpack.c.h.b16 %v7587
      %v7697 = vunpack.c.l.b16 %v7588
      %v7698 = vunpack.c.h.b16 %v7588
      %v7699 = vunpack.c.l.b16 %v7589
      %v7700 = vunpack.c.h.b16 %v7589
      %v7701 = vunpack.c.l.b16 %v7590
      %v7702 = vunpack.c.h.b16 %v7590
      %v7703 = vunpack.c.l.b16 %v7591
      %v7704 = vunpack.c.h.b16 %v7591
      %v7705 = vunpack.c.l.b16 %v7592
      %v7706 = vunpack.c.h.b16 %v7592
      %v7707 = vunpack.c.l.b16 %v7593
      %v7708 = vunpack.c.h.b16 %v7593
      %v7709 = vunpack.c.l.b16 %v7594
      %v7710 = vunpack.c.h.b16 %v7594
      %v7711 = vunpack.c.l.b16 %v7595
      %v7712 = vunpack.c.h.b16 %v7595
      %v7713 = vunpack.c.l.b16 %v7596
      %v7714 = vunpack.c.h.b16 %v7596
      %v7715 = vunpack.c.l.b16 %v7597
      %v7716 = vunpack.c.h.b16 %v7597
      %v7717 = vunpack.c.l.b16 %v7598
      %v7718 = vunpack.c.h.b16 %v7598
      %v7719 = vunpack.c.l.b16 %v7599
      %v7720 = vunpack.c.h.b16 %v7599
      %v7721 = vunpack.c.l.b16 %v7600
      %v7722 = vunpack.c.h.b16 %v7600
      %v7723 = vunpack.c.l.b16 %v7601
      %v7724 = vunpack.c.h.b16 %v7601
      %v7725 = vunpack.c.l.b16 %v7602
      %v7726 = vunpack.c.h.b16 %v7602
      %v7727 = vunpack.c.l.b16 %v7603
      %v7728 = vunpack.c.h.b16 %v7603
      %v7729 = vunpack.c.l.b16 %v7604
      %v7730 = vunpack.c.h.b16 %v7604
      %v7731 = vunpack.c.l.b16 %v7605
      %v7732 = vunpack.c.h.b16 %v7605
      %v7733 = vunpack.c.l.b16 %v7606
      %v7734 = vunpack.c.h.b16 %v7606
      %v7735 = vunpack.c.l.b16 %v7607
      %v7736 = vunpack.c.h.b16 %v7607
      %v7737 = vunpack.c.l.b16 %v7608
      %v7738 = vunpack.c.h.b16 %v7608
      %v7739 = vunpack.c.l.b16 %v7609
      %v7740 = vunpack.c.h.b16 %v7609
      %v7741 = vunpack.c.l.b16 %v7610
      %v7742 = vunpack.c.h.b16 %v7610
      %v7743 = vunpack.c.l.b16 %v7611
      %v7744 = vunpack.c.h.b16 %v7611
      %v7745 = vunpack.c.l.b16 %v7612
      %v7746 = vunpack.c.h.b16 %v7612
      %v7747 = vunpack.c.l.b16 %v7613
      %v7748 = vunpack.c.h.b16 %v7613
      %v7749 = vunpack.c.l.b16 %v7614
      %v7750 = vunpack.c.h.b16 %v7614
      %v7751 = vunpack.c.l.b16 %v7615
      %v7752 = vunpack.c.h.b16 %v7615
      %v7753 = vunpack.c.l.b16 %v7616
      %v7754 = vunpack.c.h.b16 %v7616
      %v7755 = vunpack.c.l.b16 %v7617
      %v7756 = vunpack.c.h.b16 %v7617
      %v7757 = vunpack.c.l.b16 %v7618
      %v7758 = vunpack.c.h.b16 %v7618
      %v7759 = vunpack.c.l.b16 %v7619
      %v7760 = vunpack.c.h.b16 %v7619
      %v7761 = vunpack.c.l.b16 %v7620
      %v7762 = vunpack.c.h.b16 %v7620
      %v7763 = vunpack.c.l.b16 %v7621
      %v7764 = vunpack.c.h.b16 %v7621
      %v7765 = vunpack.c.l.b16 %v7622
      %v7766 = vunpack.c.h.b16 %v7622
      %v7767 = vunpack.c.l.b16 %v7623
      %v7768 = vunpack.c.h.b16 %v7623
      %v7769 = vunpack.c.l.b16 %v7624
      %v7770 = vunpack.c.h.b16 %v7624
      %v7771 = vunpack.c.l.b16 %v7625
      %v7772 = vunpack.c.h.b16 %v7625
      %v7773 = vunpack.c.l.b16 %v7626
      %v7774 = vunpack.c.h.b16 %v7626
      %v7775 = vunpack.c.l.b16 %v7627
      %v7776 = vunpack.c.h.b16 %v7627
      %v7777 = vunpack.c.l.b16 %v7628
      %v7778 = vunpack.c.h.b16 %v7628
      %v7779 = vpack.c.b16 %v7683, %v7679
      %v7780 = vpack.c.b16 %v7684, %v7680
      %v7781 = vpack.c.b16 %v7685, %v7681
      %v7782 = vpack.c.b16 %v7686, %v7682
      %v7783 = vpack.c.b16 %v7691, %v7687
      %v7784 = vpack.c.b16 %v7692, %v7688
      %v7785 = vpack.c.b16 %v7693, %v7689
      %v7786 = vpack.c.b16 %v7694, %v7690
      %v7787 = vpack.c.b16 %v7699, %v7695
      %v7788 = vpack.c.b16 %v7700, %v7696
      %v7789 = vpack.c.b16 %v7701, %v7697
      %v7790 = vpack.c.b16 %v7702, %v7698
      %v7791 = vpack.c.b16 %v7707, %v7703
      %v7792 = vpack.c.b16 %v7708, %v7704
      %v7793 = vpack.c.b16 %v7709, %v7705
      %v7794 = vpack.c.b16 %v7710, %v7706
      %v7795 = vpack.c.b16 %v7715, %v7711
      %v7796 = vpack.c.b16 %v7716, %v7712
      %v7797 = vpack.c.b16 %v7717, %v7713
      %v7798 = vpack.c.b16 %v7718, %v7714
      %v7799 = vpack.c.b16 %v7723, %v7719
      %v7800 = vpack.c.b16 %v7724, %v7720
      %v7801 = vpack.c.b16 %v7725, %v7721
      %v7802 = vpack.c.b16 %v7726, %v7722
      %v7803 = vpack.c.b16 %v7731, %v7727
      %v7804 = vpack.c.b16 %v7732, %v7728
      %v7805 = vpack.c.b16 %v7733, %v7729
      %v7806 = vpack.c.b16 %v7734, %v7730
      %v7807 = vpack.c.b16 %v7739, %v7735
      %v7808 = vpack.c.b16 %v7740, %v7736
      %v7809 = vpack.c.b16 %v7741, %v7737
      %v7810 = vpack.c.b16 %v7742, %v7738
      %v7811 = vpack.c.b16 %v7747, %v7743
      %v7812 = vpack.c.b16 %v7748, %v7744
      %v7813 = vpack.c.b16 %v7749, %v7745
      %v7814 = vpack.c.b16 %v7750, %v7746
      %v7815 = vpack.c.b16 %v7755, %v7751
      %v7816 = vpack.c.b16 %v7756, %v7752
      %v7817 = vpack.c.b16 %v7757, %v7753
      %v7818 = vpack.c.b16 %v7758, %v7754
      %v7819 = vpack.c.b16 %v7763, %v7759
      %v7820 = vpack.c.b16 %v7764, %v7760
      %v7821 = vpack.c.b16 %v7765, %v7761
      %v7822 = vpack.c.b16 %v7766, %v7762
      %v7823 = vpack.c.b16 %v7771, %v7767
      %v7824 = vpack.c.b16 %v7772, %v7768
      %v7825 = vpack.c.b16 %v7773, %v7769
      %v7826 = vpack.c.b16 %v7774, %v7770
      %v7827 = vpack.c.b16 %v7775, %v7775
      %v7828 = vpack.c.b16 %v7776, %v7776
      %v7829 = vpack.c.b16 %v7777, %v7777
      %v7830 = vpack.c.b16 %v7778, %v7778
      %v7880 = vsel %vm3156, %v7577, 0
      %v7883 = vsel %vm7126, %v7827, 0
      %v7886 = vsel %vm7126, %v7828, 0
      %v7889 = vsel %vm7126, %v7829, 0
      %v7892 = vsel %vm7126, %v7830, 0
      %7894 = vmatprep.subr.bf16.mxu0 %v7780
      %7895 = vmatpush1.bf16.msra.mxu0 %v7779
      %7896 = vmatprep.subr.bf16.mxu0 %v7784
      %7897 = vmatpush1.bf16.msra.mxu0 %v7783
      %7898 = vmatprep.subr.bf16.mxu0 %v7788
      %7899 = vmatpush1.bf16.msra.mxu0 %v7787
      %7900 = vmatprep.subr.bf16.mxu0 %v7792
      %7901 = vmatpush1.bf16.msra.mxu0 %v7791
      %7902 = vmatprep.subr.bf16.mxu0 %v7796
      %7903 = vmatpush1.bf16.msra.mxu0 %v7795
      %7904 = vmatprep.subr.bf16.mxu0 %v7800
      %7905 = vmatpush1.bf16.msra.mxu0 %v7799
      %7906 = vmatprep.subr.bf16.mxu0 %v7804
      %7907 = vmatpush1.bf16.msra.mxu0 %v7803
      %7908 = vmatprep.subr.bf16.mxu0 %v7808
      %7909 = vmatpush1.bf16.msra.mxu0 %v7807
      %7910 = vmatprep.subr.bf16.mxu0 %v7812
      %7911 = vmatpush1.bf16.msra.mxu0 %v7811
      %7912 = vmatprep.subr.bf16.mxu0 %v7816
      %7913 = vmatpush1.bf16.msra.mxu0 %v7815
      %7914 = vmatprep.subr.bf16.mxu0 %v7820
      %7915 = vmatpush1.bf16.msra.mxu0 %v7819
      %7916 = vmatprep.subr.bf16.mxu0 %v7824
      %7917 = vmatpush1.bf16.msra.mxu0 %v7823
      %7918 = vmatprep.subr.bf16.mxu0 %v7886
      %7919 = vmatpush1.bf16.msra.mxu0 %v7883
      %7920 = vmatprep.subr.bf16.mxu0 0
      %7921 = vmatpush1.bf16.msra.mxu0 0
      %7922 = vmatprep.subr.bf16.mxu0 0
      %7923 = vmatpush1.bf16.msra.mxu0 0
      %7924 = vmatprep.subr.bf16.mxu0 0
      %7925 = vmatpush1.bf16.msra.mxu0 0
      %7926 = vmatprep.mubr.bf16.mxu0 %v7880
      %7927 = vmatmul.mubr.bf16.gmra.mrb[0].mxu0 %v7576
      %v7928 = vpop.f32.mrb[0].mxu0
      %v7929 = vadd.f32 0.0, %v7928
      %v7930 = vpop.f32.mrb[0].mxu0
      %v7931 = vadd.f32 0.0, %v7930
      %v7932 = vpop.f32.mrb[0].mxu0
      %v7933 = vadd.f32 0.0, %v7932
      %v7934 = vpop.f32.mrb[0].mxu0
      %v7935 = vadd.f32 0.0, %v7934
      %7936 = vdwg.mxu0
      %7937 = vmatprep.subr.bf16.mxu0 %v7782
      %7938 = vmatpush1.bf16.msra.mxu0 %v7781
      %7939 = vmatprep.subr.bf16.mxu0 %v7786
      %7940 = vmatpush1.bf16.msra.mxu0 %v7785
      %7941 = vmatprep.subr.bf16.mxu0 %v7790
      %7942 = vmatpush1.bf16.msra.mxu0 %v7789
      %7943 = vmatprep.subr.bf16.mxu0 %v7794
      %7944 = vmatpush1.bf16.msra.mxu0 %v7793
      %7945 = vmatprep.subr.bf16.mxu0 %v7798
      %7946 = vmatpush1.bf16.msra.mxu0 %v7797
      %7947 = vmatprep.subr.bf16.mxu0 %v7802
      %7948 = vmatpush1.bf16.msra.mxu0 %v7801
      %7949 = vmatprep.subr.bf16.mxu0 %v7806
      %7950 = vmatpush1.bf16.msra.mxu0 %v7805
      %7951 = vmatprep.subr.bf16.mxu0 %v7810
      %7952 = vmatpush1.bf16.msra.mxu0 %v7809
      %7953 = vmatprep.subr.bf16.mxu0 %v7814
      %7954 = vmatpush1.bf16.msra.mxu0 %v7813
      %7955 = vmatprep.subr.bf16.mxu0 %v7818
      %7956 = vmatpush1.bf16.msra.mxu0 %v7817
      %7957 = vmatprep.subr.bf16.mxu0 %v7822
      %7958 = vmatpush1.bf16.msra.mxu0 %v7821
      %7959 = vmatprep.subr.bf16.mxu0 %v7826
      %7960 = vmatpush1.bf16.msra.mxu0 %v7825
      %7961 = vmatprep.subr.bf16.mxu0 %v7892
      %7962 = vmatpush1.bf16.msra.mxu0 %v7889
      %7963 = vmatprep.subr.bf16.mxu0 0
      %7964 = vmatpush1.bf16.msra.mxu0 0
      %7965 = vmatprep.subr.bf16.mxu0 0
      %7966 = vmatpush1.bf16.msra.mxu0 0
      %7967 = vmatprep.subr.bf16.mxu0 0
      %7968 = vmatpush1.bf16.msra.mxu0 0
      %7969 = vmatprep.mubr.bf16.mxu0 %v7880
      %7970 = vmatmul.mubr.bf16.gmra.mrb[0].mxu0 %v7576
      %v7971 = vpop.f32.mrb[0].mxu0
      %v7972 = vadd.f32 0.0, %v7971
      %v7973 = vpop.f32.mrb[0].mxu0
      %v7974 = vadd.f32 0.0, %v7973
      %v7975 = vpop.f32.mrb[0].mxu0
      %v7976 = vadd.f32 0.0, %v7975
      %v7977 = vpop.f32.mrb[0].mxu0
      %v7978 = vadd.f32 0.0, %v7977
      %7979 = vdwg.mxu0
      %v7980 = vadd.f32 %v7525, %v7929
      %v7981 = vadd.f32 %v7527, %v7931
      %v7982 = vadd.f32 %v7568, %v7972
      %v7983 = vadd.f32 %v7570, %v7974
      %v7984 = vadd.f32 %v7529, %v7933
      %v7985 = vadd.f32 %v7531, %v7935
      %v7986 = vadd.f32 %v7572, %v7976
      %v7987 = vadd.f32 %v7574, %v7978
      %v7988 = vld [vmem:[#allocation6 + $0x30] sm:$0xff]
      %v7989 = vld [vmem:[#allocation6 + $0x38] sm:$0xff]
      %s7990 = scalar_lea.vmem %s8, 1200
      %v7991 = vld [vmem:[%s7990] sm:$0xff]
      %v7992 = vld [vmem:[%s7990 + $0x8] sm:$0xff]
      %v7993 = vld [vmem:[%s7990 + $0x10] sm:$0xff]
      %v7994 = vld [vmem:[%s7990 + $0x18] sm:$0xff]
      %v7995 = vld [vmem:[%s7990 + $0x20] sm:$0xff]
      %v7996 = vld [vmem:[%s7990 + $0x28] sm:$0xff]
      %v7997 = vld [vmem:[%s7990 + $0x30] sm:$0xff]
      %v7998 = vld [vmem:[%s7990 + $0x38] sm:$0xff]
      %v7999 = vld [vmem:[%s7990 + $0x40] sm:$0xff]
      %v8000 = vld [vmem:[%s7990 + $0x48] sm:$0xff]
      %v8001 = vld [vmem:[%s7990 + $0x50] sm:$0xff]
      %v8002 = vld [vmem:[%s7990 + $0x58] sm:$0xff]
      %v8003 = vld [vmem:[%s7990 + $0x60] sm:$0xff]
      %v8004 = vld [vmem:[%s7990 + $0x68] sm:$0xff]
      %v8005 = vld [vmem:[%s7990 + $0x70] sm:$0xff]
      %v8006 = vld [vmem:[%s7990 + $0x78] sm:$0xff]
      %v8007 = vld [vmem:[%s7990 + $0x80] sm:$0xff]
      %v8008 = vld [vmem:[%s7990 + $0x88] sm:$0xff]
      %v8009 = vld [vmem:[%s7990 + $0x90] sm:$0xff]
      %v8010 = vld [vmem:[%s7990 + $0x98] sm:$0xff]
      %v8011 = vld [vmem:[%s7990 + $0xa0] sm:$0xff]
      %v8012 = vld [vmem:[%s7990 + $0xa8] sm:$0xff]
      %v8013 = vld [vmem:[%s7990 + $0xb0] sm:$0xff]
      %v8014 = vld [vmem:[%s7990 + $0xb8] sm:$0xff]
      %v8015 = vld [vmem:[%s7990 + $0xc0] sm:$0xff]
      %v8016 = vld [vmem:[%s7990 + $0xc8] sm:$0xff]
      %v8017 = vld [vmem:[%s7990 + $0xd0] sm:$0xff]
      %v8018 = vld [vmem:[%s7990 + $0xd8] sm:$0xff]
      %v8019 = vld [vmem:[%s7990 + $0xe0] sm:$0xff]
      %v8020 = vld [vmem:[%s7990 + $0xe8] sm:$0xff]
      %v8021 = vld [vmem:[%s7990 + $0xf0] sm:$0xff]
      %v8022 = vld [vmem:[%s7990 + $0xf8] sm:$0xff]
      %v8023 = vld [vmem:[%s7990 + $0x100] sm:$0xff]
      %v8024 = vld [vmem:[%s7990 + $0x108] sm:$0xff]
      %v8025 = vld [vmem:[%s7990 + $0x110] sm:$0xff]
      %v8026 = vld [vmem:[%s7990 + $0x118] sm:$0xff]
      %v8027 = vld [vmem:[%s7990 + $0x120] sm:$0xff]
      %v8028 = vld [vmem:[%s7990 + $0x128] sm:$0xff]
      %v8029 = vld [vmem:[%s7990 + $0x130] sm:$0xff]
      %v8030 = vld [vmem:[%s7990 + $0x138] sm:$0xff]
      %v8031 = vld [vmem:[%s7990 + $0x140] sm:$0xff]
      %v8032 = vld [vmem:[%s7990 + $0x148] sm:$0xff]
      %v8033 = vld [vmem:[%s7990 + $0x150] sm:$0xff]
      %v8034 = vld [vmem:[%s7990 + $0x158] sm:$0xff]
      %v8035 = vld [vmem:[%s7990 + $0x160] sm:$0xff]
      %v8036 = vld [vmem:[%s7990 + $0x168] sm:$0xff]
      %v8037 = vld [vmem:[%s7990 + $0x170] sm:$0xff]
      %v8038 = vld [vmem:[%s7990 + $0x178] sm:$0xff]
      %v8039 = vld [vmem:[%s7990 + $0x180] sm:$0xff]
      %v8040 = vld [vmem:[%s7990 + $0x188] sm:$0xff]
      %v8091 = vunpack.c.l.b16 %v7991
      %v8092 = vunpack.c.h.b16 %v7991
      %v8093 = vunpack.c.l.b16 %v7992
      %v8094 = vunpack.c.h.b16 %v7992
      %v8095 = vunpack.c.l.b16 %v7993
      %v8096 = vunpack.c.h.b16 %v7993
      %v8097 = vunpack.c.l.b16 %v7994
      %v8098 = vunpack.c.h.b16 %v7994
      %v8099 = vunpack.c.l.b16 %v7995
      %v8100 = vunpack.c.h.b16 %v7995
      %v8101 = vunpack.c.l.b16 %v7996
      %v8102 = vunpack.c.h.b16 %v7996
      %v8103 = vunpack.c.l.b16 %v7997
      %v8104 = vunpack.c.h.b16 %v7997
      %v8105 = vunpack.c.l.b16 %v7998
      %v8106 = vunpack.c.h.b16 %v7998
      %v8107 = vunpack.c.l.b16 %v7999
      %v8108 = vunpack.c.h.b16 %v7999
      %v8109 = vunpack.c.l.b16 %v8000
      %v8110 = vunpack.c.h.b16 %v8000
      %v8111 = vunpack.c.l.b16 %v8001
      %v8112 = vunpack.c.h.b16 %v8001
      %v8113 = vunpack.c.l.b16 %v8002
      %v8114 = vunpack.c.h.b16 %v8002
      %v8115 = vunpack.c.l.b16 %v8003
      %v8116 = vunpack.c.h.b16 %v8003
      %v8117 = vunpack.c.l.b16 %v8004
      %v8118 = vunpack.c.h.b16 %v8004
      %v8119 = vunpack.c.l.b16 %v8005
      %v8120 = vunpack.c.h.b16 %v8005
      %v8121 = vunpack.c.l.b16 %v8006
      %v8122 = vunpack.c.h.b16 %v8006
      %v8123 = vunpack.c.l.b16 %v8007
      %v8124 = vunpack.c.h.b16 %v8007
      %v8125 = vunpack.c.l.b16 %v8008
      %v8126 = vunpack.c.h.b16 %v8008
      %v8127 = vunpack.c.l.b16 %v8009
      %v8128 = vunpack.c.h.b16 %v8009
      %v8129 = vunpack.c.l.b16 %v8010
      %v8130 = vunpack.c.h.b16 %v8010
      %v8131 = vunpack.c.l.b16 %v8011
      %v8132 = vunpack.c.h.b16 %v8011
      %v8133 = vunpack.c.l.b16 %v8012
      %v8134 = vunpack.c.h.b16 %v8012
      %v8135 = vunpack.c.l.b16 %v8013
      %v8136 = vunpack.c.h.b16 %v8013
      %v8137 = vunpack.c.l.b16 %v8014
      %v8138 = vunpack.c.h.b16 %v8014
      %v8139 = vunpack.c.l.b16 %v8015
      %v8140 = vunpack.c.h.b16 %v8015
      %v8141 = vunpack.c.l.b16 %v8016
      %v8142 = vunpack.c.h.b16 %v8016
      %v8143 = vunpack.c.l.b16 %v8017
      %v8144 = vunpack.c.h.b16 %v8017
      %v8145 = vunpack.c.l.b16 %v8018
      %v8146 = vunpack.c.h.b16 %v8018
      %v8147 = vunpack.c.l.b16 %v8019
      %v8148 = vunpack.c.h.b16 %v8019
      %v8149 = vunpack.c.l.b16 %v8020
      %v8150 = vunpack.c.h.b16 %v8020
      %v8151 = vunpack.c.l.b16 %v8021
      %v8152 = vunpack.c.h.b16 %v8021
      %v8153 = vunpack.c.l.b16 %v8022
      %v8154 = vunpack.c.h.b16 %v8022
      %v8155 = vunpack.c.l.b16 %v8023
      %v8156 = vunpack.c.h.b16 %v8023
      %v8157 = vunpack.c.l.b16 %v8024
      %v8158 = vunpack.c.h.b16 %v8024
      %v8159 = vunpack.c.l.b16 %v8025
      %v8160 = vunpack.c.h.b16 %v8025
      %v8161 = vunpack.c.l.b16 %v8026
      %v8162 = vunpack.c.h.b16 %v8026
      %v8163 = vunpack.c.l.b16 %v8027
      %v8164 = vunpack.c.h.b16 %v8027
      %v8165 = vunpack.c.l.b16 %v8028
      %v8166 = vunpack.c.h.b16 %v8028
      %v8167 = vunpack.c.l.b16 %v8029
      %v8168 = vunpack.c.h.b16 %v8029
      %v8169 = vunpack.c.l.b16 %v8030
      %v8170 = vunpack.c.h.b16 %v8030
      %v8171 = vunpack.c.l.b16 %v8031
      %v8172 = vunpack.c.h.b16 %v8031
      %v8173 = vunpack.c.l.b16 %v8032
      %v8174 = vunpack.c.h.b16 %v8032
      %v8175 = vunpack.c.l.b16 %v8033
      %v8176 = vunpack.c.h.b16 %v8033
      %v8177 = vunpack.c.l.b16 %v8034
      %v8178 = vunpack.c.h.b16 %v8034
      %v8179 = vunpack.c.l.b16 %v8035
      %v8180 = vunpack.c.h.b16 %v8035
      %v8181 = vunpack.c.l.b16 %v8036
      %v8182 = vunpack.c.h.b16 %v8036
      %v8183 = vunpack.c.l.b16 %v8037
      %v8184 = vunpack.c.h.b16 %v8037
      %v8185 = vunpack.c.l.b16 %v8038
      %v8186 = vunpack.c.h.b16 %v8038
      %v8187 = vunpack.c.l.b16 %v8039
      %v8188 = vunpack.c.h.b16 %v8039
      %v8189 = vunpack.c.l.b16 %v8040
      %v8190 = vunpack.c.h.b16 %v8040
      %v8191 = vpack.c.b16 %v8095, %v8091
      %v8192 = vpack.c.b16 %v8096, %v8092
      %v8193 = vpack.c.b16 %v8097, %v8093
      %v8194 = vpack.c.b16 %v8098, %v8094
      %v8195 = vpack.c.b16 %v8103, %v8099
      %v8196 = vpack.c.b16 %v8104, %v8100
      %v8197 = vpack.c.b16 %v8105, %v8101
      %v8198 = vpack.c.b16 %v8106, %v8102
      %v8199 = vpack.c.b16 %v8111, %v8107
      %v8200 = vpack.c.b16 %v8112, %v8108
      %v8201 = vpack.c.b16 %v8113, %v8109
      %v8202 = vpack.c.b16 %v8114, %v8110
      %v8203 = vpack.c.b16 %v8119, %v8115
      %v8204 = vpack.c.b16 %v8120, %v8116
      %v8205 = vpack.c.b16 %v8121, %v8117
      %v8206 = vpack.c.b16 %v8122, %v8118
      %v8207 = vpack.c.b16 %v8127, %v8123
      %v8208 = vpack.c.b16 %v8128, %v8124
      %v8209 = vpack.c.b16 %v8129, %v8125
      %v8210 = vpack.c.b16 %v8130, %v8126
      %v8211 = vpack.c.b16 %v8135, %v8131
      %v8212 = vpack.c.b16 %v8136, %v8132
      %v8213 = vpack.c.b16 %v8137, %v8133
      %v8214 = vpack.c.b16 %v8138, %v8134
      %v8215 = vpack.c.b16 %v8143, %v8139
      %v8216 = vpack.c.b16 %v8144, %v8140
      %v8217 = vpack.c.b16 %v8145, %v8141
      %v8218 = vpack.c.b16 %v8146, %v8142
      %v8219 = vpack.c.b16 %v8151, %v8147
      %v8220 = vpack.c.b16 %v8152, %v8148
      %v8221 = vpack.c.b16 %v8153, %v8149
      %v8222 = vpack.c.b16 %v8154, %v8150
      %v8223 = vpack.c.b16 %v8159, %v8155
      %v8224 = vpack.c.b16 %v8160, %v8156
      %v8225 = vpack.c.b16 %v8161, %v8157
      %v8226 = vpack.c.b16 %v8162, %v8158
      %v8227 = vpack.c.b16 %v8167, %v8163
      %v8228 = vpack.c.b16 %v8168, %v8164
      %v8229 = vpack.c.b16 %v8169, %v8165
      %v8230 = vpack.c.b16 %v8170, %v8166
      %v8231 = vpack.c.b16 %v8175, %v8171
      %v8232 = vpack.c.b16 %v8176, %v8172
      %v8233 = vpack.c.b16 %v8177, %v8173
      %v8234 = vpack.c.b16 %v8178, %v8174
      %v8235 = vpack.c.b16 %v8183, %v8179
      %v8236 = vpack.c.b16 %v8184, %v8180
      %v8237 = vpack.c.b16 %v8185, %v8181
      %v8238 = vpack.c.b16 %v8186, %v8182
      %v8239 = vpack.c.b16 %v8187, %v8187
      %v8240 = vpack.c.b16 %v8188, %v8188
      %v8241 = vpack.c.b16 %v8189, %v8189
      %v8242 = vpack.c.b16 %v8190, %v8190
      %v8292 = vsel %vm3156, %v7989, 0
      %v8295 = vsel %vm7126, %v8239, 0
      %v8298 = vsel %vm7126, %v8240, 0
      %v8301 = vsel %vm7126, %v8241, 0
      %v8304 = vsel %vm7126, %v8242, 0
      %8306 = vmatprep.subr.bf16.mxu0 %v8192
      %8307 = vmatpush1.bf16.msra.mxu0 %v8191
      %8308 = vmatprep.subr.bf16.mxu0 %v8196
      %8309 = vmatpush1.bf16.msra.mxu0 %v8195
      %8310 = vmatprep.subr.bf16.mxu0 %v8200
      %8311 = vmatpush1.bf16.msra.mxu0 %v8199
      %8312 = vmatprep.subr.bf16.mxu0 %v8204
      %8313 = vmatpush1.bf16.msra.mxu0 %v8203
      %8314 = vmatprep.subr.bf16.mxu0 %v8208
      %8315 = vmatpush1.bf16.msra.mxu0 %v8207
      %8316 = vmatprep.subr.bf16.mxu0 %v8212
      %8317 = vmatpush1.bf16.msra.mxu0 %v8211
      %8318 = vmatprep.subr.bf16.mxu0 %v8216
      %8319 = vmatpush1.bf16.msra.mxu0 %v8215
      %8320 = vmatprep.subr.bf16.mxu0 %v8220
      %8321 = vmatpush1.bf16.msra.mxu0 %v8219
      %8322 = vmatprep.subr.bf16.mxu0 %v8224
      %8323 = vmatpush1.bf16.msra.mxu0 %v8223
      %8324 = vmatprep.subr.bf16.mxu0 %v8228
      %8325 = vmatpush1.bf16.msra.mxu0 %v8227
      %8326 = vmatprep.subr.bf16.mxu0 %v8232
      %8327 = vmatpush1.bf16.msra.mxu0 %v8231
      %8328 = vmatprep.subr.bf16.mxu0 %v8236
      %8329 = vmatpush1.bf16.msra.mxu0 %v8235
      %8330 = vmatprep.subr.bf16.mxu0 %v8298
      %8331 = vmatpush1.bf16.msra.mxu0 %v8295
      %8332 = vmatprep.subr.bf16.mxu0 0
      %8333 = vmatpush1.bf16.msra.mxu0 0
      %8334 = vmatprep.subr.bf16.mxu0 0
      %8335 = vmatpush1.bf16.msra.mxu0 0
      %8336 = vmatprep.subr.bf16.mxu0 0
      %8337 = vmatpush1.bf16.msra.mxu0 0
      %8338 = vmatprep.mubr.bf16.mxu0 %v8292
      %8339 = vmatmul.mubr.bf16.gmra.mrb[0].mxu0 %v7988
      %v8340 = vpop.f32.mrb[0].mxu0
      %v8341 = vadd.f32 0.0, %v8340
      %v8342 = vpop.f32.mrb[0].mxu0
      %v8343 = vadd.f32 0.0, %v8342
      %v8344 = vpop.f32.mrb[0].mxu0
      %v8345 = vadd.f32 0.0, %v8344
      %v8346 = vpop.f32.mrb[0].mxu0
      %v8347 = vadd.f32 0.0, %v8346
      %8348 = vdwg.mxu0
      %8349 = vmatprep.subr.bf16.mxu0 %v8194
      %8350 = vmatpush1.bf16.msra.mxu0 %v8193
      %8351 = vmatprep.subr.bf16.mxu0 %v8198
      %8352 = vmatpush1.bf16.msra.mxu0 %v8197
      %8353 = vmatprep.subr.bf16.mxu0 %v8202
      %8354 = vmatpush1.bf16.msra.mxu0 %v8201
      %8355 = vmatprep.subr.bf16.mxu0 %v8206
      %8356 = vmatpush1.bf16.msra.mxu0 %v8205
      %8357 = vmatprep.subr.bf16.mxu0 %v8210
      %8358 = vmatpush1.bf16.msra.mxu0 %v8209
      %8359 = vmatprep.subr.bf16.mxu0 %v8214
      %8360 = vmatpush1.bf16.msra.mxu0 %v8213
      %8361 = vmatprep.subr.bf16.mxu0 %v8218
      %8362 = vmatpush1.bf16.msra.mxu0 %v8217
      %8363 = vmatprep.subr.bf16.mxu0 %v8222
      %8364 = vmatpush1.bf16.msra.mxu0 %v8221
      %8365 = vmatprep.subr.bf16.mxu0 %v8226
      %8366 = vmatpush1.bf16.msra.mxu0 %v8225
      %8367 = vmatprep.subr.bf16.mxu0 %v8230
      %8368 = vmatpush1.bf16.msra.mxu0 %v8229
      %8369 = vmatprep.subr.bf16.mxu0 %v8234
      %8370 = vmatpush1.bf16.msra.mxu0 %v8233
      %8371 = vmatprep.subr.bf16.mxu0 %v8238
      %8372 = vmatpush1.bf16.msra.mxu0 %v8237
      %8373 = vmatprep.subr.bf16.mxu0 %v8304
      %8374 = vmatpush1.bf16.msra.mxu0 %v8301
      %8375 = vmatprep.subr.bf16.mxu0 0
      %8376 = vmatpush1.bf16.msra.mxu0 0
      %8377 = vmatprep.subr.bf16.mxu0 0
      %8378 = vmatpush1.bf16.msra.mxu0 0
      %8379 = vmatprep.subr.bf16.mxu0 0
      %8380 = vmatpush1.bf16.msra.mxu0 0
      %8381 = vmatprep.mubr.bf16.mxu0 %v8292
      %8382 = vmatmul.mubr.bf16.gmra.mrb[0].mxu0 %v7988
      %v8383 = vpop.f32.mrb[0].mxu0
      %v8384 = vadd.f32 0.0, %v8383
      %v8385 = vpop.f32.mrb[0].mxu0
      %v8386 = vadd.f32 0.0, %v8385
      %v8387 = vpop.f32.mrb[0].mxu0
      %v8388 = vadd.f32 0.0, %v8387
      %v8389 = vpop.f32.mrb[0].mxu0
      %v8390 = vadd.f32 0.0, %v8389
      %8391 = vdwg.mxu0
      %v8392 = vadd.f32 %v7980, %v8341
      %v8393 = vadd.f32 %v7981, %v8343
      %v8394 = vadd.f32 %v7982, %v8384
      %v8395 = vadd.f32 %v7983, %v8386
      %v8396 = vadd.f32 %v7984, %v8345
      %v8397 = vadd.f32 %v7985, %v8347
      %v8398 = vadd.f32 %v7986, %v8388
      %v8399 = vadd.f32 %v7987, %v8390
      %v8400 = vld [vmem:[%s9] sm:$0xf]
      %v8402 = vlaneseq
      %v8403 = vshrl.u32 %v8402, 7
      %v8404 = vsub.s32 0, %v8403
      %v8405 = vrot.slane %v8400, %v8404
      %v8406 = vlaneseq
      %v8407 = vshrl.u32 %v8406, 7
      %v8408 = vsub.s32 1, %v8407
      %v8409 = vrot.slane %v8400, %v8408
      %v8410 = vlaneseq
      %v8411 = vshrl.u32 %v8410, 7
      %v8412 = vsub.s32 2, %v8411
      %v8413 = vrot.slane %v8400, %v8412
      %v8414 = vlaneseq
      %v8415 = vshrl.u32 %v8414, 7
      %v8416 = vsub.s32 3, %v8415
      %v8417 = vrot.slane %v8400, %v8416
      %v8422 = vadd.f32 %v8392, %v8405
      %v8423 = vadd.f32 %v8393, %v8409
      %v8424 = vadd.f32 %v8394, %v8413
      %v8425 = vadd.f32 %v8395, %v8417
      %v8426 = vadd.f32 %v8396, %v8405
      %v8427 = vadd.f32 %v8397, %v8409
      %v8428 = vadd.f32 %v8398, %v8413
      %v8429 = vadd.f32 %v8399, %v8417
      %v8430 = vmax.f32 %v8422, 0.0
      %v8431 = vmax.f32 %v8423, 0.0
      %v8432 = vmax.f32 %v8424, 0.0
      %v8433 = vmax.f32 %v8425, 0.0
      %v8434 = vmax.f32 %v8426, 0.0
      %v8435 = vmax.f32 %v8427, 0.0
      %v8436 = vmax.f32 %v8428, 0.0
      %v8437 = vmax.f32 %v8429, 0.0
      %v8438 = vpack.c.bf16 %v8434, %v8430
      %v8439 = vpack.c.bf16 %v8435, %v8431
      %v8440 = vpack.c.bf16 %v8436, %v8432
      %v8441 = vpack.c.bf16 %v8437, %v8433
      %v8442 = vld [vmem:[%s10] sm:$0xf]
      %v8443 = vld [vmem:[%s10 + $0x4] sm:$0xf]
      %v8444 = vld [vmem:[%s10 + $0x8] sm:$0xf]
      %v8445 = vld [vmem:[%s10 + $0xc] sm:$0xf]
      %v8446 = vld [vmem:[%s10 + $0x10] sm:$0xf]
      %v8447 = vld [vmem:[%s10 + $0x14] sm:$0xf]
      %v8448 = vld [vmem:[%s10 + $0x18] sm:$0xf]
      %v8449 = vld [vmem:[%s10 + $0x1c] sm:$0xf]
      %v8450 = vld [vmem:[%s10 + $0x20] sm:$0xf]
      %v8451 = vld [vmem:[%s10 + $0x24] sm:$0xf]
      %v8452 = vld [vmem:[%s10 + $0x28] sm:$0xf]
      %v8453 = vld [vmem:[%s10 + $0x2c] sm:$0xf]
      %v8454 = vld [vmem:[%s10 + $0x30] sm:$0xf]
      %v8455 = vld [vmem:[%s10 + $0x34] sm:$0xf]
      %v8456 = vld [vmem:[%s10 + $0x38] sm:$0xf]
      %v8457 = vld [vmem:[%s10 + $0x3c] sm:$0xf]
      %v8458 = vld [vmem:[%s10 + $0x40] sm:$0xf]
      %v8459 = vld [vmem:[%s10 + $0x44] sm:$0xf]
      %v8460 = vld [vmem:[%s10 + $0x48] sm:$0xf]
      %v8461 = vld [vmem:[%s10 + $0x4c] sm:$0xf]
      %v8462 = vld [vmem:[%s10 + $0x50] sm:$0xf]
      %v8463 = vld [vmem:[%s10 + $0x54] sm:$0xf]
      %v8464 = vld [vmem:[%s10 + $0x58] sm:$0xf]
      %v8465 = vld [vmem:[%s10 + $0x5c] sm:$0xf]
      %v8466 = vld [vmem:[%s10 + $0x60] sm:$0xf]
      %v8467 = vld [vmem:[%s10 + $0x64] sm:$0xf]
      %v8468 = vld [vmem:[%s10 + $0x68] sm:$0xf]
      %v8469 = vld [vmem:[%s10 + $0x6c] sm:$0xf]
      %v8470 = vld [vmem:[%s10 + $0x70] sm:$0xf]
      %v8471 = vld [vmem:[%s10 + $0x74] sm:$0xf]
      %v8472 = vld [vmem:[%s10 + $0x78] sm:$0xf]
      %v8473 = vld [vmem:[%s10 + $0x7c] sm:$0xf]
      %v8474 = vld [vmem:[%s10 + $0x80] sm:$0xf]
      %v8475 = vld [vmem:[%s10 + $0x84] sm:$0xf]
      %v8476 = vld [vmem:[%s10 + $0x88] sm:$0xf]
      %v8477 = vld [vmem:[%s10 + $0x8c] sm:$0xf]
      %v8478 = vld [vmem:[%s10 + $0x90] sm:$0xf]
      %v8479 = vld [vmem:[%s10 + $0x94] sm:$0xf]
      %v8480 = vld [vmem:[%s10 + $0x98] sm:$0xf]
      %v8481 = vld [vmem:[%s10 + $0x9c] sm:$0xf]
      %v8482 = vld [vmem:[%s10 + $0xa0] sm:$0xf]
      %v8483 = vld [vmem:[%s10 + $0xa4] sm:$0xf]
      %v8484 = vld [vmem:[%s10 + $0xa8] sm:$0xf]
      %v8485 = vld [vmem:[%s10 + $0xac] sm:$0xf]
      %v8486 = vld [vmem:[%s10 + $0xb0] sm:$0xf]
      %v8487 = vld [vmem:[%s10 + $0xb4] sm:$0xf]
      %v8488 = vld [vmem:[%s10 + $0xb8] sm:$0xf]
      %v8489 = vld [vmem:[%s10 + $0xbc] sm:$0xf]
      %v8490 = vld [vmem:[%s10 + $0xc0] sm:$0xf]
      %v8491 = vld [vmem:[%s10 + $0xc4] sm:$0xf]
      %v8492 = vld [vmem:[%s10 + $0xc8] sm:$0xf]
      %v8493 = vld [vmem:[%s10 + $0xcc] sm:$0xf]
      %v8494 = vld [vmem:[%s10 + $0xd0] sm:$0xf]
      %v8495 = vld [vmem:[%s10 + $0xd4] sm:$0xf]
      %v8496 = vld [vmem:[%s10 + $0xd8] sm:$0xf]
      %v8497 = vld [vmem:[%s10 + $0xdc] sm:$0xf]
      %v8498 = vld [vmem:[%s10 + $0xe0] sm:$0xf]
      %v8499 = vld [vmem:[%s10 + $0xe4] sm:$0xf]
      %v8500 = vld [vmem:[%s10 + $0xe8] sm:$0xf]
      %v8501 = vld [vmem:[%s10 + $0xec] sm:$0xf]
      %v8502 = vld [vmem:[%s10 + $0xf0] sm:$0xf]
      %v8503 = vld [vmem:[%s10 + $0xf4] sm:$0xf]
      %v8504 = vld [vmem:[%s10 + $0xf8] sm:$0x3]
      %v8505 = vld [vmem:[%s11] sm:$0x1]
      %v8507 = vlaneseq
      %v8508 = vshrl.u32 %v8507, 7
      %v8509 = vsub.s32 0, %v8508
      %v8510 = vrot.slane %v8505, %v8509
      %v8575 = vunpack.c.l.b16 %v8442
      %v8576 = vunpack.c.l.b16 %v8443
      %v8577 = vunpack.c.l.b16 %v8444
      %v8578 = vunpack.c.l.b16 %v8445
      %v8579 = vunpack.c.l.b16 %v8446
      %v8580 = vunpack.c.l.b16 %v8447
      %v8581 = vunpack.c.l.b16 %v8448
      %v8582 = vunpack.c.l.b16 %v8449
      %v8583 = vunpack.c.l.b16 %v8450
      %v8584 = vunpack.c.l.b16 %v8451
      %v8585 = vunpack.c.l.b16 %v8452
      %v8586 = vunpack.c.l.b16 %v8453
      %v8587 = vunpack.c.l.b16 %v8454
      %v8588 = vunpack.c.l.b16 %v8455
      %v8589 = vunpack.c.l.b16 %v8456
      %v8590 = vunpack.c.l.b16 %v8457
      %v8591 = vunpack.c.l.b16 %v8458
      %v8592 = vunpack.c.l.b16 %v8459
      %v8593 = vunpack.c.l.b16 %v8460
      %v8594 = vunpack.c.l.b16 %v8461
      %v8595 = vunpack.c.l.b16 %v8462
      %v8596 = vunpack.c.l.b16 %v8463
      %v8597 = vunpack.c.l.b16 %v8464
      %v8598 = vunpack.c.l.b16 %v8465
      %v8599 = vunpack.c.l.b16 %v8466
      %v8600 = vunpack.c.l.b16 %v8467
      %v8601 = vunpack.c.l.b16 %v8468
      %v8602 = vunpack.c.l.b16 %v8469
      %v8603 = vunpack.c.l.b16 %v8470
      %v8604 = vunpack.c.l.b16 %v8471
      %v8605 = vunpack.c.l.b16 %v8472
      %v8606 = vunpack.c.l.b16 %v8473
      %v8607 = vunpack.c.l.b16 %v8474
      %v8608 = vunpack.c.l.b16 %v8475
      %v8609 = vunpack.c.l.b16 %v8476
      %v8610 = vunpack.c.l.b16 %v8477
      %v8611 = vunpack.c.l.b16 %v8478
      %v8612 = vunpack.c.l.b16 %v8479
      %v8613 = vunpack.c.l.b16 %v8480
      %v8614 = vunpack.c.l.b16 %v8481
      %v8615 = vunpack.c.l.b16 %v8482
      %v8616 = vunpack.c.l.b16 %v8483
      %v8617 = vunpack.c.l.b16 %v8484
      %v8618 = vunpack.c.l.b16 %v8485
      %v8619 = vunpack.c.l.b16 %v8486
      %v8620 = vunpack.c.l.b16 %v8487
      %v8621 = vunpack.c.l.b16 %v8488
      %v8622 = vunpack.c.l.b16 %v8489
      %v8623 = vunpack.c.l.b16 %v8490
      %v8624 = vunpack.c.l.b16 %v8491
      %v8625 = vunpack.c.l.b16 %v8492
      %v8626 = vunpack.c.l.b16 %v8493
      %v8627 = vunpack.c.l.b16 %v8494
      %v8628 = vunpack.c.l.b16 %v8495
      %v8629 = vunpack.c.l.b16 %v8496
      %v8630 = vunpack.c.l.b16 %v8497
      %v8631 = vunpack.c.l.b16 %v8498
      %v8632 = vunpack.c.l.b16 %v8499
      %v8633 = vunpack.c.l.b16 %v8500
      %v8634 = vunpack.c.l.b16 %v8501
      %v8635 = vunpack.c.l.b16 %v8502
      %v8636 = vunpack.c.l.b16 %v8503
      %v8637 = vunpack.c.l.b16 %v8504
      %v8638 = vpack.c.b16 %v8576, %v8575
      %v8639 = vpack.c.b16 %v8578, %v8577
      %v8640 = vpack.c.b16 %v8580, %v8579
      %v8641 = vpack.c.b16 %v8582, %v8581
      %v8642 = vpack.c.b16 %v8584, %v8583
      %v8643 = vpack.c.b16 %v8586, %v8585
      %v8644 = vpack.c.b16 %v8588, %v8587
      %v8645 = vpack.c.b16 %v8590, %v8589
      %v8646 = vpack.c.b16 %v8592, %v8591
      %v8647 = vpack.c.b16 %v8594, %v8593
      %v8648 = vpack.c.b16 %v8596, %v8595
      %v8649 = vpack.c.b16 %v8598, %v8597
      %v8650 = vpack.c.b16 %v8600, %v8599
      %v8651 = vpack.c.b16 %v8602, %v8601
      %v8652 = vpack.c.b16 %v8604, %v8603
      %v8653 = vpack.c.b16 %v8606, %v8605
      %v8654 = vpack.c.b16 %v8608, %v8607
      %v8655 = vpack.c.b16 %v8610, %v8609
      %v8656 = vpack.c.b16 %v8612, %v8611
      %v8657 = vpack.c.b16 %v8614, %v8613
      %v8658 = vpack.c.b16 %v8616, %v8615
      %v8659 = vpack.c.b16 %v8618, %v8617
      %v8660 = vpack.c.b16 %v8620, %v8619
      %v8661 = vpack.c.b16 %v8622, %v8621
      %v8662 = vpack.c.b16 %v8624, %v8623
      %v8663 = vpack.c.b16 %v8626, %v8625
      %v8664 = vpack.c.b16 %v8628, %v8627
      %v8665 = vpack.c.b16 %v8630, %v8629
      %v8666 = vpack.c.b16 %v8632, %v8631
      %v8667 = vpack.c.b16 %v8634, %v8633
      %v8668 = vpack.c.b16 %v8636, %v8635
      %v8669 = vpack.c.b16 %v8637, %v8637
      %vm8701 = vcmask 949248
      %v8703 = vsel %vm8701, %v8441, 0
      %vm8705 = vcmask 1041408
      %v8707 = vsel %vm8705, %v8669, 0
      %8709 = vmatprep.subr.bf16.mxu0 0
      %8710 = vmatpush1.bf16.msra.mxu0 %v8638
      %8711 = vmatprep.subr.bf16.mxu0 0
      %8712 = vmatpush1.bf16.msra.mxu0 %v8639
      %8713 = vmatprep.subr.bf16.mxu0 0
      %8714 = vmatpush1.bf16.msra.mxu0 %v8640
      %8715 = vmatprep.subr.bf16.mxu0 0
      %8716 = vmatpush1.bf16.msra.mxu0 %v8641
      %8717 = vmatprep.subr.bf16.mxu0 0
      %8718 = vmatpush1.bf16.msra.mxu0 %v8642
      %8719 = vmatprep.subr.bf16.mxu0 0
      %8720 = vmatpush1.bf16.msra.mxu0 %v8643
      %8721 = vmatprep.subr.bf16.mxu0 0
      %8722 = vmatpush1.bf16.msra.mxu0 %v8644
      %8723 = vmatprep.subr.bf16.mxu0 0
      %8724 = vmatpush1.bf16.msra.mxu0 %v8645
      %8725 = vmatprep.subr.bf16.mxu0 0
      %8726 = vmatpush1.bf16.msra.mxu0 %v8646
      %8727 = vmatprep.subr.bf16.mxu0 0
      %8728 = vmatpush1.bf16.msra.mxu0 %v8647
      %8729 = vmatprep.subr.bf16.mxu0 0
      %8730 = vmatpush1.bf16.msra.mxu0 %v8648
      %8731 = vmatprep.subr.bf16.mxu0 0
      %8732 = vmatpush1.bf16.msra.mxu0 %v8649
      %8733 = vmatprep.subr.bf16.mxu0 0
      %8734 = vmatpush1.bf16.msra.mxu0 %v8650
      %8735 = vmatprep.subr.bf16.mxu0 0
      %8736 = vmatpush1.bf16.msra.mxu0 %v8651
      %8737 = vmatprep.subr.bf16.mxu0 0
      %8738 = vmatpush1.bf16.msra.mxu0 %v8652
      %8739 = vmatprep.subr.bf16.mxu0 0
      %8740 = vmatpush1.bf16.msra.mxu0 %v8653
      %8741 = vmatprep.mubr.bf16.mxu0 %v8439
      %8742 = vmatmul.mubr.bf16.gmra.mrb[0].mxu0 %v8438
      %v8743 = vpop.f32.mrb[0].mxu0
      %v8744 = vadd.f32 %v8510, %v8743
      %v8745 = vpop.f32.mrb[0].mxu0
      %v8746 = vpop.f32.mrb[0].mxu0
      %v8747 = vadd.f32 %v8510, %v8746
      %v8748 = vpop.f32.mrb[0].mxu0
      %8749 = vdwg.mxu0
      %8750 = vmatprep.subr.bf16.mxu0 0
      %8751 = vmatpush1.bf16.msra.mxu0 %v8654
      %8752 = vmatprep.subr.bf16.mxu0 0
      %8753 = vmatpush1.bf16.msra.mxu0 %v8655
      %8754 = vmatprep.subr.bf16.mxu0 0
      %8755 = vmatpush1.bf16.msra.mxu0 %v8656
      %8756 = vmatprep.subr.bf16.mxu0 0
      %8757 = vmatpush1.bf16.msra.mxu0 %v8657
      %8758 = vmatprep.subr.bf16.mxu0 0
      %8759 = vmatpush1.bf16.msra.mxu0 %v8658
      %8760 = vmatprep.subr.bf16.mxu0 0
      %8761 = vmatpush1.bf16.msra.mxu0 %v8659
      %8762 = vmatprep.subr.bf16.mxu0 0
      %8763 = vmatpush1.bf16.msra.mxu0 %v8660
      %8764 = vmatprep.subr.bf16.mxu0 0
      %8765 = vmatpush1.bf16.msra.mxu0 %v8661
      %8766 = vmatprep.subr.bf16.mxu0 0
      %8767 = vmatpush1.bf16.msra.mxu0 %v8662
      %8768 = vmatprep.subr.bf16.mxu0 0
      %8769 = vmatpush1.bf16.msra.mxu0 %v8663
      %8770 = vmatprep.subr.bf16.mxu0 0
      %8771 = vmatpush1.bf16.msra.mxu0 %v8664
      %8772 = vmatprep.subr.bf16.mxu0 0
      %8773 = vmatpush1.bf16.msra.mxu0 %v8665
      %8774 = vmatprep.subr.bf16.mxu0 0
      %8775 = vmatpush1.bf16.msra.mxu0 %v8666
      %8776 = vmatprep.subr.bf16.mxu0 0
      %8777 = vmatpush1.bf16.msra.mxu0 %v8667
      %8778 = vmatprep.subr.bf16.mxu0 0
      %8779 = vmatpush1.bf16.msra.mxu0 %v8668
      %8780 = vmatprep.subr.bf16.mxu0 0
      %8781 = vmatpush1.bf16.msra.mxu0 %v8707
      %8782 = vmatprep.mubr.bf16.mxu0 %v8703
      %8783 = vmatmul.mubr.bf16.gmra.mrb[0].mxu0 %v8440
      %v8784 = vpop.f32.mrb[0].mxu0
      %v8785 = vadd.f32 %v8744, %v8784
      %v8786 = vpop.f32.mrb[0].mxu0
      %v8787 = vpop.f32.mrb[0].mxu0
      %v8788 = vadd.f32 %v8747, %v8787
      %v8789 = vpop.f32.mrb[0].mxu0
      %8790 = vdwg.mxu0
      %8791 = vst [vmem:[%s443] sm:$0xff] %v8785
      %8792 = vst [vmem:[%s443 + $0x8] sm:$0xff] %v8788
      %s8793 = smul.u32 2, %s23
      %p8794 = scmp.lt.s32.totalorder %s8793, 3
      %s8795 = scalar_select %p8794, %s8793, 3
      %s8796 = smul.addr %s8795, 8
      %s8797 = scalar_lea.vmem %s12, %s8796
      // Predicated region
      $region69: #{lenet_forward.1} parent=67 // pred_check
        %p8798 = pneg %p303
      $region70: #{lenet_forward.1} parent=67 // pred_check_branch
        %8800 = sbr.rel (%p8798) target = $region72
      $region71: #{lenet_forward.1} parent=67 // pred_region
        %s8801 = smul.u32 2, %s23
      $region72: #{lenet_forward.1} parent=67 // pred_fallthru
        _
    $region68: #{lenet_forward.1} parent=5 // pred_fallthru
      _
    %p8802 = scmp.le.s32.totalorder 2, %s18
    // Predicated region
    $region73: #{lenet_forward.1} parent=5 // pred_check
      %p8803 = pneg %p8802
    $region74: #{lenet_forward.1} parent=5 // pred_check_branch
      %8805 = sbr.rel (%p8803) target = $region76
    $region75: #{lenet_forward.1} parent=5 // pred_region
      %s8806 = ssub.s32 %s18, 2
      // Predicated region
      $region77: #{lenet_forward.1} parent=75 // pred_check
        %p8807 = pneg %p309
      $region78: #{lenet_forward.1} parent=75 // pred_check_branch
        %8809 = sbr.rel (%p8807) target = $region80
      $region79: #{lenet_forward.1} parent=75 // pred_region
        %s8810 = smul.u32 2, %s24
        %p8811 = scmp.lt.s32.totalorder %s8810, 3
        %s8812 = scalar_select %p8811, %s8810, 3
        %s8813 = smul.addr %s8812, 8
        %s8814 = scalar_lea.vmem %s12, %s8813
      $region80: #{lenet_forward.1} parent=75 // pred_fallthru
        _
    $region76: #{lenet_forward.1} parent=5 // pred_fallthru
      _
  $region6: #{lenet_forward.1} parent=0 // loop_footer
    %s22 = sadd.s32 1, %s18
  $region7: #{lenet_forward.1} parent=0 // loop_footer_branch
    %17 = sbr.rel target = $region3
  $region8: #{lenet_forward.1} parent=0 // loop_exit
    _

</llo_original>
